<compile_context>
chip_gen: v6e
topology: v6e:2x2x1
jax: 0.10.0
libtpu: 0.0.40
codegen_flags: <defaults>
</compile_context>

<pallas_src>
import functools

import numpy as np

import jax
import jax.numpy as jnp
from jax.experimental import pallas as pl
from jax.experimental.pallas import tpu as pltpu


# ---------------------------------------------------------------------------
# The fused kernel: one grid step == one batch element, everything in VMEM.
# ---------------------------------------------------------------------------
def _enc_vae_kernel(x_ref, w1, b1, w2, b2, w3, b3, w4, b4,
                    s_ref, wpp_ref, bp_ref, wht_ref, bh_ref,
                    h_ref, mu_ref, sg_ref, *, stride, lan, out_dim):
    # 3x3 window offsets inside the flattened (stride x stride) spatial grid.
    offs = tuple(i * stride + j for i in range(3) for j in range(3))

    def conv(a_pad, w_r, b_r):
        # a_pad: (D*Cin, lan+128) bf16  -- rows = depth*channel, lanes = spatial
        # w_r  : (Do*Cout, 9*D*Cin) bf16 banded fused (conv taps + BN folded)
        # Build the 9 shifted spatial windows (static lane slices) and stack
        # them on the contraction (sublane) axis -> one deep-K matmul.
        q = jnp.concatenate([a_pad[:, o:o + lan] for o in offs], axis=0)
        y = jnp.dot(w_r[...], q, preferred_element_type=jnp.float32)
        return jnp.maximum(y + b_r[...], 0.0)            # bias + ReLU epilogue

    def repad(y):
        # back to bf16 and re-append the 128 padding lanes for the next layer
        yb = y.astype(jnp.bfloat16)
        pad = jnp.zeros((yb.shape[0], 128), jnp.bfloat16)
        return jnp.concatenate([yb, pad], axis=1)

    a = x_ref[0]                                          # (channel, lan+128) bf16
    a = repad(conv(a, w1, b1))                            # conv1: (80, lan+128)
    a = repad(conv(a, w2, b2))                            # conv2: (96, lan+128)
    a = repad(conv(a, w3, b3))                            # conv3: (128, lan+128)
    y4 = conv(a, w4, b4)                                  # conv4: (64, lan) f32

    # AdaptiveAvgPool2d((4,4)) on the 8x8 valid region == matmul with a
    # constant 0.25 selection matrix (also compacts the 16 pooled positions).
    pooled = jnp.dot(y4.astype(jnp.bfloat16), s_ref[...],
                     preferred_element_type=jnp.float32)  # (64, 16)
    h_ref[0] = pooled                                     # h output (pre-flatten)

    # projector Linear(1024,512)+ReLU on the VPU: contract channels (sublanes)
    # and pooled positions (lanes) via 16 column-broadcast MACs + one reduce.
    z = pooled[:, 0:1] * wpp_ref[0]
    for p in range(1, 16):
        z = z + pooled[:, p:p + 1] * wpp_ref[p]           # (64, 512) f32
    proj = jnp.sum(z, axis=0, keepdims=True) + bp_ref[...]
    proj = jnp.maximum(proj, 0.0)                         # (1, 512)

    # mu / log_sigma heads fused: y = [Wmu | Wls]^T @ proj  (VPU + lane reduce)
    yh = jnp.sum(wht_ref[...] * proj, axis=1, keepdims=True) + bh_ref[...]
    mu_ref[0] = yh[:out_dim]                              # (out_dim, 1)
    sg_ref[0] = jnp.exp(yh[out_dim:])                     # sigma = exp(log_sigma)


# ---------------------------------------------------------------------------
# Wrapper: one pallas_call for the whole forward pass.
# ---------------------------------------------------------------------------
def enc_vae_forward(x, params, *, patch_size=16, output_dim=8):
    # x: [B, 1, channel, H, W] (torch NCDHW with Cin=1)
    B, _, channel, H, W = x.shape
    P = patch_size
    lan = P * P
    xb = x.reshape(B, channel, lan).astype(jnp.bfloat16)
    xb = jnp.pad(xb, ((0, 0), (0, 0), (0, 128)))          # (B, channel, lan+128)

    def const_spec(a):
        nd = a.ndim
        return pl.BlockSpec(a.shape, lambda b, _n=nd: (0,) * _n)

    weights = (params["w1"], params["b1"], params["w2"], params["b2"],
               params["w3"], params["b3"], params["w4"], params["b4"],
               params["S"], params["wpp"], params["bp"],
               params["wht"], params["bh"])

    kernel = functools.partial(_enc_vae_kernel, stride=P, lan=lan,
                               out_dim=output_dim)
    h3, mu3, sg3 = pl.pallas_call(
        kernel,
        out_shape=(jax.ShapeDtypeStruct((B, 64, 16), jnp.float32),
                   jax.ShapeDtypeStruct((B, output_dim, 1), jnp.float32),
                   jax.ShapeDtypeStruct((B, output_dim, 1), jnp.float32)),
        grid=(B,),
        in_specs=[pl.BlockSpec((1, channel, lan + 128), lambda b: (b, 0, 0))]
                 + [const_spec(a) for a in weights],
        out_specs=(pl.BlockSpec((1, 64, 16), lambda b: (b, 0, 0)),
                   pl.BlockSpec((1, output_dim, 1), lambda b: (b, 0, 0)),
                   pl.BlockSpec((1, output_dim, 1), lambda b: (b, 0, 0))),
        compiler_params=pltpu.CompilerParams(
            dimension_semantics=("parallel",)),            # batch across cores (v7x)
    )(xb, *weights)

    h = h3.reshape(B, 64 * 16)                             # torch flatten order (c, py, px)
    return h, mu3.reshape(B, output_dim), sg3.reshape(B, output_dim)


# ---------------------------------------------------------------------------
# Parameters: synthetic init, BN folded, conv taps fused into banded weights.
# ---------------------------------------------------------------------------
def init_params(key, channel, output_dim, patch_size):
    assert patch_size == 16, "spatial lane layout assumes 16x16 patches"
    eps = 1e-5
    bn_scale = float(1.0 / np.sqrt(1.0 + eps))             # eval-mode BN fold
    ks = jax.random.split(key, 11)

    def rnd(k, shape, scale):
        return np.asarray(jax.random.normal(k, shape, jnp.float32)) * scale

    def conv_w(k, cout, cin, kd):
        fan_in = cin * kd * 9
        return rnd(k, (cout, cin, kd, 3, 3), (2.0 / fan_in) ** 0.5)

    def fuse(w, b, D):
        # w: (Cout, Cin, kd, 3, 3)  ->  banded fused weight (Do*Cout, 9*D*Cin)
        cout, cin, kd = w.shape[0], w.shape[1], w.shape[2]
        Do = D - kd + 1
        wf = np.zeros((Do, cout, 3, 3, D, cin), np.float32)
        for d in range(Do):
            for t in range(kd):
                wf[d, :, :, :, d + t, :] = np.transpose(w[:, :, t, :, :],
                                                        (0, 2, 3, 1))
        wf = wf.reshape(Do * cout, 9 * D * cin) * bn_scale
        bcol = np.tile(b, Do).reshape(Do * cout, 1) * bn_scale
        return jnp.asarray(wf, jnp.bfloat16), jnp.asarray(bcol, jnp.float32)

    D1 = channel            # 16
    D2 = D1 - 6             # after kd=7 -> 10
    D3 = D2 - 4             # after kd=5 -> 6
    D4 = D3 - 2             # after kd=3 -> 4  (= channel-12)
    c4_in = 32 * D4

    w1 = conv_w(ks[0], 8, 1, 7);   b1 = rnd(ks[7], (8,), 0.01)
    w2 = conv_w(ks[1], 16, 8, 5);  b2 = rnd(ks[8], (16,), 0.01)
    w3 = conv_w(ks[2], 32, 16, 3); b3 = rnd(ks[9], (32,), 0.01)
    # conv4 weight built in torch layout (in-channel index q = c*D4 + d from
    # torch's reshape), then permuted to this kernel's row order m = d*32 + c.
    w4t = rnd(ks[3], (64, c4_in, 3, 3), (2.0 / (c4_in * 9)) ** 0.5)
    b4 = rnd(ks[10], (64,), 0.01)
    m = np.arange(c4_in)
    w4m = w4t[:, (m % 32) * D4 + (m // 32), :, :]

    params = {}
    params["w1"], params["b1"] = fuse(w1, b1, D1)          # (80, 144)
    params["w2"], params["b2"] = fuse(w2, b2, D2)          # (96, 720)
    params["w3"], params["b3"] = fuse(w3, b3, D3)          # (128, 864)
    params["w4"], params["b4"] = fuse(w4m[:, :, None, :, :], b4, 1)  # (64, 1152)

    # AdaptiveAvgPool2d((4,4)) selection matrix for the 8x8 valid region.
    P = patch_size
    S = np.zeros((P * P, 16), np.float32)
    for py in range(4):
        for px in range(4):
            for dy in range(2):
                for dx in range(2):
                    S[(2 * py + dy) * P + (2 * px + dx), py * 4 + px] = 0.25
    params["S"] = jnp.asarray(S, jnp.bfloat16)

    wp = rnd(ks[4], (1024, 512), 0.01)                     # Linear(1024,512).weight.T
    params["wpp"] = jnp.asarray(wp.reshape(64, 16, 512).transpose(1, 0, 2),
                                jnp.bfloat16)              # (pool_pos, channel, 512)
    params["bp"] = jnp.zeros((1, 512), jnp.float32)
    wmu = rnd(ks[5], (512, output_dim), 0.01)
    wls = rnd(ks[6], (512, output_dim), 0.01)
    params["wht"] = jnp.asarray(np.concatenate([wmu, wls], axis=1).T,
                                jnp.float32)               # (2*out_dim, 512)
    params["bh"] = jnp.zeros((2 * output_dim, 1), jnp.float32)
    return params


# ---------------------------------------------------------------------------
if __name__ == "__main__":
    B, channel, patch_size, output_dim = 2, 16, 16, 8

    key = jax.random.PRNGKey(0)
    kx, kp = jax.random.split(key)
    x = jax.random.normal(kx, (B, 1, channel, patch_size, patch_size), jnp.float32)
    params = init_params(kp, channel, output_dim, patch_size)

    fwd = jax.jit(functools.partial(enc_vae_forward, patch_size=patch_size,
                                    output_dim=output_dim))
    h, mu, sigma = fwd(x, params)
    jax.block_until_ready((h, mu, sigma))

    assert h.shape == (B, 1024)
    assert mu.shape == (B, output_dim)
    assert sigma.shape == (B, output_dim)
    assert bool(jnp.all(jnp.isfinite(h)))
    assert bool(jnp.all(jnp.isfinite(mu)))
    assert bool(jnp.all(sigma > 0))
    print("KERNEL_OK")
</pallas_src>

<mosaic_0001>
module attributes {stable_mosaic.version = 11 : i64} {
  func.func @_enc_vae_kernel(%arg0: i32, %arg1: memref<1x16x384xbf16, #tpu.memory_space<vmem>>, %arg2: memref<80x144xbf16, #tpu.memory_space<vmem>>, %arg3: memref<80x1xf32, #tpu.memory_space<vmem>>, %arg4: memref<96x720xbf16, #tpu.memory_space<vmem>>, %arg5: memref<96x1xf32, #tpu.memory_space<vmem>>, %arg6: memref<128x864xbf16, #tpu.memory_space<vmem>>, %arg7: memref<128x1xf32, #tpu.memory_space<vmem>>, %arg8: memref<64x1152xbf16, #tpu.memory_space<vmem>>, %arg9: memref<64x1xf32, #tpu.memory_space<vmem>>, %arg10: memref<256x16xbf16, #tpu.memory_space<vmem>>, %arg11: memref<16x64x512xbf16, #tpu.memory_space<vmem>>, %arg12: memref<1x512xf32, #tpu.memory_space<vmem>>, %arg13: memref<16x512xf32, #tpu.memory_space<vmem>>, %arg14: memref<16x1xf32, #tpu.memory_space<vmem>>, %arg15: memref<1x64x16xf32, #tpu.memory_space<vmem>>, %arg16: memref<1x8x1xf32, #tpu.memory_space<vmem>>, %arg17: memref<1x8x1xf32, #tpu.memory_space<vmem>>) attributes {dimension_semantics = [#tpu.dimension_semantics<parallel>], iteration_bounds = array<i64: 2>, scalar_prefetch = 0 : i64, scratch_operands = 0 : i64, tpu.core_type = #tpu.core_type<tc>, window_params = [{transform_indices = @transform_0, window_bounds = array<i64: 1, 16, 384>}, {pipeline_mode = #tpu.pipeline_mode<synchronous>, transform_indices = @transform_1, window_bounds = array<i64: 80, 144>}, {pipeline_mode = #tpu.pipeline_mode<synchronous>, transform_indices = @transform_2, window_bounds = array<i64: 80, 1>}, {pipeline_mode = #tpu.pipeline_mode<synchronous>, transform_indices = @transform_3, window_bounds = array<i64: 96, 720>}, {pipeline_mode = #tpu.pipeline_mode<synchronous>, transform_indices = @transform_4, window_bounds = array<i64: 96, 1>}, {pipeline_mode = #tpu.pipeline_mode<synchronous>, transform_indices = @transform_5, window_bounds = array<i64: 128, 864>}, {pipeline_mode = #tpu.pipeline_mode<synchronous>, transform_indices = @transform_6, window_bounds = array<i64: 128, 1>}, {pipeline_mode = #tpu.pipeline_mode<synchronous>, transform_indices = @transform_7, window_bounds = array<i64: 64, 1152>}, {pipeline_mode = #tpu.pipeline_mode<synchronous>, transform_indices = @transform_8, window_bounds = array<i64: 64, 1>}, {pipeline_mode = #tpu.pipeline_mode<synchronous>, transform_indices = @transform_9, window_bounds = array<i64: 256, 16>}, {pipeline_mode = #tpu.pipeline_mode<synchronous>, transform_indices = @transform_10, window_bounds = array<i64: 16, 64, 512>}, {pipeline_mode = #tpu.pipeline_mode<synchronous>, transform_indices = @transform_11, window_bounds = array<i64: 1, 512>}, {pipeline_mode = #tpu.pipeline_mode<synchronous>, transform_indices = @transform_12, window_bounds = array<i64: 16, 512>}, {pipeline_mode = #tpu.pipeline_mode<synchronous>, transform_indices = @transform_13, window_bounds = array<i64: 16, 1>}, {transform_indices = @transform_14, window_bounds = array<i64: 1, 64, 16>}, {transform_indices = @transform_15, window_bounds = array<i64: 1, 8, 1>}, {transform_indices = @transform_16, window_bounds = array<i64: 1, 8, 1>}]} {
    %c0 = arith.constant 0 : index
    %c0_0 = arith.constant 0 : index
    %c0_1 = arith.constant 0 : index
    %0 = vector.load %arg1[%c0, %c0_0, %c0_1] : memref<1x16x384xbf16, #tpu.memory_space<vmem>>, vector<1x16x384xbf16>
    %1 = vector.shape_cast %0 : vector<1x16x384xbf16> to vector<16x384xbf16>
    %2 = vector.extract_strided_slice %1 {offsets = [0, 0], sizes = [16, 256], strides = [1, 1]} : vector<16x384xbf16> to vector<16x256xbf16>
    %3 = vector.extract_strided_slice %1 {offsets = [0, 1], sizes = [16, 256], strides = [1, 1]} : vector<16x384xbf16> to vector<16x256xbf16>
    %4 = vector.extract_strided_slice %1 {offsets = [0, 2], sizes = [16, 256], strides = [1, 1]} : vector<16x384xbf16> to vector<16x256xbf16>
    %5 = vector.extract_strided_slice %1 {offsets = [0, 16], sizes = [16, 256], strides = [1, 1]} : vector<16x384xbf16> to vector<16x256xbf16>
    %6 = vector.extract_strided_slice %1 {offsets = [0, 17], sizes = [16, 256], strides = [1, 1]} : vector<16x384xbf16> to vector<16x256xbf16>
    %7 = vector.extract_strided_slice %1 {offsets = [0, 18], sizes = [16, 256], strides = [1, 1]} : vector<16x384xbf16> to vector<16x256xbf16>
    %8 = vector.extract_strided_slice %1 {offsets = [0, 32], sizes = [16, 256], strides = [1, 1]} : vector<16x384xbf16> to vector<16x256xbf16>
    %9 = vector.extract_strided_slice %1 {offsets = [0, 33], sizes = [16, 256], strides = [1, 1]} : vector<16x384xbf16> to vector<16x256xbf16>
    %10 = vector.extract_strided_slice %1 {offsets = [0, 34], sizes = [16, 256], strides = [1, 1]} : vector<16x384xbf16> to vector<16x256xbf16>
    %11 = tpu.concatenate %2, %3, %4, %5, %6, %7, %8, %9, %10 in 0 : vector<16x256xbf16>, vector<16x256xbf16>, vector<16x256xbf16>, vector<16x256xbf16>, vector<16x256xbf16>, vector<16x256xbf16>, vector<16x256xbf16>, vector<16x256xbf16>, vector<16x256xbf16> -> vector<144x256xbf16>
    %c0_2 = arith.constant 0 : index
    %c0_3 = arith.constant 0 : index
    %12 = vector.load %arg2[%c0_2, %c0_3] : memref<80x144xbf16, #tpu.memory_space<vmem>>, vector<80x144xbf16>
    %cst = arith.constant dense<0.000000e+00> : vector<80x256xf32>
    %13 = tpu.matmul %12, %11, %cst {dimension_numbers = #tpu.dot_dimension_numbers<[1], [0], [0], [1], [0, 0, 1, 1], [], []>} : vector<80x144xbf16>, vector<144x256xbf16>, vector<80x256xf32> -> vector<80x256xf32>
    %c0_4 = arith.constant 0 : index
    %c0_5 = arith.constant 0 : index
    %14 = vector.load %arg3[%c0_4, %c0_5] : memref<80x1xf32, #tpu.memory_space<vmem>>, vector<80x1xf32>
    %15 = vector.broadcast %14 : vector<80x1xf32> to vector<80x256xf32>
    %16 = arith.addf %13, %15 : vector<80x256xf32>
    %cst_6 = arith.constant 0.000000e+00 : f32
    %17 = vector.broadcast %cst_6 : f32 to vector<80x256xf32>
    %18 = arith.maximumf %16, %17 : vector<80x256xf32>
    %19 = arith.truncf %18 : vector<80x256xf32> to vector<80x256xbf16>
    %cst_7 = arith.constant 0.000000e+00 : bf16
    %20 = vector.broadcast %cst_7 : bf16 to vector<80x128xbf16>
    %21 = tpu.concatenate %19, %20 in 1 : vector<80x256xbf16>, vector<80x128xbf16> -> vector<80x384xbf16>
    %22 = vector.extract_strided_slice %21 {offsets = [0, 0], sizes = [80, 256], strides = [1, 1]} : vector<80x384xbf16> to vector<80x256xbf16>
    %23 = vector.extract_strided_slice %21 {offsets = [0, 1], sizes = [80, 256], strides = [1, 1]} : vector<80x384xbf16> to vector<80x256xbf16>
    %24 = vector.extract_strided_slice %21 {offsets = [0, 2], sizes = [80, 256], strides = [1, 1]} : vector<80x384xbf16> to vector<80x256xbf16>
    %25 = vector.extract_strided_slice %21 {offsets = [0, 16], sizes = [80, 256], strides = [1, 1]} : vector<80x384xbf16> to vector<80x256xbf16>
    %26 = vector.extract_strided_slice %21 {offsets = [0, 17], sizes = [80, 256], strides = [1, 1]} : vector<80x384xbf16> to vector<80x256xbf16>
    %27 = vector.extract_strided_slice %21 {offsets = [0, 18], sizes = [80, 256], strides = [1, 1]} : vector<80x384xbf16> to vector<80x256xbf16>
    %28 = vector.extract_strided_slice %21 {offsets = [0, 32], sizes = [80, 256], strides = [1, 1]} : vector<80x384xbf16> to vector<80x256xbf16>
    %29 = vector.extract_strided_slice %21 {offsets = [0, 33], sizes = [80, 256], strides = [1, 1]} : vector<80x384xbf16> to vector<80x256xbf16>
    %30 = vector.extract_strided_slice %21 {offsets = [0, 34], sizes = [80, 256], strides = [1, 1]} : vector<80x384xbf16> to vector<80x256xbf16>
    %31 = tpu.concatenate %22, %23, %24, %25, %26, %27, %28, %29, %30 in 0 : vector<80x256xbf16>, vector<80x256xbf16>, vector<80x256xbf16>, vector<80x256xbf16>, vector<80x256xbf16>, vector<80x256xbf16>, vector<80x256xbf16>, vector<80x256xbf16>, vector<80x256xbf16> -> vector<720x256xbf16>
    %c0_8 = arith.constant 0 : index
    %c0_9 = arith.constant 0 : index
    %32 = vector.load %arg4[%c0_8, %c0_9] : memref<96x720xbf16, #tpu.memory_space<vmem>>, vector<96x720xbf16>
    %cst_10 = arith.constant dense<0.000000e+00> : vector<96x256xf32>
    %33 = tpu.matmul %32, %31, %cst_10 {dimension_numbers = #tpu.dot_dimension_numbers<[1], [0], [0], [1], [0, 0, 1, 1], [], []>} : vector<96x720xbf16>, vector<720x256xbf16>, vector<96x256xf32> -> vector<96x256xf32>
    %c0_11 = arith.constant 0 : index
    %c0_12 = arith.constant 0 : index
    %34 = vector.load %arg5[%c0_11, %c0_12] : memref<96x1xf32, #tpu.memory_space<vmem>>, vector<96x1xf32>
    %35 = vector.broadcast %34 : vector<96x1xf32> to vector<96x256xf32>
    %36 = arith.addf %33, %35 : vector<96x256xf32>
    %cst_13 = arith.constant 0.000000e+00 : f32
    %37 = vector.broadcast %cst_13 : f32 to vector<96x256xf32>
    %38 = arith.maximumf %36, %37 : vector<96x256xf32>
    %39 = arith.truncf %38 : vector<96x256xf32> to vector<96x256xbf16>
    %cst_14 = arith.constant 0.000000e+00 : bf16
    %40 = vector.broadcast %cst_14 : bf16 to vector<96x128xbf16>
    %41 = tpu.concatenate %39, %40 in 1 : vector<96x256xbf16>, vector<96x128xbf16> -> vector<96x384xbf16>
    %42 = vector.extract_strided_slice %41 {offsets = [0, 0], sizes = [96, 256], strides = [1, 1]} : vector<96x384xbf16> to vector<96x256xbf16>
    %43 = vector.extract_strided_slice %41 {offsets = [0, 1], sizes = [96, 256], strides = [1, 1]} : vector<96x384xbf16> to vector<96x256xbf16>
    %44 = vector.extract_strided_slice %41 {offsets = [0, 2], sizes = [96, 256], strides = [1, 1]} : vector<96x384xbf16> to vector<96x256xbf16>
    %45 = vector.extract_strided_slice %41 {offsets = [0, 16], sizes = [96, 256], strides = [1, 1]} : vector<96x384xbf16> to vector<96x256xbf16>
    %46 = vector.extract_strided_slice %41 {offsets = [0, 17], sizes = [96, 256], strides = [1, 1]} : vector<96x384xbf16> to vector<96x256xbf16>
    %47 = vector.extract_strided_slice %41 {offsets = [0, 18], sizes = [96, 256], strides = [1, 1]} : vector<96x384xbf16> to vector<96x256xbf16>
    %48 = vector.extract_strided_slice %41 {offsets = [0, 32], sizes = [96, 256], strides = [1, 1]} : vector<96x384xbf16> to vector<96x256xbf16>
    %49 = vector.extract_strided_slice %41 {offsets = [0, 33], sizes = [96, 256], strides = [1, 1]} : vector<96x384xbf16> to vector<96x256xbf16>
    %50 = vector.extract_strided_slice %41 {offsets = [0, 34], sizes = [96, 256], strides = [1, 1]} : vector<96x384xbf16> to vector<96x256xbf16>
    %51 = tpu.concatenate %42, %43, %44, %45, %46, %47, %48, %49, %50 in 0 : vector<96x256xbf16>, vector<96x256xbf16>, vector<96x256xbf16>, vector<96x256xbf16>, vector<96x256xbf16>, vector<96x256xbf16>, vector<96x256xbf16>, vector<96x256xbf16>, vector<96x256xbf16> -> vector<864x256xbf16>
    %c0_15 = arith.constant 0 : index
    %c0_16 = arith.constant 0 : index
    %52 = vector.load %arg6[%c0_15, %c0_16] : memref<128x864xbf16, #tpu.memory_space<vmem>>, vector<128x864xbf16>
    %cst_17 = arith.constant dense<0.000000e+00> : vector<128x256xf32>
    %53 = tpu.matmul %52, %51, %cst_17 {dimension_numbers = #tpu.dot_dimension_numbers<[1], [0], [0], [1], [0, 0, 1, 1], [], []>} : vector<128x864xbf16>, vector<864x256xbf16>, vector<128x256xf32> -> vector<128x256xf32>
    %c0_18 = arith.constant 0 : index
    %c0_19 = arith.constant 0 : index
    %54 = vector.load %arg7[%c0_18, %c0_19] : memref<128x1xf32, #tpu.memory_space<vmem>>, vector<128x1xf32>
    %55 = vector.broadcast %54 : vector<128x1xf32> to vector<128x256xf32>
    %56 = arith.addf %53, %55 : vector<128x256xf32>
    %cst_20 = arith.constant 0.000000e+00 : f32
    %57 = vector.broadcast %cst_20 : f32 to vector<128x256xf32>
    %58 = arith.maximumf %56, %57 : vector<128x256xf32>
    %59 = arith.truncf %58 : vector<128x256xf32> to vector<128x256xbf16>
    %cst_21 = arith.constant 0.000000e+00 : bf16
    %60 = vector.broadcast %cst_21 : bf16 to vector<128x128xbf16>
    %61 = tpu.concatenate %59, %60 in 1 : vector<128x256xbf16>, vector<128x128xbf16> -> vector<128x384xbf16>
    %62 = vector.extract_strided_slice %61 {offsets = [0, 0], sizes = [128, 256], strides = [1, 1]} : vector<128x384xbf16> to vector<128x256xbf16>
    %63 = vector.extract_strided_slice %61 {offsets = [0, 1], sizes = [128, 256], strides = [1, 1]} : vector<128x384xbf16> to vector<128x256xbf16>
    %64 = vector.extract_strided_slice %61 {offsets = [0, 2], sizes = [128, 256], strides = [1, 1]} : vector<128x384xbf16> to vector<128x256xbf16>
    %65 = vector.extract_strided_slice %61 {offsets = [0, 16], sizes = [128, 256], strides = [1, 1]} : vector<128x384xbf16> to vector<128x256xbf16>
    %66 = vector.extract_strided_slice %61 {offsets = [0, 17], sizes = [128, 256], strides = [1, 1]} : vector<128x384xbf16> to vector<128x256xbf16>
    %67 = vector.extract_strided_slice %61 {offsets = [0, 18], sizes = [128, 256], strides = [1, 1]} : vector<128x384xbf16> to vector<128x256xbf16>
    %68 = vector.extract_strided_slice %61 {offsets = [0, 32], sizes = [128, 256], strides = [1, 1]} : vector<128x384xbf16> to vector<128x256xbf16>
    %69 = vector.extract_strided_slice %61 {offsets = [0, 33], sizes = [128, 256], strides = [1, 1]} : vector<128x384xbf16> to vector<128x256xbf16>
    %70 = vector.extract_strided_slice %61 {offsets = [0, 34], sizes = [128, 256], strides = [1, 1]} : vector<128x384xbf16> to vector<128x256xbf16>
    %71 = tpu.concatenate %62, %63, %64, %65, %66, %67, %68, %69, %70 in 0 : vector<128x256xbf16>, vector<128x256xbf16>, vector<128x256xbf16>, vector<128x256xbf16>, vector<128x256xbf16>, vector<128x256xbf16>, vector<128x256xbf16>, vector<128x256xbf16>, vector<128x256xbf16> -> vector<1152x256xbf16>
    %c0_22 = arith.constant 0 : index
    %c0_23 = arith.constant 0 : index
    %72 = vector.load %arg8[%c0_22, %c0_23] : memref<64x1152xbf16, #tpu.memory_space<vmem>>, vector<64x1152xbf16>
    %cst_24 = arith.constant dense<0.000000e+00> : vector<64x256xf32>
    %73 = tpu.matmul %72, %71, %cst_24 {dimension_numbers = #tpu.dot_dimension_numbers<[1], [0], [0], [1], [0, 0, 1, 1], [], []>} : vector<64x1152xbf16>, vector<1152x256xbf16>, vector<64x256xf32> -> vector<64x256xf32>
    %c0_25 = arith.constant 0 : index
    %c0_26 = arith.constant 0 : index
    %74 = vector.load %arg9[%c0_25, %c0_26] : memref<64x1xf32, #tpu.memory_space<vmem>>, vector<64x1xf32>
    %75 = vector.broadcast %74 : vector<64x1xf32> to vector<64x256xf32>
    %76 = arith.addf %73, %75 : vector<64x256xf32>
    %cst_27 = arith.constant 0.000000e+00 : f32
    %77 = vector.broadcast %cst_27 : f32 to vector<64x256xf32>
    %78 = arith.maximumf %76, %77 : vector<64x256xf32>
    %79 = arith.truncf %78 : vector<64x256xf32> to vector<64x256xbf16>
    %c0_28 = arith.constant 0 : index
    %c0_29 = arith.constant 0 : index
    %80 = vector.load %arg10[%c0_28, %c0_29] : memref<256x16xbf16, #tpu.memory_space<vmem>>, vector<256x16xbf16>
    %cst_30 = arith.constant dense<0.000000e+00> : vector<64x16xf32>
    %81 = tpu.matmul %79, %80, %cst_30 {dimension_numbers = #tpu.dot_dimension_numbers<[1], [0], [0], [1], [0, 0, 1, 1], [], []>} : vector<64x256xbf16>, vector<256x16xbf16>, vector<64x16xf32> -> vector<64x16xf32>
    %c0_31 = arith.constant 0 : index
    %c0_32 = arith.constant 0 : index
    %c0_33 = arith.constant 0 : index
    %82 = vector.load %arg15[%c0_31, %c0_32, %c0_33] : memref<1x64x16xf32, #tpu.memory_space<vmem>>, vector<1x64x16xf32>
    %83 = vector.shape_cast %82 : vector<1x64x16xf32> to vector<64x16xf32>
    %84 = vector.shape_cast %81 : vector<64x16xf32> to vector<1x64x16xf32>
    tpu.vector_store %arg15[%c0_31, %c0_32, %c0_33], %84 {strides = array<i32>} : memref<1x64x16xf32, #tpu.memory_space<vmem>>, vector<1x64x16xf32>,
    %85 = vector.extract_strided_slice %81 {offsets = [0, 0], sizes = [64, 1], strides = [1, 1]} : vector<64x16xf32> to vector<64x1xf32>
    %c0_34 = arith.constant 0 : index
    %c0_35 = arith.constant 0 : index
    %c0_36 = arith.constant 0 : index
    %86 = vector.load %arg11[%c0_34, %c0_35, %c0_36] : memref<16x64x512xbf16, #tpu.memory_space<vmem>>, vector<1x64x512xbf16>
    %87 = vector.shape_cast %86 : vector<1x64x512xbf16> to vector<64x512xbf16>
    %88 = arith.extf %87 : vector<64x512xbf16> to vector<64x512xf32>
    %89 = vector.broadcast %85 : vector<64x1xf32> to vector<64x512xf32>
    %90 = arith.mulf %89, %88 : vector<64x512xf32>
    %91 = vector.extract_strided_slice %81 {offsets = [0, 1], sizes = [64, 1], strides = [1, 1]} : vector<64x16xf32> to vector<64x1xf32>
    %c1 = arith.constant 1 : index
    %c0_37 = arith.constant 0 : index
    %c0_38 = arith.constant 0 : index
    %92 = vector.load %arg11[%c1, %c0_37, %c0_38] : memref<16x64x512xbf16, #tpu.memory_space<vmem>>, vector<1x64x512xbf16>
    %93 = vector.shape_cast %92 : vector<1x64x512xbf16> to vector<64x512xbf16>
    %94 = arith.extf %93 : vector<64x512xbf16> to vector<64x512xf32>
    %95 = vector.broadcast %91 : vector<64x1xf32> to vector<64x512xf32>
    %96 = arith.mulf %95, %94 : vector<64x512xf32>
    %97 = arith.addf %90, %96 : vector<64x512xf32>
    %98 = vector.extract_strided_slice %81 {offsets = [0, 2], sizes = [64, 1], strides = [1, 1]} : vector<64x16xf32> to vector<64x1xf32>
    %c2 = arith.constant 2 : index
    %c0_39 = arith.constant 0 : index
    %c0_40 = arith.constant 0 : index
    %99 = vector.load %arg11[%c2, %c0_39, %c0_40] : memref<16x64x512xbf16, #tpu.memory_space<vmem>>, vector<1x64x512xbf16>
    %100 = vector.shape_cast %99 : vector<1x64x512xbf16> to vector<64x512xbf16>
    %101 = arith.extf %100 : vector<64x512xbf16> to vector<64x512xf32>
    %102 = vector.broadcast %98 : vector<64x1xf32> to vector<64x512xf32>
    %103 = arith.mulf %102, %101 : vector<64x512xf32>
    %104 = arith.addf %97, %103 : vector<64x512xf32>
    %105 = vector.extract_strided_slice %81 {offsets = [0, 3], sizes = [64, 1], strides = [1, 1]} : vector<64x16xf32> to vector<64x1xf32>
    %c3 = arith.constant 3 : index
    %c0_41 = arith.constant 0 : index
    %c0_42 = arith.constant 0 : index
    %106 = vector.load %arg11[%c3, %c0_41, %c0_42] : memref<16x64x512xbf16, #tpu.memory_space<vmem>>, vector<1x64x512xbf16>
    %107 = vector.shape_cast %106 : vector<1x64x512xbf16> to vector<64x512xbf16>
    %108 = arith.extf %107 : vector<64x512xbf16> to vector<64x512xf32>
    %109 = vector.broadcast %105 : vector<64x1xf32> to vector<64x512xf32>
    %110 = arith.mulf %109, %108 : vector<64x512xf32>
    %111 = arith.addf %104, %110 : vector<64x512xf32>
    %112 = vector.extract_strided_slice %81 {offsets = [0, 4], sizes = [64, 1], strides = [1, 1]} : vector<64x16xf32> to vector<64x1xf32>
    %c4 = arith.constant 4 : index
    %c0_43 = arith.constant 0 : index
    %c0_44 = arith.constant 0 : index
    %113 = vector.load %arg11[%c4, %c0_43, %c0_44] : memref<16x64x512xbf16, #tpu.memory_space<vmem>>, vector<1x64x512xbf16>
    %114 = vector.shape_cast %113 : vector<1x64x512xbf16> to vector<64x512xbf16>
    %115 = arith.extf %114 : vector<64x512xbf16> to vector<64x512xf32>
    %116 = vector.broadcast %112 : vector<64x1xf32> to vector<64x512xf32>
    %117 = arith.mulf %116, %115 : vector<64x512xf32>
    %118 = arith.addf %111, %117 : vector<64x512xf32>
    %119 = vector.extract_strided_slice %81 {offsets = [0, 5], sizes = [64, 1], strides = [1, 1]} : vector<64x16xf32> to vector<64x1xf32>
    %c5 = arith.constant 5 : index
    %c0_45 = arith.constant 0 : index
    %c0_46 = arith.constant 0 : index
    %120 = vector.load %arg11[%c5, %c0_45, %c0_46] : memref<16x64x512xbf16, #tpu.memory_space<vmem>>, vector<1x64x512xbf16>
    %121 = vector.shape_cast %120 : vector<1x64x512xbf16> to vector<64x512xbf16>
    %122 = arith.extf %121 : vector<64x512xbf16> to vector<64x512xf32>
    %123 = vector.broadcast %119 : vector<64x1xf32> to vector<64x512xf32>
    %124 = arith.mulf %123, %122 : vector<64x512xf32>
    %125 = arith.addf %118, %124 : vector<64x512xf32>
    %126 = vector.extract_strided_slice %81 {offsets = [0, 6], sizes = [64, 1], strides = [1, 1]} : vector<64x16xf32> to vector<64x1xf32>
    %c6 = arith.constant 6 : index
    %c0_47 = arith.constant 0 : index
    %c0_48 = arith.constant 0 : index
    %127 = vector.load %arg11[%c6, %c0_47, %c0_48] : memref<16x64x512xbf16, #tpu.memory_space<vmem>>, vector<1x64x512xbf16>
    %128 = vector.shape_cast %127 : vector<1x64x512xbf16> to vector<64x512xbf16>
    %129 = arith.extf %128 : vector<64x512xbf16> to vector<64x512xf32>
    %130 = vector.broadcast %126 : vector<64x1xf32> to vector<64x512xf32>
    %131 = arith.mulf %130, %129 : vector<64x512xf32>
    %132 = arith.addf %125, %131 : vector<64x512xf32>
    %133 = vector.extract_strided_slice %81 {offsets = [0, 7], sizes = [64, 1], strides = [1, 1]} : vector<64x16xf32> to vector<64x1xf32>
    %c7 = arith.constant 7 : index
    %c0_49 = arith.constant 0 : index
    %c0_50 = arith.constant 0 : index
    %134 = vector.load %arg11[%c7, %c0_49, %c0_50] : memref<16x64x512xbf16, #tpu.memory_space<vmem>>, vector<1x64x512xbf16>
    %135 = vector.shape_cast %134 : vector<1x64x512xbf16> to vector<64x512xbf16>
    %136 = arith.extf %135 : vector<64x512xbf16> to vector<64x512xf32>
    %137 = vector.broadcast %133 : vector<64x1xf32> to vector<64x512xf32>
    %138 = arith.mulf %137, %136 : vector<64x512xf32>
    %139 = arith.addf %132, %138 : vector<64x512xf32>
    %140 = vector.extract_strided_slice %81 {offsets = [0, 8], sizes = [64, 1], strides = [1, 1]} : vector<64x16xf32> to vector<64x1xf32>
    %c8 = arith.constant 8 : index
    %c0_51 = arith.constant 0 : index
    %c0_52 = arith.constant 0 : index
    %141 = vector.load %arg11[%c8, %c0_51, %c0_52] : memref<16x64x512xbf16, #tpu.memory_space<vmem>>, vector<1x64x512xbf16>
    %142 = vector.shape_cast %141 : vector<1x64x512xbf16> to vector<64x512xbf16>
    %143 = arith.extf %142 : vector<64x512xbf16> to vector<64x512xf32>
    %144 = vector.broadcast %140 : vector<64x1xf32> to vector<64x512xf32>
    %145 = arith.mulf %144, %143 : vector<64x512xf32>
    %146 = arith.addf %139, %145 : vector<64x512xf32>
    %147 = vector.extract_strided_slice %81 {offsets = [0, 9], sizes = [64, 1], strides = [1, 1]} : vector<64x16xf32> to vector<64x1xf32>
    %c9 = arith.constant 9 : index
    %c0_53 = arith.constant 0 : index
    %c0_54 = arith.constant 0 : index
    %148 = vector.load %arg11[%c9, %c0_53, %c0_54] : memref<16x64x512xbf16, #tpu.memory_space<vmem>>, vector<1x64x512xbf16>
    %149 = vector.shape_cast %148 : vector<1x64x512xbf16> to vector<64x512xbf16>
    %150 = arith.extf %149 : vector<64x512xbf16> to vector<64x512xf32>
    %151 = vector.broadcast %147 : vector<64x1xf32> to vector<64x512xf32>
    %152 = arith.mulf %151, %150 : vector<64x512xf32>
    %153 = arith.addf %146, %152 : vector<64x512xf32>
    %154 = vector.extract_strided_slice %81 {offsets = [0, 10], sizes = [64, 1], strides = [1, 1]} : vector<64x16xf32> to vector<64x1xf32>
    %c10 = arith.constant 10 : index
    %c0_55 = arith.constant 0 : index
    %c0_56 = arith.constant 0 : index
    %155 = vector.load %arg11[%c10, %c0_55, %c0_56] : memref<16x64x512xbf16, #tpu.memory_space<vmem>>, vector<1x64x512xbf16>
    %156 = vector.shape_cast %155 : vector<1x64x512xbf16> to vector<64x512xbf16>
    %157 = arith.extf %156 : vector<64x512xbf16> to vector<64x512xf32>
    %158 = vector.broadcast %154 : vector<64x1xf32> to vector<64x512xf32>
    %159 = arith.mulf %158, %157 : vector<64x512xf32>
    %160 = arith.addf %153, %159 : vector<64x512xf32>
    %161 = vector.extract_strided_slice %81 {offsets = [0, 11], sizes = [64, 1], strides = [1, 1]} : vector<64x16xf32> to vector<64x1xf32>
    %c11 = arith.constant 11 : index
    %c0_57 = arith.constant 0 : index
    %c0_58 = arith.constant 0 : index
    %162 = vector.load %arg11[%c11, %c0_57, %c0_58] : memref<16x64x512xbf16, #tpu.memory_space<vmem>>, vector<1x64x512xbf16>
    %163 = vector.shape_cast %162 : vector<1x64x512xbf16> to vector<64x512xbf16>
    %164 = arith.extf %163 : vector<64x512xbf16> to vector<64x512xf32>
    %165 = vector.broadcast %161 : vector<64x1xf32> to vector<64x512xf32>
    %166 = arith.mulf %165, %164 : vector<64x512xf32>
    %167 = arith.addf %160, %166 : vector<64x512xf32>
    %168 = vector.extract_strided_slice %81 {offsets = [0, 12], sizes = [64, 1], strides = [1, 1]} : vector<64x16xf32> to vector<64x1xf32>
    %c12 = arith.constant 12 : index
    %c0_59 = arith.constant 0 : index
    %c0_60 = arith.constant 0 : index
    %169 = vector.load %arg11[%c12, %c0_59, %c0_60] : memref<16x64x512xbf16, #tpu.memory_space<vmem>>, vector<1x64x512xbf16>
    %170 = vector.shape_cast %169 : vector<1x64x512xbf16> to vector<64x512xbf16>
    %171 = arith.extf %170 : vector<64x512xbf16> to vector<64x512xf32>
    %172 = vector.broadcast %168 : vector<64x1xf32> to vector<64x512xf32>
    %173 = arith.mulf %172, %171 : vector<64x512xf32>
    %174 = arith.addf %167, %173 : vector<64x512xf32>
    %175 = vector.extract_strided_slice %81 {offsets = [0, 13], sizes = [64, 1], strides = [1, 1]} : vector<64x16xf32> to vector<64x1xf32>
    %c13 = arith.constant 13 : index
    %c0_61 = arith.constant 0 : index
    %c0_62 = arith.constant 0 : index
    %176 = vector.load %arg11[%c13, %c0_61, %c0_62] : memref<16x64x512xbf16, #tpu.memory_space<vmem>>, vector<1x64x512xbf16>
    %177 = vector.shape_cast %176 : vector<1x64x512xbf16> to vector<64x512xbf16>
    %178 = arith.extf %177 : vector<64x512xbf16> to vector<64x512xf32>
    %179 = vector.broadcast %175 : vector<64x1xf32> to vector<64x512xf32>
    %180 = arith.mulf %179, %178 : vector<64x512xf32>
    %181 = arith.addf %174, %180 : vector<64x512xf32>
    %182 = vector.extract_strided_slice %81 {offsets = [0, 14], sizes = [64, 1], strides = [1, 1]} : vector<64x16xf32> to vector<64x1xf32>
    %c14 = arith.constant 14 : index
    %c0_63 = arith.constant 0 : index
    %c0_64 = arith.constant 0 : index
    %183 = vector.load %arg11[%c14, %c0_63, %c0_64] : memref<16x64x512xbf16, #tpu.memory_space<vmem>>, vector<1x64x512xbf16>
    %184 = vector.shape_cast %183 : vector<1x64x512xbf16> to vector<64x512xbf16>
    %185 = arith.extf %184 : vector<64x512xbf16> to vector<64x512xf32>
    %186 = vector.broadcast %182 : vector<64x1xf32> to vector<64x512xf32>
    %187 = arith.mulf %186, %185 : vector<64x512xf32>
    %188 = arith.addf %181, %187 : vector<64x512xf32>
    %189 = vector.extract_strided_slice %81 {offsets = [0, 15], sizes = [64, 1], strides = [1, 1]} : vector<64x16xf32> to vector<64x1xf32>
    %c15 = arith.constant 15 : index
    %c0_65 = arith.constant 0 : index
    %c0_66 = arith.constant 0 : index
    %190 = vector.load %arg11[%c15, %c0_65, %c0_66] : memref<16x64x512xbf16, #tpu.memory_space<vmem>>, vector<1x64x512xbf16>
    %191 = vector.shape_cast %190 : vector<1x64x512xbf16> to vector<64x512xbf16>
    %192 = arith.extf %191 : vector<64x512xbf16> to vector<64x512xf32>
    %193 = vector.broadcast %189 : vector<64x1xf32> to vector<64x512xf32>
    %194 = arith.mulf %193, %192 : vector<64x512xf32>
    %195 = arith.addf %188, %194 : vector<64x512xf32>
    %cst_67 = arith.constant dense<0.000000e+00> : vector<512xf32>
    %196 = vector.multi_reduction <add>, %195, %cst_67 [0] : vector<64x512xf32> to vector<512xf32>
    %197 = vector.shape_cast %196 : vector<512xf32> to vector<1x512xf32>
    %c0_68 = arith.constant 0 : index
    %c0_69 = arith.constant 0 : index
    %198 = vector.load %arg12[%c0_68, %c0_69] : memref<1x512xf32, #tpu.memory_space<vmem>>, vector<1x512xf32>
    %199 = arith.addf %197, %198 : vector<1x512xf32>
    %cst_70 = arith.constant 0.000000e+00 : f32
    %200 = vector.broadcast %cst_70 : f32 to vector<1x512xf32>
    %201 = arith.maximumf %199, %200 : vector<1x512xf32>
    %c0_71 = arith.constant 0 : index
    %c0_72 = arith.constant 0 : index
    %202 = vector.load %arg13[%c0_71, %c0_72] : memref<16x512xf32, #tpu.memory_space<vmem>>, vector<16x512xf32>
    %203 = vector.broadcast %201 : vector<1x512xf32> to vector<16x512xf32>
    %204 = arith.mulf %202, %203 : vector<16x512xf32>
    %cst_73 = arith.constant dense<0.000000e+00> : vector<16xf32>
    %205 = vector.multi_reduction <add>, %204, %cst_73 [1] : vector<16x512xf32> to vector<16xf32>
    %206 = vector.shape_cast %205 : vector<16xf32> to vector<16x1xf32>
    %c0_74 = arith.constant 0 : index
    %c0_75 = arith.constant 0 : index
    %207 = vector.load %arg14[%c0_74, %c0_75] : memref<16x1xf32, #tpu.memory_space<vmem>>, vector<16x1xf32>
    %208 = arith.addf %206, %207 : vector<16x1xf32>
    %209 = vector.extract_strided_slice %208 {offsets = [0, 0], sizes = [8, 1], strides = [1, 1]} : vector<16x1xf32> to vector<8x1xf32>
    %c0_76 = arith.constant 0 : index
    %c0_77 = arith.constant 0 : index
    %c0_78 = arith.constant 0 : index
    %210 = vector.load %arg16[%c0_76, %c0_77, %c0_78] : memref<1x8x1xf32, #tpu.memory_space<vmem>>, vector<1x8x1xf32>
    %211 = vector.shape_cast %210 : vector<1x8x1xf32> to vector<8x1xf32>
    %212 = vector.shape_cast %209 : vector<8x1xf32> to vector<1x8x1xf32>
    tpu.vector_store %arg16[%c0_76, %c0_77, %c0_78], %212 {strides = array<i32>} : memref<1x8x1xf32, #tpu.memory_space<vmem>>, vector<1x8x1xf32>,
    %213 = vector.extract_strided_slice %208 {offsets = [8, 0], sizes = [8, 1], strides = [1, 1]} : vector<16x1xf32> to vector<8x1xf32>
    %214 = math.exp %213 : vector<8x1xf32>
    %c0_79 = arith.constant 0 : index
    %c0_80 = arith.constant 0 : index
    %c0_81 = arith.constant 0 : index
    %215 = vector.load %arg17[%c0_79, %c0_80, %c0_81] : memref<1x8x1xf32, #tpu.memory_space<vmem>>, vector<1x8x1xf32>
    %216 = vector.shape_cast %215 : vector<1x8x1xf32> to vector<8x1xf32>
    %217 = vector.shape_cast %214 : vector<8x1xf32> to vector<1x8x1xf32>
    tpu.vector_store %arg17[%c0_79, %c0_80, %c0_81], %217 {strides = array<i32>} : memref<1x8x1xf32, #tpu.memory_space<vmem>>, vector<1x8x1xf32>,
    return
  }
  func.func @transform_0(%arg0: i32) -> (i32, i32, i32) {
    %c0_i32 = arith.constant 0 : i32
    %c0_i32_0 = arith.constant 0 : i32
    %c0_i32_1 = arith.constant 0 : i32
    return %arg0, %c0_i32, %c0_i32_0 : i32, i32, i32
  }
  func.func @transform_1(%arg0: i32) -> (i32, i32) {
    %c0_i32 = arith.constant 0 : i32
    %c0_i32_0 = arith.constant 0 : i32
    %c0_i32_1 = arith.constant 0 : i32
    return %c0_i32, %c0_i32_0 : i32, i32
  }
  func.func @transform_2(%arg0: i32) -> (i32, i32) {
    %c0_i32 = arith.constant 0 : i32
    %c0_i32_0 = arith.constant 0 : i32
    %c0_i32_1 = arith.constant 0 : i32
    return %c0_i32, %c0_i32_0 : i32, i32
  }
  func.func @transform_3(%arg0: i32) -> (i32, i32) {
    %c0_i32 = arith.constant 0 : i32
    %c0_i32_0 = arith.constant 0 : i32
    %c0_i32_1 = arith.constant 0 : i32
    return %c0_i32, %c0_i32_0 : i32, i32
  }
  func.func @transform_4(%arg0: i32) -> (i32, i32) {
    %c0_i32 = arith.constant 0 : i32
    %c0_i32_0 = arith.constant 0 : i32
    %c0_i32_1 = arith.constant 0 : i32
    return %c0_i32, %c0_i32_0 : i32, i32
  }
  func.func @transform_5(%arg0: i32) -> (i32, i32) {
    %c0_i32 = arith.constant 0 : i32
    %c0_i32_0 = arith.constant 0 : i32
    %c0_i32_1 = arith.constant 0 : i32
    return %c0_i32, %c0_i32_0 : i32, i32
  }
  func.func @transform_6(%arg0: i32) -> (i32, i32) {
    %c0_i32 = arith.constant 0 : i32
    %c0_i32_0 = arith.constant 0 : i32
    %c0_i32_1 = arith.constant 0 : i32
    return %c0_i32, %c0_i32_0 : i32, i32
  }
  func.func @transform_7(%arg0: i32) -> (i32, i32) {
    %c0_i32 = arith.constant 0 : i32
    %c0_i32_0 = arith.constant 0 : i32
    %c0_i32_1 = arith.constant 0 : i32
    return %c0_i32, %c0_i32_0 : i32, i32
  }
  func.func @transform_8(%arg0: i32) -> (i32, i32) {
    %c0_i32 = arith.constant 0 : i32
    %c0_i32_0 = arith.constant 0 : i32
    %c0_i32_1 = arith.constant 0 : i32
    return %c0_i32, %c0_i32_0 : i32, i32
  }
  func.func @transform_9(%arg0: i32) -> (i32, i32) {
    %c0_i32 = arith.constant 0 : i32
    %c0_i32_0 = arith.constant 0 : i32
    %c0_i32_1 = arith.constant 0 : i32
    return %c0_i32, %c0_i32_0 : i32, i32
  }
  func.func @transform_10(%arg0: i32) -> (i32, i32, i32) {
    %c0_i32 = arith.constant 0 : i32
    %c0_i32_0 = arith.constant 0 : i32
    %c0_i32_1 = arith.constant 0 : i32
    %c0_i32_2 = arith.constant 0 : i32
    return %c0_i32, %c0_i32_0, %c0_i32_1 : i32, i32, i32
  }
  func.func @transform_11(%arg0: i32) -> (i32, i32) {
    %c0_i32 = arith.constant 0 : i32
    %c0_i32_0 = arith.constant 0 : i32
    %c0_i32_1 = arith.constant 0 : i32
    return %c0_i32, %c0_i32_0 : i32, i32
  }
  func.func @transform_12(%arg0: i32) -> (i32, i32) {
    %c0_i32 = arith.constant 0 : i32
    %c0_i32_0 = arith.constant 0 : i32
    %c0_i32_1 = arith.constant 0 : i32
    return %c0_i32, %c0_i32_0 : i32, i32
  }
  func.func @transform_13(%arg0: i32) -> (i32, i32) {
    %c0_i32 = arith.constant 0 : i32
    %c0_i32_0 = arith.constant 0 : i32
    %c0_i32_1 = arith.constant 0 : i32
    return %c0_i32, %c0_i32_0 : i32, i32
  }
  func.func @transform_14(%arg0: i32) -> (i32, i32, i32) {
    %c0_i32 = arith.constant 0 : i32
    %c0_i32_0 = arith.constant 0 : i32
    %c0_i32_1 = arith.constant 0 : i32
    return %arg0, %c0_i32, %c0_i32_0 : i32, i32, i32
  }
  func.func @transform_15(%arg0: i32) -> (i32, i32, i32) {
    %c0_i32 = arith.constant 0 : i32
    %c0_i32_0 = arith.constant 0 : i32
    %c0_i32_1 = arith.constant 0 : i32
    return %arg0, %c0_i32, %c0_i32_0 : i32, i32, i32
  }
  func.func @transform_16(%arg0: i32) -> (i32, i32, i32) {
    %c0_i32 = arith.constant 0 : i32
    %c0_i32_0 = arith.constant 0 : i32
    %c0_i32_1 = arith.constant 0 : i32
    return %arg0, %c0_i32, %c0_i32_0 : i32, i32, i32
  }
}

</mosaic_0001>

<llo_original>
// kernel: enc_vae_forward.1
$region0: #{enc_vae_forward.1}
  #allocation0 [shape = 'u32[]', space=smem, size = 0x4, offset = 0x4, fixed_abs, tag = 'smem constant byte address 0x4 - core index']
  #allocation1 [shape = 'u32[144,128]{1,0:T(1,128)}', space=vmem, size = 0x12000, scoped, tag = 'internal scratch']
  %s0 = inlined_call_operand.vmem [shape: bf16[2,16,384], index: 0, kind: input, shape index: {}]
  %s1 = inlined_call_operand.vmem [shape: bf16[80,144], index: 1, kind: input, shape index: {}]
  %s2 = inlined_call_operand.vmem [shape: f32[80,1], index: 2, kind: input, shape index: {}]
  %s3 = inlined_call_operand.vmem [shape: bf16[96,720], index: 3, kind: input, shape index: {}]
  %s4 = inlined_call_operand.vmem [shape: f32[96,1], index: 4, kind: input, shape index: {}]
  %s5 = inlined_call_operand.vmem [shape: bf16[128,864], index: 5, kind: input, shape index: {}]
  %s6 = inlined_call_operand.vmem [shape: f32[128,1], index: 6, kind: input, shape index: {}]
  %s7 = inlined_call_operand.vmem [shape: bf16[64,1152], index: 7, kind: input, shape index: {}]
  %s8 = inlined_call_operand.vmem [shape: f32[64,1], index: 8, kind: input, shape index: {}]
  %s9 = inlined_call_operand.vmem [shape: bf16[256,16], index: 9, kind: input, shape index: {}]
  %s10 = inlined_call_operand.vmem [shape: bf16[16,64,512], index: 10, kind: input, shape index: {}]
  %s11 = inlined_call_operand.vmem [shape: f32[1,512], index: 11, kind: input, shape index: {}]
  %s12 = inlined_call_operand.vmem [shape: f32[16,512], index: 12, kind: input, shape index: {}]
  %s13 = inlined_call_operand.vmem [shape: f32[16,1], index: 13, kind: input, shape index: {}]
  %s14 = inlined_call_operand.vmem [shape: f32[2,64,16], index: 14, kind: output, shape index: {0}]
  %s15 = inlined_call_operand.vmem [shape: f32[2,8,1], index: 15, kind: output, shape index: {1}]
  %s16 = inlined_call_operand.vmem [shape: f32[2,8,1], index: 16, kind: output, shape index: {2}]
  %17 = xla_tuple %s14, %s15, %s16
  %s18 = sld [smem:[#allocation0]]
  $region105: #{enc_vae_forward.1} parent=0
    _
  %s20 = ssub.s32 1, %s18
  %s21 = scalar_select 0, %s20, %s18
  loop: start=0, step=1, limit=4
  $region2: #{enc_vae_forward.1} parent=0 // loop_pre_header
    _
  $region3: #{enc_vae_forward.1} parent=0 // loop_header
    %s23 = sphi 0, %s27
    %p24 = scmp.ge.s32.totalorder %s23, 4
    %s33 = sphi 0, %s35
    %s36 = sphi 0, %s33
    %s37 = sphi 0, %s36
    %s53 = sphi 0, %s37
    %s57 = sphi 0, %s57
    %s59 = sphi 0, %s57
    %s60 = sphi 0, %s59
    %s74 = sphi 0, %s60
    %s78 = sphi 0, %s78
    %s80 = sphi 0, %s78
    %s81 = sphi 0, %s80
    %s95 = sphi 0, %s81
    %s99 = sphi 0, %s99
    %s101 = sphi 0, %s99
    %s102 = sphi 0, %s101
    %s116 = sphi 0, %s102
    %s120 = sphi 0, %s120
    %s122 = sphi 0, %s120
    %s123 = sphi 0, %s122
    %s137 = sphi 0, %s123
    %s141 = sphi 0, %s141
    %s143 = sphi 0, %s141
    %s144 = sphi 0, %s143
    %s158 = sphi 0, %s144
    %s162 = sphi 0, %s162
    %s164 = sphi 0, %s162
    %s165 = sphi 0, %s164
    %s179 = sphi 0, %s165
    %s183 = sphi 0, %s183
    %s185 = sphi 0, %s183
    %s186 = sphi 0, %s185
    %s200 = sphi 0, %s186
    %s204 = sphi 0, %s204
    %s206 = sphi 0, %s204
    %s207 = sphi 0, %s206
    %s221 = sphi 0, %s207
    %s225 = sphi 0, %s225
    %s227 = sphi 0, %s225
    %s228 = sphi 0, %s227
    %s242 = sphi 0, %s228
    %s246 = sphi 0, %s246
    %s248 = sphi 0, %s246
    %s249 = sphi 0, %s248
    %s263 = sphi 0, %s249
    %s267 = sphi 0, %s267
    %s269 = sphi 0, %s267
    %s270 = sphi 0, %s269
    %s284 = sphi 0, %s270
    %s288 = sphi 0, %s288
    %s290 = sphi 0, %s288
    %s291 = sphi 0, %s290
    %s305 = sphi 0, %s291
    %s309 = sphi 0, %s309
    %s311 = sphi 0, %s309
    %s312 = sphi 0, %s311
    %s326 = sphi 0, %s312
    %s332 = sphi 0, %s334
    %s335 = sphi 0, %s332
    %s336 = sphi 0, %s335
    %s352 = sphi 0, %s336
    %s358 = sphi 0, %s360
    %s361 = sphi 0, %s358
    %s362 = sphi 0, %s361
    %s378 = sphi 0, %s362
    %s384 = sphi 0, %s386
    %s387 = sphi 0, %s384
    %s388 = sphi 0, %s387
    %s404 = sphi 0, %s388
  $region4: #{enc_vae_forward.1} parent=0 // loop_header_branch
    %26 = sbr.rel (%p24) target = $region8
  $region5: #{enc_vae_forward.1} parent=0 // loop_body
    %s28 = ssub.s32 %s23, 1
    %s29 = ssub.s32 %s23, 2
    %s30 = sadd.s32 %s23, 1
    %s31 = ssub.s32 %s23, %s30
    %p32 = scmp.eq.s32.totalorder %s31, 0
    %s34 = sadd.s32 %s33, 1
    %s35 = scalar_select %p32, %s33, %s34
    %p38 = pneg %p32
    %p39 = scmp.eq.s32.totalorder %s23, 1
    %p40 = por %p38, %p39
    %p41 = scmp.ne.s32.totalorder %s33, %s36
    %p42 = scmp.eq.s32.totalorder %s23, 0
    %p43 = por %p41, %p42
    %p44 = scmp.ne.s32.totalorder %s33, %s36
    %p45 = scmp.eq.s32.totalorder %s28, 1
    %p46 = por %p44, %p45
    %p47 = scmp.ne.s32.totalorder %s36, %s37
    %p48 = scmp.eq.s32.totalorder %s28, 0
    %p49 = por %p47, %p48
    %p50 = scmp.ne.s32.totalorder %s36, %s37
    %p51 = scmp.eq.s32.totalorder %s29, 1
    %p52 = por %p50, %p51
    %p54 = scmp.ne.s32.totalorder %s37, %s53
    %p55 = scmp.eq.s32.totalorder %s29, 0
    %p56 = por %p54, %p55
    %s58 = sadd.s32 %s57, 1
    %p61 = scmp.eq.s32.totalorder %s23, 1
    %p62 = scmp.ne.s32.totalorder %s57, %s59
    %p63 = scmp.eq.s32.totalorder %s23, 0
    %p64 = por %p62, %p63
    %p65 = scmp.ne.s32.totalorder %s57, %s59
    %p66 = scmp.eq.s32.totalorder %s28, 1
    %p67 = por %p65, %p66
    %p68 = scmp.ne.s32.totalorder %s59, %s60
    %p69 = scmp.eq.s32.totalorder %s28, 0
    %p70 = por %p68, %p69
    %p71 = scmp.ne.s32.totalorder %s59, %s60
    %p72 = scmp.eq.s32.totalorder %s29, 1
    %p73 = por %p71, %p72
    %p75 = scmp.ne.s32.totalorder %s60, %s74
    %p76 = scmp.eq.s32.totalorder %s29, 0
    %p77 = por %p75, %p76
    %s79 = sadd.s32 %s78, 1
    %p82 = scmp.eq.s32.totalorder %s23, 1
    %p83 = scmp.ne.s32.totalorder %s78, %s80
    %p84 = scmp.eq.s32.totalorder %s23, 0
    %p85 = por %p83, %p84
    %p86 = scmp.ne.s32.totalorder %s78, %s80
    %p87 = scmp.eq.s32.totalorder %s28, 1
    %p88 = por %p86, %p87
    %p89 = scmp.ne.s32.totalorder %s80, %s81
    %p90 = scmp.eq.s32.totalorder %s28, 0
    %p91 = por %p89, %p90
    %p92 = scmp.ne.s32.totalorder %s80, %s81
    %p93 = scmp.eq.s32.totalorder %s29, 1
    %p94 = por %p92, %p93
    %p96 = scmp.ne.s32.totalorder %s81, %s95
    %p97 = scmp.eq.s32.totalorder %s29, 0
    %p98 = por %p96, %p97
    %s100 = sadd.s32 %s99, 1
    %p103 = scmp.eq.s32.totalorder %s23, 1
    %p104 = scmp.ne.s32.totalorder %s99, %s101
    %p105 = scmp.eq.s32.totalorder %s23, 0
    %p106 = por %p104, %p105
    %p107 = scmp.ne.s32.totalorder %s99, %s101
    %p108 = scmp.eq.s32.totalorder %s28, 1
    %p109 = por %p107, %p108
    %p110 = scmp.ne.s32.totalorder %s101, %s102
    %p111 = scmp.eq.s32.totalorder %s28, 0
    %p112 = por %p110, %p111
    %p113 = scmp.ne.s32.totalorder %s101, %s102
    %p114 = scmp.eq.s32.totalorder %s29, 1
    %p115 = por %p113, %p114
    %p117 = scmp.ne.s32.totalorder %s102, %s116
    %p118 = scmp.eq.s32.totalorder %s29, 0
    %p119 = por %p117, %p118
    %s121 = sadd.s32 %s120, 1
    %p124 = scmp.eq.s32.totalorder %s23, 1
    %p125 = scmp.ne.s32.totalorder %s120, %s122
    %p126 = scmp.eq.s32.totalorder %s23, 0
    %p127 = por %p125, %p126
    %p128 = scmp.ne.s32.totalorder %s120, %s122
    %p129 = scmp.eq.s32.totalorder %s28, 1
    %p130 = por %p128, %p129
    %p131 = scmp.ne.s32.totalorder %s122, %s123
    %p132 = scmp.eq.s32.totalorder %s28, 0
    %p133 = por %p131, %p132
    %p134 = scmp.ne.s32.totalorder %s122, %s123
    %p135 = scmp.eq.s32.totalorder %s29, 1
    %p136 = por %p134, %p135
    %p138 = scmp.ne.s32.totalorder %s123, %s137
    %p139 = scmp.eq.s32.totalorder %s29, 0
    %p140 = por %p138, %p139
    %s142 = sadd.s32 %s141, 1
    %p145 = scmp.eq.s32.totalorder %s23, 1
    %p146 = scmp.ne.s32.totalorder %s141, %s143
    %p147 = scmp.eq.s32.totalorder %s23, 0
    %p148 = por %p146, %p147
    %p149 = scmp.ne.s32.totalorder %s141, %s143
    %p150 = scmp.eq.s32.totalorder %s28, 1
    %p151 = por %p149, %p150
    %p152 = scmp.ne.s32.totalorder %s143, %s144
    %p153 = scmp.eq.s32.totalorder %s28, 0
    %p154 = por %p152, %p153
    %p155 = scmp.ne.s32.totalorder %s143, %s144
    %p156 = scmp.eq.s32.totalorder %s29, 1
    %p157 = por %p155, %p156
    %p159 = scmp.ne.s32.totalorder %s144, %s158
    %p160 = scmp.eq.s32.totalorder %s29, 0
    %p161 = por %p159, %p160
    %s163 = sadd.s32 %s162, 1
    %p166 = scmp.eq.s32.totalorder %s23, 1
    %p167 = scmp.ne.s32.totalorder %s162, %s164
    %p168 = scmp.eq.s32.totalorder %s23, 0
    %p169 = por %p167, %p168
    %p170 = scmp.ne.s32.totalorder %s162, %s164
    %p171 = scmp.eq.s32.totalorder %s28, 1
    %p172 = por %p170, %p171
    %p173 = scmp.ne.s32.totalorder %s164, %s165
    %p174 = scmp.eq.s32.totalorder %s28, 0
    %p175 = por %p173, %p174
    %p176 = scmp.ne.s32.totalorder %s164, %s165
    %p177 = scmp.eq.s32.totalorder %s29, 1
    %p178 = por %p176, %p177
    %p180 = scmp.ne.s32.totalorder %s165, %s179
    %p181 = scmp.eq.s32.totalorder %s29, 0
    %p182 = por %p180, %p181
    %s184 = sadd.s32 %s183, 1
    %p187 = scmp.eq.s32.totalorder %s23, 1
    %p188 = scmp.ne.s32.totalorder %s183, %s185
    %p189 = scmp.eq.s32.totalorder %s23, 0
    %p190 = por %p188, %p189
    %p191 = scmp.ne.s32.totalorder %s183, %s185
    %p192 = scmp.eq.s32.totalorder %s28, 1
    %p193 = por %p191, %p192
    %p194 = scmp.ne.s32.totalorder %s185, %s186
    %p195 = scmp.eq.s32.totalorder %s28, 0
    %p196 = por %p194, %p195
    %p197 = scmp.ne.s32.totalorder %s185, %s186
    %p198 = scmp.eq.s32.totalorder %s29, 1
    %p199 = por %p197, %p198
    %p201 = scmp.ne.s32.totalorder %s186, %s200
    %p202 = scmp.eq.s32.totalorder %s29, 0
    %p203 = por %p201, %p202
    %s205 = sadd.s32 %s204, 1
    %p208 = scmp.eq.s32.totalorder %s23, 1
    %p209 = scmp.ne.s32.totalorder %s204, %s206
    %p210 = scmp.eq.s32.totalorder %s23, 0
    %p211 = por %p209, %p210
    %p212 = scmp.ne.s32.totalorder %s204, %s206
    %p213 = scmp.eq.s32.totalorder %s28, 1
    %p214 = por %p212, %p213
    %p215 = scmp.ne.s32.totalorder %s206, %s207
    %p216 = scmp.eq.s32.totalorder %s28, 0
    %p217 = por %p215, %p216
    %p218 = scmp.ne.s32.totalorder %s206, %s207
    %p219 = scmp.eq.s32.totalorder %s29, 1
    %p220 = por %p218, %p219
    %p222 = scmp.ne.s32.totalorder %s207, %s221
    %p223 = scmp.eq.s32.totalorder %s29, 0
    %p224 = por %p222, %p223
    %s226 = sadd.s32 %s225, 1
    %p229 = scmp.eq.s32.totalorder %s23, 1
    %p230 = scmp.ne.s32.totalorder %s225, %s227
    %p231 = scmp.eq.s32.totalorder %s23, 0
    %p232 = por %p230, %p231
    %p233 = scmp.ne.s32.totalorder %s225, %s227
    %p234 = scmp.eq.s32.totalorder %s28, 1
    %p235 = por %p233, %p234
    %p236 = scmp.ne.s32.totalorder %s227, %s228
    %p237 = scmp.eq.s32.totalorder %s28, 0
    %p238 = por %p236, %p237
    %p239 = scmp.ne.s32.totalorder %s227, %s228
    %p240 = scmp.eq.s32.totalorder %s29, 1
    %p241 = por %p239, %p240
    %p243 = scmp.ne.s32.totalorder %s228, %s242
    %p244 = scmp.eq.s32.totalorder %s29, 0
    %p245 = por %p243, %p244
    %s247 = sadd.s32 %s246, 1
    %p250 = scmp.eq.s32.totalorder %s23, 1
    %p251 = scmp.ne.s32.totalorder %s246, %s248
    %p252 = scmp.eq.s32.totalorder %s23, 0
    %p253 = por %p251, %p252
    %p254 = scmp.ne.s32.totalorder %s246, %s248
    %p255 = scmp.eq.s32.totalorder %s28, 1
    %p256 = por %p254, %p255
    %p257 = scmp.ne.s32.totalorder %s248, %s249
    %p258 = scmp.eq.s32.totalorder %s28, 0
    %p259 = por %p257, %p258
    %p260 = scmp.ne.s32.totalorder %s248, %s249
    %p261 = scmp.eq.s32.totalorder %s29, 1
    %p262 = por %p260, %p261
    %p264 = scmp.ne.s32.totalorder %s249, %s263
    %p265 = scmp.eq.s32.totalorder %s29, 0
    %p266 = por %p264, %p265
    %s268 = sadd.s32 %s267, 1
    %p271 = scmp.eq.s32.totalorder %s23, 1
    %p272 = scmp.ne.s32.totalorder %s267, %s269
    %p273 = scmp.eq.s32.totalorder %s23, 0
    %p274 = por %p272, %p273
    %p275 = scmp.ne.s32.totalorder %s267, %s269
    %p276 = scmp.eq.s32.totalorder %s28, 1
    %p277 = por %p275, %p276
    %p278 = scmp.ne.s32.totalorder %s269, %s270
    %p279 = scmp.eq.s32.totalorder %s28, 0
    %p280 = por %p278, %p279
    %p281 = scmp.ne.s32.totalorder %s269, %s270
    %p282 = scmp.eq.s32.totalorder %s29, 1
    %p283 = por %p281, %p282
    %p285 = scmp.ne.s32.totalorder %s270, %s284
    %p286 = scmp.eq.s32.totalorder %s29, 0
    %p287 = por %p285, %p286
    %s289 = sadd.s32 %s288, 1
    %p292 = scmp.eq.s32.totalorder %s23, 1
    %p293 = scmp.ne.s32.totalorder %s288, %s290
    %p294 = scmp.eq.s32.totalorder %s23, 0
    %p295 = por %p293, %p294
    %p296 = scmp.ne.s32.totalorder %s288, %s290
    %p297 = scmp.eq.s32.totalorder %s28, 1
    %p298 = por %p296, %p297
    %p299 = scmp.ne.s32.totalorder %s290, %s291
    %p300 = scmp.eq.s32.totalorder %s28, 0
    %p301 = por %p299, %p300
    %p302 = scmp.ne.s32.totalorder %s290, %s291
    %p303 = scmp.eq.s32.totalorder %s29, 1
    %p304 = por %p302, %p303
    %p306 = scmp.ne.s32.totalorder %s291, %s305
    %p307 = scmp.eq.s32.totalorder %s29, 0
    %p308 = por %p306, %p307
    %s310 = sadd.s32 %s309, 1
    %p313 = scmp.eq.s32.totalorder %s23, 1
    %p314 = scmp.ne.s32.totalorder %s309, %s311
    %p315 = scmp.eq.s32.totalorder %s23, 0
    %p316 = por %p314, %p315
    %p317 = scmp.ne.s32.totalorder %s309, %s311
    %p318 = scmp.eq.s32.totalorder %s28, 1
    %p319 = por %p317, %p318
    %p320 = scmp.ne.s32.totalorder %s311, %s312
    %p321 = scmp.eq.s32.totalorder %s28, 0
    %p322 = por %p320, %p321
    %p323 = scmp.ne.s32.totalorder %s311, %s312
    %p324 = scmp.eq.s32.totalorder %s29, 1
    %p325 = por %p323, %p324
    %p327 = scmp.ne.s32.totalorder %s312, %s326
    %p328 = scmp.eq.s32.totalorder %s29, 0
    %p329 = por %p327, %p328
    %s330 = ssub.s32 %s23, %s30
    %p331 = scmp.eq.s32.totalorder %s330, 0
    %s333 = sadd.s32 %s332, 1
    %s334 = scalar_select %p331, %s332, %s333
    %p337 = pneg %p331
    %p338 = scmp.eq.s32.totalorder %s23, 1
    %p339 = por %p337, %p338
    %p340 = scmp.ne.s32.totalorder %s332, %s335
    %p341 = scmp.eq.s32.totalorder %s23, 0
    %p342 = por %p340, %p341
    %p343 = scmp.ne.s32.totalorder %s332, %s335
    %p344 = scmp.eq.s32.totalorder %s28, 1
    %p345 = por %p343, %p344
    %p346 = scmp.ne.s32.totalorder %s335, %s336
    %p347 = scmp.eq.s32.totalorder %s28, 0
    %p348 = por %p346, %p347
    %p349 = scmp.ne.s32.totalorder %s335, %s336
    %p350 = scmp.eq.s32.totalorder %s29, 1
    %p351 = por %p349, %p350
    %p353 = scmp.ne.s32.totalorder %s336, %s352
    %p354 = scmp.eq.s32.totalorder %s29, 0
    %p355 = por %p353, %p354
    %s356 = ssub.s32 %s23, %s30
    %p357 = scmp.eq.s32.totalorder %s356, 0
    %s359 = sadd.s32 %s358, 1
    %s360 = scalar_select %p357, %s358, %s359
    %p363 = pneg %p357
    %p364 = scmp.eq.s32.totalorder %s23, 1
    %p365 = por %p363, %p364
    %p366 = scmp.ne.s32.totalorder %s358, %s361
    %p367 = scmp.eq.s32.totalorder %s23, 0
    %p368 = por %p366, %p367
    %p369 = scmp.ne.s32.totalorder %s358, %s361
    %p370 = scmp.eq.s32.totalorder %s28, 1
    %p371 = por %p369, %p370
    %p372 = scmp.ne.s32.totalorder %s361, %s362
    %p373 = scmp.eq.s32.totalorder %s28, 0
    %p374 = por %p372, %p373
    %p375 = scmp.ne.s32.totalorder %s361, %s362
    %p376 = scmp.eq.s32.totalorder %s29, 1
    %p377 = por %p375, %p376
    %p379 = scmp.ne.s32.totalorder %s362, %s378
    %p380 = scmp.eq.s32.totalorder %s29, 0
    %p381 = por %p379, %p380
    %s382 = ssub.s32 %s23, %s30
    %p383 = scmp.eq.s32.totalorder %s382, 0
    %s385 = sadd.s32 %s384, 1
    %s386 = scalar_select %p383, %s384, %s385
    %p389 = pneg %p383
    %p390 = scmp.eq.s32.totalorder %s23, 1
    %p391 = por %p389, %p390
    %p392 = scmp.ne.s32.totalorder %s384, %s387
    %p393 = scmp.eq.s32.totalorder %s23, 0
    %p394 = por %p392, %p393
    %p395 = scmp.ne.s32.totalorder %s384, %s387
    %p396 = scmp.eq.s32.totalorder %s28, 1
    %p397 = por %p395, %p396
    %p398 = scmp.ne.s32.totalorder %s387, %s388
    %p399 = scmp.eq.s32.totalorder %s28, 0
    %p400 = por %p398, %p399
    %p401 = scmp.ne.s32.totalorder %s387, %s388
    %p402 = scmp.eq.s32.totalorder %s29, 1
    %p403 = por %p401, %p402
    %p405 = scmp.ne.s32.totalorder %s388, %s404
    %p406 = scmp.eq.s32.totalorder %s29, 0
    %p407 = por %p405, %p406
    %p408 = scmp.le.s32.totalorder 1, %s23
    %p409 = scmp.lt.s32.totalorder %s23, 3
    %p410 = pnand %p408, %p409
    %p411 = pneg %p410
    // Predicated region
    $region9: #{enc_vae_forward.1} parent=5 // pred_check
      _
    $region10: #{enc_vae_forward.1} parent=5 // pred_check_branch
      %413 = sbr.rel (%p410) target = $region12
    $region11: #{enc_vae_forward.1} parent=5 // pred_region
      %s414 = ssub.s32 %s23, 1
      // Predicated region
      $region13: #{enc_vae_forward.1} parent=11 // pred_check
        %p415 = pneg %p70
      $region14: #{enc_vae_forward.1} parent=11 // pred_check_branch
        %417 = sbr.rel (%p415) target = $region16
      $region15: #{enc_vae_forward.1} parent=11 // pred_region
        _
      $region16: #{enc_vae_forward.1} parent=11 // pred_fallthru
        _
      // Predicated region
      $region17: #{enc_vae_forward.1} parent=11 // pred_check
        %p418 = pneg %p91
      $region18: #{enc_vae_forward.1} parent=11 // pred_check_branch
        %420 = sbr.rel (%p418) target = $region20
      $region19: #{enc_vae_forward.1} parent=11 // pred_region
        _
      $region20: #{enc_vae_forward.1} parent=11 // pred_fallthru
        _
      // Predicated region
      $region21: #{enc_vae_forward.1} parent=11 // pred_check
        %p421 = pneg %p112
      $region22: #{enc_vae_forward.1} parent=11 // pred_check_branch
        %423 = sbr.rel (%p421) target = $region24
      $region23: #{enc_vae_forward.1} parent=11 // pred_region
        _
      $region24: #{enc_vae_forward.1} parent=11 // pred_fallthru
        _
      // Predicated region
      $region25: #{enc_vae_forward.1} parent=11 // pred_check
        %p424 = pneg %p133
      $region26: #{enc_vae_forward.1} parent=11 // pred_check_branch
        %426 = sbr.rel (%p424) target = $region28
      $region27: #{enc_vae_forward.1} parent=11 // pred_region
        _
      $region28: #{enc_vae_forward.1} parent=11 // pred_fallthru
        _
      // Predicated region
      $region29: #{enc_vae_forward.1} parent=11 // pred_check
        %p427 = pneg %p154
      $region30: #{enc_vae_forward.1} parent=11 // pred_check_branch
        %429 = sbr.rel (%p427) target = $region32
      $region31: #{enc_vae_forward.1} parent=11 // pred_region
        _
      $region32: #{enc_vae_forward.1} parent=11 // pred_fallthru
        _
      // Predicated region
      $region33: #{enc_vae_forward.1} parent=11 // pred_check
        %p430 = pneg %p175
      $region34: #{enc_vae_forward.1} parent=11 // pred_check_branch
        %432 = sbr.rel (%p430) target = $region36
      $region35: #{enc_vae_forward.1} parent=11 // pred_region
        _
      $region36: #{enc_vae_forward.1} parent=11 // pred_fallthru
        _
      // Predicated region
      $region37: #{enc_vae_forward.1} parent=11 // pred_check
        %p433 = pneg %p196
      $region38: #{enc_vae_forward.1} parent=11 // pred_check_branch
        %435 = sbr.rel (%p433) target = $region40
      $region39: #{enc_vae_forward.1} parent=11 // pred_region
        _
      $region40: #{enc_vae_forward.1} parent=11 // pred_fallthru
        _
      // Predicated region
      $region41: #{enc_vae_forward.1} parent=11 // pred_check
        %p436 = pneg %p217
      $region42: #{enc_vae_forward.1} parent=11 // pred_check_branch
        %438 = sbr.rel (%p436) target = $region44
      $region43: #{enc_vae_forward.1} parent=11 // pred_region
        _
      $region44: #{enc_vae_forward.1} parent=11 // pred_fallthru
        _
      // Predicated region
      $region45: #{enc_vae_forward.1} parent=11 // pred_check
        %p439 = pneg %p238
      $region46: #{enc_vae_forward.1} parent=11 // pred_check_branch
        %441 = sbr.rel (%p439) target = $region48
      $region47: #{enc_vae_forward.1} parent=11 // pred_region
        _
      $region48: #{enc_vae_forward.1} parent=11 // pred_fallthru
        _
      // Predicated region
      $region49: #{enc_vae_forward.1} parent=11 // pred_check
        %p442 = pneg %p259
      $region50: #{enc_vae_forward.1} parent=11 // pred_check_branch
        %444 = sbr.rel (%p442) target = $region52
      $region51: #{enc_vae_forward.1} parent=11 // pred_region
        _
      $region52: #{enc_vae_forward.1} parent=11 // pred_fallthru
        _
      // Predicated region
      $region53: #{enc_vae_forward.1} parent=11 // pred_check
        %p445 = pneg %p280
      $region54: #{enc_vae_forward.1} parent=11 // pred_check_branch
        %447 = sbr.rel (%p445) target = $region56
      $region55: #{enc_vae_forward.1} parent=11 // pred_region
        _
      $region56: #{enc_vae_forward.1} parent=11 // pred_fallthru
        _
      // Predicated region
      $region57: #{enc_vae_forward.1} parent=11 // pred_check
        %p448 = pneg %p301
      $region58: #{enc_vae_forward.1} parent=11 // pred_check_branch
        %450 = sbr.rel (%p448) target = $region60
      $region59: #{enc_vae_forward.1} parent=11 // pred_region
        _
      $region60: #{enc_vae_forward.1} parent=11 // pred_fallthru
        _
      // Predicated region
      $region61: #{enc_vae_forward.1} parent=11 // pred_check
        %p451 = pneg %p322
      $region62: #{enc_vae_forward.1} parent=11 // pred_check_branch
        %453 = sbr.rel (%p451) target = $region64
      $region63: #{enc_vae_forward.1} parent=11 // pred_region
        _
      $region64: #{enc_vae_forward.1} parent=11 // pred_fallthru
        _
    $region12: #{enc_vae_forward.1} parent=5 // pred_fallthru
      _
    %p454 = scmp.lt.s32.totalorder %s23, 2
    // Predicated region
    $region65: #{enc_vae_forward.1} parent=5 // pred_check
      %p455 = pneg %p454
    $region66: #{enc_vae_forward.1} parent=5 // pred_check_branch
      %457 = sbr.rel (%p455) target = $region68
    $region67: #{enc_vae_forward.1} parent=5 // pred_region
      // Predicated region
      $region69: #{enc_vae_forward.1} parent=67 // pred_check
        %p458 = pneg %p43
      $region70: #{enc_vae_forward.1} parent=67 // pred_check_branch
        %460 = sbr.rel (%p458) target = $region72
      $region71: #{enc_vae_forward.1} parent=67 // pred_region
        %p461 = scmp.lt.s32.totalorder %s23, 1
        %s462 = scalar_select %p461, %s23, 1
        %s463 = smul.addr %s462, 6
        %s464 = smul.addr %s463, 4
        %s465 = scalar_lea.vmem %s0, %s464
      $region72: #{enc_vae_forward.1} parent=67 // pred_fallthru
        _
    $region68: #{enc_vae_forward.1} parent=5 // pred_fallthru
      _
    %p466 = scmp.le.s32.totalorder 1, %s23
    %p467 = scmp.lt.s32.totalorder %s23, 3
    %p468 = pnand %p466, %p467
    %p469 = pneg %p468
    // Predicated region
    $region73: #{enc_vae_forward.1} parent=5 // pred_check
      _
    $region74: #{enc_vae_forward.1} parent=5 // pred_check_branch
      %471 = sbr.rel (%p468) target = $region76
    $region75: #{enc_vae_forward.1} parent=5 // pred_region
      %s472 = ssub.s32 %s23, 1
      %p473 = scmp.lt.s32.totalorder %s28, 1
      %s474 = scalar_select %p473, %s28, 1
      %s475 = smul.addr %s474, 6
      %s476 = smul.addr %s475, 4
      %s477 = scalar_lea.vmem %s0, %s476
      %p478 = pneg %p49
      %p479 = pneg %p46
      %p480 = pneg %p70
      %p481 = pneg %p67
      %p482 = pneg %p91
      %p483 = pneg %p88
      %p484 = pneg %p112
      %p485 = pneg %p109
      %p486 = pneg %p133
      %p487 = pneg %p130
      %p488 = pneg %p154
      %p489 = pneg %p151
      %p490 = pneg %p175
      %p491 = pneg %p172
      %p492 = pneg %p196
      %p493 = pneg %p193
      %p494 = pneg %p217
      %p495 = pneg %p214
      %p496 = pneg %p238
      %p497 = pneg %p235
      %p498 = pneg %p259
      %p499 = pneg %p256
      %p500 = pneg %p280
      %p501 = pneg %p277
      %p502 = pneg %p301
      %p503 = pneg %p298
      %p504 = pneg %p322
      %p505 = pneg %p319
      %p506 = pneg %p348
      %p507 = pneg %p345
      %p508 = scmp.lt.s32.totalorder %s28, 1
      %s509 = scalar_select %p508, %s28, 1
      %s510 = smul.addr %s509, 8
      %s511 = smul.addr %s510, 8
      %s512 = scalar_lea.vmem %s14, %s511
      %p513 = pneg %p374
      %p514 = pneg %p371
      %p515 = scmp.lt.s32.totalorder %s28, 1
      %s516 = scalar_select %p515, %s28, 1
      %s517 = smul.addr %s516, 8
      %s518 = scalar_lea.vmem %s15, %s517
      %p519 = pneg %p400
      %p520 = pneg %p397
      %p521 = scmp.lt.s32.totalorder %s28, 1
      %s522 = scalar_select %p521, %s28, 1
      %s523 = smul.addr %s522, 8
      %s524 = scalar_lea.vmem %s16, %s523
      %p525 = scmp.lt.s32.totalorder %s28, 1
      %s526 = scalar_select %p525, %s28, 1
      %s527 = smul.addr %s526, 6
      %s528 = smul.addr %s527, 4
      %s529 = scalar_lea.vmem %s0, %s528
      %p530 = scmp.lt.s32.totalorder %s28, 1
      %s531 = scalar_select %p530, %s28, 1
      %s532 = smul.addr %s531, 8
      %s533 = smul.addr %s532, 8
      %s534 = scalar_lea.vmem %s14, %s533
      %p535 = scmp.lt.s32.totalorder %s28, 1
      %s536 = scalar_select %p535, %s28, 1
      %s537 = smul.addr %s536, 8
      %s538 = scalar_lea.vmem %s15, %s537
      %p539 = scmp.lt.s32.totalorder %s28, 1
      %s540 = scalar_select %p539, %s28, 1
      %s541 = smul.addr %s540, 8
      %s542 = scalar_lea.vmem %s16, %s541
      %v544 = vld [vmem:[%s529] sm:$0xff]
      %v545 = vld [vmem:[%s529 + $0x8] sm:$0xf]
      %v546 = vld [vmem:[%s529 + $0xc] sm:$0xff]
      %v547 = vld [vmem:[%s529 + $0x14] sm:$0xf]
      %v550 = vunpack.c.l.b16 %v544
      %v551 = vunpack.c.h.b16 %v544
      %v552 = vunpack.c.l.b16 %v546
      %v553 = vunpack.c.h.b16 %v546
      %v554 = vpack.c.b16 %v552, %v550
      %v555 = vpack.c.b16 %v553, %v551
      %v560 = vunpack.c.l.b16 %v545
      %v561 = vunpack.c.l.b16 %v547
      %v562 = vpack.c.b16 %v561, %v560
      %563 = vrot.lane.b32.xlu0 %v554, 127
      %v564 = vpop.permute.xlu0 %563
      %565 = vrot.lane.b32.xlu0 %v555, 127
      %v566 = vpop.permute.xlu0 %565
      %567 = vrot.lane.b32.xlu0 %v562, 127
      %v568 = vpop.permute.xlu0 %567
      %vm569 = vcmask 1039360
      %v570 = vsel %vm569, %v564, %v566
      %v571 = vsel %vm569, %v566, %v568
      %574 = vrot.lane.b32.xlu0 %v554, 126
      %v575 = vpop.permute.xlu0 %574
      %576 = vrot.lane.b32.xlu0 %v555, 126
      %v577 = vpop.permute.xlu0 %576
      %578 = vrot.lane.b32.xlu0 %v562, 126
      %v579 = vpop.permute.xlu0 %578
      %vm580 = vcmask 1031168
      %v581 = vsel %vm580, %v575, %v577
      %v582 = vsel %vm580, %v577, %v579
      %585 = vrot.lane.b32.xlu0 %v554, 112
      %v586 = vpop.permute.xlu0 %585
      %587 = vrot.lane.b32.xlu0 %v555, 112
      %v588 = vpop.permute.xlu0 %587
      %589 = vrot.lane.b32.xlu0 %v562, 112
      %v590 = vpop.permute.xlu0 %589
      %vm591 = vcmask 916480
      %v592 = vsel %vm591, %v586, %v588
      %v593 = vsel %vm591, %v588, %v590
      %596 = vrot.lane.b32.xlu0 %v554, 111
      %v597 = vpop.permute.xlu0 %596
      %598 = vrot.lane.b32.xlu0 %v555, 111
      %v599 = vpop.permute.xlu0 %598
      %600 = vrot.lane.b32.xlu0 %v562, 111
      %v601 = vpop.permute.xlu0 %600
      %vm602 = vcmask 908288
      %v603 = vsel %vm602, %v597, %v599
      %v604 = vsel %vm602, %v599, %v601
      %607 = vrot.lane.b32.xlu0 %v554, 110
      %v608 = vpop.permute.xlu0 %607
      %609 = vrot.lane.b32.xlu0 %v555, 110
      %v610 = vpop.permute.xlu0 %609
      %611 = vrot.lane.b32.xlu0 %v562, 110
      %v612 = vpop.permute.xlu0 %611
      %vm613 = vcmask 900096
      %v614 = vsel %vm613, %v608, %v610
      %v615 = vsel %vm613, %v610, %v612
      %618 = vrot.lane.b32.xlu0 %v554, 96
      %v619 = vpop.permute.xlu0 %618
      %620 = vrot.lane.b32.xlu0 %v555, 96
      %v621 = vpop.permute.xlu0 %620
      %622 = vrot.lane.b32.xlu0 %v562, 96
      %v623 = vpop.permute.xlu0 %622
      %vm624 = vcmask 785408
      %v625 = vsel %vm624, %v619, %v621
      %v626 = vsel %vm624, %v621, %v623
      %629 = vrot.lane.b32.xlu0 %v554, 95
      %v630 = vpop.permute.xlu0 %629
      %631 = vrot.lane.b32.xlu0 %v555, 95
      %v632 = vpop.permute.xlu0 %631
      %633 = vrot.lane.b32.xlu0 %v562, 95
      %v634 = vpop.permute.xlu0 %633
      %vm635 = vcmask 777216
      %v636 = vsel %vm635, %v630, %v632
      %v637 = vsel %vm635, %v632, %v634
      %640 = vrot.lane.b32.xlu0 %v554, 94
      %v641 = vpop.permute.xlu0 %640
      %642 = vrot.lane.b32.xlu0 %v555, 94
      %v643 = vpop.permute.xlu0 %642
      %644 = vrot.lane.b32.xlu0 %v562, 94
      %v645 = vpop.permute.xlu0 %644
      %vm646 = vcmask 769024
      %v647 = vsel %vm646, %v641, %v643
      %v648 = vsel %vm646, %v643, %v645
      %v651 = vld [vmem:[%s1] sm:$0xff]
      %v652 = vld [vmem:[%s1 + $0x8] sm:$0xff]
      %v653 = vld [vmem:[%s1 + $0x10] sm:$0xff]
      %v654 = vld [vmem:[%s1 + $0x18] sm:$0xff]
      %v655 = vld [vmem:[%s1 + $0x20] sm:$0xff]
      %v656 = vld [vmem:[%s1 + $0x28] sm:$0xff]
      %v657 = vld [vmem:[%s1 + $0x30] sm:$0xff]
      %v658 = vld [vmem:[%s1 + $0x38] sm:$0xff]
      %v659 = vld [vmem:[%s1 + $0x40] sm:$0xff]
      %v660 = vld [vmem:[%s1 + $0x48] sm:$0xff]
      %v661 = vld [vmem:[%s2] sm:$0xff]
      %v662 = vld [vmem:[%s2 + $0x8] sm:$0xff]
      %v663 = vld [vmem:[%s2 + $0x10] sm:$0xff]
      %v664 = vld [vmem:[%s2 + $0x18] sm:$0xff]
      %v665 = vld [vmem:[%s2 + $0x20] sm:$0xff]
      %v666 = vld [vmem:[%s2 + $0x28] sm:$0xff]
      %v667 = vld [vmem:[%s2 + $0x30] sm:$0xff]
      %v668 = vld [vmem:[%s2 + $0x38] sm:$0xff]
      %v669 = vld [vmem:[%s2 + $0x40] sm:$0xff]
      %v670 = vld [vmem:[%s2 + $0x48] sm:$0xff]
      %672 = vset.pattern.permute.xlu0 0
      %673 = vperm.xlu0 %672, %v661
      %v674 = vpop.permute.xlu0 %673
      %677 = vset.pattern.permute.xlu0 0
      %678 = vperm.xlu0 %677, %v662
      %v679 = vpop.permute.xlu0 %678
      %682 = vset.pattern.permute.xlu0 0
      %683 = vperm.xlu0 %682, %v663
      %v684 = vpop.permute.xlu0 %683
      %687 = vset.pattern.permute.xlu0 0
      %688 = vperm.xlu0 %687, %v664
      %v689 = vpop.permute.xlu0 %688
      %692 = vset.pattern.permute.xlu0 0
      %693 = vperm.xlu0 %692, %v665
      %v694 = vpop.permute.xlu0 %693
      %697 = vset.pattern.permute.xlu0 0
      %698 = vperm.xlu0 %697, %v666
      %v699 = vpop.permute.xlu0 %698
      %702 = vset.pattern.permute.xlu0 0
      %703 = vperm.xlu0 %702, %v667
      %v704 = vpop.permute.xlu0 %703
      %707 = vset.pattern.permute.xlu0 0
      %708 = vperm.xlu0 %707, %v668
      %v709 = vpop.permute.xlu0 %708
      %712 = vset.pattern.permute.xlu0 0
      %713 = vperm.xlu0 %712, %v669
      %v714 = vpop.permute.xlu0 %713
      %717 = vset.pattern.permute.xlu0 0
      %718 = vperm.xlu0 %717, %v670
      %v719 = vpop.permute.xlu0 %718
      %v731 = vunpack.c.l.b16 %v651
      %v732 = vunpack.c.h.b16 %v651
      %v733 = vunpack.c.l.b16 %v652
      %v734 = vunpack.c.h.b16 %v652
      %v735 = vunpack.c.l.b16 %v653
      %v736 = vunpack.c.h.b16 %v653
      %v737 = vunpack.c.l.b16 %v654
      %v738 = vunpack.c.h.b16 %v654
      %v739 = vunpack.c.l.b16 %v655
      %v740 = vunpack.c.h.b16 %v655
      %v741 = vunpack.c.l.b16 %v656
      %v742 = vunpack.c.h.b16 %v656
      %v743 = vunpack.c.l.b16 %v657
      %v744 = vunpack.c.h.b16 %v657
      %v745 = vunpack.c.l.b16 %v658
      %v746 = vunpack.c.h.b16 %v658
      %v747 = vunpack.c.l.b16 %v659
      %v748 = vunpack.c.h.b16 %v659
      %v749 = vunpack.c.l.b16 %v660
      %v750 = vunpack.c.h.b16 %v660
      %v751 = vpack.c.b16 %v733, %v731
      %v752 = vpack.c.b16 %v734, %v732
      %v753 = vpack.c.b16 %v737, %v735
      %v754 = vpack.c.b16 %v738, %v736
      %v755 = vpack.c.b16 %v741, %v739
      %v756 = vpack.c.b16 %v742, %v740
      %v757 = vpack.c.b16 %v745, %v743
      %v758 = vpack.c.b16 %v746, %v744
      %v759 = vpack.c.b16 %v749, %v747
      %v760 = vpack.c.b16 %v750, %v748
      %vm766 = vcmask 130048
      %v768 = vsel %vm766, %v752, 0
      %v771 = vsel %vm766, %v754, 0
      %v774 = vsel %vm766, %v756, 0
      %v777 = vsel %vm766, %v758, 0
      %v780 = vsel %vm766, %v760, 0
      %782 = vmatprep.subr.bf16.mxu0 %v637
      %783 = vmatpush1.bf16.msra.mxu0 %v636
      %784 = vmatprep.subr.bf16.mxu0 %v626
      %785 = vmatpush1.bf16.msra.mxu0 %v625
      %786 = vmatprep.subr.bf16.mxu0 %v615
      %787 = vmatpush1.bf16.msra.mxu0 %v614
      %788 = vmatprep.subr.bf16.mxu0 %v604
      %789 = vmatpush1.bf16.msra.mxu0 %v603
      %790 = vmatprep.subr.bf16.mxu0 %v593
      %791 = vmatpush1.bf16.msra.mxu0 %v592
      %792 = vmatprep.subr.bf16.mxu0 %v582
      %793 = vmatpush1.bf16.msra.mxu0 %v581
      %794 = vmatprep.subr.bf16.mxu0 %v571
      %795 = vmatpush1.bf16.msra.mxu0 %v570
      %796 = vmatprep.subr.bf16.mxu0 %v555
      %797 = vmatpush1.bf16.msra.mxu0 %v554
      %798 = vmatprep.subr.bf16.mxu0 0
      %799 = vmatpush2.bf16.msra.mxu0 0
      %800 = vmatprep.subr.bf16.mxu0 0
      %801 = vmatpush2.bf16.msra.mxu0 0
      %802 = vmatprep.subr.bf16.mxu0 0
      %803 = vmatpush2.bf16.msra.mxu0 0
      %804 = vmatprep.subr.bf16.mxu0 0
      %805 = vmatpush2.bf16.msra.mxu0 0
      %806 = vmatprep.subr.bf16.mxu0 0
      %807 = vmatpush2.bf16.msra.mxu0 0
      %808 = vmatprep.subr.bf16.mxu0 0
      %809 = vmatpush2.bf16.msra.mxu0 0
      %810 = vmatprep.subr.bf16.mxu0 0
      %811 = vmatpush2.bf16.msra.mxu0 0
      %812 = vmatprep.subr.bf16.mxu0 %v648
      %813 = vmatpush2.bf16.msra.mxu0 %v647
      %814 = vmatprep.mubr.bf16.mxu0 %v768
      %815 = vmatmul.mubr.bf16.gmra.mxu0 %v751
      %v816 = vpop.f32.mrf.mxu0
      %v817 = vadd.f32 %v674, %v816
      %v818 = vpop.f32.mrf.mxu0
      %v819 = vadd.f32 %v674, %v818
      %v820 = vpop.f32.mrf.mxu0
      %v821 = vadd.f32 %v679, %v820
      %v822 = vpop.f32.mrf.mxu0
      %v823 = vadd.f32 %v679, %v822
      %824 = vmatprep.mubr.bf16.mxu0 %v771
      %825 = vmatmul.mubr.bf16.gmra.mxu0 %v753
      %v826 = vpop.f32.mrf.mxu0
      %v827 = vadd.f32 %v684, %v826
      %v828 = vpop.f32.mrf.mxu0
      %v829 = vadd.f32 %v684, %v828
      %v830 = vpop.f32.mrf.mxu0
      %v831 = vadd.f32 %v689, %v830
      %v832 = vpop.f32.mrf.mxu0
      %v833 = vadd.f32 %v689, %v832
      %834 = vmatprep.mubr.bf16.mxu0 %v774
      %835 = vmatmul.mubr.bf16.gmra.mxu0 %v755
      %v836 = vpop.f32.mrf.mxu0
      %v837 = vadd.f32 %v694, %v836
      %v838 = vpop.f32.mrf.mxu0
      %v839 = vadd.f32 %v694, %v838
      %v840 = vpop.f32.mrf.mxu0
      %v841 = vadd.f32 %v699, %v840
      %v842 = vpop.f32.mrf.mxu0
      %v843 = vadd.f32 %v699, %v842
      %844 = vmatprep.mubr.bf16.mxu0 %v777
      %845 = vmatmul.mubr.bf16.gmra.mxu0 %v757
      %v846 = vpop.f32.mrf.mxu0
      %v847 = vadd.f32 %v704, %v846
      %v848 = vpop.f32.mrf.mxu0
      %v849 = vadd.f32 %v704, %v848
      %v850 = vpop.f32.mrf.mxu0
      %v851 = vadd.f32 %v709, %v850
      %v852 = vpop.f32.mrf.mxu0
      %v853 = vadd.f32 %v709, %v852
      %854 = vmatprep.mubr.bf16.mxu0 %v780
      %855 = vmatmul.mubr.bf16.gmra.mxu0 %v759
      %v856 = vpop.f32.mrf.mxu0
      %v857 = vadd.f32 %v714, %v856
      %v858 = vpop.f32.mrf.mxu0
      %v859 = vadd.f32 %v714, %v858
      %v860 = vpop.f32.mrf.mxu0
      %v861 = vadd.f32 %v719, %v860
      %v862 = vpop.f32.mrf.mxu0
      %v863 = vadd.f32 %v719, %v862
      %864 = vdwg.mxu0
      %v865 = vmax.f32 %v817, 0.0
      %v866 = vmax.f32 %v819, 0.0
      %v867 = vmax.f32 %v821, 0.0
      %v868 = vmax.f32 %v823, 0.0
      %v869 = vmax.f32 %v827, 0.0
      %v870 = vmax.f32 %v829, 0.0
      %v871 = vmax.f32 %v831, 0.0
      %v872 = vmax.f32 %v833, 0.0
      %v873 = vmax.f32 %v837, 0.0
      %v874 = vmax.f32 %v839, 0.0
      %v875 = vmax.f32 %v841, 0.0
      %v876 = vmax.f32 %v843, 0.0
      %v877 = vmax.f32 %v847, 0.0
      %v878 = vmax.f32 %v849, 0.0
      %v879 = vmax.f32 %v851, 0.0
      %v880 = vmax.f32 %v853, 0.0
      %v881 = vmax.f32 %v857, 0.0
      %v882 = vmax.f32 %v859, 0.0
      %v883 = vmax.f32 %v861, 0.0
      %v884 = vmax.f32 %v863, 0.0
      %v885 = vpack.c.bf16 %v867, %v865
      %v886 = vpack.c.bf16 %v868, %v866
      %v887 = vpack.c.bf16 %v871, %v869
      %v888 = vpack.c.bf16 %v872, %v870
      %v889 = vpack.c.bf16 %v875, %v873
      %v890 = vpack.c.bf16 %v876, %v874
      %v891 = vpack.c.bf16 %v879, %v877
      %v892 = vpack.c.bf16 %v880, %v878
      %v893 = vpack.c.bf16 %v883, %v881
      %v894 = vpack.c.bf16 %v884, %v882
      %906 = vrot.lane.b32.xlu0 %v885, 127
      %v907 = vpop.permute.xlu0 %906
      %908 = vrot.lane.b32.xlu0 %v886, 127
      %v909 = vpop.permute.xlu0 %908
      %910 = vrot.lane.b32.xlu0 0, 127
      %v911 = vpop.permute.xlu0 %910
      %912 = vrot.lane.b32.xlu0 %v887, 127
      %v913 = vpop.permute.xlu0 %912
      %914 = vrot.lane.b32.xlu0 %v888, 127
      %v915 = vpop.permute.xlu0 %914
      %916 = vrot.lane.b32.xlu0 %v889, 127
      %v917 = vpop.permute.xlu0 %916
      %918 = vrot.lane.b32.xlu0 %v890, 127
      %v919 = vpop.permute.xlu0 %918
      %920 = vrot.lane.b32.xlu0 %v891, 127
      %v921 = vpop.permute.xlu0 %920
      %922 = vrot.lane.b32.xlu0 %v892, 127
      %v923 = vpop.permute.xlu0 %922
      %924 = vrot.lane.b32.xlu0 %v893, 127
      %v925 = vpop.permute.xlu0 %924
      %926 = vrot.lane.b32.xlu0 %v894, 127
      %v927 = vpop.permute.xlu0 %926
      %v928 = vsel %vm569, %v907, %v909
      %v929 = vsel %vm569, %v909, %v911
      %v930 = vsel %vm569, %v913, %v915
      %v931 = vsel %vm569, %v915, %v911
      %v932 = vsel %vm569, %v917, %v919
      %v933 = vsel %vm569, %v919, %v911
      %v934 = vsel %vm569, %v921, %v923
      %v935 = vsel %vm569, %v923, %v911
      %v936 = vsel %vm569, %v925, %v927
      %v937 = vsel %vm569, %v927, %v911
      %948 = vrot.lane.b32.xlu0 %v885, 126
      %v949 = vpop.permute.xlu0 %948
      %950 = vrot.lane.b32.xlu0 %v886, 126
      %v951 = vpop.permute.xlu0 %950
      %952 = vrot.lane.b32.xlu0 0, 126
      %v953 = vpop.permute.xlu0 %952
      %954 = vrot.lane.b32.xlu0 %v887, 126
      %v955 = vpop.permute.xlu0 %954
      %956 = vrot.lane.b32.xlu0 %v888, 126
      %v957 = vpop.permute.xlu0 %956
      %958 = vrot.lane.b32.xlu0 %v889, 126
      %v959 = vpop.permute.xlu0 %958
      %960 = vrot.lane.b32.xlu0 %v890, 126
      %v961 = vpop.permute.xlu0 %960
      %962 = vrot.lane.b32.xlu0 %v891, 126
      %v963 = vpop.permute.xlu0 %962
      %964 = vrot.lane.b32.xlu0 %v892, 126
      %v965 = vpop.permute.xlu0 %964
      %966 = vrot.lane.b32.xlu0 %v893, 126
      %v967 = vpop.permute.xlu0 %966
      %968 = vrot.lane.b32.xlu0 %v894, 126
      %v969 = vpop.permute.xlu0 %968
      %v970 = vsel %vm580, %v949, %v951
      %v971 = vsel %vm580, %v951, %v953
      %v972 = vsel %vm580, %v955, %v957
      %v973 = vsel %vm580, %v957, %v953
      %v974 = vsel %vm580, %v959, %v961
      %v975 = vsel %vm580, %v961, %v953
      %v976 = vsel %vm580, %v963, %v965
      %v977 = vsel %vm580, %v965, %v953
      %v978 = vsel %vm580, %v967, %v969
      %v979 = vsel %vm580, %v969, %v953
      %990 = vrot.lane.b32.xlu0 %v885, 112
      %v991 = vpop.permute.xlu0 %990
      %992 = vrot.lane.b32.xlu0 %v886, 112
      %v993 = vpop.permute.xlu0 %992
      %994 = vrot.lane.b32.xlu0 0, 112
      %v995 = vpop.permute.xlu0 %994
      %996 = vrot.lane.b32.xlu0 %v887, 112
      %v997 = vpop.permute.xlu0 %996
      %998 = vrot.lane.b32.xlu0 %v888, 112
      %v999 = vpop.permute.xlu0 %998
      %1000 = vrot.lane.b32.xlu0 %v889, 112
      %v1001 = vpop.permute.xlu0 %1000
      %1002 = vrot.lane.b32.xlu0 %v890, 112
      %v1003 = vpop.permute.xlu0 %1002
      %1004 = vrot.lane.b32.xlu0 %v891, 112
      %v1005 = vpop.permute.xlu0 %1004
      %1006 = vrot.lane.b32.xlu0 %v892, 112
      %v1007 = vpop.permute.xlu0 %1006
      %1008 = vrot.lane.b32.xlu0 %v893, 112
      %v1009 = vpop.permute.xlu0 %1008
      %1010 = vrot.lane.b32.xlu0 %v894, 112
      %v1011 = vpop.permute.xlu0 %1010
      %v1012 = vsel %vm591, %v991, %v993
      %v1013 = vsel %vm591, %v993, %v995
      %v1014 = vsel %vm591, %v997, %v999
      %v1015 = vsel %vm591, %v999, %v995
      %v1016 = vsel %vm591, %v1001, %v1003
      %v1017 = vsel %vm591, %v1003, %v995
      %v1018 = vsel %vm591, %v1005, %v1007
      %v1019 = vsel %vm591, %v1007, %v995
      %v1020 = vsel %vm591, %v1009, %v1011
      %v1021 = vsel %vm591, %v1011, %v995
      %1032 = vrot.lane.b32.xlu0 %v885, 111
      %v1033 = vpop.permute.xlu0 %1032
      %1034 = vrot.lane.b32.xlu0 %v886, 111
      %v1035 = vpop.permute.xlu0 %1034
      %1036 = vrot.lane.b32.xlu0 0, 111
      %v1037 = vpop.permute.xlu0 %1036
      %1038 = vrot.lane.b32.xlu0 %v887, 111
      %v1039 = vpop.permute.xlu0 %1038
      %1040 = vrot.lane.b32.xlu0 %v888, 111
      %v1041 = vpop.permute.xlu0 %1040
      %1042 = vrot.lane.b32.xlu0 %v889, 111
      %v1043 = vpop.permute.xlu0 %1042
      %1044 = vrot.lane.b32.xlu0 %v890, 111
      %v1045 = vpop.permute.xlu0 %1044
      %1046 = vrot.lane.b32.xlu0 %v891, 111
      %v1047 = vpop.permute.xlu0 %1046
      %1048 = vrot.lane.b32.xlu0 %v892, 111
      %v1049 = vpop.permute.xlu0 %1048
      %1050 = vrot.lane.b32.xlu0 %v893, 111
      %v1051 = vpop.permute.xlu0 %1050
      %1052 = vrot.lane.b32.xlu0 %v894, 111
      %v1053 = vpop.permute.xlu0 %1052
      %v1054 = vsel %vm602, %v1033, %v1035
      %v1055 = vsel %vm602, %v1035, %v1037
      %v1056 = vsel %vm602, %v1039, %v1041
      %v1057 = vsel %vm602, %v1041, %v1037
      %v1058 = vsel %vm602, %v1043, %v1045
      %v1059 = vsel %vm602, %v1045, %v1037
      %v1060 = vsel %vm602, %v1047, %v1049
      %v1061 = vsel %vm602, %v1049, %v1037
      %v1062 = vsel %vm602, %v1051, %v1053
      %v1063 = vsel %vm602, %v1053, %v1037
      %1074 = vrot.lane.b32.xlu0 %v885, 110
      %v1075 = vpop.permute.xlu0 %1074
      %1076 = vrot.lane.b32.xlu0 %v886, 110
      %v1077 = vpop.permute.xlu0 %1076
      %1078 = vrot.lane.b32.xlu0 0, 110
      %v1079 = vpop.permute.xlu0 %1078
      %1080 = vrot.lane.b32.xlu0 %v887, 110
      %v1081 = vpop.permute.xlu0 %1080
      %1082 = vrot.lane.b32.xlu0 %v888, 110
      %v1083 = vpop.permute.xlu0 %1082
      %1084 = vrot.lane.b32.xlu0 %v889, 110
      %v1085 = vpop.permute.xlu0 %1084
      %1086 = vrot.lane.b32.xlu0 %v890, 110
      %v1087 = vpop.permute.xlu0 %1086
      %1088 = vrot.lane.b32.xlu0 %v891, 110
      %v1089 = vpop.permute.xlu0 %1088
      %1090 = vrot.lane.b32.xlu0 %v892, 110
      %v1091 = vpop.permute.xlu0 %1090
      %1092 = vrot.lane.b32.xlu0 %v893, 110
      %v1093 = vpop.permute.xlu0 %1092
      %1094 = vrot.lane.b32.xlu0 %v894, 110
      %v1095 = vpop.permute.xlu0 %1094
      %v1096 = vsel %vm613, %v1075, %v1077
      %v1097 = vsel %vm613, %v1077, %v1079
      %v1098 = vsel %vm613, %v1081, %v1083
      %v1099 = vsel %vm613, %v1083, %v1079
      %v1100 = vsel %vm613, %v1085, %v1087
      %v1101 = vsel %vm613, %v1087, %v1079
      %v1102 = vsel %vm613, %v1089, %v1091
      %v1103 = vsel %vm613, %v1091, %v1079
      %v1104 = vsel %vm613, %v1093, %v1095
      %v1105 = vsel %vm613, %v1095, %v1079
      %1116 = vrot.lane.b32.xlu0 %v885, 96
      %v1117 = vpop.permute.xlu0 %1116
      %1118 = vrot.lane.b32.xlu0 %v886, 96
      %v1119 = vpop.permute.xlu0 %1118
      %1120 = vrot.lane.b32.xlu0 0, 96
      %v1121 = vpop.permute.xlu0 %1120
      %1122 = vrot.lane.b32.xlu0 %v887, 96
      %v1123 = vpop.permute.xlu0 %1122
      %1124 = vrot.lane.b32.xlu0 %v888, 96
      %v1125 = vpop.permute.xlu0 %1124
      %1126 = vrot.lane.b32.xlu0 %v889, 96
      %v1127 = vpop.permute.xlu0 %1126
      %1128 = vrot.lane.b32.xlu0 %v890, 96
      %v1129 = vpop.permute.xlu0 %1128
      %1130 = vrot.lane.b32.xlu0 %v891, 96
      %v1131 = vpop.permute.xlu0 %1130
      %1132 = vrot.lane.b32.xlu0 %v892, 96
      %v1133 = vpop.permute.xlu0 %1132
      %1134 = vrot.lane.b32.xlu0 %v893, 96
      %v1135 = vpop.permute.xlu0 %1134
      %1136 = vrot.lane.b32.xlu0 %v894, 96
      %v1137 = vpop.permute.xlu0 %1136
      %v1138 = vsel %vm624, %v1117, %v1119
      %v1139 = vsel %vm624, %v1119, %v1121
      %v1140 = vsel %vm624, %v1123, %v1125
      %v1141 = vsel %vm624, %v1125, %v1121
      %v1142 = vsel %vm624, %v1127, %v1129
      %v1143 = vsel %vm624, %v1129, %v1121
      %v1144 = vsel %vm624, %v1131, %v1133
      %v1145 = vsel %vm624, %v1133, %v1121
      %v1146 = vsel %vm624, %v1135, %v1137
      %v1147 = vsel %vm624, %v1137, %v1121
      %1158 = vrot.lane.b32.xlu0 %v885, 95
      %v1159 = vpop.permute.xlu0 %1158
      %1160 = vrot.lane.b32.xlu0 %v886, 95
      %v1161 = vpop.permute.xlu0 %1160
      %1162 = vrot.lane.b32.xlu0 0, 95
      %v1163 = vpop.permute.xlu0 %1162
      %1164 = vrot.lane.b32.xlu0 %v887, 95
      %v1165 = vpop.permute.xlu0 %1164
      %1166 = vrot.lane.b32.xlu0 %v888, 95
      %v1167 = vpop.permute.xlu0 %1166
      %1168 = vrot.lane.b32.xlu0 %v889, 95
      %v1169 = vpop.permute.xlu0 %1168
      %1170 = vrot.lane.b32.xlu0 %v890, 95
      %v1171 = vpop.permute.xlu0 %1170
      %1172 = vrot.lane.b32.xlu0 %v891, 95
      %v1173 = vpop.permute.xlu0 %1172
      %1174 = vrot.lane.b32.xlu0 %v892, 95
      %v1175 = vpop.permute.xlu0 %1174
      %1176 = vrot.lane.b32.xlu0 %v893, 95
      %v1177 = vpop.permute.xlu0 %1176
      %1178 = vrot.lane.b32.xlu0 %v894, 95
      %v1179 = vpop.permute.xlu0 %1178
      %v1180 = vsel %vm635, %v1159, %v1161
      %v1181 = vsel %vm635, %v1161, %v1163
      %v1182 = vsel %vm635, %v1165, %v1167
      %v1183 = vsel %vm635, %v1167, %v1163
      %v1184 = vsel %vm635, %v1169, %v1171
      %v1185 = vsel %vm635, %v1171, %v1163
      %v1186 = vsel %vm635, %v1173, %v1175
      %v1187 = vsel %vm635, %v1175, %v1163
      %v1188 = vsel %vm635, %v1177, %v1179
      %v1189 = vsel %vm635, %v1179, %v1163
      %1200 = vrot.lane.b32.xlu0 %v885, 94
      %v1201 = vpop.permute.xlu0 %1200
      %1202 = vrot.lane.b32.xlu0 %v886, 94
      %v1203 = vpop.permute.xlu0 %1202
      %1204 = vrot.lane.b32.xlu0 0, 94
      %v1205 = vpop.permute.xlu0 %1204
      %1206 = vrot.lane.b32.xlu0 %v887, 94
      %v1207 = vpop.permute.xlu0 %1206
      %1208 = vrot.lane.b32.xlu0 %v888, 94
      %v1209 = vpop.permute.xlu0 %1208
      %1210 = vrot.lane.b32.xlu0 %v889, 94
      %v1211 = vpop.permute.xlu0 %1210
      %1212 = vrot.lane.b32.xlu0 %v890, 94
      %v1213 = vpop.permute.xlu0 %1212
      %1214 = vrot.lane.b32.xlu0 %v891, 94
      %v1215 = vpop.permute.xlu0 %1214
      %1216 = vrot.lane.b32.xlu0 %v892, 94
      %v1217 = vpop.permute.xlu0 %1216
      %1218 = vrot.lane.b32.xlu0 %v893, 94
      %v1219 = vpop.permute.xlu0 %1218
      %1220 = vrot.lane.b32.xlu0 %v894, 94
      %v1221 = vpop.permute.xlu0 %1220
      %v1222 = vsel %vm646, %v1201, %v1203
      %v1223 = vsel %vm646, %v1203, %v1205
      %v1224 = vsel %vm646, %v1207, %v1209
      %v1225 = vsel %vm646, %v1209, %v1205
      %v1226 = vsel %vm646, %v1211, %v1213
      %v1227 = vsel %vm646, %v1213, %v1205
      %v1228 = vsel %vm646, %v1215, %v1217
      %v1229 = vsel %vm646, %v1217, %v1205
      %v1230 = vsel %vm646, %v1219, %v1221
      %v1231 = vsel %vm646, %v1221, %v1205
      %v1242 = vld [vmem:[%s3] sm:$0xff]
      %v1243 = vld [vmem:[%s3 + $0x8] sm:$0xff]
      %v1244 = vld [vmem:[%s3 + $0x10] sm:$0xff]
      %v1245 = vld [vmem:[%s3 + $0x18] sm:$0xff]
      %v1246 = vld [vmem:[%s3 + $0x20] sm:$0xff]
      %v1247 = vld [vmem:[%s3 + $0x28] sm:$0xff]
      %v1248 = vld [vmem:[%s3 + $0x30] sm:$0xff]
      %v1249 = vld [vmem:[%s3 + $0x38] sm:$0xff]
      %v1250 = vld [vmem:[%s3 + $0x40] sm:$0xff]
      %v1251 = vld [vmem:[%s3 + $0x48] sm:$0xff]
      %v1252 = vld [vmem:[%s3 + $0x50] sm:$0xff]
      %v1253 = vld [vmem:[%s3 + $0x58] sm:$0xff]
      %v1254 = vld [vmem:[%s3 + $0x60] sm:$0xff]
      %v1255 = vld [vmem:[%s3 + $0x68] sm:$0xff]
      %v1256 = vld [vmem:[%s3 + $0x70] sm:$0xff]
      %v1257 = vld [vmem:[%s3 + $0x78] sm:$0xff]
      %v1258 = vld [vmem:[%s3 + $0x80] sm:$0xff]
      %v1259 = vld [vmem:[%s3 + $0x88] sm:$0xff]
      %v1260 = vld [vmem:[%s3 + $0x90] sm:$0xff]
      %v1261 = vld [vmem:[%s3 + $0x98] sm:$0xff]
      %v1262 = vld [vmem:[%s3 + $0xa0] sm:$0xff]
      %v1263 = vld [vmem:[%s3 + $0xa8] sm:$0xff]
      %v1264 = vld [vmem:[%s3 + $0xb0] sm:$0xff]
      %v1265 = vld [vmem:[%s3 + $0xb8] sm:$0xff]
      %v1266 = vld [vmem:[%s3 + $0xc0] sm:$0xff]
      %v1267 = vld [vmem:[%s3 + $0xc8] sm:$0xff]
      %v1268 = vld [vmem:[%s3 + $0xd0] sm:$0xff]
      %v1269 = vld [vmem:[%s3 + $0xd8] sm:$0xff]
      %v1270 = vld [vmem:[%s3 + $0xe0] sm:$0xff]
      %v1271 = vld [vmem:[%s3 + $0xe8] sm:$0xff]
      %v1272 = vld [vmem:[%s3 + $0xf0] sm:$0xff]
      %v1273 = vld [vmem:[%s3 + $0xf8] sm:$0xff]
      %v1274 = vld [vmem:[%s3 + $0x100] sm:$0xff]
      %v1275 = vld [vmem:[%s3 + $0x108] sm:$0xff]
      %v1276 = vld [vmem:[%s3 + $0x110] sm:$0xff]
      %v1277 = vld [vmem:[%s3 + $0x118] sm:$0xff]
      %v1278 = vld [vmem:[%s4] sm:$0xff]
      %v1279 = vld [vmem:[%s4 + $0x8] sm:$0xff]
      %v1280 = vld [vmem:[%s4 + $0x10] sm:$0xff]
      %v1281 = vld [vmem:[%s4 + $0x18] sm:$0xff]
      %v1282 = vld [vmem:[%s4 + $0x20] sm:$0xff]
      %v1283 = vld [vmem:[%s4 + $0x28] sm:$0xff]
      %v1284 = vld [vmem:[%s4 + $0x30] sm:$0xff]
      %v1285 = vld [vmem:[%s4 + $0x38] sm:$0xff]
      %v1286 = vld [vmem:[%s4 + $0x40] sm:$0xff]
      %v1287 = vld [vmem:[%s4 + $0x48] sm:$0xff]
      %v1288 = vld [vmem:[%s4 + $0x50] sm:$0xff]
      %v1289 = vld [vmem:[%s4 + $0x58] sm:$0xff]
      %1291 = vset.pattern.permute.xlu0 0
      %1292 = vperm.xlu0 %1291, %v1278
      %v1293 = vpop.permute.xlu0 %1292
      %1296 = vset.pattern.permute.xlu0 0
      %1297 = vperm.xlu0 %1296, %v1279
      %v1298 = vpop.permute.xlu0 %1297
      %1301 = vset.pattern.permute.xlu0 0
      %1302 = vperm.xlu0 %1301, %v1280
      %v1303 = vpop.permute.xlu0 %1302
      %1306 = vset.pattern.permute.xlu0 0
      %1307 = vperm.xlu0 %1306, %v1281
      %v1308 = vpop.permute.xlu0 %1307
      %1311 = vset.pattern.permute.xlu0 0
      %1312 = vperm.xlu0 %1311, %v1282
      %v1313 = vpop.permute.xlu0 %1312
      %1316 = vset.pattern.permute.xlu0 0
      %1317 = vperm.xlu0 %1316, %v1283
      %v1318 = vpop.permute.xlu0 %1317
      %1321 = vset.pattern.permute.xlu0 0
      %1322 = vperm.xlu0 %1321, %v1284
      %v1323 = vpop.permute.xlu0 %1322
      %1326 = vset.pattern.permute.xlu0 0
      %1327 = vperm.xlu0 %1326, %v1285
      %v1328 = vpop.permute.xlu0 %1327
      %1331 = vset.pattern.permute.xlu0 0
      %1332 = vperm.xlu0 %1331, %v1286
      %v1333 = vpop.permute.xlu0 %1332
      %1336 = vset.pattern.permute.xlu0 0
      %1337 = vperm.xlu0 %1336, %v1287
      %v1338 = vpop.permute.xlu0 %1337
      %1341 = vset.pattern.permute.xlu0 0
      %1342 = vperm.xlu0 %1341, %v1288
      %v1343 = vpop.permute.xlu0 %1342
      %1346 = vset.pattern.permute.xlu0 0
      %1347 = vperm.xlu0 %1346, %v1289
      %v1348 = vpop.permute.xlu0 %1347
      %v1386 = vunpack.c.l.b16 %v1242
      %v1387 = vunpack.c.h.b16 %v1242
      %v1388 = vunpack.c.l.b16 %v1243
      %v1389 = vunpack.c.h.b16 %v1243
      %v1390 = vunpack.c.l.b16 %v1244
      %v1391 = vunpack.c.h.b16 %v1244
      %v1392 = vunpack.c.l.b16 %v1245
      %v1393 = vunpack.c.h.b16 %v1245
      %v1394 = vunpack.c.l.b16 %v1246
      %v1395 = vunpack.c.h.b16 %v1246
      %v1396 = vunpack.c.l.b16 %v1247
      %v1397 = vunpack.c.h.b16 %v1247
      %v1398 = vunpack.c.l.b16 %v1248
      %v1399 = vunpack.c.h.b16 %v1248
      %v1400 = vunpack.c.l.b16 %v1249
      %v1401 = vunpack.c.h.b16 %v1249
      %v1402 = vunpack.c.l.b16 %v1250
      %v1403 = vunpack.c.h.b16 %v1250
      %v1404 = vunpack.c.l.b16 %v1251
      %v1405 = vunpack.c.h.b16 %v1251
      %v1406 = vunpack.c.l.b16 %v1252
      %v1407 = vunpack.c.h.b16 %v1252
      %v1408 = vunpack.c.l.b16 %v1253
      %v1409 = vunpack.c.h.b16 %v1253
      %v1410 = vunpack.c.l.b16 %v1254
      %v1411 = vunpack.c.h.b16 %v1254
      %v1412 = vunpack.c.l.b16 %v1255
      %v1413 = vunpack.c.h.b16 %v1255
      %v1414 = vunpack.c.l.b16 %v1256
      %v1415 = vunpack.c.h.b16 %v1256
      %v1416 = vunpack.c.l.b16 %v1257
      %v1417 = vunpack.c.h.b16 %v1257
      %v1418 = vunpack.c.l.b16 %v1258
      %v1419 = vunpack.c.h.b16 %v1258
      %v1420 = vunpack.c.l.b16 %v1259
      %v1421 = vunpack.c.h.b16 %v1259
      %v1422 = vunpack.c.l.b16 %v1260
      %v1423 = vunpack.c.h.b16 %v1260
      %v1424 = vunpack.c.l.b16 %v1261
      %v1425 = vunpack.c.h.b16 %v1261
      %v1426 = vunpack.c.l.b16 %v1262
      %v1427 = vunpack.c.h.b16 %v1262
      %v1428 = vunpack.c.l.b16 %v1263
      %v1429 = vunpack.c.h.b16 %v1263
      %v1430 = vunpack.c.l.b16 %v1264
      %v1431 = vunpack.c.h.b16 %v1264
      %v1432 = vunpack.c.l.b16 %v1265
      %v1433 = vunpack.c.h.b16 %v1265
      %v1434 = vunpack.c.l.b16 %v1266
      %v1435 = vunpack.c.h.b16 %v1266
      %v1436 = vunpack.c.l.b16 %v1267
      %v1437 = vunpack.c.h.b16 %v1267
      %v1438 = vunpack.c.l.b16 %v1268
      %v1439 = vunpack.c.h.b16 %v1268
      %v1440 = vunpack.c.l.b16 %v1269
      %v1441 = vunpack.c.h.b16 %v1269
      %v1442 = vunpack.c.l.b16 %v1270
      %v1443 = vunpack.c.h.b16 %v1270
      %v1444 = vunpack.c.l.b16 %v1271
      %v1445 = vunpack.c.h.b16 %v1271
      %v1446 = vunpack.c.l.b16 %v1272
      %v1447 = vunpack.c.h.b16 %v1272
      %v1448 = vunpack.c.l.b16 %v1273
      %v1449 = vunpack.c.h.b16 %v1273
      %v1450 = vunpack.c.l.b16 %v1274
      %v1451 = vunpack.c.h.b16 %v1274
      %v1452 = vunpack.c.l.b16 %v1275
      %v1453 = vunpack.c.h.b16 %v1275
      %v1454 = vunpack.c.l.b16 %v1276
      %v1455 = vunpack.c.h.b16 %v1276
      %v1456 = vunpack.c.l.b16 %v1277
      %v1457 = vunpack.c.h.b16 %v1277
      %v1458 = vpack.c.b16 %v1392, %v1386
      %v1459 = vpack.c.b16 %v1393, %v1387
      %v1460 = vpack.c.b16 %v1394, %v1388
      %v1461 = vpack.c.b16 %v1395, %v1389
      %v1462 = vpack.c.b16 %v1396, %v1390
      %v1463 = vpack.c.b16 %v1397, %v1391
      %v1464 = vpack.c.b16 %v1404, %v1398
      %v1465 = vpack.c.b16 %v1405, %v1399
      %v1466 = vpack.c.b16 %v1406, %v1400
      %v1467 = vpack.c.b16 %v1407, %v1401
      %v1468 = vpack.c.b16 %v1408, %v1402
      %v1469 = vpack.c.b16 %v1409, %v1403
      %v1470 = vpack.c.b16 %v1416, %v1410
      %v1471 = vpack.c.b16 %v1417, %v1411
      %v1472 = vpack.c.b16 %v1418, %v1412
      %v1473 = vpack.c.b16 %v1419, %v1413
      %v1474 = vpack.c.b16 %v1420, %v1414
      %v1475 = vpack.c.b16 %v1421, %v1415
      %v1476 = vpack.c.b16 %v1428, %v1422
      %v1477 = vpack.c.b16 %v1429, %v1423
      %v1478 = vpack.c.b16 %v1430, %v1424
      %v1479 = vpack.c.b16 %v1431, %v1425
      %v1480 = vpack.c.b16 %v1432, %v1426
      %v1481 = vpack.c.b16 %v1433, %v1427
      %v1482 = vpack.c.b16 %v1440, %v1434
      %v1483 = vpack.c.b16 %v1441, %v1435
      %v1484 = vpack.c.b16 %v1442, %v1436
      %v1485 = vpack.c.b16 %v1443, %v1437
      %v1486 = vpack.c.b16 %v1444, %v1438
      %v1487 = vpack.c.b16 %v1445, %v1439
      %v1488 = vpack.c.b16 %v1452, %v1446
      %v1489 = vpack.c.b16 %v1453, %v1447
      %v1490 = vpack.c.b16 %v1454, %v1448
      %v1491 = vpack.c.b16 %v1455, %v1449
      %v1492 = vpack.c.b16 %v1456, %v1450
      %v1493 = vpack.c.b16 %v1457, %v1451
      %vm1524 = vcmask 654336
      %v1526 = vsel %vm1524, %v1463, 0
      %v1529 = vsel %vm1524, %v1469, 0
      %v1532 = vsel %vm1524, %v1475, 0
      %v1535 = vsel %vm1524, %v1481, 0
      %v1538 = vsel %vm1524, %v1487, 0
      %v1541 = vsel %vm1524, %v1493, 0
      %1543 = vmatprep.subr.bf16.mxu0 %v933
      %1544 = vmatpush1.bf16.msra.mxu0 %v932
      %1545 = vmatprep.subr.bf16.mxu0 %v931
      %1546 = vmatpush1.bf16.msra.mxu0 %v930
      %1547 = vmatprep.subr.bf16.mxu0 %v929
      %1548 = vmatpush1.bf16.msra.mxu0 %v928
      %1549 = vmatprep.subr.bf16.mxu0 %v894
      %1550 = vmatpush1.bf16.msra.mxu0 %v893
      %1551 = vmatprep.subr.bf16.mxu0 %v892
      %1552 = vmatpush1.bf16.msra.mxu0 %v891
      %1553 = vmatprep.subr.bf16.mxu0 %v890
      %1554 = vmatpush1.bf16.msra.mxu0 %v889
      %1555 = vmatprep.subr.bf16.mxu0 %v888
      %1556 = vmatpush1.bf16.msra.mxu0 %v887
      %1557 = vmatprep.subr.bf16.mxu0 %v886
      %1558 = vmatpush1.bf16.msra.mxu0 %v885
      %1559 = vmatprep.subr.bf16.mxu0 %v1013
      %1560 = vmatpush2.bf16.msra.mxu0 %v1012
      %1561 = vmatprep.subr.bf16.mxu0 %v979
      %1562 = vmatpush2.bf16.msra.mxu0 %v978
      %1563 = vmatprep.subr.bf16.mxu0 %v977
      %1564 = vmatpush2.bf16.msra.mxu0 %v976
      %1565 = vmatprep.subr.bf16.mxu0 %v975
      %1566 = vmatpush2.bf16.msra.mxu0 %v974
      %1567 = vmatprep.subr.bf16.mxu0 %v973
      %1568 = vmatpush2.bf16.msra.mxu0 %v972
      %1569 = vmatprep.subr.bf16.mxu0 %v971
      %1570 = vmatpush2.bf16.msra.mxu0 %v970
      %1571 = vmatprep.subr.bf16.mxu0 %v937
      %1572 = vmatpush2.bf16.msra.mxu0 %v936
      %1573 = vmatprep.subr.bf16.mxu0 %v935
      %1574 = vmatpush2.bf16.msra.mxu0 %v934
      %1575 = vmatprep.mubr.bf16.mxu0 %v1459
      %1576 = vmatmul.mubr.bf16.gmra.mxu0 %v1458
      %v1577 = vpop.f32.mrf.mxu0
      %v1578 = vadd.f32 %v1293, %v1577
      %v1579 = vpop.f32.mrf.mxu0
      %v1580 = vadd.f32 %v1293, %v1579
      %v1581 = vpop.f32.mrf.mxu0
      %v1582 = vadd.f32 %v1298, %v1581
      %v1583 = vpop.f32.mrf.mxu0
      %v1584 = vadd.f32 %v1298, %v1583
      %1585 = vmatprep.mubr.bf16.mxu0 %v1465
      %1586 = vmatmul.mubr.bf16.gmra.mxu0 %v1464
      %v1587 = vpop.f32.mrf.mxu0
      %v1588 = vadd.f32 %v1303, %v1587
      %v1589 = vpop.f32.mrf.mxu0
      %v1590 = vadd.f32 %v1303, %v1589
      %v1591 = vpop.f32.mrf.mxu0
      %v1592 = vadd.f32 %v1308, %v1591
      %v1593 = vpop.f32.mrf.mxu0
      %v1594 = vadd.f32 %v1308, %v1593
      %1595 = vmatprep.mubr.bf16.mxu0 %v1471
      %1596 = vmatmul.mubr.bf16.gmra.mxu0 %v1470
      %v1597 = vpop.f32.mrf.mxu0
      %v1598 = vadd.f32 %v1313, %v1597
      %v1599 = vpop.f32.mrf.mxu0
      %v1600 = vadd.f32 %v1313, %v1599
      %v1601 = vpop.f32.mrf.mxu0
      %v1602 = vadd.f32 %v1318, %v1601
      %v1603 = vpop.f32.mrf.mxu0
      %v1604 = vadd.f32 %v1318, %v1603
      %1605 = vmatprep.mubr.bf16.mxu0 %v1477
      %1606 = vmatmul.mubr.bf16.gmra.mxu0 %v1476
      %v1607 = vpop.f32.mrf.mxu0
      %v1608 = vadd.f32 %v1323, %v1607
      %v1609 = vpop.f32.mrf.mxu0
      %v1610 = vadd.f32 %v1323, %v1609
      %v1611 = vpop.f32.mrf.mxu0
      %v1612 = vadd.f32 %v1328, %v1611
      %v1613 = vpop.f32.mrf.mxu0
      %v1614 = vadd.f32 %v1328, %v1613
      %1615 = vmatprep.mubr.bf16.mxu0 %v1483
      %1616 = vmatmul.mubr.bf16.gmra.mxu0 %v1482
      %v1617 = vpop.f32.mrf.mxu0
      %v1618 = vadd.f32 %v1333, %v1617
      %v1619 = vpop.f32.mrf.mxu0
      %v1620 = vadd.f32 %v1333, %v1619
      %v1621 = vpop.f32.mrf.mxu0
      %v1622 = vadd.f32 %v1338, %v1621
      %v1623 = vpop.f32.mrf.mxu0
      %v1624 = vadd.f32 %v1338, %v1623
      %1625 = vmatprep.mubr.bf16.mxu0 %v1489
      %1626 = vmatmul.mubr.bf16.gmra.mxu0 %v1488
      %v1627 = vpop.f32.mrf.mxu0
      %v1628 = vadd.f32 %v1343, %v1627
      %v1629 = vpop.f32.mrf.mxu0
      %v1630 = vadd.f32 %v1343, %v1629
      %v1631 = vpop.f32.mrf.mxu0
      %v1632 = vadd.f32 %v1348, %v1631
      %v1633 = vpop.f32.mrf.mxu0
      %v1634 = vadd.f32 %v1348, %v1633
      %1635 = vdwg.mxu0
      %1636 = vmatprep.subr.bf16.mxu0 %v1061
      %1637 = vmatpush1.bf16.msra.mxu0 %v1060
      %1638 = vmatprep.subr.bf16.mxu0 %v1059
      %1639 = vmatpush1.bf16.msra.mxu0 %v1058
      %1640 = vmatprep.subr.bf16.mxu0 %v1057
      %1641 = vmatpush1.bf16.msra.mxu0 %v1056
      %1642 = vmatprep.subr.bf16.mxu0 %v1055
      %1643 = vmatpush1.bf16.msra.mxu0 %v1054
      %1644 = vmatprep.subr.bf16.mxu0 %v1021
      %1645 = vmatpush1.bf16.msra.mxu0 %v1020
      %1646 = vmatprep.subr.bf16.mxu0 %v1019
      %1647 = vmatpush1.bf16.msra.mxu0 %v1018
      %1648 = vmatprep.subr.bf16.mxu0 %v1017
      %1649 = vmatpush1.bf16.msra.mxu0 %v1016
      %1650 = vmatprep.subr.bf16.mxu0 %v1015
      %1651 = vmatpush1.bf16.msra.mxu0 %v1014
      %1652 = vmatprep.subr.bf16.mxu0 %v1141
      %1653 = vmatpush2.bf16.msra.mxu0 %v1140
      %1654 = vmatprep.subr.bf16.mxu0 %v1139
      %1655 = vmatpush2.bf16.msra.mxu0 %v1138
      %1656 = vmatprep.subr.bf16.mxu0 %v1105
      %1657 = vmatpush2.bf16.msra.mxu0 %v1104
      %1658 = vmatprep.subr.bf16.mxu0 %v1103
      %1659 = vmatpush2.bf16.msra.mxu0 %v1102
      %1660 = vmatprep.subr.bf16.mxu0 %v1101
      %1661 = vmatpush2.bf16.msra.mxu0 %v1100
      %1662 = vmatprep.subr.bf16.mxu0 %v1099
      %1663 = vmatpush2.bf16.msra.mxu0 %v1098
      %1664 = vmatprep.subr.bf16.mxu0 %v1097
      %1665 = vmatpush2.bf16.msra.mxu0 %v1096
      %1666 = vmatprep.subr.bf16.mxu0 %v1063
      %1667 = vmatpush2.bf16.msra.mxu0 %v1062
      %1668 = vmatprep.mubr.bf16.mxu0 %v1461
      %1669 = vmatmul.mubr.bf16.gmra.mxu0 %v1460
      %v1670 = vpop.f32.mrf.mxu0
      %v1671 = vadd.f32 %v1578, %v1670
      %v1672 = vpop.f32.mrf.mxu0
      %v1673 = vadd.f32 %v1580, %v1672
      %v1674 = vpop.f32.mrf.mxu0
      %v1675 = vadd.f32 %v1582, %v1674
      %v1676 = vpop.f32.mrf.mxu0
      %v1677 = vadd.f32 %v1584, %v1676
      %1678 = vmatprep.mubr.bf16.mxu0 %v1467
      %1679 = vmatmul.mubr.bf16.gmra.mxu0 %v1466
      %v1680 = vpop.f32.mrf.mxu0
      %v1681 = vadd.f32 %v1588, %v1680
      %v1682 = vpop.f32.mrf.mxu0
      %v1683 = vadd.f32 %v1590, %v1682
      %v1684 = vpop.f32.mrf.mxu0
      %v1685 = vadd.f32 %v1592, %v1684
      %v1686 = vpop.f32.mrf.mxu0
      %v1687 = vadd.f32 %v1594, %v1686
      %1688 = vmatprep.mubr.bf16.mxu0 %v1473
      %1689 = vmatmul.mubr.bf16.gmra.mxu0 %v1472
      %v1690 = vpop.f32.mrf.mxu0
      %v1691 = vadd.f32 %v1598, %v1690
      %v1692 = vpop.f32.mrf.mxu0
      %v1693 = vadd.f32 %v1600, %v1692
      %v1694 = vpop.f32.mrf.mxu0
      %v1695 = vadd.f32 %v1602, %v1694
      %v1696 = vpop.f32.mrf.mxu0
      %v1697 = vadd.f32 %v1604, %v1696
      %1698 = vmatprep.mubr.bf16.mxu0 %v1479
      %1699 = vmatmul.mubr.bf16.gmra.mxu0 %v1478
      %v1700 = vpop.f32.mrf.mxu0
      %v1701 = vadd.f32 %v1608, %v1700
      %v1702 = vpop.f32.mrf.mxu0
      %v1703 = vadd.f32 %v1610, %v1702
      %v1704 = vpop.f32.mrf.mxu0
      %v1705 = vadd.f32 %v1612, %v1704
      %v1706 = vpop.f32.mrf.mxu0
      %v1707 = vadd.f32 %v1614, %v1706
      %1708 = vmatprep.mubr.bf16.mxu0 %v1485
      %1709 = vmatmul.mubr.bf16.gmra.mxu0 %v1484
      %v1710 = vpop.f32.mrf.mxu0
      %v1711 = vadd.f32 %v1618, %v1710
      %v1712 = vpop.f32.mrf.mxu0
      %v1713 = vadd.f32 %v1620, %v1712
      %v1714 = vpop.f32.mrf.mxu0
      %v1715 = vadd.f32 %v1622, %v1714
      %v1716 = vpop.f32.mrf.mxu0
      %v1717 = vadd.f32 %v1624, %v1716
      %1718 = vmatprep.mubr.bf16.mxu0 %v1491
      %1719 = vmatmul.mubr.bf16.gmra.mxu0 %v1490
      %v1720 = vpop.f32.mrf.mxu0
      %v1721 = vadd.f32 %v1628, %v1720
      %v1722 = vpop.f32.mrf.mxu0
      %v1723 = vadd.f32 %v1630, %v1722
      %v1724 = vpop.f32.mrf.mxu0
      %v1725 = vadd.f32 %v1632, %v1724
      %v1726 = vpop.f32.mrf.mxu0
      %v1727 = vadd.f32 %v1634, %v1726
      %1728 = vdwg.mxu0
      %1729 = vmatprep.subr.bf16.mxu0 %v1189
      %1730 = vmatpush1.bf16.msra.mxu0 %v1188
      %1731 = vmatprep.subr.bf16.mxu0 %v1187
      %1732 = vmatpush1.bf16.msra.mxu0 %v1186
      %1733 = vmatprep.subr.bf16.mxu0 %v1185
      %1734 = vmatpush1.bf16.msra.mxu0 %v1184
      %1735 = vmatprep.subr.bf16.mxu0 %v1183
      %1736 = vmatpush1.bf16.msra.mxu0 %v1182
      %1737 = vmatprep.subr.bf16.mxu0 %v1181
      %1738 = vmatpush1.bf16.msra.mxu0 %v1180
      %1739 = vmatprep.subr.bf16.mxu0 %v1147
      %1740 = vmatpush1.bf16.msra.mxu0 %v1146
      %1741 = vmatprep.subr.bf16.mxu0 %v1145
      %1742 = vmatpush1.bf16.msra.mxu0 %v1144
      %1743 = vmatprep.subr.bf16.mxu0 %v1143
      %1744 = vmatpush1.bf16.msra.mxu0 %v1142
      %1745 = vmatprep.subr.bf16.mxu0 0
      %1746 = vmatpush2.bf16.msra.mxu0 0
      %1747 = vmatprep.subr.bf16.mxu0 0
      %1748 = vmatpush2.bf16.msra.mxu0 0
      %1749 = vmatprep.subr.bf16.mxu0 0
      %1750 = vmatpush2.bf16.msra.mxu0 0
      %1751 = vmatprep.subr.bf16.mxu0 %v1231
      %1752 = vmatpush2.bf16.msra.mxu0 %v1230
      %1753 = vmatprep.subr.bf16.mxu0 %v1229
      %1754 = vmatpush2.bf16.msra.mxu0 %v1228
      %1755 = vmatprep.subr.bf16.mxu0 %v1227
      %1756 = vmatpush2.bf16.msra.mxu0 %v1226
      %1757 = vmatprep.subr.bf16.mxu0 %v1225
      %1758 = vmatpush2.bf16.msra.mxu0 %v1224
      %1759 = vmatprep.subr.bf16.mxu0 %v1223
      %1760 = vmatpush2.bf16.msra.mxu0 %v1222
      %1761 = vmatprep.mubr.bf16.mxu0 %v1526
      %1762 = vmatmul.mubr.bf16.gmra.mxu0 %v1462
      %v1763 = vpop.f32.mrf.mxu0
      %v1764 = vadd.f32 %v1671, %v1763
      %v1765 = vpop.f32.mrf.mxu0
      %v1766 = vadd.f32 %v1673, %v1765
      %v1767 = vpop.f32.mrf.mxu0
      %v1768 = vadd.f32 %v1675, %v1767
      %v1769 = vpop.f32.mrf.mxu0
      %v1770 = vadd.f32 %v1677, %v1769
      %1771 = vmatprep.mubr.bf16.mxu0 %v1529
      %1772 = vmatmul.mubr.bf16.gmra.mxu0 %v1468
      %v1773 = vpop.f32.mrf.mxu0
      %v1774 = vadd.f32 %v1681, %v1773
      %v1775 = vpop.f32.mrf.mxu0
      %v1776 = vadd.f32 %v1683, %v1775
      %v1777 = vpop.f32.mrf.mxu0
      %v1778 = vadd.f32 %v1685, %v1777
      %v1779 = vpop.f32.mrf.mxu0
      %v1780 = vadd.f32 %v1687, %v1779
      %1781 = vmatprep.mubr.bf16.mxu0 %v1532
      %1782 = vmatmul.mubr.bf16.gmra.mxu0 %v1474
      %v1783 = vpop.f32.mrf.mxu0
      %v1784 = vadd.f32 %v1691, %v1783
      %v1785 = vpop.f32.mrf.mxu0
      %v1786 = vadd.f32 %v1693, %v1785
      %v1787 = vpop.f32.mrf.mxu0
      %v1788 = vadd.f32 %v1695, %v1787
      %v1789 = vpop.f32.mrf.mxu0
      %v1790 = vadd.f32 %v1697, %v1789
      %1791 = vmatprep.mubr.bf16.mxu0 %v1535
      %1792 = vmatmul.mubr.bf16.gmra.mxu0 %v1480
      %v1793 = vpop.f32.mrf.mxu0
      %v1794 = vadd.f32 %v1701, %v1793
      %v1795 = vpop.f32.mrf.mxu0
      %v1796 = vadd.f32 %v1703, %v1795
      %v1797 = vpop.f32.mrf.mxu0
      %v1798 = vadd.f32 %v1705, %v1797
      %v1799 = vpop.f32.mrf.mxu0
      %v1800 = vadd.f32 %v1707, %v1799
      %1801 = vmatprep.mubr.bf16.mxu0 %v1538
      %1802 = vmatmul.mubr.bf16.gmra.mxu0 %v1486
      %v1803 = vpop.f32.mrf.mxu0
      %v1804 = vadd.f32 %v1711, %v1803
      %v1805 = vpop.f32.mrf.mxu0
      %v1806 = vadd.f32 %v1713, %v1805
      %v1807 = vpop.f32.mrf.mxu0
      %v1808 = vadd.f32 %v1715, %v1807
      %v1809 = vpop.f32.mrf.mxu0
      %v1810 = vadd.f32 %v1717, %v1809
      %1811 = vmatprep.mubr.bf16.mxu0 %v1541
      %1812 = vmatmul.mubr.bf16.gmra.mxu0 %v1492
      %v1813 = vpop.f32.mrf.mxu0
      %v1814 = vadd.f32 %v1721, %v1813
      %v1815 = vpop.f32.mrf.mxu0
      %v1816 = vadd.f32 %v1723, %v1815
      %v1817 = vpop.f32.mrf.mxu0
      %v1818 = vadd.f32 %v1725, %v1817
      %v1819 = vpop.f32.mrf.mxu0
      %v1820 = vadd.f32 %v1727, %v1819
      %1821 = vdwg.mxu0
      %v1822 = vmax.f32 %v1764, 0.0
      %v1823 = vmax.f32 %v1766, 0.0
      %v1824 = vmax.f32 %v1768, 0.0
      %v1825 = vmax.f32 %v1770, 0.0
      %v1826 = vmax.f32 %v1774, 0.0
      %v1827 = vmax.f32 %v1776, 0.0
      %v1828 = vmax.f32 %v1778, 0.0
      %v1829 = vmax.f32 %v1780, 0.0
      %v1830 = vmax.f32 %v1784, 0.0
      %v1831 = vmax.f32 %v1786, 0.0
      %v1832 = vmax.f32 %v1788, 0.0
      %v1833 = vmax.f32 %v1790, 0.0
      %v1834 = vmax.f32 %v1794, 0.0
      %v1835 = vmax.f32 %v1796, 0.0
      %v1836 = vmax.f32 %v1798, 0.0
      %v1837 = vmax.f32 %v1800, 0.0
      %v1838 = vmax.f32 %v1804, 0.0
      %v1839 = vmax.f32 %v1806, 0.0
      %v1840 = vmax.f32 %v1808, 0.0
      %v1841 = vmax.f32 %v1810, 0.0
      %v1842 = vmax.f32 %v1814, 0.0
      %v1843 = vmax.f32 %v1816, 0.0
      %v1844 = vmax.f32 %v1818, 0.0
      %v1845 = vmax.f32 %v1820, 0.0
      %v1846 = vpack.c.bf16 %v1824, %v1822
      %v1847 = vpack.c.bf16 %v1825, %v1823
      %v1848 = vpack.c.bf16 %v1828, %v1826
      %v1849 = vpack.c.bf16 %v1829, %v1827
      %v1850 = vpack.c.bf16 %v1832, %v1830
      %v1851 = vpack.c.bf16 %v1833, %v1831
      %v1852 = vpack.c.bf16 %v1836, %v1834
      %v1853 = vpack.c.bf16 %v1837, %v1835
      %v1854 = vpack.c.bf16 %v1840, %v1838
      %v1855 = vpack.c.bf16 %v1841, %v1839
      %v1856 = vpack.c.bf16 %v1844, %v1842
      %v1857 = vpack.c.bf16 %v1845, %v1843
      %1870 = vrot.lane.b32.xlu0 %v1846, 127
      %v1871 = vpop.permute.xlu0 %1870
      %1872 = vrot.lane.b32.xlu0 %v1847, 127
      %v1873 = vpop.permute.xlu0 %1872
      %1874 = vrot.lane.b32.xlu0 %v1848, 127
      %v1875 = vpop.permute.xlu0 %1874
      %1876 = vrot.lane.b32.xlu0 %v1849, 127
      %v1877 = vpop.permute.xlu0 %1876
      %1878 = vrot.lane.b32.xlu0 %v1850, 127
      %v1879 = vpop.permute.xlu0 %1878
      %1880 = vrot.lane.b32.xlu0 %v1851, 127
      %v1881 = vpop.permute.xlu0 %1880
      %1882 = vrot.lane.b32.xlu0 %v1852, 127
      %v1883 = vpop.permute.xlu0 %1882
      %1884 = vrot.lane.b32.xlu0 %v1853, 127
      %v1885 = vpop.permute.xlu0 %1884
      %1886 = vrot.lane.b32.xlu0 %v1854, 127
      %v1887 = vpop.permute.xlu0 %1886
      %1888 = vrot.lane.b32.xlu0 %v1855, 127
      %v1889 = vpop.permute.xlu0 %1888
      %1890 = vrot.lane.b32.xlu0 %v1856, 127
      %v1891 = vpop.permute.xlu0 %1890
      %1892 = vrot.lane.b32.xlu0 %v1857, 127
      %v1893 = vpop.permute.xlu0 %1892
      %v1894 = vsel %vm569, %v1871, %v1873
      %v1895 = vsel %vm569, %v1873, %v911
      %v1896 = vsel %vm569, %v1875, %v1877
      %v1897 = vsel %vm569, %v1877, %v911
      %v1898 = vsel %vm569, %v1879, %v1881
      %v1899 = vsel %vm569, %v1881, %v911
      %v1900 = vsel %vm569, %v1883, %v1885
      %v1901 = vsel %vm569, %v1885, %v911
      %v1902 = vsel %vm569, %v1887, %v1889
      %v1903 = vsel %vm569, %v1889, %v911
      %v1904 = vsel %vm569, %v1891, %v1893
      %v1905 = vsel %vm569, %v1893, %v911
      %1918 = vrot.lane.b32.xlu0 %v1846, 126
      %v1919 = vpop.permute.xlu0 %1918
      %1920 = vrot.lane.b32.xlu0 %v1847, 126
      %v1921 = vpop.permute.xlu0 %1920
      %1922 = vrot.lane.b32.xlu0 %v1848, 126
      %v1923 = vpop.permute.xlu0 %1922
      %1924 = vrot.lane.b32.xlu0 %v1849, 126
      %v1925 = vpop.permute.xlu0 %1924
      %1926 = vrot.lane.b32.xlu0 %v1850, 126
      %v1927 = vpop.permute.xlu0 %1926
      %1928 = vrot.lane.b32.xlu0 %v1851, 126
      %v1929 = vpop.permute.xlu0 %1928
      %1930 = vrot.lane.b32.xlu0 %v1852, 126
      %v1931 = vpop.permute.xlu0 %1930
      %1932 = vrot.lane.b32.xlu0 %v1853, 126
      %v1933 = vpop.permute.xlu0 %1932
      %1934 = vrot.lane.b32.xlu0 %v1854, 126
      %v1935 = vpop.permute.xlu0 %1934
      %1936 = vrot.lane.b32.xlu0 %v1855, 126
      %v1937 = vpop.permute.xlu0 %1936
      %1938 = vrot.lane.b32.xlu0 %v1856, 126
      %v1939 = vpop.permute.xlu0 %1938
      %1940 = vrot.lane.b32.xlu0 %v1857, 126
      %v1941 = vpop.permute.xlu0 %1940
      %v1942 = vsel %vm580, %v1919, %v1921
      %v1943 = vsel %vm580, %v1921, %v953
      %v1944 = vsel %vm580, %v1923, %v1925
      %v1945 = vsel %vm580, %v1925, %v953
      %v1946 = vsel %vm580, %v1927, %v1929
      %v1947 = vsel %vm580, %v1929, %v953
      %v1948 = vsel %vm580, %v1931, %v1933
      %v1949 = vsel %vm580, %v1933, %v953
      %v1950 = vsel %vm580, %v1935, %v1937
      %v1951 = vsel %vm580, %v1937, %v953
      %v1952 = vsel %vm580, %v1939, %v1941
      %v1953 = vsel %vm580, %v1941, %v953
      %1966 = vrot.lane.b32.xlu0 %v1846, 112
      %v1967 = vpop.permute.xlu0 %1966
      %1968 = vrot.lane.b32.xlu0 %v1847, 112
      %v1969 = vpop.permute.xlu0 %1968
      %1970 = vrot.lane.b32.xlu0 %v1848, 112
      %v1971 = vpop.permute.xlu0 %1970
      %1972 = vrot.lane.b32.xlu0 %v1849, 112
      %v1973 = vpop.permute.xlu0 %1972
      %1974 = vrot.lane.b32.xlu0 %v1850, 112
      %v1975 = vpop.permute.xlu0 %1974
      %1976 = vrot.lane.b32.xlu0 %v1851, 112
      %v1977 = vpop.permute.xlu0 %1976
      %1978 = vrot.lane.b32.xlu0 %v1852, 112
      %v1979 = vpop.permute.xlu0 %1978
      %1980 = vrot.lane.b32.xlu0 %v1853, 112
      %v1981 = vpop.permute.xlu0 %1980
      %1982 = vrot.lane.b32.xlu0 %v1854, 112
      %v1983 = vpop.permute.xlu0 %1982
      %1984 = vrot.lane.b32.xlu0 %v1855, 112
      %v1985 = vpop.permute.xlu0 %1984
      %1986 = vrot.lane.b32.xlu0 %v1856, 112
      %v1987 = vpop.permute.xlu0 %1986
      %1988 = vrot.lane.b32.xlu0 %v1857, 112
      %v1989 = vpop.permute.xlu0 %1988
      %v1990 = vsel %vm591, %v1967, %v1969
      %v1991 = vsel %vm591, %v1969, %v995
      %v1992 = vsel %vm591, %v1971, %v1973
      %v1993 = vsel %vm591, %v1973, %v995
      %v1994 = vsel %vm591, %v1975, %v1977
      %v1995 = vsel %vm591, %v1977, %v995
      %v1996 = vsel %vm591, %v1979, %v1981
      %v1997 = vsel %vm591, %v1981, %v995
      %v1998 = vsel %vm591, %v1983, %v1985
      %v1999 = vsel %vm591, %v1985, %v995
      %v2000 = vsel %vm591, %v1987, %v1989
      %v2001 = vsel %vm591, %v1989, %v995
      %2014 = vrot.lane.b32.xlu0 %v1846, 111
      %v2015 = vpop.permute.xlu0 %2014
      %2016 = vrot.lane.b32.xlu0 %v1847, 111
      %v2017 = vpop.permute.xlu0 %2016
      %2018 = vrot.lane.b32.xlu0 %v1848, 111
      %v2019 = vpop.permute.xlu0 %2018
      %2020 = vrot.lane.b32.xlu0 %v1849, 111
      %v2021 = vpop.permute.xlu0 %2020
      %2022 = vrot.lane.b32.xlu0 %v1850, 111
      %v2023 = vpop.permute.xlu0 %2022
      %2024 = vrot.lane.b32.xlu0 %v1851, 111
      %v2025 = vpop.permute.xlu0 %2024
      %2026 = vrot.lane.b32.xlu0 %v1852, 111
      %v2027 = vpop.permute.xlu0 %2026
      %2028 = vrot.lane.b32.xlu0 %v1853, 111
      %v2029 = vpop.permute.xlu0 %2028
      %2030 = vrot.lane.b32.xlu0 %v1854, 111
      %v2031 = vpop.permute.xlu0 %2030
      %2032 = vrot.lane.b32.xlu0 %v1855, 111
      %v2033 = vpop.permute.xlu0 %2032
      %2034 = vrot.lane.b32.xlu0 %v1856, 111
      %v2035 = vpop.permute.xlu0 %2034
      %2036 = vrot.lane.b32.xlu0 %v1857, 111
      %v2037 = vpop.permute.xlu0 %2036
      %v2038 = vsel %vm602, %v2015, %v2017
      %v2039 = vsel %vm602, %v2017, %v1037
      %v2040 = vsel %vm602, %v2019, %v2021
      %v2041 = vsel %vm602, %v2021, %v1037
      %v2042 = vsel %vm602, %v2023, %v2025
      %v2043 = vsel %vm602, %v2025, %v1037
      %v2044 = vsel %vm602, %v2027, %v2029
      %v2045 = vsel %vm602, %v2029, %v1037
      %v2046 = vsel %vm602, %v2031, %v2033
      %v2047 = vsel %vm602, %v2033, %v1037
      %v2048 = vsel %vm602, %v2035, %v2037
      %v2049 = vsel %vm602, %v2037, %v1037
      %2062 = vrot.lane.b32.xlu0 %v1846, 110
      %v2063 = vpop.permute.xlu0 %2062
      %2064 = vrot.lane.b32.xlu0 %v1847, 110
      %v2065 = vpop.permute.xlu0 %2064
      %2066 = vrot.lane.b32.xlu0 %v1848, 110
      %v2067 = vpop.permute.xlu0 %2066
      %2068 = vrot.lane.b32.xlu0 %v1849, 110
      %v2069 = vpop.permute.xlu0 %2068
      %2070 = vrot.lane.b32.xlu0 %v1850, 110
      %v2071 = vpop.permute.xlu0 %2070
      %2072 = vrot.lane.b32.xlu0 %v1851, 110
      %v2073 = vpop.permute.xlu0 %2072
      %2074 = vrot.lane.b32.xlu0 %v1852, 110
      %v2075 = vpop.permute.xlu0 %2074
      %2076 = vrot.lane.b32.xlu0 %v1853, 110
      %v2077 = vpop.permute.xlu0 %2076
      %2078 = vrot.lane.b32.xlu0 %v1854, 110
      %v2079 = vpop.permute.xlu0 %2078
      %2080 = vrot.lane.b32.xlu0 %v1855, 110
      %v2081 = vpop.permute.xlu0 %2080
      %2082 = vrot.lane.b32.xlu0 %v1856, 110
      %v2083 = vpop.permute.xlu0 %2082
      %2084 = vrot.lane.b32.xlu0 %v1857, 110
      %v2085 = vpop.permute.xlu0 %2084
      %v2086 = vsel %vm613, %v2063, %v2065
      %v2087 = vsel %vm613, %v2065, %v1079
      %v2088 = vsel %vm613, %v2067, %v2069
      %v2089 = vsel %vm613, %v2069, %v1079
      %v2090 = vsel %vm613, %v2071, %v2073
      %v2091 = vsel %vm613, %v2073, %v1079
      %v2092 = vsel %vm613, %v2075, %v2077
      %v2093 = vsel %vm613, %v2077, %v1079
      %v2094 = vsel %vm613, %v2079, %v2081
      %v2095 = vsel %vm613, %v2081, %v1079
      %v2096 = vsel %vm613, %v2083, %v2085
      %v2097 = vsel %vm613, %v2085, %v1079
      %2110 = vrot.lane.b32.xlu0 %v1846, 96
      %v2111 = vpop.permute.xlu0 %2110
      %2112 = vrot.lane.b32.xlu0 %v1847, 96
      %v2113 = vpop.permute.xlu0 %2112
      %2114 = vrot.lane.b32.xlu0 %v1848, 96
      %v2115 = vpop.permute.xlu0 %2114
      %2116 = vrot.lane.b32.xlu0 %v1849, 96
      %v2117 = vpop.permute.xlu0 %2116
      %2118 = vrot.lane.b32.xlu0 %v1850, 96
      %v2119 = vpop.permute.xlu0 %2118
      %2120 = vrot.lane.b32.xlu0 %v1851, 96
      %v2121 = vpop.permute.xlu0 %2120
      %2122 = vrot.lane.b32.xlu0 %v1852, 96
      %v2123 = vpop.permute.xlu0 %2122
      %2124 = vrot.lane.b32.xlu0 %v1853, 96
      %v2125 = vpop.permute.xlu0 %2124
      %2126 = vrot.lane.b32.xlu0 %v1854, 96
      %v2127 = vpop.permute.xlu0 %2126
      %2128 = vrot.lane.b32.xlu0 %v1855, 96
      %v2129 = vpop.permute.xlu0 %2128
      %2130 = vrot.lane.b32.xlu0 %v1856, 96
      %v2131 = vpop.permute.xlu0 %2130
      %2132 = vrot.lane.b32.xlu0 %v1857, 96
      %v2133 = vpop.permute.xlu0 %2132
      %v2134 = vsel %vm624, %v2111, %v2113
      %v2135 = vsel %vm624, %v2113, %v1121
      %v2136 = vsel %vm624, %v2115, %v2117
      %v2137 = vsel %vm624, %v2117, %v1121
      %v2138 = vsel %vm624, %v2119, %v2121
      %v2139 = vsel %vm624, %v2121, %v1121
      %v2140 = vsel %vm624, %v2123, %v2125
      %v2141 = vsel %vm624, %v2125, %v1121
      %v2142 = vsel %vm624, %v2127, %v2129
      %v2143 = vsel %vm624, %v2129, %v1121
      %v2144 = vsel %vm624, %v2131, %v2133
      %v2145 = vsel %vm624, %v2133, %v1121
      %2158 = vrot.lane.b32.xlu0 %v1846, 95
      %v2159 = vpop.permute.xlu0 %2158
      %2160 = vrot.lane.b32.xlu0 %v1847, 95
      %v2161 = vpop.permute.xlu0 %2160
      %2162 = vrot.lane.b32.xlu0 %v1848, 95
      %v2163 = vpop.permute.xlu0 %2162
      %2164 = vrot.lane.b32.xlu0 %v1849, 95
      %v2165 = vpop.permute.xlu0 %2164
      %2166 = vrot.lane.b32.xlu0 %v1850, 95
      %v2167 = vpop.permute.xlu0 %2166
      %2168 = vrot.lane.b32.xlu0 %v1851, 95
      %v2169 = vpop.permute.xlu0 %2168
      %2170 = vrot.lane.b32.xlu0 %v1852, 95
      %v2171 = vpop.permute.xlu0 %2170
      %2172 = vrot.lane.b32.xlu0 %v1853, 95
      %v2173 = vpop.permute.xlu0 %2172
      %2174 = vrot.lane.b32.xlu0 %v1854, 95
      %v2175 = vpop.permute.xlu0 %2174
      %2176 = vrot.lane.b32.xlu0 %v1855, 95
      %v2177 = vpop.permute.xlu0 %2176
      %2178 = vrot.lane.b32.xlu0 %v1856, 95
      %v2179 = vpop.permute.xlu0 %2178
      %2180 = vrot.lane.b32.xlu0 %v1857, 95
      %v2181 = vpop.permute.xlu0 %2180
      %v2182 = vsel %vm635, %v2159, %v2161
      %v2183 = vsel %vm635, %v2161, %v1163
      %v2184 = vsel %vm635, %v2163, %v2165
      %v2185 = vsel %vm635, %v2165, %v1163
      %v2186 = vsel %vm635, %v2167, %v2169
      %v2187 = vsel %vm635, %v2169, %v1163
      %v2188 = vsel %vm635, %v2171, %v2173
      %v2189 = vsel %vm635, %v2173, %v1163
      %v2190 = vsel %vm635, %v2175, %v2177
      %v2191 = vsel %vm635, %v2177, %v1163
      %v2192 = vsel %vm635, %v2179, %v2181
      %v2193 = vsel %vm635, %v2181, %v1163
      %2206 = vrot.lane.b32.xlu0 %v1846, 94
      %v2207 = vpop.permute.xlu0 %2206
      %2208 = vrot.lane.b32.xlu0 %v1847, 94
      %v2209 = vpop.permute.xlu0 %2208
      %2210 = vrot.lane.b32.xlu0 %v1848, 94
      %v2211 = vpop.permute.xlu0 %2210
      %2212 = vrot.lane.b32.xlu0 %v1849, 94
      %v2213 = vpop.permute.xlu0 %2212
      %2214 = vrot.lane.b32.xlu0 %v1850, 94
      %v2215 = vpop.permute.xlu0 %2214
      %2216 = vrot.lane.b32.xlu0 %v1851, 94
      %v2217 = vpop.permute.xlu0 %2216
      %2218 = vrot.lane.b32.xlu0 %v1852, 94
      %v2219 = vpop.permute.xlu0 %2218
      %2220 = vrot.lane.b32.xlu0 %v1853, 94
      %v2221 = vpop.permute.xlu0 %2220
      %2222 = vrot.lane.b32.xlu0 %v1854, 94
      %v2223 = vpop.permute.xlu0 %2222
      %2224 = vrot.lane.b32.xlu0 %v1855, 94
      %v2225 = vpop.permute.xlu0 %2224
      %2226 = vrot.lane.b32.xlu0 %v1856, 94
      %v2227 = vpop.permute.xlu0 %2226
      %2228 = vrot.lane.b32.xlu0 %v1857, 94
      %v2229 = vpop.permute.xlu0 %2228
      %v2230 = vsel %vm646, %v2207, %v2209
      %v2231 = vsel %vm646, %v2209, %v1205
      %v2232 = vsel %vm646, %v2211, %v2213
      %v2233 = vsel %vm646, %v2213, %v1205
      %v2234 = vsel %vm646, %v2215, %v2217
      %v2235 = vsel %vm646, %v2217, %v1205
      %v2236 = vsel %vm646, %v2219, %v2221
      %v2237 = vsel %vm646, %v2221, %v1205
      %v2238 = vsel %vm646, %v2223, %v2225
      %v2239 = vsel %vm646, %v2225, %v1205
      %v2240 = vsel %vm646, %v2227, %v2229
      %v2241 = vsel %vm646, %v2229, %v1205
      %v2254 = vld [vmem:[%s5] sm:$0xff]
      %v2255 = vld [vmem:[%s5 + $0x8] sm:$0xff]
      %v2256 = vld [vmem:[%s5 + $0x10] sm:$0xff]
      %v2257 = vld [vmem:[%s5 + $0x18] sm:$0xf]
      %v2258 = vld [vmem:[%s5 + $0x1c] sm:$0xff]
      %v2259 = vld [vmem:[%s5 + $0x24] sm:$0xff]
      %v2260 = vld [vmem:[%s5 + $0x2c] sm:$0xff]
      %v2261 = vld [vmem:[%s5 + $0x34] sm:$0xf]
      %v2262 = vld [vmem:[%s5 + $0x38] sm:$0xff]
      %v2263 = vld [vmem:[%s5 + $0x40] sm:$0xff]
      %v2264 = vld [vmem:[%s5 + $0x48] sm:$0xff]
      %v2265 = vld [vmem:[%s5 + $0x50] sm:$0xf]
      %v2266 = vld [vmem:[%s5 + $0x54] sm:$0xff]
      %v2267 = vld [vmem:[%s5 + $0x5c] sm:$0xff]
      %v2268 = vld [vmem:[%s5 + $0x64] sm:$0xff]
      %v2269 = vld [vmem:[%s5 + $0x6c] sm:$0xf]
      %v2270 = vld [vmem:[%s5 + $0x70] sm:$0xff]
      %v2271 = vld [vmem:[%s5 + $0x78] sm:$0xff]
      %v2272 = vld [vmem:[%s5 + $0x80] sm:$0xff]
      %v2273 = vld [vmem:[%s5 + $0x88] sm:$0xf]
      %v2274 = vld [vmem:[%s5 + $0x8c] sm:$0xff]
      %v2275 = vld [vmem:[%s5 + $0x94] sm:$0xff]
      %v2276 = vld [vmem:[%s5 + $0x9c] sm:$0xff]
      %v2277 = vld [vmem:[%s5 + $0xa4] sm:$0xf]
      %v2278 = vld [vmem:[%s5 + $0xa8] sm:$0xff]
      %v2279 = vld [vmem:[%s5 + $0xb0] sm:$0xff]
      %v2280 = vld [vmem:[%s5 + $0xb8] sm:$0xff]
      %v2281 = vld [vmem:[%s5 + $0xc0] sm:$0xf]
      %v2282 = vld [vmem:[%s5 + $0xc4] sm:$0xff]
      %v2283 = vld [vmem:[%s5 + $0xcc] sm:$0xff]
      %v2284 = vld [vmem:[%s5 + $0xd4] sm:$0xff]
      %v2285 = vld [vmem:[%s5 + $0xdc] sm:$0xf]
      %v2286 = vld [vmem:[%s5 + $0xe0] sm:$0xff]
      %v2287 = vld [vmem:[%s5 + $0xe8] sm:$0xff]
      %v2288 = vld [vmem:[%s5 + $0xf0] sm:$0xff]
      %v2289 = vld [vmem:[%s5 + $0xf8] sm:$0xf]
      %v2290 = vld [vmem:[%s5 + $0xfc] sm:$0xff]
      %v2291 = vld [vmem:[%s5 + $0x104] sm:$0xff]
      %v2292 = vld [vmem:[%s5 + $0x10c] sm:$0xff]
      %v2293 = vld [vmem:[%s5 + $0x114] sm:$0xf]
      %v2294 = vld [vmem:[%s5 + $0x118] sm:$0xff]
      %v2295 = vld [vmem:[%s5 + $0x120] sm:$0xff]
      %v2296 = vld [vmem:[%s5 + $0x128] sm:$0xff]
      %v2297 = vld [vmem:[%s5 + $0x130] sm:$0xf]
      %v2298 = vld [vmem:[%s5 + $0x134] sm:$0xff]
      %v2299 = vld [vmem:[%s5 + $0x13c] sm:$0xff]
      %v2300 = vld [vmem:[%s5 + $0x144] sm:$0xff]
      %v2301 = vld [vmem:[%s5 + $0x14c] sm:$0xf]
      %v2302 = vld [vmem:[%s5 + $0x150] sm:$0xff]
      %v2303 = vld [vmem:[%s5 + $0x158] sm:$0xff]
      %v2304 = vld [vmem:[%s5 + $0x160] sm:$0xff]
      %v2305 = vld [vmem:[%s5 + $0x168] sm:$0xf]
      %v2306 = vld [vmem:[%s5 + $0x16c] sm:$0xff]
      %v2307 = vld [vmem:[%s5 + $0x174] sm:$0xff]
      %v2308 = vld [vmem:[%s5 + $0x17c] sm:$0xff]
      %v2309 = vld [vmem:[%s5 + $0x184] sm:$0xf]
      %v2310 = vld [vmem:[%s5 + $0x188] sm:$0xff]
      %v2311 = vld [vmem:[%s5 + $0x190] sm:$0xff]
      %v2312 = vld [vmem:[%s5 + $0x198] sm:$0xff]
      %v2313 = vld [vmem:[%s5 + $0x1a0] sm:$0xf]
      %v2314 = vld [vmem:[%s5 + $0x1a4] sm:$0xff]
      %v2315 = vld [vmem:[%s5 + $0x1ac] sm:$0xff]
      %v2316 = vld [vmem:[%s5 + $0x1b4] sm:$0xff]
      %v2317 = vld [vmem:[%s5 + $0x1bc] sm:$0xf]
      %v2318 = vld [vmem:[%s6] sm:$0xff]
      %v2319 = vld [vmem:[%s6 + $0x8] sm:$0xff]
      %v2320 = vld [vmem:[%s6 + $0x10] sm:$0xff]
      %v2321 = vld [vmem:[%s6 + $0x18] sm:$0xff]
      %v2322 = vld [vmem:[%s6 + $0x20] sm:$0xff]
      %v2323 = vld [vmem:[%s6 + $0x28] sm:$0xff]
      %v2324 = vld [vmem:[%s6 + $0x30] sm:$0xff]
      %v2325 = vld [vmem:[%s6 + $0x38] sm:$0xff]
      %v2326 = vld [vmem:[%s6 + $0x40] sm:$0xff]
      %v2327 = vld [vmem:[%s6 + $0x48] sm:$0xff]
      %v2328 = vld [vmem:[%s6 + $0x50] sm:$0xff]
      %v2329 = vld [vmem:[%s6 + $0x58] sm:$0xff]
      %v2330 = vld [vmem:[%s6 + $0x60] sm:$0xff]
      %v2331 = vld [vmem:[%s6 + $0x68] sm:$0xff]
      %v2332 = vld [vmem:[%s6 + $0x70] sm:$0xff]
      %v2333 = vld [vmem:[%s6 + $0x78] sm:$0xff]
      %2335 = vset.pattern.permute.xlu0 0
      %2336 = vperm.xlu0 %2335, %v2318
      %v2337 = vpop.permute.xlu0 %2336
      %2340 = vset.pattern.permute.xlu0 0
      %2341 = vperm.xlu0 %2340, %v2319
      %v2342 = vpop.permute.xlu0 %2341
      %2345 = vset.pattern.permute.xlu0 0
      %2346 = vperm.xlu0 %2345, %v2320
      %v2347 = vpop.permute.xlu0 %2346
      %2350 = vset.pattern.permute.xlu0 0
      %2351 = vperm.xlu0 %2350, %v2321
      %v2352 = vpop.permute.xlu0 %2351
      %2355 = vset.pattern.permute.xlu0 0
      %2356 = vperm.xlu0 %2355, %v2322
      %v2357 = vpop.permute.xlu0 %2356
      %2360 = vset.pattern.permute.xlu0 0
      %2361 = vperm.xlu0 %2360, %v2323
      %v2362 = vpop.permute.xlu0 %2361
      %2365 = vset.pattern.permute.xlu0 0
      %2366 = vperm.xlu0 %2365, %v2324
      %v2367 = vpop.permute.xlu0 %2366
      %2370 = vset.pattern.permute.xlu0 0
      %2371 = vperm.xlu0 %2370, %v2325
      %v2372 = vpop.permute.xlu0 %2371
      %2375 = vset.pattern.permute.xlu0 0
      %2376 = vperm.xlu0 %2375, %v2326
      %v2377 = vpop.permute.xlu0 %2376
      %2380 = vset.pattern.permute.xlu0 0
      %2381 = vperm.xlu0 %2380, %v2327
      %v2382 = vpop.permute.xlu0 %2381
      %2385 = vset.pattern.permute.xlu0 0
      %2386 = vperm.xlu0 %2385, %v2328
      %v2387 = vpop.permute.xlu0 %2386
      %2390 = vset.pattern.permute.xlu0 0
      %2391 = vperm.xlu0 %2390, %v2329
      %v2392 = vpop.permute.xlu0 %2391
      %2395 = vset.pattern.permute.xlu0 0
      %2396 = vperm.xlu0 %2395, %v2330
      %v2397 = vpop.permute.xlu0 %2396
      %2400 = vset.pattern.permute.xlu0 0
      %2401 = vperm.xlu0 %2400, %v2331
      %v2402 = vpop.permute.xlu0 %2401
      %2405 = vset.pattern.permute.xlu0 0
      %2406 = vperm.xlu0 %2405, %v2332
      %v2407 = vpop.permute.xlu0 %2406
      %2410 = vset.pattern.permute.xlu0 0
      %2411 = vperm.xlu0 %2410, %v2333
      %v2412 = vpop.permute.xlu0 %2411
      %v2478 = vunpack.c.l.b16 %v2254
      %v2479 = vunpack.c.h.b16 %v2254
      %v2480 = vunpack.c.l.b16 %v2255
      %v2481 = vunpack.c.h.b16 %v2255
      %v2482 = vunpack.c.l.b16 %v2256
      %v2483 = vunpack.c.h.b16 %v2256
      %v2484 = vunpack.c.l.b16 %v2257
      %v2485 = vunpack.c.l.b16 %v2258
      %v2486 = vunpack.c.h.b16 %v2258
      %v2487 = vunpack.c.l.b16 %v2259
      %v2488 = vunpack.c.h.b16 %v2259
      %v2489 = vunpack.c.l.b16 %v2260
      %v2490 = vunpack.c.h.b16 %v2260
      %v2491 = vunpack.c.l.b16 %v2261
      %v2492 = vunpack.c.l.b16 %v2262
      %v2493 = vunpack.c.h.b16 %v2262
      %v2494 = vunpack.c.l.b16 %v2263
      %v2495 = vunpack.c.h.b16 %v2263
      %v2496 = vunpack.c.l.b16 %v2264
      %v2497 = vunpack.c.h.b16 %v2264
      %v2498 = vunpack.c.l.b16 %v2265
      %v2499 = vunpack.c.l.b16 %v2266
      %v2500 = vunpack.c.h.b16 %v2266
      %v2501 = vunpack.c.l.b16 %v2267
      %v2502 = vunpack.c.h.b16 %v2267
      %v2503 = vunpack.c.l.b16 %v2268
      %v2504 = vunpack.c.h.b16 %v2268
      %v2505 = vunpack.c.l.b16 %v2269
      %v2506 = vunpack.c.l.b16 %v2270
      %v2507 = vunpack.c.h.b16 %v2270
      %v2508 = vunpack.c.l.b16 %v2271
      %v2509 = vunpack.c.h.b16 %v2271
      %v2510 = vunpack.c.l.b16 %v2272
      %v2511 = vunpack.c.h.b16 %v2272
      %v2512 = vunpack.c.l.b16 %v2273
      %v2513 = vunpack.c.l.b16 %v2274
      %v2514 = vunpack.c.h.b16 %v2274
      %v2515 = vunpack.c.l.b16 %v2275
      %v2516 = vunpack.c.h.b16 %v2275
      %v2517 = vunpack.c.l.b16 %v2276
      %v2518 = vunpack.c.h.b16 %v2276
      %v2519 = vunpack.c.l.b16 %v2277
      %v2520 = vunpack.c.l.b16 %v2278
      %v2521 = vunpack.c.h.b16 %v2278
      %v2522 = vunpack.c.l.b16 %v2279
      %v2523 = vunpack.c.h.b16 %v2279
      %v2524 = vunpack.c.l.b16 %v2280
      %v2525 = vunpack.c.h.b16 %v2280
      %v2526 = vunpack.c.l.b16 %v2281
      %v2527 = vunpack.c.l.b16 %v2282
      %v2528 = vunpack.c.h.b16 %v2282
      %v2529 = vunpack.c.l.b16 %v2283
      %v2530 = vunpack.c.h.b16 %v2283
      %v2531 = vunpack.c.l.b16 %v2284
      %v2532 = vunpack.c.h.b16 %v2284
      %v2533 = vunpack.c.l.b16 %v2285
      %v2534 = vunpack.c.l.b16 %v2286
      %v2535 = vunpack.c.h.b16 %v2286
      %v2536 = vunpack.c.l.b16 %v2287
      %v2537 = vunpack.c.h.b16 %v2287
      %v2538 = vunpack.c.l.b16 %v2288
      %v2539 = vunpack.c.h.b16 %v2288
      %v2540 = vunpack.c.l.b16 %v2289
      %v2541 = vunpack.c.l.b16 %v2290
      %v2542 = vunpack.c.h.b16 %v2290
      %v2543 = vunpack.c.l.b16 %v2291
      %v2544 = vunpack.c.h.b16 %v2291
      %v2545 = vunpack.c.l.b16 %v2292
      %v2546 = vunpack.c.h.b16 %v2292
      %v2547 = vunpack.c.l.b16 %v2293
      %v2548 = vunpack.c.l.b16 %v2294
      %v2549 = vunpack.c.h.b16 %v2294
      %v2550 = vunpack.c.l.b16 %v2295
      %v2551 = vunpack.c.h.b16 %v2295
      %v2552 = vunpack.c.l.b16 %v2296
      %v2553 = vunpack.c.h.b16 %v2296
      %v2554 = vunpack.c.l.b16 %v2297
      %v2555 = vunpack.c.l.b16 %v2298
      %v2556 = vunpack.c.h.b16 %v2298
      %v2557 = vunpack.c.l.b16 %v2299
      %v2558 = vunpack.c.h.b16 %v2299
      %v2559 = vunpack.c.l.b16 %v2300
      %v2560 = vunpack.c.h.b16 %v2300
      %v2561 = vunpack.c.l.b16 %v2301
      %v2562 = vunpack.c.l.b16 %v2302
      %v2563 = vunpack.c.h.b16 %v2302
      %v2564 = vunpack.c.l.b16 %v2303
      %v2565 = vunpack.c.h.b16 %v2303
      %v2566 = vunpack.c.l.b16 %v2304
      %v2567 = vunpack.c.h.b16 %v2304
      %v2568 = vunpack.c.l.b16 %v2305
      %v2569 = vunpack.c.l.b16 %v2306
      %v2570 = vunpack.c.h.b16 %v2306
      %v2571 = vunpack.c.l.b16 %v2307
      %v2572 = vunpack.c.h.b16 %v2307
      %v2573 = vunpack.c.l.b16 %v2308
      %v2574 = vunpack.c.h.b16 %v2308
      %v2575 = vunpack.c.l.b16 %v2309
      %v2576 = vunpack.c.l.b16 %v2310
      %v2577 = vunpack.c.h.b16 %v2310
      %v2578 = vunpack.c.l.b16 %v2311
      %v2579 = vunpack.c.h.b16 %v2311
      %v2580 = vunpack.c.l.b16 %v2312
      %v2581 = vunpack.c.h.b16 %v2312
      %v2582 = vunpack.c.l.b16 %v2313
      %v2583 = vunpack.c.l.b16 %v2314
      %v2584 = vunpack.c.h.b16 %v2314
      %v2585 = vunpack.c.l.b16 %v2315
      %v2586 = vunpack.c.h.b16 %v2315
      %v2587 = vunpack.c.l.b16 %v2316
      %v2588 = vunpack.c.h.b16 %v2316
      %v2589 = vunpack.c.l.b16 %v2317
      %v2590 = vpack.c.b16 %v2485, %v2478
      %v2591 = vpack.c.b16 %v2486, %v2479
      %v2592 = vpack.c.b16 %v2487, %v2480
      %v2593 = vpack.c.b16 %v2488, %v2481
      %v2594 = vpack.c.b16 %v2489, %v2482
      %v2595 = vpack.c.b16 %v2490, %v2483
      %v2596 = vpack.c.b16 %v2491, %v2484
      %v2597 = vpack.c.b16 %v2499, %v2492
      %v2598 = vpack.c.b16 %v2500, %v2493
      %v2599 = vpack.c.b16 %v2501, %v2494
      %v2600 = vpack.c.b16 %v2502, %v2495
      %v2601 = vpack.c.b16 %v2503, %v2496
      %v2602 = vpack.c.b16 %v2504, %v2497
      %v2603 = vpack.c.b16 %v2505, %v2498
      %v2604 = vpack.c.b16 %v2513, %v2506
      %v2605 = vpack.c.b16 %v2514, %v2507
      %v2606 = vpack.c.b16 %v2515, %v2508
      %v2607 = vpack.c.b16 %v2516, %v2509
      %v2608 = vpack.c.b16 %v2517, %v2510
      %v2609 = vpack.c.b16 %v2518, %v2511
      %v2610 = vpack.c.b16 %v2519, %v2512
      %v2611 = vpack.c.b16 %v2527, %v2520
      %v2612 = vpack.c.b16 %v2528, %v2521
      %v2613 = vpack.c.b16 %v2529, %v2522
      %v2614 = vpack.c.b16 %v2530, %v2523
      %v2615 = vpack.c.b16 %v2531, %v2524
      %v2616 = vpack.c.b16 %v2532, %v2525
      %v2617 = vpack.c.b16 %v2533, %v2526
      %v2618 = vpack.c.b16 %v2541, %v2534
      %v2619 = vpack.c.b16 %v2542, %v2535
      %v2620 = vpack.c.b16 %v2543, %v2536
      %v2621 = vpack.c.b16 %v2544, %v2537
      %v2622 = vpack.c.b16 %v2545, %v2538
      %v2623 = vpack.c.b16 %v2546, %v2539
      %v2624 = vpack.c.b16 %v2547, %v2540
      %v2625 = vpack.c.b16 %v2555, %v2548
      %v2626 = vpack.c.b16 %v2556, %v2549
      %v2627 = vpack.c.b16 %v2557, %v2550
      %v2628 = vpack.c.b16 %v2558, %v2551
      %v2629 = vpack.c.b16 %v2559, %v2552
      %v2630 = vpack.c.b16 %v2560, %v2553
      %v2631 = vpack.c.b16 %v2561, %v2554
      %v2632 = vpack.c.b16 %v2569, %v2562
      %v2633 = vpack.c.b16 %v2570, %v2563
      %v2634 = vpack.c.b16 %v2571, %v2564
      %v2635 = vpack.c.b16 %v2572, %v2565
      %v2636 = vpack.c.b16 %v2573, %v2566
      %v2637 = vpack.c.b16 %v2574, %v2567
      %v2638 = vpack.c.b16 %v2575, %v2568
      %v2639 = vpack.c.b16 %v2583, %v2576
      %v2640 = vpack.c.b16 %v2584, %v2577
      %v2641 = vpack.c.b16 %v2585, %v2578
      %v2642 = vpack.c.b16 %v2586, %v2579
      %v2643 = vpack.c.b16 %v2587, %v2580
      %v2644 = vpack.c.b16 %v2588, %v2581
      %v2645 = vpack.c.b16 %v2589, %v2582
      %vm2694 = vcmask 785408
      %v2696 = vsel %vm2694, %v2596, 0
      %v2699 = vsel %vm2694, %v2603, 0
      %v2702 = vsel %vm2694, %v2610, 0
      %v2705 = vsel %vm2694, %v2617, 0
      %v2708 = vsel %vm2694, %v2624, 0
      %v2711 = vsel %vm2694, %v2631, 0
      %v2714 = vsel %vm2694, %v2638, 0
      %v2717 = vsel %vm2694, %v2645, 0
      %2719 = vmatprep.subr.bf16.mxu0 %v1897
      %2720 = vmatpush1.bf16.msra.mxu0 %v1896
      %2721 = vmatprep.subr.bf16.mxu0 %v1895
      %2722 = vmatpush1.bf16.msra.mxu0 %v1894
      %2723 = vmatprep.subr.bf16.mxu0 %v1857
      %2724 = vmatpush1.bf16.msra.mxu0 %v1856
      %2725 = vmatprep.subr.bf16.mxu0 %v1855
      %2726 = vmatpush1.bf16.msra.mxu0 %v1854
      %2727 = vmatprep.subr.bf16.mxu0 %v1853
      %2728 = vmatpush1.bf16.msra.mxu0 %v1852
      %2729 = vmatprep.subr.bf16.mxu0 %v1851
      %2730 = vmatpush1.bf16.msra.mxu0 %v1850
      %2731 = vmatprep.subr.bf16.mxu0 %v1849
      %2732 = vmatpush1.bf16.msra.mxu0 %v1848
      %2733 = vmatprep.subr.bf16.mxu0 %v1847
      %2734 = vmatpush1.bf16.msra.mxu0 %v1846
      %2735 = vmatprep.subr.bf16.mxu0 %v1949
      %2736 = vmatpush2.bf16.msra.mxu0 %v1948
      %2737 = vmatprep.subr.bf16.mxu0 %v1947
      %2738 = vmatpush2.bf16.msra.mxu0 %v1946
      %2739 = vmatprep.subr.bf16.mxu0 %v1945
      %2740 = vmatpush2.bf16.msra.mxu0 %v1944
      %2741 = vmatprep.subr.bf16.mxu0 %v1943
      %2742 = vmatpush2.bf16.msra.mxu0 %v1942
      %2743 = vmatprep.subr.bf16.mxu0 %v1905
      %2744 = vmatpush2.bf16.msra.mxu0 %v1904
      %2745 = vmatprep.subr.bf16.mxu0 %v1903
      %2746 = vmatpush2.bf16.msra.mxu0 %v1902
      %2747 = vmatprep.subr.bf16.mxu0 %v1901
      %2748 = vmatpush2.bf16.msra.mxu0 %v1900
      %2749 = vmatprep.subr.bf16.mxu0 %v1899
      %2750 = vmatpush2.bf16.msra.mxu0 %v1898
      %2751 = vmatprep.mubr.bf16.mxu0 %v2591
      %2752 = vmatmul.mubr.bf16.gmra.mxu0 %v2590
      %v2753 = vpop.f32.mrf.mxu0
      %v2754 = vadd.f32 %v2337, %v2753
      %v2755 = vpop.f32.mrf.mxu0
      %v2756 = vadd.f32 %v2337, %v2755
      %v2757 = vpop.f32.mrf.mxu0
      %v2758 = vadd.f32 %v2342, %v2757
      %v2759 = vpop.f32.mrf.mxu0
      %v2760 = vadd.f32 %v2342, %v2759
      %2761 = vmatprep.mubr.bf16.mxu0 %v2598
      %2762 = vmatmul.mubr.bf16.gmra.mxu0 %v2597
      %v2763 = vpop.f32.mrf.mxu0
      %v2764 = vadd.f32 %v2347, %v2763
      %v2765 = vpop.f32.mrf.mxu0
      %v2766 = vadd.f32 %v2347, %v2765
      %v2767 = vpop.f32.mrf.mxu0
      %v2768 = vadd.f32 %v2352, %v2767
      %v2769 = vpop.f32.mrf.mxu0
      %v2770 = vadd.f32 %v2352, %v2769
      %2771 = vmatprep.mubr.bf16.mxu0 %v2605
      %2772 = vmatmul.mubr.bf16.gmra.mxu0 %v2604
      %v2773 = vpop.f32.mrf.mxu0
      %v2774 = vadd.f32 %v2357, %v2773
      %v2775 = vpop.f32.mrf.mxu0
      %v2776 = vadd.f32 %v2357, %v2775
      %v2777 = vpop.f32.mrf.mxu0
      %v2778 = vadd.f32 %v2362, %v2777
      %v2779 = vpop.f32.mrf.mxu0
      %v2780 = vadd.f32 %v2362, %v2779
      %2781 = vmatprep.mubr.bf16.mxu0 %v2612
      %2782 = vmatmul.mubr.bf16.gmra.mxu0 %v2611
      %v2783 = vpop.f32.mrf.mxu0
      %v2784 = vadd.f32 %v2367, %v2783
      %v2785 = vpop.f32.mrf.mxu0
      %v2786 = vadd.f32 %v2367, %v2785
      %v2787 = vpop.f32.mrf.mxu0
      %v2788 = vadd.f32 %v2372, %v2787
      %v2789 = vpop.f32.mrf.mxu0
      %v2790 = vadd.f32 %v2372, %v2789
      %2791 = vmatprep.mubr.bf16.mxu0 %v2619
      %2792 = vmatmul.mubr.bf16.gmra.mxu0 %v2618
      %v2793 = vpop.f32.mrf.mxu0
      %v2794 = vadd.f32 %v2377, %v2793
      %v2795 = vpop.f32.mrf.mxu0
      %v2796 = vadd.f32 %v2377, %v2795
      %v2797 = vpop.f32.mrf.mxu0
      %v2798 = vadd.f32 %v2382, %v2797
      %v2799 = vpop.f32.mrf.mxu0
      %v2800 = vadd.f32 %v2382, %v2799
      %2801 = vmatprep.mubr.bf16.mxu0 %v2626
      %2802 = vmatmul.mubr.bf16.gmra.mxu0 %v2625
      %v2803 = vpop.f32.mrf.mxu0
      %v2804 = vadd.f32 %v2387, %v2803
      %v2805 = vpop.f32.mrf.mxu0
      %v2806 = vadd.f32 %v2387, %v2805
      %v2807 = vpop.f32.mrf.mxu0
      %v2808 = vadd.f32 %v2392, %v2807
      %v2809 = vpop.f32.mrf.mxu0
      %v2810 = vadd.f32 %v2392, %v2809
      %2811 = vmatprep.mubr.bf16.mxu0 %v2633
      %2812 = vmatmul.mubr.bf16.gmra.mxu0 %v2632
      %v2813 = vpop.f32.mrf.mxu0
      %v2814 = vadd.f32 %v2397, %v2813
      %v2815 = vpop.f32.mrf.mxu0
      %v2816 = vadd.f32 %v2397, %v2815
      %v2817 = vpop.f32.mrf.mxu0
      %v2818 = vadd.f32 %v2402, %v2817
      %v2819 = vpop.f32.mrf.mxu0
      %v2820 = vadd.f32 %v2402, %v2819
      %2821 = vmatprep.mubr.bf16.mxu0 %v2640
      %2822 = vmatmul.mubr.bf16.gmra.mxu0 %v2639
      %v2823 = vpop.f32.mrf.mxu0
      %v2824 = vadd.f32 %v2407, %v2823
      %v2825 = vpop.f32.mrf.mxu0
      %v2826 = vadd.f32 %v2407, %v2825
      %v2827 = vpop.f32.mrf.mxu0
      %v2828 = vadd.f32 %v2412, %v2827
      %v2829 = vpop.f32.mrf.mxu0
      %v2830 = vadd.f32 %v2412, %v2829
      %2831 = vdwg.mxu0
      %2832 = vmatprep.subr.bf16.mxu0 %v2001
      %2833 = vmatpush1.bf16.msra.mxu0 %v2000
      %2834 = vmatprep.subr.bf16.mxu0 %v1999
      %2835 = vmatpush1.bf16.msra.mxu0 %v1998
      %2836 = vmatprep.subr.bf16.mxu0 %v1997
      %2837 = vmatpush1.bf16.msra.mxu0 %v1996
      %2838 = vmatprep.subr.bf16.mxu0 %v1995
      %2839 = vmatpush1.bf16.msra.mxu0 %v1994
      %2840 = vmatprep.subr.bf16.mxu0 %v1993
      %2841 = vmatpush1.bf16.msra.mxu0 %v1992
      %2842 = vmatprep.subr.bf16.mxu0 %v1991
      %2843 = vmatpush1.bf16.msra.mxu0 %v1990
      %2844 = vmatprep.subr.bf16.mxu0 %v1953
      %2845 = vmatpush1.bf16.msra.mxu0 %v1952
      %2846 = vmatprep.subr.bf16.mxu0 %v1951
      %2847 = vmatpush1.bf16.msra.mxu0 %v1950
      %2848 = vmatprep.subr.bf16.mxu0 %v2089
      %2849 = vmatpush2.bf16.msra.mxu0 %v2088
      %2850 = vmatprep.subr.bf16.mxu0 %v2087
      %2851 = vmatpush2.bf16.msra.mxu0 %v2086
      %2852 = vmatprep.subr.bf16.mxu0 %v2049
      %2853 = vmatpush2.bf16.msra.mxu0 %v2048
      %2854 = vmatprep.subr.bf16.mxu0 %v2047
      %2855 = vmatpush2.bf16.msra.mxu0 %v2046
      %2856 = vmatprep.subr.bf16.mxu0 %v2045
      %2857 = vmatpush2.bf16.msra.mxu0 %v2044
      %2858 = vmatprep.subr.bf16.mxu0 %v2043
      %2859 = vmatpush2.bf16.msra.mxu0 %v2042
      %2860 = vmatprep.subr.bf16.mxu0 %v2041
      %2861 = vmatpush2.bf16.msra.mxu0 %v2040
      %2862 = vmatprep.subr.bf16.mxu0 %v2039
      %2863 = vmatpush2.bf16.msra.mxu0 %v2038
      %2864 = vmatprep.mubr.bf16.mxu0 %v2593
      %2865 = vmatmul.mubr.bf16.gmra.mxu0 %v2592
      %v2866 = vpop.f32.mrf.mxu0
      %v2867 = vadd.f32 %v2754, %v2866
      %v2868 = vpop.f32.mrf.mxu0
      %v2869 = vadd.f32 %v2756, %v2868
      %v2870 = vpop.f32.mrf.mxu0
      %v2871 = vadd.f32 %v2758, %v2870
      %v2872 = vpop.f32.mrf.mxu0
      %v2873 = vadd.f32 %v2760, %v2872
      %2874 = vmatprep.mubr.bf16.mxu0 %v2600
      %2875 = vmatmul.mubr.bf16.gmra.mxu0 %v2599
      %v2876 = vpop.f32.mrf.mxu0
      %v2877 = vadd.f32 %v2764, %v2876
      %v2878 = vpop.f32.mrf.mxu0
      %v2879 = vadd.f32 %v2766, %v2878
      %v2880 = vpop.f32.mrf.mxu0
      %v2881 = vadd.f32 %v2768, %v2880
      %v2882 = vpop.f32.mrf.mxu0
      %v2883 = vadd.f32 %v2770, %v2882
      %2884 = vmatprep.mubr.bf16.mxu0 %v2607
      %2885 = vmatmul.mubr.bf16.gmra.mxu0 %v2606
      %v2886 = vpop.f32.mrf.mxu0
      %v2887 = vadd.f32 %v2774, %v2886
      %v2888 = vpop.f32.mrf.mxu0
      %v2889 = vadd.f32 %v2776, %v2888
      %v2890 = vpop.f32.mrf.mxu0
      %v2891 = vadd.f32 %v2778, %v2890
      %v2892 = vpop.f32.mrf.mxu0
      %v2893 = vadd.f32 %v2780, %v2892
      %2894 = vmatprep.mubr.bf16.mxu0 %v2614
      %2895 = vmatmul.mubr.bf16.gmra.mxu0 %v2613
      %v2896 = vpop.f32.mrf.mxu0
      %v2897 = vadd.f32 %v2784, %v2896
      %v2898 = vpop.f32.mrf.mxu0
      %v2899 = vadd.f32 %v2786, %v2898
      %v2900 = vpop.f32.mrf.mxu0
      %v2901 = vadd.f32 %v2788, %v2900
      %v2902 = vpop.f32.mrf.mxu0
      %v2903 = vadd.f32 %v2790, %v2902
      %2904 = vmatprep.mubr.bf16.mxu0 %v2621
      %2905 = vmatmul.mubr.bf16.gmra.mxu0 %v2620
      %v2906 = vpop.f32.mrf.mxu0
      %v2907 = vadd.f32 %v2794, %v2906
      %v2908 = vpop.f32.mrf.mxu0
      %v2909 = vadd.f32 %v2796, %v2908
      %v2910 = vpop.f32.mrf.mxu0
      %v2911 = vadd.f32 %v2798, %v2910
      %v2912 = vpop.f32.mrf.mxu0
      %v2913 = vadd.f32 %v2800, %v2912
      %2914 = vmatprep.mubr.bf16.mxu0 %v2628
      %2915 = vmatmul.mubr.bf16.gmra.mxu0 %v2627
      %v2916 = vpop.f32.mrf.mxu0
      %v2917 = vadd.f32 %v2804, %v2916
      %v2918 = vpop.f32.mrf.mxu0
      %v2919 = vadd.f32 %v2806, %v2918
      %v2920 = vpop.f32.mrf.mxu0
      %v2921 = vadd.f32 %v2808, %v2920
      %v2922 = vpop.f32.mrf.mxu0
      %v2923 = vadd.f32 %v2810, %v2922
      %2924 = vmatprep.mubr.bf16.mxu0 %v2635
      %2925 = vmatmul.mubr.bf16.gmra.mxu0 %v2634
      %v2926 = vpop.f32.mrf.mxu0
      %v2927 = vadd.f32 %v2814, %v2926
      %v2928 = vpop.f32.mrf.mxu0
      %v2929 = vadd.f32 %v2816, %v2928
      %v2930 = vpop.f32.mrf.mxu0
      %v2931 = vadd.f32 %v2818, %v2930
      %v2932 = vpop.f32.mrf.mxu0
      %v2933 = vadd.f32 %v2820, %v2932
      %2934 = vmatprep.mubr.bf16.mxu0 %v2642
      %2935 = vmatmul.mubr.bf16.gmra.mxu0 %v2641
      %v2936 = vpop.f32.mrf.mxu0
      %v2937 = vadd.f32 %v2824, %v2936
      %v2938 = vpop.f32.mrf.mxu0
      %v2939 = vadd.f32 %v2826, %v2938
      %v2940 = vpop.f32.mrf.mxu0
      %v2941 = vadd.f32 %v2828, %v2940
      %v2942 = vpop.f32.mrf.mxu0
      %v2943 = vadd.f32 %v2830, %v2942
      %2944 = vdwg.mxu0
      %2945 = vmatprep.subr.bf16.mxu0 %v2141
      %2946 = vmatpush1.bf16.msra.mxu0 %v2140
      %2947 = vmatprep.subr.bf16.mxu0 %v2139
      %2948 = vmatpush1.bf16.msra.mxu0 %v2138
      %2949 = vmatprep.subr.bf16.mxu0 %v2137
      %2950 = vmatpush1.bf16.msra.mxu0 %v2136
      %2951 = vmatprep.subr.bf16.mxu0 %v2135
      %2952 = vmatpush1.bf16.msra.mxu0 %v2134
      %2953 = vmatprep.subr.bf16.mxu0 %v2097
      %2954 = vmatpush1.bf16.msra.mxu0 %v2096
      %2955 = vmatprep.subr.bf16.mxu0 %v2095
      %2956 = vmatpush1.bf16.msra.mxu0 %v2094
      %2957 = vmatprep.subr.bf16.mxu0 %v2093
      %2958 = vmatpush1.bf16.msra.mxu0 %v2092
      %2959 = vmatprep.subr.bf16.mxu0 %v2091
      %2960 = vmatpush1.bf16.msra.mxu0 %v2090
      %2961 = vmatprep.subr.bf16.mxu0 %v2193
      %2962 = vmatpush2.bf16.msra.mxu0 %v2192
      %2963 = vmatprep.subr.bf16.mxu0 %v2191
      %2964 = vmatpush2.bf16.msra.mxu0 %v2190
      %2965 = vmatprep.subr.bf16.mxu0 %v2189
      %2966 = vmatpush2.bf16.msra.mxu0 %v2188
      %2967 = vmatprep.subr.bf16.mxu0 %v2187
      %2968 = vmatpush2.bf16.msra.mxu0 %v2186
      %2969 = vmatprep.subr.bf16.mxu0 %v2185
      %2970 = vmatpush2.bf16.msra.mxu0 %v2184
      %2971 = vmatprep.subr.bf16.mxu0 %v2183
      %2972 = vmatpush2.bf16.msra.mxu0 %v2182
      %2973 = vmatprep.subr.bf16.mxu0 %v2145
      %2974 = vmatpush2.bf16.msra.mxu0 %v2144
      %2975 = vmatprep.subr.bf16.mxu0 %v2143
      %2976 = vmatpush2.bf16.msra.mxu0 %v2142
      %2977 = vmatprep.mubr.bf16.mxu0 %v2595
      %2978 = vmatmul.mubr.bf16.gmra.mxu0 %v2594
      %v2979 = vpop.f32.mrf.mxu0
      %v2980 = vadd.f32 %v2867, %v2979
      %v2981 = vpop.f32.mrf.mxu0
      %v2982 = vadd.f32 %v2869, %v2981
      %v2983 = vpop.f32.mrf.mxu0
      %v2984 = vadd.f32 %v2871, %v2983
      %v2985 = vpop.f32.mrf.mxu0
      %v2986 = vadd.f32 %v2873, %v2985
      %2987 = vmatprep.mubr.bf16.mxu0 %v2602
      %2988 = vmatmul.mubr.bf16.gmra.mxu0 %v2601
      %v2989 = vpop.f32.mrf.mxu0
      %v2990 = vadd.f32 %v2877, %v2989
      %v2991 = vpop.f32.mrf.mxu0
      %v2992 = vadd.f32 %v2879, %v2991
      %v2993 = vpop.f32.mrf.mxu0
      %v2994 = vadd.f32 %v2881, %v2993
      %v2995 = vpop.f32.mrf.mxu0
      %v2996 = vadd.f32 %v2883, %v2995
      %2997 = vmatprep.mubr.bf16.mxu0 %v2609
      %2998 = vmatmul.mubr.bf16.gmra.mxu0 %v2608
      %v2999 = vpop.f32.mrf.mxu0
      %v3000 = vadd.f32 %v2887, %v2999
      %v3001 = vpop.f32.mrf.mxu0
      %v3002 = vadd.f32 %v2889, %v3001
      %v3003 = vpop.f32.mrf.mxu0
      %v3004 = vadd.f32 %v2891, %v3003
      %v3005 = vpop.f32.mrf.mxu0
      %v3006 = vadd.f32 %v2893, %v3005
      %3007 = vmatprep.mubr.bf16.mxu0 %v2616
      %3008 = vmatmul.mubr.bf16.gmra.mxu0 %v2615
      %v3009 = vpop.f32.mrf.mxu0
      %v3010 = vadd.f32 %v2897, %v3009
      %v3011 = vpop.f32.mrf.mxu0
      %v3012 = vadd.f32 %v2899, %v3011
      %v3013 = vpop.f32.mrf.mxu0
      %v3014 = vadd.f32 %v2901, %v3013
      %v3015 = vpop.f32.mrf.mxu0
      %v3016 = vadd.f32 %v2903, %v3015
      %3017 = vmatprep.mubr.bf16.mxu0 %v2623
      %3018 = vmatmul.mubr.bf16.gmra.mxu0 %v2622
      %v3019 = vpop.f32.mrf.mxu0
      %v3020 = vadd.f32 %v2907, %v3019
      %v3021 = vpop.f32.mrf.mxu0
      %v3022 = vadd.f32 %v2909, %v3021
      %v3023 = vpop.f32.mrf.mxu0
      %v3024 = vadd.f32 %v2911, %v3023
      %v3025 = vpop.f32.mrf.mxu0
      %v3026 = vadd.f32 %v2913, %v3025
      %3027 = vmatprep.mubr.bf16.mxu0 %v2630
      %3028 = vmatmul.mubr.bf16.gmra.mxu0 %v2629
      %v3029 = vpop.f32.mrf.mxu0
      %v3030 = vadd.f32 %v2917, %v3029
      %v3031 = vpop.f32.mrf.mxu0
      %v3032 = vadd.f32 %v2919, %v3031
      %v3033 = vpop.f32.mrf.mxu0
      %v3034 = vadd.f32 %v2921, %v3033
      %v3035 = vpop.f32.mrf.mxu0
      %v3036 = vadd.f32 %v2923, %v3035
      %3037 = vmatprep.mubr.bf16.mxu0 %v2637
      %3038 = vmatmul.mubr.bf16.gmra.mxu0 %v2636
      %v3039 = vpop.f32.mrf.mxu0
      %v3040 = vadd.f32 %v2927, %v3039
      %v3041 = vpop.f32.mrf.mxu0
      %v3042 = vadd.f32 %v2929, %v3041
      %v3043 = vpop.f32.mrf.mxu0
      %v3044 = vadd.f32 %v2931, %v3043
      %v3045 = vpop.f32.mrf.mxu0
      %v3046 = vadd.f32 %v2933, %v3045
      %3047 = vmatprep.mubr.bf16.mxu0 %v2644
      %3048 = vmatmul.mubr.bf16.gmra.mxu0 %v2643
      %v3049 = vpop.f32.mrf.mxu0
      %v3050 = vadd.f32 %v2937, %v3049
      %v3051 = vpop.f32.mrf.mxu0
      %v3052 = vadd.f32 %v2939, %v3051
      %v3053 = vpop.f32.mrf.mxu0
      %v3054 = vadd.f32 %v2941, %v3053
      %v3055 = vpop.f32.mrf.mxu0
      %v3056 = vadd.f32 %v2943, %v3055
      %3057 = vdwg.mxu0
      %3058 = vmatprep.subr.bf16.mxu0 0
      %3059 = vmatpush1.bf16.msra.mxu0 0
      %3060 = vmatprep.subr.bf16.mxu0 0
      %3061 = vmatpush1.bf16.msra.mxu0 0
      %3062 = vmatprep.subr.bf16.mxu0 %v2241
      %3063 = vmatpush1.bf16.msra.mxu0 %v2240
      %3064 = vmatprep.subr.bf16.mxu0 %v2239
      %3065 = vmatpush1.bf16.msra.mxu0 %v2238
      %3066 = vmatprep.subr.bf16.mxu0 %v2237
      %3067 = vmatpush1.bf16.msra.mxu0 %v2236
      %3068 = vmatprep.subr.bf16.mxu0 %v2235
      %3069 = vmatpush1.bf16.msra.mxu0 %v2234
      %3070 = vmatprep.subr.bf16.mxu0 %v2233
      %3071 = vmatpush1.bf16.msra.mxu0 %v2232
      %3072 = vmatprep.subr.bf16.mxu0 %v2231
      %3073 = vmatpush1.bf16.msra.mxu0 %v2230
      %3074 = vmatprep.subr.bf16.mxu0 0
      %3075 = vmatpush2.bf16.msra.mxu0 0
      %3076 = vmatprep.subr.bf16.mxu0 0
      %3077 = vmatpush2.bf16.msra.mxu0 0
      %3078 = vmatprep.subr.bf16.mxu0 0
      %3079 = vmatpush2.bf16.msra.mxu0 0
      %3080 = vmatprep.subr.bf16.mxu0 0
      %3081 = vmatpush2.bf16.msra.mxu0 0
      %3082 = vmatprep.subr.bf16.mxu0 0
      %3083 = vmatpush2.bf16.msra.mxu0 0
      %3084 = vmatprep.subr.bf16.mxu0 0
      %3085 = vmatpush2.bf16.msra.mxu0 0
      %3086 = vmatprep.subr.bf16.mxu0 0
      %3087 = vmatpush2.bf16.msra.mxu0 0
      %3088 = vmatprep.subr.bf16.mxu0 0
      %3089 = vmatpush2.bf16.msra.mxu0 0
      %3090 = vmatprep.mubr.bf16.mxu0 0
      %3091 = vmatmul.mubr.bf16.gmra.mxu0 %v2696
      %v3092 = vpop.f32.mrf.mxu0
      %v3093 = vadd.f32 %v2980, %v3092
      %v3094 = vpop.f32.mrf.mxu0
      %v3095 = vadd.f32 %v2982, %v3094
      %v3096 = vpop.f32.mrf.mxu0
      %v3097 = vadd.f32 %v2984, %v3096
      %v3098 = vpop.f32.mrf.mxu0
      %v3099 = vadd.f32 %v2986, %v3098
      %3100 = vmatprep.mubr.bf16.mxu0 0
      %3101 = vmatmul.mubr.bf16.gmra.mxu0 %v2699
      %v3102 = vpop.f32.mrf.mxu0
      %v3103 = vadd.f32 %v2990, %v3102
      %v3104 = vpop.f32.mrf.mxu0
      %v3105 = vadd.f32 %v2992, %v3104
      %v3106 = vpop.f32.mrf.mxu0
      %v3107 = vadd.f32 %v2994, %v3106
      %v3108 = vpop.f32.mrf.mxu0
      %v3109 = vadd.f32 %v2996, %v3108
      %3110 = vmatprep.mubr.bf16.mxu0 0
      %3111 = vmatmul.mubr.bf16.gmra.mxu0 %v2702
      %v3112 = vpop.f32.mrf.mxu0
      %v3113 = vadd.f32 %v3000, %v3112
      %v3114 = vpop.f32.mrf.mxu0
      %v3115 = vadd.f32 %v3002, %v3114
      %v3116 = vpop.f32.mrf.mxu0
      %v3117 = vadd.f32 %v3004, %v3116
      %v3118 = vpop.f32.mrf.mxu0
      %v3119 = vadd.f32 %v3006, %v3118
      %3120 = vmatprep.mubr.bf16.mxu0 0
      %3121 = vmatmul.mubr.bf16.gmra.mxu0 %v2705
      %v3122 = vpop.f32.mrf.mxu0
      %v3123 = vadd.f32 %v3010, %v3122
      %v3124 = vpop.f32.mrf.mxu0
      %v3125 = vadd.f32 %v3012, %v3124
      %v3126 = vpop.f32.mrf.mxu0
      %v3127 = vadd.f32 %v3014, %v3126
      %v3128 = vpop.f32.mrf.mxu0
      %v3129 = vadd.f32 %v3016, %v3128
      %3130 = vmatprep.mubr.bf16.mxu0 0
      %3131 = vmatmul.mubr.bf16.gmra.mxu0 %v2708
      %v3132 = vpop.f32.mrf.mxu0
      %v3133 = vadd.f32 %v3020, %v3132
      %v3134 = vpop.f32.mrf.mxu0
      %v3135 = vadd.f32 %v3022, %v3134
      %v3136 = vpop.f32.mrf.mxu0
      %v3137 = vadd.f32 %v3024, %v3136
      %v3138 = vpop.f32.mrf.mxu0
      %v3139 = vadd.f32 %v3026, %v3138
      %3140 = vmatprep.mubr.bf16.mxu0 0
      %3141 = vmatmul.mubr.bf16.gmra.mxu0 %v2711
      %v3142 = vpop.f32.mrf.mxu0
      %v3143 = vadd.f32 %v3030, %v3142
      %v3144 = vpop.f32.mrf.mxu0
      %v3145 = vadd.f32 %v3032, %v3144
      %v3146 = vpop.f32.mrf.mxu0
      %v3147 = vadd.f32 %v3034, %v3146
      %v3148 = vpop.f32.mrf.mxu0
      %v3149 = vadd.f32 %v3036, %v3148
      %3150 = vmatprep.mubr.bf16.mxu0 0
      %3151 = vmatmul.mubr.bf16.gmra.mxu0 %v2714
      %v3152 = vpop.f32.mrf.mxu0
      %v3153 = vadd.f32 %v3040, %v3152
      %v3154 = vpop.f32.mrf.mxu0
      %v3155 = vadd.f32 %v3042, %v3154
      %v3156 = vpop.f32.mrf.mxu0
      %v3157 = vadd.f32 %v3044, %v3156
      %v3158 = vpop.f32.mrf.mxu0
      %v3159 = vadd.f32 %v3046, %v3158
      %3160 = vmatprep.mubr.bf16.mxu0 0
      %3161 = vmatmul.mubr.bf16.gmra.mxu0 %v2717
      %v3162 = vpop.f32.mrf.mxu0
      %v3163 = vadd.f32 %v3050, %v3162
      %v3164 = vpop.f32.mrf.mxu0
      %v3165 = vadd.f32 %v3052, %v3164
      %v3166 = vpop.f32.mrf.mxu0
      %v3167 = vadd.f32 %v3054, %v3166
      %v3168 = vpop.f32.mrf.mxu0
      %v3169 = vadd.f32 %v3056, %v3168
      %3170 = vdwg.mxu0
      %v3171 = vmax.f32 %v3093, 0.0
      %v3172 = vmax.f32 %v3095, 0.0
      %v3173 = vmax.f32 %v3097, 0.0
      %v3174 = vmax.f32 %v3099, 0.0
      %v3175 = vmax.f32 %v3103, 0.0
      %v3176 = vmax.f32 %v3105, 0.0
      %v3177 = vmax.f32 %v3107, 0.0
      %v3178 = vmax.f32 %v3109, 0.0
      %v3179 = vmax.f32 %v3113, 0.0
      %v3180 = vmax.f32 %v3115, 0.0
      %v3181 = vmax.f32 %v3117, 0.0
      %v3182 = vmax.f32 %v3119, 0.0
      %v3183 = vmax.f32 %v3123, 0.0
      %v3184 = vmax.f32 %v3125, 0.0
      %v3185 = vmax.f32 %v3127, 0.0
      %v3186 = vmax.f32 %v3129, 0.0
      %v3187 = vmax.f32 %v3133, 0.0
      %v3188 = vmax.f32 %v3135, 0.0
      %v3189 = vmax.f32 %v3137, 0.0
      %v3190 = vmax.f32 %v3139, 0.0
      %v3191 = vmax.f32 %v3143, 0.0
      %v3192 = vmax.f32 %v3145, 0.0
      %v3193 = vmax.f32 %v3147, 0.0
      %v3194 = vmax.f32 %v3149, 0.0
      %v3195 = vmax.f32 %v3153, 0.0
      %v3196 = vmax.f32 %v3155, 0.0
      %v3197 = vmax.f32 %v3157, 0.0
      %v3198 = vmax.f32 %v3159, 0.0
      %v3199 = vmax.f32 %v3163, 0.0
      %v3200 = vmax.f32 %v3165, 0.0
      %v3201 = vmax.f32 %v3167, 0.0
      %v3202 = vmax.f32 %v3169, 0.0
      %v3203 = vpack.c.bf16 %v3173, %v3171
      %v3204 = vpack.c.bf16 %v3174, %v3172
      %v3205 = vpack.c.bf16 %v3177, %v3175
      %v3206 = vpack.c.bf16 %v3178, %v3176
      %v3207 = vpack.c.bf16 %v3181, %v3179
      %v3208 = vpack.c.bf16 %v3182, %v3180
      %v3209 = vpack.c.bf16 %v3185, %v3183
      %v3210 = vpack.c.bf16 %v3186, %v3184
      %v3211 = vpack.c.bf16 %v3189, %v3187
      %v3212 = vpack.c.bf16 %v3190, %v3188
      %v3213 = vpack.c.bf16 %v3193, %v3191
      %v3214 = vpack.c.bf16 %v3194, %v3192
      %v3215 = vpack.c.bf16 %v3197, %v3195
      %v3216 = vpack.c.bf16 %v3198, %v3196
      %v3217 = vpack.c.bf16 %v3201, %v3199
      %v3218 = vpack.c.bf16 %v3202, %v3200
      %3235 = vrot.lane.b32.xlu0 %v3203, 127
      %v3236 = vpop.permute.xlu0 %3235
      %3237 = vrot.lane.b32.xlu0 %v3204, 127
      %v3238 = vpop.permute.xlu0 %3237
      %3239 = vrot.lane.b32.xlu0 %v3205, 127
      %v3240 = vpop.permute.xlu0 %3239
      %3241 = vrot.lane.b32.xlu0 %v3206, 127
      %v3242 = vpop.permute.xlu0 %3241
      %3243 = vrot.lane.b32.xlu0 %v3207, 127
      %v3244 = vpop.permute.xlu0 %3243
      %3245 = vrot.lane.b32.xlu0 %v3208, 127
      %v3246 = vpop.permute.xlu0 %3245
      %3247 = vrot.lane.b32.xlu0 %v3209, 127
      %v3248 = vpop.permute.xlu0 %3247
      %3249 = vrot.lane.b32.xlu0 %v3210, 127
      %v3250 = vpop.permute.xlu0 %3249
      %3251 = vrot.lane.b32.xlu0 %v3211, 127
      %v3252 = vpop.permute.xlu0 %3251
      %3253 = vrot.lane.b32.xlu0 %v3212, 127
      %v3254 = vpop.permute.xlu0 %3253
      %3255 = vrot.lane.b32.xlu0 %v3213, 127
      %v3256 = vpop.permute.xlu0 %3255
      %3257 = vrot.lane.b32.xlu0 %v3214, 127
      %v3258 = vpop.permute.xlu0 %3257
      %3259 = vrot.lane.b32.xlu0 %v3215, 127
      %v3260 = vpop.permute.xlu0 %3259
      %3261 = vrot.lane.b32.xlu0 %v3216, 127
      %v3262 = vpop.permute.xlu0 %3261
      %3263 = vrot.lane.b32.xlu0 %v3217, 127
      %v3264 = vpop.permute.xlu0 %3263
      %3265 = vrot.lane.b32.xlu0 %v3218, 127
      %v3266 = vpop.permute.xlu0 %3265
      %v3267 = vsel %vm569, %v3236, %v3238
      %v3268 = vsel %vm569, %v3238, %v911
      %v3269 = vsel %vm569, %v3240, %v3242
      %v3270 = vsel %vm569, %v3242, %v911
      %v3271 = vsel %vm569, %v3244, %v3246
      %v3272 = vsel %vm569, %v3246, %v911
      %v3273 = vsel %vm569, %v3248, %v3250
      %v3274 = vsel %vm569, %v3250, %v911
      %v3275 = vsel %vm569, %v3252, %v3254
      %v3276 = vsel %vm569, %v3254, %v911
      %v3277 = vsel %vm569, %v3256, %v3258
      %v3278 = vsel %vm569, %v3258, %v911
      %v3279 = vsel %vm569, %v3260, %v3262
      %v3280 = vsel %vm569, %v3262, %v911
      %v3281 = vsel %vm569, %v3264, %v3266
      %v3282 = vsel %vm569, %v3266, %v911
      %3299 = vrot.lane.b32.xlu0 %v3203, 126
      %v3300 = vpop.permute.xlu0 %3299
      %3301 = vrot.lane.b32.xlu0 %v3204, 126
      %v3302 = vpop.permute.xlu0 %3301
      %3303 = vrot.lane.b32.xlu0 %v3205, 126
      %v3304 = vpop.permute.xlu0 %3303
      %3305 = vrot.lane.b32.xlu0 %v3206, 126
      %v3306 = vpop.permute.xlu0 %3305
      %3307 = vrot.lane.b32.xlu0 %v3207, 126
      %v3308 = vpop.permute.xlu0 %3307
      %3309 = vrot.lane.b32.xlu0 %v3208, 126
      %v3310 = vpop.permute.xlu0 %3309
      %3311 = vrot.lane.b32.xlu0 %v3209, 126
      %v3312 = vpop.permute.xlu0 %3311
      %3313 = vrot.lane.b32.xlu0 %v3210, 126
      %v3314 = vpop.permute.xlu0 %3313
      %3315 = vrot.lane.b32.xlu0 %v3211, 126
      %v3316 = vpop.permute.xlu0 %3315
      %3317 = vrot.lane.b32.xlu0 %v3212, 126
      %v3318 = vpop.permute.xlu0 %3317
      %3319 = vrot.lane.b32.xlu0 %v3213, 126
      %v3320 = vpop.permute.xlu0 %3319
      %3321 = vrot.lane.b32.xlu0 %v3214, 126
      %v3322 = vpop.permute.xlu0 %3321
      %3323 = vrot.lane.b32.xlu0 %v3215, 126
      %v3324 = vpop.permute.xlu0 %3323
      %3325 = vrot.lane.b32.xlu0 %v3216, 126
      %v3326 = vpop.permute.xlu0 %3325
      %3327 = vrot.lane.b32.xlu0 %v3217, 126
      %v3328 = vpop.permute.xlu0 %3327
      %3329 = vrot.lane.b32.xlu0 %v3218, 126
      %v3330 = vpop.permute.xlu0 %3329
      %v3331 = vsel %vm580, %v3300, %v3302
      %v3332 = vsel %vm580, %v3302, %v953
      %v3333 = vsel %vm580, %v3304, %v3306
      %v3334 = vsel %vm580, %v3306, %v953
      %v3335 = vsel %vm580, %v3308, %v3310
      %v3336 = vsel %vm580, %v3310, %v953
      %v3337 = vsel %vm580, %v3312, %v3314
      %v3338 = vsel %vm580, %v3314, %v953
      %v3339 = vsel %vm580, %v3316, %v3318
      %v3340 = vsel %vm580, %v3318, %v953
      %v3341 = vsel %vm580, %v3320, %v3322
      %v3342 = vsel %vm580, %v3322, %v953
      %v3343 = vsel %vm580, %v3324, %v3326
      %v3344 = vsel %vm580, %v3326, %v953
      %v3345 = vsel %vm580, %v3328, %v3330
      %v3346 = vsel %vm580, %v3330, %v953
      %3363 = vrot.lane.b32.xlu0 %v3203, 112
      %v3364 = vpop.permute.xlu0 %3363
      %3365 = vrot.lane.b32.xlu0 %v3204, 112
      %v3366 = vpop.permute.xlu0 %3365
      %3367 = vrot.lane.b32.xlu0 %v3205, 112
      %v3368 = vpop.permute.xlu0 %3367
      %3369 = vrot.lane.b32.xlu0 %v3206, 112
      %v3370 = vpop.permute.xlu0 %3369
      %3371 = vrot.lane.b32.xlu0 %v3207, 112
      %v3372 = vpop.permute.xlu0 %3371
      %3373 = vrot.lane.b32.xlu0 %v3208, 112
      %v3374 = vpop.permute.xlu0 %3373
      %3375 = vrot.lane.b32.xlu0 %v3209, 112
      %v3376 = vpop.permute.xlu0 %3375
      %3377 = vrot.lane.b32.xlu0 %v3210, 112
      %v3378 = vpop.permute.xlu0 %3377
      %3379 = vrot.lane.b32.xlu0 %v3211, 112
      %v3380 = vpop.permute.xlu0 %3379
      %3381 = vrot.lane.b32.xlu0 %v3212, 112
      %v3382 = vpop.permute.xlu0 %3381
      %3383 = vrot.lane.b32.xlu0 %v3213, 112
      %v3384 = vpop.permute.xlu0 %3383
      %3385 = vrot.lane.b32.xlu0 %v3214, 112
      %v3386 = vpop.permute.xlu0 %3385
      %3387 = vrot.lane.b32.xlu0 %v3215, 112
      %v3388 = vpop.permute.xlu0 %3387
      %3389 = vrot.lane.b32.xlu0 %v3216, 112
      %v3390 = vpop.permute.xlu0 %3389
      %3391 = vrot.lane.b32.xlu0 %v3217, 112
      %v3392 = vpop.permute.xlu0 %3391
      %3393 = vrot.lane.b32.xlu0 %v3218, 112
      %v3394 = vpop.permute.xlu0 %3393
      %v3395 = vsel %vm591, %v3364, %v3366
      %v3396 = vsel %vm591, %v3366, %v995
      %v3397 = vsel %vm591, %v3368, %v3370
      %v3398 = vsel %vm591, %v3370, %v995
      %v3399 = vsel %vm591, %v3372, %v3374
      %v3400 = vsel %vm591, %v3374, %v995
      %v3401 = vsel %vm591, %v3376, %v3378
      %v3402 = vsel %vm591, %v3378, %v995
      %v3403 = vsel %vm591, %v3380, %v3382
      %v3404 = vsel %vm591, %v3382, %v995
      %v3405 = vsel %vm591, %v3384, %v3386
      %v3406 = vsel %vm591, %v3386, %v995
      %v3407 = vsel %vm591, %v3388, %v3390
      %v3408 = vsel %vm591, %v3390, %v995
      %v3409 = vsel %vm591, %v3392, %v3394
      %v3410 = vsel %vm591, %v3394, %v995
      %3427 = vrot.lane.b32.xlu0 %v3203, 111
      %v3428 = vpop.permute.xlu0 %3427
      %3429 = vrot.lane.b32.xlu0 %v3204, 111
      %v3430 = vpop.permute.xlu0 %3429
      %3431 = vrot.lane.b32.xlu0 %v3205, 111
      %v3432 = vpop.permute.xlu0 %3431
      %3433 = vrot.lane.b32.xlu0 %v3206, 111
      %v3434 = vpop.permute.xlu0 %3433
      %3435 = vrot.lane.b32.xlu0 %v3207, 111
      %v3436 = vpop.permute.xlu0 %3435
      %3437 = vrot.lane.b32.xlu0 %v3208, 111
      %v3438 = vpop.permute.xlu0 %3437
      %3439 = vrot.lane.b32.xlu0 %v3209, 111
      %v3440 = vpop.permute.xlu0 %3439
      %3441 = vrot.lane.b32.xlu0 %v3210, 111
      %v3442 = vpop.permute.xlu0 %3441
      %3443 = vrot.lane.b32.xlu0 %v3211, 111
      %v3444 = vpop.permute.xlu0 %3443
      %3445 = vrot.lane.b32.xlu0 %v3212, 111
      %v3446 = vpop.permute.xlu0 %3445
      %3447 = vrot.lane.b32.xlu0 %v3213, 111
      %v3448 = vpop.permute.xlu0 %3447
      %3449 = vrot.lane.b32.xlu0 %v3214, 111
      %v3450 = vpop.permute.xlu0 %3449
      %3451 = vrot.lane.b32.xlu0 %v3215, 111
      %v3452 = vpop.permute.xlu0 %3451
      %3453 = vrot.lane.b32.xlu0 %v3216, 111
      %v3454 = vpop.permute.xlu0 %3453
      %3455 = vrot.lane.b32.xlu0 %v3217, 111
      %v3456 = vpop.permute.xlu0 %3455
      %3457 = vrot.lane.b32.xlu0 %v3218, 111
      %v3458 = vpop.permute.xlu0 %3457
      %v3459 = vsel %vm602, %v3428, %v3430
      %v3460 = vsel %vm602, %v3430, %v1037
      %v3461 = vsel %vm602, %v3432, %v3434
      %v3462 = vsel %vm602, %v3434, %v1037
      %v3463 = vsel %vm602, %v3436, %v3438
      %v3464 = vsel %vm602, %v3438, %v1037
      %v3465 = vsel %vm602, %v3440, %v3442
      %v3466 = vsel %vm602, %v3442, %v1037
      %v3467 = vsel %vm602, %v3444, %v3446
      %v3468 = vsel %vm602, %v3446, %v1037
      %v3469 = vsel %vm602, %v3448, %v3450
      %v3470 = vsel %vm602, %v3450, %v1037
      %v3471 = vsel %vm602, %v3452, %v3454
      %v3472 = vsel %vm602, %v3454, %v1037
      %v3473 = vsel %vm602, %v3456, %v3458
      %v3474 = vsel %vm602, %v3458, %v1037
      %3491 = vrot.lane.b32.xlu0 %v3203, 110
      %v3492 = vpop.permute.xlu0 %3491
      %3493 = vrot.lane.b32.xlu0 %v3204, 110
      %v3494 = vpop.permute.xlu0 %3493
      %3495 = vrot.lane.b32.xlu0 %v3205, 110
      %v3496 = vpop.permute.xlu0 %3495
      %3497 = vrot.lane.b32.xlu0 %v3206, 110
      %v3498 = vpop.permute.xlu0 %3497
      %3499 = vrot.lane.b32.xlu0 %v3207, 110
      %v3500 = vpop.permute.xlu0 %3499
      %3501 = vrot.lane.b32.xlu0 %v3208, 110
      %v3502 = vpop.permute.xlu0 %3501
      %3503 = vrot.lane.b32.xlu0 %v3209, 110
      %v3504 = vpop.permute.xlu0 %3503
      %3505 = vrot.lane.b32.xlu0 %v3210, 110
      %v3506 = vpop.permute.xlu0 %3505
      %3507 = vrot.lane.b32.xlu0 %v3211, 110
      %v3508 = vpop.permute.xlu0 %3507
      %3509 = vrot.lane.b32.xlu0 %v3212, 110
      %v3510 = vpop.permute.xlu0 %3509
      %3511 = vrot.lane.b32.xlu0 %v3213, 110
      %v3512 = vpop.permute.xlu0 %3511
      %3513 = vrot.lane.b32.xlu0 %v3214, 110
      %v3514 = vpop.permute.xlu0 %3513
      %3515 = vrot.lane.b32.xlu0 %v3215, 110
      %v3516 = vpop.permute.xlu0 %3515
      %3517 = vrot.lane.b32.xlu0 %v3216, 110
      %v3518 = vpop.permute.xlu0 %3517
      %3519 = vrot.lane.b32.xlu0 %v3217, 110
      %v3520 = vpop.permute.xlu0 %3519
      %3521 = vrot.lane.b32.xlu0 %v3218, 110
      %v3522 = vpop.permute.xlu0 %3521
      %v3523 = vsel %vm613, %v3492, %v3494
      %v3524 = vsel %vm613, %v3494, %v1079
      %v3525 = vsel %vm613, %v3496, %v3498
      %v3526 = vsel %vm613, %v3498, %v1079
      %v3527 = vsel %vm613, %v3500, %v3502
      %v3528 = vsel %vm613, %v3502, %v1079
      %v3529 = vsel %vm613, %v3504, %v3506
      %v3530 = vsel %vm613, %v3506, %v1079
      %v3531 = vsel %vm613, %v3508, %v3510
      %v3532 = vsel %vm613, %v3510, %v1079
      %v3533 = vsel %vm613, %v3512, %v3514
      %v3534 = vsel %vm613, %v3514, %v1079
      %v3535 = vsel %vm613, %v3516, %v3518
      %v3536 = vsel %vm613, %v3518, %v1079
      %v3537 = vsel %vm613, %v3520, %v3522
      %v3538 = vsel %vm613, %v3522, %v1079
      %3555 = vrot.lane.b32.xlu0 %v3203, 96
      %v3556 = vpop.permute.xlu0 %3555
      %3557 = vrot.lane.b32.xlu0 %v3204, 96
      %v3558 = vpop.permute.xlu0 %3557
      %3559 = vrot.lane.b32.xlu0 %v3205, 96
      %v3560 = vpop.permute.xlu0 %3559
      %3561 = vrot.lane.b32.xlu0 %v3206, 96
      %v3562 = vpop.permute.xlu0 %3561
      %3563 = vrot.lane.b32.xlu0 %v3207, 96
      %v3564 = vpop.permute.xlu0 %3563
      %3565 = vrot.lane.b32.xlu0 %v3208, 96
      %v3566 = vpop.permute.xlu0 %3565
      %3567 = vrot.lane.b32.xlu0 %v3209, 96
      %v3568 = vpop.permute.xlu0 %3567
      %3569 = vrot.lane.b32.xlu0 %v3210, 96
      %v3570 = vpop.permute.xlu0 %3569
      %3571 = vrot.lane.b32.xlu0 %v3211, 96
      %v3572 = vpop.permute.xlu0 %3571
      %3573 = vrot.lane.b32.xlu0 %v3212, 96
      %v3574 = vpop.permute.xlu0 %3573
      %3575 = vrot.lane.b32.xlu0 %v3213, 96
      %v3576 = vpop.permute.xlu0 %3575
      %3577 = vrot.lane.b32.xlu0 %v3214, 96
      %v3578 = vpop.permute.xlu0 %3577
      %3579 = vrot.lane.b32.xlu0 %v3215, 96
      %v3580 = vpop.permute.xlu0 %3579
      %3581 = vrot.lane.b32.xlu0 %v3216, 96
      %v3582 = vpop.permute.xlu0 %3581
      %3583 = vrot.lane.b32.xlu0 %v3217, 96
      %v3584 = vpop.permute.xlu0 %3583
      %3585 = vrot.lane.b32.xlu0 %v3218, 96
      %v3586 = vpop.permute.xlu0 %3585
      %v3587 = vsel %vm624, %v3556, %v3558
      %v3588 = vsel %vm624, %v3558, %v1121
      %v3589 = vsel %vm624, %v3560, %v3562
      %v3590 = vsel %vm624, %v3562, %v1121
      %v3591 = vsel %vm624, %v3564, %v3566
      %v3592 = vsel %vm624, %v3566, %v1121
      %v3593 = vsel %vm624, %v3568, %v3570
      %v3594 = vsel %vm624, %v3570, %v1121
      %v3595 = vsel %vm624, %v3572, %v3574
      %v3596 = vsel %vm624, %v3574, %v1121
      %v3597 = vsel %vm624, %v3576, %v3578
      %v3598 = vsel %vm624, %v3578, %v1121
      %v3599 = vsel %vm624, %v3580, %v3582
      %v3600 = vsel %vm624, %v3582, %v1121
      %v3601 = vsel %vm624, %v3584, %v3586
      %v3602 = vsel %vm624, %v3586, %v1121
      %3619 = vrot.lane.b32.xlu0 %v3203, 95
      %v3620 = vpop.permute.xlu0 %3619
      %3621 = vrot.lane.b32.xlu0 %v3204, 95
      %v3622 = vpop.permute.xlu0 %3621
      %3623 = vrot.lane.b32.xlu0 %v3205, 95
      %v3624 = vpop.permute.xlu0 %3623
      %3625 = vrot.lane.b32.xlu0 %v3206, 95
      %v3626 = vpop.permute.xlu0 %3625
      %3627 = vrot.lane.b32.xlu0 %v3207, 95
      %v3628 = vpop.permute.xlu0 %3627
      %3629 = vrot.lane.b32.xlu0 %v3208, 95
      %v3630 = vpop.permute.xlu0 %3629
      %3631 = vrot.lane.b32.xlu0 %v3209, 95
      %v3632 = vpop.permute.xlu0 %3631
      %3633 = vrot.lane.b32.xlu0 %v3210, 95
      %v3634 = vpop.permute.xlu0 %3633
      %3635 = vrot.lane.b32.xlu0 %v3211, 95
      %v3636 = vpop.permute.xlu0 %3635
      %3637 = vrot.lane.b32.xlu0 %v3212, 95
      %v3638 = vpop.permute.xlu0 %3637
      %3639 = vrot.lane.b32.xlu0 %v3213, 95
      %v3640 = vpop.permute.xlu0 %3639
      %3641 = vrot.lane.b32.xlu0 %v3214, 95
      %v3642 = vpop.permute.xlu0 %3641
      %3643 = vrot.lane.b32.xlu0 %v3215, 95
      %v3644 = vpop.permute.xlu0 %3643
      %3645 = vrot.lane.b32.xlu0 %v3216, 95
      %v3646 = vpop.permute.xlu0 %3645
      %3647 = vrot.lane.b32.xlu0 %v3217, 95
      %v3648 = vpop.permute.xlu0 %3647
      %3649 = vrot.lane.b32.xlu0 %v3218, 95
      %v3650 = vpop.permute.xlu0 %3649
      %v3651 = vsel %vm635, %v3620, %v3622
      %v3652 = vsel %vm635, %v3622, %v1163
      %v3653 = vsel %vm635, %v3624, %v3626
      %v3654 = vsel %vm635, %v3626, %v1163
      %v3655 = vsel %vm635, %v3628, %v3630
      %v3656 = vsel %vm635, %v3630, %v1163
      %v3657 = vsel %vm635, %v3632, %v3634
      %v3658 = vsel %vm635, %v3634, %v1163
      %v3659 = vsel %vm635, %v3636, %v3638
      %v3660 = vsel %vm635, %v3638, %v1163
      %v3661 = vsel %vm635, %v3640, %v3642
      %v3662 = vsel %vm635, %v3642, %v1163
      %v3663 = vsel %vm635, %v3644, %v3646
      %v3664 = vsel %vm635, %v3646, %v1163
      %v3665 = vsel %vm635, %v3648, %v3650
      %v3666 = vsel %vm635, %v3650, %v1163
      %3683 = vrot.lane.b32.xlu0 %v3203, 94
      %v3684 = vpop.permute.xlu0 %3683
      %3685 = vrot.lane.b32.xlu0 %v3204, 94
      %v3686 = vpop.permute.xlu0 %3685
      %3687 = vrot.lane.b32.xlu0 %v3205, 94
      %v3688 = vpop.permute.xlu0 %3687
      %3689 = vrot.lane.b32.xlu0 %v3206, 94
      %v3690 = vpop.permute.xlu0 %3689
      %3691 = vrot.lane.b32.xlu0 %v3207, 94
      %v3692 = vpop.permute.xlu0 %3691
      %3693 = vrot.lane.b32.xlu0 %v3208, 94
      %v3694 = vpop.permute.xlu0 %3693
      %3695 = vrot.lane.b32.xlu0 %v3209, 94
      %v3696 = vpop.permute.xlu0 %3695
      %3697 = vrot.lane.b32.xlu0 %v3210, 94
      %v3698 = vpop.permute.xlu0 %3697
      %3699 = vrot.lane.b32.xlu0 %v3211, 94
      %v3700 = vpop.permute.xlu0 %3699
      %3701 = vrot.lane.b32.xlu0 %v3212, 94
      %v3702 = vpop.permute.xlu0 %3701
      %3703 = vrot.lane.b32.xlu0 %v3213, 94
      %v3704 = vpop.permute.xlu0 %3703
      %3705 = vrot.lane.b32.xlu0 %v3214, 94
      %v3706 = vpop.permute.xlu0 %3705
      %3707 = vrot.lane.b32.xlu0 %v3215, 94
      %v3708 = vpop.permute.xlu0 %3707
      %3709 = vrot.lane.b32.xlu0 %v3216, 94
      %v3710 = vpop.permute.xlu0 %3709
      %3711 = vrot.lane.b32.xlu0 %v3217, 94
      %v3712 = vpop.permute.xlu0 %3711
      %3713 = vrot.lane.b32.xlu0 %v3218, 94
      %v3714 = vpop.permute.xlu0 %3713
      %v3715 = vsel %vm646, %v3684, %v3686
      %v3716 = vsel %vm646, %v3686, %v1205
      %v3717 = vsel %vm646, %v3688, %v3690
      %v3718 = vsel %vm646, %v3690, %v1205
      %v3719 = vsel %vm646, %v3692, %v3694
      %v3720 = vsel %vm646, %v3694, %v1205
      %v3721 = vsel %vm646, %v3696, %v3698
      %v3722 = vsel %vm646, %v3698, %v1205
      %v3723 = vsel %vm646, %v3700, %v3702
      %v3724 = vsel %vm646, %v3702, %v1205
      %v3725 = vsel %vm646, %v3704, %v3706
      %v3726 = vsel %vm646, %v3706, %v1205
      %v3727 = vsel %vm646, %v3708, %v3710
      %v3728 = vsel %vm646, %v3710, %v1205
      %v3729 = vsel %vm646, %v3712, %v3714
      %v3730 = vsel %vm646, %v3714, %v1205
      %v3747 = vld [vmem:[%s7] sm:$0xff]
      %v3748 = vld [vmem:[%s7 + $0x8] sm:$0xff]
      %v3749 = vld [vmem:[%s7 + $0x10] sm:$0xff]
      %v3750 = vld [vmem:[%s7 + $0x18] sm:$0xff]
      %v3751 = vld [vmem:[%s7 + $0x20] sm:$0xf]
      %v3752 = vld [vmem:[%s7 + $0x24] sm:$0xff]
      %v3753 = vld [vmem:[%s7 + $0x2c] sm:$0xff]
      %v3754 = vld [vmem:[%s7 + $0x34] sm:$0xff]
      %v3755 = vld [vmem:[%s7 + $0x3c] sm:$0xff]
      %v3756 = vld [vmem:[%s7 + $0x44] sm:$0xf]
      %v3757 = vld [vmem:[%s7 + $0x48] sm:$0xff]
      %v3758 = vld [vmem:[%s7 + $0x50] sm:$0xff]
      %v3759 = vld [vmem:[%s7 + $0x58] sm:$0xff]
      %v3760 = vld [vmem:[%s7 + $0x60] sm:$0xff]
      %v3761 = vld [vmem:[%s7 + $0x68] sm:$0xf]
      %v3762 = vld [vmem:[%s7 + $0x6c] sm:$0xff]
      %v3763 = vld [vmem:[%s7 + $0x74] sm:$0xff]
      %v3764 = vld [vmem:[%s7 + $0x7c] sm:$0xff]
      %v3765 = vld [vmem:[%s7 + $0x84] sm:$0xff]
      %v3766 = vld [vmem:[%s7 + $0x8c] sm:$0xf]
      %v3767 = vld [vmem:[%s7 + $0x90] sm:$0xff]
      %v3768 = vld [vmem:[%s7 + $0x98] sm:$0xff]
      %v3769 = vld [vmem:[%s7 + $0xa0] sm:$0xff]
      %v3770 = vld [vmem:[%s7 + $0xa8] sm:$0xff]
      %v3771 = vld [vmem:[%s7 + $0xb0] sm:$0xf]
      %v3772 = vld [vmem:[%s7 + $0xb4] sm:$0xff]
      %v3773 = vld [vmem:[%s7 + $0xbc] sm:$0xff]
      %v3774 = vld [vmem:[%s7 + $0xc4] sm:$0xff]
      %v3775 = vld [vmem:[%s7 + $0xcc] sm:$0xff]
      %v3776 = vld [vmem:[%s7 + $0xd4] sm:$0xf]
      %v3777 = vld [vmem:[%s7 + $0xd8] sm:$0xff]
      %v3778 = vld [vmem:[%s7 + $0xe0] sm:$0xff]
      %v3779 = vld [vmem:[%s7 + $0xe8] sm:$0xff]
      %v3780 = vld [vmem:[%s7 + $0xf0] sm:$0xff]
      %v3781 = vld [vmem:[%s7 + $0xf8] sm:$0xf]
      %v3782 = vld [vmem:[%s7 + $0xfc] sm:$0xff]
      %v3783 = vld [vmem:[%s7 + $0x104] sm:$0xff]
      %v3784 = vld [vmem:[%s7 + $0x10c] sm:$0xff]
      %v3785 = vld [vmem:[%s7 + $0x114] sm:$0xff]
      %v3786 = vld [vmem:[%s7 + $0x11c] sm:$0xf]
      %v3787 = vld [vmem:[%s8] sm:$0xff]
      %v3788 = vld [vmem:[%s8 + $0x8] sm:$0xff]
      %v3789 = vld [vmem:[%s8 + $0x10] sm:$0xff]
      %v3790 = vld [vmem:[%s8 + $0x18] sm:$0xff]
      %v3791 = vld [vmem:[%s8 + $0x20] sm:$0xff]
      %v3792 = vld [vmem:[%s8 + $0x28] sm:$0xff]
      %v3793 = vld [vmem:[%s8 + $0x30] sm:$0xff]
      %v3794 = vld [vmem:[%s8 + $0x38] sm:$0xff]
      %3796 = vset.pattern.permute.xlu0 0
      %3797 = vperm.xlu0 %3796, %v3787
      %v3798 = vpop.permute.xlu0 %3797
      %3801 = vset.pattern.permute.xlu0 0
      %3802 = vperm.xlu0 %3801, %v3788
      %v3803 = vpop.permute.xlu0 %3802
      %3806 = vset.pattern.permute.xlu0 0
      %3807 = vperm.xlu0 %3806, %v3789
      %v3808 = vpop.permute.xlu0 %3807
      %3811 = vset.pattern.permute.xlu0 0
      %3812 = vperm.xlu0 %3811, %v3790
      %v3813 = vpop.permute.xlu0 %3812
      %3816 = vset.pattern.permute.xlu0 0
      %3817 = vperm.xlu0 %3816, %v3791
      %v3818 = vpop.permute.xlu0 %3817
      %3821 = vset.pattern.permute.xlu0 0
      %3822 = vperm.xlu0 %3821, %v3792
      %v3823 = vpop.permute.xlu0 %3822
      %3826 = vset.pattern.permute.xlu0 0
      %3827 = vperm.xlu0 %3826, %v3793
      %v3828 = vpop.permute.xlu0 %3827
      %3831 = vset.pattern.permute.xlu0 0
      %3832 = vperm.xlu0 %3831, %v3794
      %v3833 = vpop.permute.xlu0 %3832
      %v3875 = vunpack.c.l.b16 %v3747
      %v3876 = vunpack.c.h.b16 %v3747
      %v3877 = vunpack.c.l.b16 %v3748
      %v3878 = vunpack.c.h.b16 %v3748
      %v3879 = vunpack.c.l.b16 %v3749
      %v3880 = vunpack.c.h.b16 %v3749
      %v3881 = vunpack.c.l.b16 %v3750
      %v3882 = vunpack.c.h.b16 %v3750
      %v3883 = vunpack.c.l.b16 %v3751
      %v3884 = vunpack.c.l.b16 %v3752
      %v3885 = vunpack.c.h.b16 %v3752
      %v3886 = vunpack.c.l.b16 %v3753
      %v3887 = vunpack.c.h.b16 %v3753
      %v3888 = vunpack.c.l.b16 %v3754
      %v3889 = vunpack.c.h.b16 %v3754
      %v3890 = vunpack.c.l.b16 %v3755
      %v3891 = vunpack.c.h.b16 %v3755
      %v3892 = vunpack.c.l.b16 %v3756
      %v3893 = vunpack.c.l.b16 %v3757
      %v3894 = vunpack.c.h.b16 %v3757
      %v3895 = vunpack.c.l.b16 %v3758
      %v3896 = vunpack.c.h.b16 %v3758
      %v3897 = vunpack.c.l.b16 %v3759
      %v3898 = vunpack.c.h.b16 %v3759
      %v3899 = vunpack.c.l.b16 %v3760
      %v3900 = vunpack.c.h.b16 %v3760
      %v3901 = vunpack.c.l.b16 %v3761
      %v3902 = vunpack.c.l.b16 %v3762
      %v3903 = vunpack.c.h.b16 %v3762
      %v3904 = vunpack.c.l.b16 %v3763
      %v3905 = vunpack.c.h.b16 %v3763
      %v3906 = vunpack.c.l.b16 %v3764
      %v3907 = vunpack.c.h.b16 %v3764
      %v3908 = vunpack.c.l.b16 %v3765
      %v3909 = vunpack.c.h.b16 %v3765
      %v3910 = vunpack.c.l.b16 %v3766
      %v3911 = vunpack.c.l.b16 %v3767
      %v3912 = vunpack.c.h.b16 %v3767
      %v3913 = vunpack.c.l.b16 %v3768
      %v3914 = vunpack.c.h.b16 %v3768
      %v3915 = vunpack.c.l.b16 %v3769
      %v3916 = vunpack.c.h.b16 %v3769
      %v3917 = vunpack.c.l.b16 %v3770
      %v3918 = vunpack.c.h.b16 %v3770
      %v3919 = vunpack.c.l.b16 %v3771
      %v3920 = vunpack.c.l.b16 %v3772
      %v3921 = vunpack.c.h.b16 %v3772
      %v3922 = vunpack.c.l.b16 %v3773
      %v3923 = vunpack.c.h.b16 %v3773
      %v3924 = vunpack.c.l.b16 %v3774
      %v3925 = vunpack.c.h.b16 %v3774
      %v3926 = vunpack.c.l.b16 %v3775
      %v3927 = vunpack.c.h.b16 %v3775
      %v3928 = vunpack.c.l.b16 %v3776
      %v3929 = vunpack.c.l.b16 %v3777
      %v3930 = vunpack.c.h.b16 %v3777
      %v3931 = vunpack.c.l.b16 %v3778
      %v3932 = vunpack.c.h.b16 %v3778
      %v3933 = vunpack.c.l.b16 %v3779
      %v3934 = vunpack.c.h.b16 %v3779
      %v3935 = vunpack.c.l.b16 %v3780
      %v3936 = vunpack.c.h.b16 %v3780
      %v3937 = vunpack.c.l.b16 %v3781
      %v3938 = vunpack.c.l.b16 %v3782
      %v3939 = vunpack.c.h.b16 %v3782
      %v3940 = vunpack.c.l.b16 %v3783
      %v3941 = vunpack.c.h.b16 %v3783
      %v3942 = vunpack.c.l.b16 %v3784
      %v3943 = vunpack.c.h.b16 %v3784
      %v3944 = vunpack.c.l.b16 %v3785
      %v3945 = vunpack.c.h.b16 %v3785
      %v3946 = vunpack.c.l.b16 %v3786
      %v3947 = vpack.c.b16 %v3884, %v3875
      %v3948 = vpack.c.b16 %v3885, %v3876
      %v3949 = vpack.c.b16 %v3886, %v3877
      %v3950 = vpack.c.b16 %v3887, %v3878
      %v3951 = vpack.c.b16 %v3888, %v3879
      %v3952 = vpack.c.b16 %v3889, %v3880
      %v3953 = vpack.c.b16 %v3890, %v3881
      %v3954 = vpack.c.b16 %v3891, %v3882
      %v3955 = vpack.c.b16 %v3892, %v3883
      %v3956 = vpack.c.b16 %v3902, %v3893
      %v3957 = vpack.c.b16 %v3903, %v3894
      %v3958 = vpack.c.b16 %v3904, %v3895
      %v3959 = vpack.c.b16 %v3905, %v3896
      %v3960 = vpack.c.b16 %v3906, %v3897
      %v3961 = vpack.c.b16 %v3907, %v3898
      %v3962 = vpack.c.b16 %v3908, %v3899
      %v3963 = vpack.c.b16 %v3909, %v3900
      %v3964 = vpack.c.b16 %v3910, %v3901
      %v3965 = vpack.c.b16 %v3920, %v3911
      %v3966 = vpack.c.b16 %v3921, %v3912
      %v3967 = vpack.c.b16 %v3922, %v3913
      %v3968 = vpack.c.b16 %v3923, %v3914
      %v3969 = vpack.c.b16 %v3924, %v3915
      %v3970 = vpack.c.b16 %v3925, %v3916
      %v3971 = vpack.c.b16 %v3926, %v3917
      %v3972 = vpack.c.b16 %v3927, %v3918
      %v3973 = vpack.c.b16 %v3928, %v3919
      %v3974 = vpack.c.b16 %v3938, %v3929
      %v3975 = vpack.c.b16 %v3939, %v3930
      %v3976 = vpack.c.b16 %v3940, %v3931
      %v3977 = vpack.c.b16 %v3941, %v3932
      %v3978 = vpack.c.b16 %v3942, %v3933
      %v3979 = vpack.c.b16 %v3943, %v3934
      %v3980 = vpack.c.b16 %v3944, %v3935
      %v3981 = vpack.c.b16 %v3945, %v3936
      %v3982 = vpack.c.b16 %v3946, %v3937
      %4019 = vmatprep.subr.bf16.mxu0 %v3218
      %4020 = vmatpush1.bf16.msra.mxu0 %v3217
      %4021 = vmatprep.subr.bf16.mxu0 %v3216
      %4022 = vmatpush1.bf16.msra.mxu0 %v3215
      %4023 = vmatprep.subr.bf16.mxu0 %v3214
      %4024 = vmatpush1.bf16.msra.mxu0 %v3213
      %4025 = vmatprep.subr.bf16.mxu0 %v3212
      %4026 = vmatpush1.bf16.msra.mxu0 %v3211
      %4027 = vmatprep.subr.bf16.mxu0 %v3210
      %4028 = vmatpush1.bf16.msra.mxu0 %v3209
      %4029 = vmatprep.subr.bf16.mxu0 %v3208
      %4030 = vmatpush1.bf16.msra.mxu0 %v3207
      %4031 = vmatprep.subr.bf16.mxu0 %v3206
      %4032 = vmatpush1.bf16.msra.mxu0 %v3205
      %4033 = vmatprep.subr.bf16.mxu0 %v3204
      %4034 = vmatpush1.bf16.msra.mxu0 %v3203
      %4035 = vmatprep.subr.bf16.mxu0 %v3282
      %4036 = vmatpush2.bf16.msra.mxu0 %v3281
      %4037 = vmatprep.subr.bf16.mxu0 %v3280
      %4038 = vmatpush2.bf16.msra.mxu0 %v3279
      %4039 = vmatprep.subr.bf16.mxu0 %v3278
      %4040 = vmatpush2.bf16.msra.mxu0 %v3277
      %4041 = vmatprep.subr.bf16.mxu0 %v3276
      %4042 = vmatpush2.bf16.msra.mxu0 %v3275
      %4043 = vmatprep.subr.bf16.mxu0 %v3274
      %4044 = vmatpush2.bf16.msra.mxu0 %v3273
      %4045 = vmatprep.subr.bf16.mxu0 %v3272
      %4046 = vmatpush2.bf16.msra.mxu0 %v3271
      %4047 = vmatprep.subr.bf16.mxu0 %v3270
      %4048 = vmatpush2.bf16.msra.mxu0 %v3269
      %4049 = vmatprep.subr.bf16.mxu0 %v3268
      %4050 = vmatpush2.bf16.msra.mxu0 %v3267
      %4051 = vmatprep.mubr.bf16.mxu0 %v3948
      %4052 = vmatmul.mubr.bf16.gmra.mxu0 %v3947
      %v4053 = vpop.f32.mrf.mxu0
      %v4054 = vadd.f32 %v3798, %v4053
      %v4055 = vpop.f32.mrf.mxu0
      %v4056 = vadd.f32 %v3798, %v4055
      %v4057 = vpop.f32.mrf.mxu0
      %v4058 = vadd.f32 %v3803, %v4057
      %v4059 = vpop.f32.mrf.mxu0
      %v4060 = vadd.f32 %v3803, %v4059
      %4061 = vmatprep.mubr.bf16.mxu0 %v3957
      %4062 = vmatmul.mubr.bf16.gmra.mxu0 %v3956
      %v4063 = vpop.f32.mrf.mxu0
      %v4064 = vadd.f32 %v3808, %v4063
      %v4065 = vpop.f32.mrf.mxu0
      %v4066 = vadd.f32 %v3808, %v4065
      %v4067 = vpop.f32.mrf.mxu0
      %v4068 = vadd.f32 %v3813, %v4067
      %v4069 = vpop.f32.mrf.mxu0
      %v4070 = vadd.f32 %v3813, %v4069
      %4071 = vmatprep.mubr.bf16.mxu0 %v3966
      %4072 = vmatmul.mubr.bf16.gmra.mxu0 %v3965
      %v4073 = vpop.f32.mrf.mxu0
      %v4074 = vadd.f32 %v3818, %v4073
      %v4075 = vpop.f32.mrf.mxu0
      %v4076 = vadd.f32 %v3818, %v4075
      %v4077 = vpop.f32.mrf.mxu0
      %v4078 = vadd.f32 %v3823, %v4077
      %v4079 = vpop.f32.mrf.mxu0
      %v4080 = vadd.f32 %v3823, %v4079
      %4081 = vmatprep.mubr.bf16.mxu0 %v3975
      %4082 = vmatmul.mubr.bf16.gmra.mxu0 %v3974
      %v4083 = vpop.f32.mrf.mxu0
      %v4084 = vadd.f32 %v3828, %v4083
      %v4085 = vpop.f32.mrf.mxu0
      %v4086 = vadd.f32 %v3828, %v4085
      %v4087 = vpop.f32.mrf.mxu0
      %v4088 = vadd.f32 %v3833, %v4087
      %v4089 = vpop.f32.mrf.mxu0
      %v4090 = vadd.f32 %v3833, %v4089
      %4091 = vdwg.mxu0
      %4092 = vmatprep.subr.bf16.mxu0 %v3346
      %4093 = vmatpush1.bf16.msra.mxu0 %v3345
      %4094 = vmatprep.subr.bf16.mxu0 %v3344
      %4095 = vmatpush1.bf16.msra.mxu0 %v3343
      %4096 = vmatprep.subr.bf16.mxu0 %v3342
      %4097 = vmatpush1.bf16.msra.mxu0 %v3341
      %4098 = vmatprep.subr.bf16.mxu0 %v3340
      %4099 = vmatpush1.bf16.msra.mxu0 %v3339
      %4100 = vmatprep.subr.bf16.mxu0 %v3338
      %4101 = vmatpush1.bf16.msra.mxu0 %v3337
      %4102 = vmatprep.subr.bf16.mxu0 %v3336
      %4103 = vmatpush1.bf16.msra.mxu0 %v3335
      %4104 = vmatprep.subr.bf16.mxu0 %v3334
      %4105 = vmatpush1.bf16.msra.mxu0 %v3333
      %4106 = vmatprep.subr.bf16.mxu0 %v3332
      %4107 = vmatpush1.bf16.msra.mxu0 %v3331
      %4108 = vmatprep.subr.bf16.mxu0 %v3410
      %4109 = vmatpush2.bf16.msra.mxu0 %v3409
      %4110 = vmatprep.subr.bf16.mxu0 %v3408
      %4111 = vmatpush2.bf16.msra.mxu0 %v3407
      %4112 = vmatprep.subr.bf16.mxu0 %v3406
      %4113 = vmatpush2.bf16.msra.mxu0 %v3405
      %4114 = vmatprep.subr.bf16.mxu0 %v3404
      %4115 = vmatpush2.bf16.msra.mxu0 %v3403
      %4116 = vmatprep.subr.bf16.mxu0 %v3402
      %4117 = vmatpush2.bf16.msra.mxu0 %v3401
      %4118 = vmatprep.subr.bf16.mxu0 %v3400
      %4119 = vmatpush2.bf16.msra.mxu0 %v3399
      %4120 = vmatprep.subr.bf16.mxu0 %v3398
      %4121 = vmatpush2.bf16.msra.mxu0 %v3397
      %4122 = vmatprep.subr.bf16.mxu0 %v3396
      %4123 = vmatpush2.bf16.msra.mxu0 %v3395
      %4124 = vmatprep.mubr.bf16.mxu0 %v3950
      %4125 = vmatmul.mubr.bf16.gmra.mxu0 %v3949
      %v4126 = vpop.f32.mrf.mxu0
      %v4127 = vadd.f32 %v4054, %v4126
      %v4128 = vpop.f32.mrf.mxu0
      %v4129 = vadd.f32 %v4056, %v4128
      %v4130 = vpop.f32.mrf.mxu0
      %v4131 = vadd.f32 %v4058, %v4130
      %v4132 = vpop.f32.mrf.mxu0
      %v4133 = vadd.f32 %v4060, %v4132
      %4134 = vmatprep.mubr.bf16.mxu0 %v3959
      %4135 = vmatmul.mubr.bf16.gmra.mxu0 %v3958
      %v4136 = vpop.f32.mrf.mxu0
      %v4137 = vadd.f32 %v4064, %v4136
      %v4138 = vpop.f32.mrf.mxu0
      %v4139 = vadd.f32 %v4066, %v4138
      %v4140 = vpop.f32.mrf.mxu0
      %v4141 = vadd.f32 %v4068, %v4140
      %v4142 = vpop.f32.mrf.mxu0
      %v4143 = vadd.f32 %v4070, %v4142
      %4144 = vmatprep.mubr.bf16.mxu0 %v3968
      %4145 = vmatmul.mubr.bf16.gmra.mxu0 %v3967
      %v4146 = vpop.f32.mrf.mxu0
      %v4147 = vadd.f32 %v4074, %v4146
      %v4148 = vpop.f32.mrf.mxu0
      %v4149 = vadd.f32 %v4076, %v4148
      %v4150 = vpop.f32.mrf.mxu0
      %v4151 = vadd.f32 %v4078, %v4150
      %v4152 = vpop.f32.mrf.mxu0
      %v4153 = vadd.f32 %v4080, %v4152
      %4154 = vmatprep.mubr.bf16.mxu0 %v3977
      %4155 = vmatmul.mubr.bf16.gmra.mxu0 %v3976
      %v4156 = vpop.f32.mrf.mxu0
      %v4157 = vadd.f32 %v4084, %v4156
      %v4158 = vpop.f32.mrf.mxu0
      %v4159 = vadd.f32 %v4086, %v4158
      %v4160 = vpop.f32.mrf.mxu0
      %v4161 = vadd.f32 %v4088, %v4160
      %v4162 = vpop.f32.mrf.mxu0
      %v4163 = vadd.f32 %v4090, %v4162
      %4164 = vdwg.mxu0
      %4165 = vmatprep.subr.bf16.mxu0 %v3474
      %4166 = vmatpush1.bf16.msra.mxu0 %v3473
      %4167 = vmatprep.subr.bf16.mxu0 %v3472
      %4168 = vmatpush1.bf16.msra.mxu0 %v3471
      %4169 = vmatprep.subr.bf16.mxu0 %v3470
      %4170 = vmatpush1.bf16.msra.mxu0 %v3469
      %4171 = vmatprep.subr.bf16.mxu0 %v3468
      %4172 = vmatpush1.bf16.msra.mxu0 %v3467
      %4173 = vmatprep.subr.bf16.mxu0 %v3466
      %4174 = vmatpush1.bf16.msra.mxu0 %v3465
      %4175 = vmatprep.subr.bf16.mxu0 %v3464
      %4176 = vmatpush1.bf16.msra.mxu0 %v3463
      %4177 = vmatprep.subr.bf16.mxu0 %v3462
      %4178 = vmatpush1.bf16.msra.mxu0 %v3461
      %4179 = vmatprep.subr.bf16.mxu0 %v3460
      %4180 = vmatpush1.bf16.msra.mxu0 %v3459
      %4181 = vmatprep.subr.bf16.mxu0 %v3538
      %4182 = vmatpush2.bf16.msra.mxu0 %v3537
      %4183 = vmatprep.subr.bf16.mxu0 %v3536
      %4184 = vmatpush2.bf16.msra.mxu0 %v3535
      %4185 = vmatprep.subr.bf16.mxu0 %v3534
      %4186 = vmatpush2.bf16.msra.mxu0 %v3533
      %4187 = vmatprep.subr.bf16.mxu0 %v3532
      %4188 = vmatpush2.bf16.msra.mxu0 %v3531
      %4189 = vmatprep.subr.bf16.mxu0 %v3530
      %4190 = vmatpush2.bf16.msra.mxu0 %v3529
      %4191 = vmatprep.subr.bf16.mxu0 %v3528
      %4192 = vmatpush2.bf16.msra.mxu0 %v3527
      %4193 = vmatprep.subr.bf16.mxu0 %v3526
      %4194 = vmatpush2.bf16.msra.mxu0 %v3525
      %4195 = vmatprep.subr.bf16.mxu0 %v3524
      %4196 = vmatpush2.bf16.msra.mxu0 %v3523
      %4197 = vmatprep.mubr.bf16.mxu0 %v3952
      %4198 = vmatmul.mubr.bf16.gmra.mxu0 %v3951
      %v4199 = vpop.f32.mrf.mxu0
      %v4200 = vadd.f32 %v4127, %v4199
      %v4201 = vpop.f32.mrf.mxu0
      %v4202 = vadd.f32 %v4129, %v4201
      %v4203 = vpop.f32.mrf.mxu0
      %v4204 = vadd.f32 %v4131, %v4203
      %v4205 = vpop.f32.mrf.mxu0
      %v4206 = vadd.f32 %v4133, %v4205
      %4207 = vmatprep.mubr.bf16.mxu0 %v3961
      %4208 = vmatmul.mubr.bf16.gmra.mxu0 %v3960
      %v4209 = vpop.f32.mrf.mxu0
      %v4210 = vadd.f32 %v4137, %v4209
      %v4211 = vpop.f32.mrf.mxu0
      %v4212 = vadd.f32 %v4139, %v4211
      %v4213 = vpop.f32.mrf.mxu0
      %v4214 = vadd.f32 %v4141, %v4213
      %v4215 = vpop.f32.mrf.mxu0
      %v4216 = vadd.f32 %v4143, %v4215
      %4217 = vmatprep.mubr.bf16.mxu0 %v3970
      %4218 = vmatmul.mubr.bf16.gmra.mxu0 %v3969
      %v4219 = vpop.f32.mrf.mxu0
      %v4220 = vadd.f32 %v4147, %v4219
      %v4221 = vpop.f32.mrf.mxu0
      %v4222 = vadd.f32 %v4149, %v4221
      %v4223 = vpop.f32.mrf.mxu0
      %v4224 = vadd.f32 %v4151, %v4223
      %v4225 = vpop.f32.mrf.mxu0
      %v4226 = vadd.f32 %v4153, %v4225
      %4227 = vmatprep.mubr.bf16.mxu0 %v3979
      %4228 = vmatmul.mubr.bf16.gmra.mxu0 %v3978
      %v4229 = vpop.f32.mrf.mxu0
      %v4230 = vadd.f32 %v4157, %v4229
      %v4231 = vpop.f32.mrf.mxu0
      %v4232 = vadd.f32 %v4159, %v4231
      %v4233 = vpop.f32.mrf.mxu0
      %v4234 = vadd.f32 %v4161, %v4233
      %v4235 = vpop.f32.mrf.mxu0
      %v4236 = vadd.f32 %v4163, %v4235
      %4237 = vdwg.mxu0
      %4238 = vmatprep.subr.bf16.mxu0 %v3602
      %4239 = vmatpush1.bf16.msra.mxu0 %v3601
      %4240 = vmatprep.subr.bf16.mxu0 %v3600
      %4241 = vmatpush1.bf16.msra.mxu0 %v3599
      %4242 = vmatprep.subr.bf16.mxu0 %v3598
      %4243 = vmatpush1.bf16.msra.mxu0 %v3597
      %4244 = vmatprep.subr.bf16.mxu0 %v3596
      %4245 = vmatpush1.bf16.msra.mxu0 %v3595
      %4246 = vmatprep.subr.bf16.mxu0 %v3594
      %4247 = vmatpush1.bf16.msra.mxu0 %v3593
      %4248 = vmatprep.subr.bf16.mxu0 %v3592
      %4249 = vmatpush1.bf16.msra.mxu0 %v3591
      %4250 = vmatprep.subr.bf16.mxu0 %v3590
      %4251 = vmatpush1.bf16.msra.mxu0 %v3589
      %4252 = vmatprep.subr.bf16.mxu0 %v3588
      %4253 = vmatpush1.bf16.msra.mxu0 %v3587
      %4254 = vmatprep.subr.bf16.mxu0 %v3666
      %4255 = vmatpush2.bf16.msra.mxu0 %v3665
      %4256 = vmatprep.subr.bf16.mxu0 %v3664
      %4257 = vmatpush2.bf16.msra.mxu0 %v3663
      %4258 = vmatprep.subr.bf16.mxu0 %v3662
      %4259 = vmatpush2.bf16.msra.mxu0 %v3661
      %4260 = vmatprep.subr.bf16.mxu0 %v3660
      %4261 = vmatpush2.bf16.msra.mxu0 %v3659
      %4262 = vmatprep.subr.bf16.mxu0 %v3658
      %4263 = vmatpush2.bf16.msra.mxu0 %v3657
      %4264 = vmatprep.subr.bf16.mxu0 %v3656
      %4265 = vmatpush2.bf16.msra.mxu0 %v3655
      %4266 = vmatprep.subr.bf16.mxu0 %v3654
      %4267 = vmatpush2.bf16.msra.mxu0 %v3653
      %4268 = vmatprep.subr.bf16.mxu0 %v3652
      %4269 = vmatpush2.bf16.msra.mxu0 %v3651
      %4270 = vmatprep.mubr.bf16.mxu0 %v3954
      %4271 = vmatmul.mubr.bf16.gmra.mxu0 %v3953
      %v4272 = vpop.f32.mrf.mxu0
      %v4273 = vadd.f32 %v4200, %v4272
      %v4274 = vpop.f32.mrf.mxu0
      %v4275 = vadd.f32 %v4202, %v4274
      %v4276 = vpop.f32.mrf.mxu0
      %v4277 = vadd.f32 %v4204, %v4276
      %v4278 = vpop.f32.mrf.mxu0
      %v4279 = vadd.f32 %v4206, %v4278
      %4280 = vmatprep.mubr.bf16.mxu0 %v3963
      %4281 = vmatmul.mubr.bf16.gmra.mxu0 %v3962
      %v4282 = vpop.f32.mrf.mxu0
      %v4283 = vadd.f32 %v4210, %v4282
      %v4284 = vpop.f32.mrf.mxu0
      %v4285 = vadd.f32 %v4212, %v4284
      %v4286 = vpop.f32.mrf.mxu0
      %v4287 = vadd.f32 %v4214, %v4286
      %v4288 = vpop.f32.mrf.mxu0
      %v4289 = vadd.f32 %v4216, %v4288
      %4290 = vmatprep.mubr.bf16.mxu0 %v3972
      %4291 = vmatmul.mubr.bf16.gmra.mxu0 %v3971
      %v4292 = vpop.f32.mrf.mxu0
      %v4293 = vadd.f32 %v4220, %v4292
      %v4294 = vpop.f32.mrf.mxu0
      %v4295 = vadd.f32 %v4222, %v4294
      %v4296 = vpop.f32.mrf.mxu0
      %v4297 = vadd.f32 %v4224, %v4296
      %v4298 = vpop.f32.mrf.mxu0
      %v4299 = vadd.f32 %v4226, %v4298
      %4300 = vmatprep.mubr.bf16.mxu0 %v3981
      %4301 = vmatmul.mubr.bf16.gmra.mxu0 %v3980
      %v4302 = vpop.f32.mrf.mxu0
      %v4303 = vadd.f32 %v4230, %v4302
      %v4304 = vpop.f32.mrf.mxu0
      %v4305 = vadd.f32 %v4232, %v4304
      %v4306 = vpop.f32.mrf.mxu0
      %v4307 = vadd.f32 %v4234, %v4306
      %v4308 = vpop.f32.mrf.mxu0
      %v4309 = vadd.f32 %v4236, %v4308
      %4310 = vdwg.mxu0
      %4311 = vmatprep.subr.bf16.mxu0 %v3730
      %4312 = vmatpush1.bf16.msra.mxu0 %v3729
      %4313 = vmatprep.subr.bf16.mxu0 %v3728
      %4314 = vmatpush1.bf16.msra.mxu0 %v3727
      %4315 = vmatprep.subr.bf16.mxu0 %v3726
      %4316 = vmatpush1.bf16.msra.mxu0 %v3725
      %4317 = vmatprep.subr.bf16.mxu0 %v3724
      %4318 = vmatpush1.bf16.msra.mxu0 %v3723
      %4319 = vmatprep.subr.bf16.mxu0 %v3722
      %4320 = vmatpush1.bf16.msra.mxu0 %v3721
      %4321 = vmatprep.subr.bf16.mxu0 %v3720
      %4322 = vmatpush1.bf16.msra.mxu0 %v3719
      %4323 = vmatprep.subr.bf16.mxu0 %v3718
      %4324 = vmatpush1.bf16.msra.mxu0 %v3717
      %4325 = vmatprep.subr.bf16.mxu0 %v3716
      %4326 = vmatpush1.bf16.msra.mxu0 %v3715
      %4327 = vmatprep.subr.bf16.mxu0 0
      %4328 = vmatpush2.bf16.msra.mxu0 0
      %4329 = vmatprep.subr.bf16.mxu0 0
      %4330 = vmatpush2.bf16.msra.mxu0 0
      %4331 = vmatprep.subr.bf16.mxu0 0
      %4332 = vmatpush2.bf16.msra.mxu0 0
      %4333 = vmatprep.subr.bf16.mxu0 0
      %4334 = vmatpush2.bf16.msra.mxu0 0
      %4335 = vmatprep.subr.bf16.mxu0 0
      %4336 = vmatpush2.bf16.msra.mxu0 0
      %4337 = vmatprep.subr.bf16.mxu0 0
      %4338 = vmatpush2.bf16.msra.mxu0 0
      %4339 = vmatprep.subr.bf16.mxu0 0
      %4340 = vmatpush2.bf16.msra.mxu0 0
      %4341 = vmatprep.subr.bf16.mxu0 0
      %4342 = vmatpush2.bf16.msra.mxu0 0
      %4343 = vmatprep.mubr.bf16.mxu0 0
      %4344 = vmatmul.mubr.bf16.gmra.mxu0 %v3955
      %v4345 = vpop.f32.mrf.mxu0
      %v4346 = vadd.f32 %v4273, %v4345
      %v4347 = vpop.f32.mrf.mxu0
      %v4348 = vadd.f32 %v4275, %v4347
      %v4349 = vpop.f32.mrf.mxu0
      %v4350 = vadd.f32 %v4277, %v4349
      %v4351 = vpop.f32.mrf.mxu0
      %v4352 = vadd.f32 %v4279, %v4351
      %4353 = vmatprep.mubr.bf16.mxu0 0
      %4354 = vmatmul.mubr.bf16.gmra.mxu0 %v3964
      %v4355 = vpop.f32.mrf.mxu0
      %v4356 = vadd.f32 %v4283, %v4355
      %v4357 = vpop.f32.mrf.mxu0
      %v4358 = vadd.f32 %v4285, %v4357
      %v4359 = vpop.f32.mrf.mxu0
      %v4360 = vadd.f32 %v4287, %v4359
      %v4361 = vpop.f32.mrf.mxu0
      %v4362 = vadd.f32 %v4289, %v4361
      %4363 = vmatprep.mubr.bf16.mxu0 0
      %4364 = vmatmul.mubr.bf16.gmra.mxu0 %v3973
      %v4365 = vpop.f32.mrf.mxu0
      %v4366 = vadd.f32 %v4293, %v4365
      %v4367 = vpop.f32.mrf.mxu0
      %v4368 = vadd.f32 %v4295, %v4367
      %v4369 = vpop.f32.mrf.mxu0
      %v4370 = vadd.f32 %v4297, %v4369
      %v4371 = vpop.f32.mrf.mxu0
      %v4372 = vadd.f32 %v4299, %v4371
      %4373 = vmatprep.mubr.bf16.mxu0 0
      %4374 = vmatmul.mubr.bf16.gmra.mxu0 %v3982
      %v4375 = vpop.f32.mrf.mxu0
      %v4376 = vadd.f32 %v4303, %v4375
      %v4377 = vpop.f32.mrf.mxu0
      %v4378 = vadd.f32 %v4305, %v4377
      %v4379 = vpop.f32.mrf.mxu0
      %v4380 = vadd.f32 %v4307, %v4379
      %v4381 = vpop.f32.mrf.mxu0
      %v4382 = vadd.f32 %v4309, %v4381
      %4383 = vdwg.mxu0
      %v4384 = vmax.f32 %v4346, 0.0
      %v4385 = vmax.f32 %v4348, 0.0
      %v4386 = vmax.f32 %v4350, 0.0
      %v4387 = vmax.f32 %v4352, 0.0
      %v4388 = vmax.f32 %v4356, 0.0
      %v4389 = vmax.f32 %v4358, 0.0
      %v4390 = vmax.f32 %v4360, 0.0
      %v4391 = vmax.f32 %v4362, 0.0
      %v4392 = vmax.f32 %v4366, 0.0
      %v4393 = vmax.f32 %v4368, 0.0
      %v4394 = vmax.f32 %v4370, 0.0
      %v4395 = vmax.f32 %v4372, 0.0
      %v4396 = vmax.f32 %v4376, 0.0
      %v4397 = vmax.f32 %v4378, 0.0
      %v4398 = vmax.f32 %v4380, 0.0
      %v4399 = vmax.f32 %v4382, 0.0
      %v4400 = vpack.c.bf16 %v4386, %v4384
      %v4401 = vpack.c.bf16 %v4387, %v4385
      %v4402 = vpack.c.bf16 %v4390, %v4388
      %v4403 = vpack.c.bf16 %v4391, %v4389
      %v4404 = vpack.c.bf16 %v4394, %v4392
      %v4405 = vpack.c.bf16 %v4395, %v4393
      %v4406 = vpack.c.bf16 %v4398, %v4396
      %v4407 = vpack.c.bf16 %v4399, %v4397
      %v4408 = vld [vmem:[%s9] sm:$0xf]
      %v4409 = vld [vmem:[%s9 + $0x4] sm:$0xf]
      %v4410 = vld [vmem:[%s9 + $0x8] sm:$0xf]
      %v4411 = vld [vmem:[%s9 + $0xc] sm:$0xf]
      %v4412 = vld [vmem:[%s9 + $0x10] sm:$0xf]
      %v4413 = vld [vmem:[%s9 + $0x14] sm:$0xf]
      %v4414 = vld [vmem:[%s9 + $0x18] sm:$0xf]
      %v4415 = vld [vmem:[%s9 + $0x1c] sm:$0xf]
      %v4416 = vld [vmem:[%s9 + $0x20] sm:$0xf]
      %v4417 = vld [vmem:[%s9 + $0x24] sm:$0xf]
      %v4418 = vld [vmem:[%s9 + $0x28] sm:$0xf]
      %v4419 = vld [vmem:[%s9 + $0x2c] sm:$0xf]
      %v4420 = vld [vmem:[%s9 + $0x30] sm:$0xf]
      %v4421 = vld [vmem:[%s9 + $0x34] sm:$0xf]
      %v4422 = vld [vmem:[%s9 + $0x38] sm:$0xf]
      %v4423 = vld [vmem:[%s9 + $0x3c] sm:$0xf]
      %v4424 = vld [vmem:[%s9 + $0x40] sm:$0xf]
      %v4425 = vld [vmem:[%s9 + $0x44] sm:$0xf]
      %v4426 = vld [vmem:[%s9 + $0x48] sm:$0xf]
      %v4427 = vld [vmem:[%s9 + $0x4c] sm:$0xf]
      %v4428 = vld [vmem:[%s9 + $0x50] sm:$0xf]
      %v4429 = vld [vmem:[%s9 + $0x54] sm:$0xf]
      %v4430 = vld [vmem:[%s9 + $0x58] sm:$0xf]
      %v4431 = vld [vmem:[%s9 + $0x5c] sm:$0xf]
      %v4432 = vld [vmem:[%s9 + $0x60] sm:$0xf]
      %v4433 = vld [vmem:[%s9 + $0x64] sm:$0xf]
      %v4434 = vld [vmem:[%s9 + $0x68] sm:$0xf]
      %v4435 = vld [vmem:[%s9 + $0x6c] sm:$0xf]
      %v4436 = vld [vmem:[%s9 + $0x70] sm:$0xf]
      %v4437 = vld [vmem:[%s9 + $0x74] sm:$0xf]
      %v4438 = vld [vmem:[%s9 + $0x78] sm:$0xf]
      %v4439 = vld [vmem:[%s9 + $0x7c] sm:$0xf]
      %v4472 = vunpack.c.l.b16 %v4408
      %v4473 = vunpack.c.l.b16 %v4409
      %v4474 = vunpack.c.l.b16 %v4410
      %v4475 = vunpack.c.l.b16 %v4411
      %v4476 = vunpack.c.l.b16 %v4412
      %v4477 = vunpack.c.l.b16 %v4413
      %v4478 = vunpack.c.l.b16 %v4414
      %v4479 = vunpack.c.l.b16 %v4415
      %v4480 = vunpack.c.l.b16 %v4416
      %v4481 = vunpack.c.l.b16 %v4417
      %v4482 = vunpack.c.l.b16 %v4418
      %v4483 = vunpack.c.l.b16 %v4419
      %v4484 = vunpack.c.l.b16 %v4420
      %v4485 = vunpack.c.l.b16 %v4421
      %v4486 = vunpack.c.l.b16 %v4422
      %v4487 = vunpack.c.l.b16 %v4423
      %v4488 = vunpack.c.l.b16 %v4424
      %v4489 = vunpack.c.l.b16 %v4425
      %v4490 = vunpack.c.l.b16 %v4426
      %v4491 = vunpack.c.l.b16 %v4427
      %v4492 = vunpack.c.l.b16 %v4428
      %v4493 = vunpack.c.l.b16 %v4429
      %v4494 = vunpack.c.l.b16 %v4430
      %v4495 = vunpack.c.l.b16 %v4431
      %v4496 = vunpack.c.l.b16 %v4432
      %v4497 = vunpack.c.l.b16 %v4433
      %v4498 = vunpack.c.l.b16 %v4434
      %v4499 = vunpack.c.l.b16 %v4435
      %v4500 = vunpack.c.l.b16 %v4436
      %v4501 = vunpack.c.l.b16 %v4437
      %v4502 = vunpack.c.l.b16 %v4438
      %v4503 = vunpack.c.l.b16 %v4439
      %v4504 = vpack.c.b16 %v4473, %v4472
      %v4505 = vpack.c.b16 %v4475, %v4474
      %v4506 = vpack.c.b16 %v4477, %v4476
      %v4507 = vpack.c.b16 %v4479, %v4478
      %v4508 = vpack.c.b16 %v4481, %v4480
      %v4509 = vpack.c.b16 %v4483, %v4482
      %v4510 = vpack.c.b16 %v4485, %v4484
      %v4511 = vpack.c.b16 %v4487, %v4486
      %v4512 = vpack.c.b16 %v4489, %v4488
      %v4513 = vpack.c.b16 %v4491, %v4490
      %v4514 = vpack.c.b16 %v4493, %v4492
      %v4515 = vpack.c.b16 %v4495, %v4494
      %v4516 = vpack.c.b16 %v4497, %v4496
      %v4517 = vpack.c.b16 %v4499, %v4498
      %v4518 = vpack.c.b16 %v4501, %v4500
      %v4519 = vpack.c.b16 %v4503, %v4502
      %4536 = vmatprep.subr.bf16.mxu0 0
      %4537 = vmatpush1.bf16.msra.mxu0 %v4511
      %4538 = vmatprep.subr.bf16.mxu0 0
      %4539 = vmatpush1.bf16.msra.mxu0 %v4510
      %4540 = vmatprep.subr.bf16.mxu0 0
      %4541 = vmatpush1.bf16.msra.mxu0 %v4509
      %4542 = vmatprep.subr.bf16.mxu0 0
      %4543 = vmatpush1.bf16.msra.mxu0 %v4508
      %4544 = vmatprep.subr.bf16.mxu0 0
      %4545 = vmatpush1.bf16.msra.mxu0 %v4507
      %4546 = vmatprep.subr.bf16.mxu0 0
      %4547 = vmatpush1.bf16.msra.mxu0 %v4506
      %4548 = vmatprep.subr.bf16.mxu0 0
      %4549 = vmatpush1.bf16.msra.mxu0 %v4505
      %4550 = vmatprep.subr.bf16.mxu0 0
      %4551 = vmatpush1.bf16.msra.mxu0 %v4504
      %4552 = vmatprep.subr.bf16.mxu0 0
      %4553 = vmatpush2.bf16.msra.mxu0 %v4519
      %4554 = vmatprep.subr.bf16.mxu0 0
      %4555 = vmatpush2.bf16.msra.mxu0 %v4518
      %4556 = vmatprep.subr.bf16.mxu0 0
      %4557 = vmatpush2.bf16.msra.mxu0 %v4517
      %4558 = vmatprep.subr.bf16.mxu0 0
      %4559 = vmatpush2.bf16.msra.mxu0 %v4516
      %4560 = vmatprep.subr.bf16.mxu0 0
      %4561 = vmatpush2.bf16.msra.mxu0 %v4515
      %4562 = vmatprep.subr.bf16.mxu0 0
      %4563 = vmatpush2.bf16.msra.mxu0 %v4514
      %4564 = vmatprep.subr.bf16.mxu0 0
      %4565 = vmatpush2.bf16.msra.mxu0 %v4513
      %4566 = vmatprep.subr.bf16.mxu0 0
      %4567 = vmatpush2.bf16.msra.mxu0 %v4512
      %4568 = vmatprep.mubr.bf16.mxu0 %v4401
      %4569 = vmatmul.mubr.bf16.gmra.mxu0 %v4400
      %v4570 = vpop.f32.mrf.mxu0
      %v4571 = vadd.f32 0.0, %v4570
      %v4572 = vpop.f32.mrf.mxu0
      %v4573 = vpop.f32.mrf.mxu0
      %v4574 = vadd.f32 0.0, %v4573
      %v4575 = vpop.f32.mrf.mxu0
      %4576 = vmatprep.mubr.bf16.mxu0 %v4403
      %4577 = vmatmul.mubr.bf16.gmra.mxu0 %v4402
      %v4578 = vpop.f32.mrf.mxu0
      %v4579 = vadd.f32 0.0, %v4578
      %v4580 = vpop.f32.mrf.mxu0
      %v4581 = vpop.f32.mrf.mxu0
      %v4582 = vadd.f32 0.0, %v4581
      %v4583 = vpop.f32.mrf.mxu0
      %4584 = vmatprep.mubr.bf16.mxu0 %v4405
      %4585 = vmatmul.mubr.bf16.gmra.mxu0 %v4404
      %v4586 = vpop.f32.mrf.mxu0
      %v4587 = vadd.f32 0.0, %v4586
      %v4588 = vpop.f32.mrf.mxu0
      %v4589 = vpop.f32.mrf.mxu0
      %v4590 = vadd.f32 0.0, %v4589
      %v4591 = vpop.f32.mrf.mxu0
      %4592 = vmatprep.mubr.bf16.mxu0 %v4407
      %4593 = vmatmul.mubr.bf16.gmra.mxu0 %v4406
      %v4594 = vpop.f32.mrf.mxu0
      %v4595 = vadd.f32 0.0, %v4594
      %v4596 = vpop.f32.mrf.mxu0
      %v4597 = vpop.f32.mrf.mxu0
      %v4598 = vadd.f32 0.0, %v4597
      %v4599 = vpop.f32.mrf.mxu0
      %4600 = vdwg.mxu0
      %4601 = vst.msk [vmem:[%s534] sm:$0xff] %vm766, %v4571
      %4602 = vst.msk [vmem:[%s534 + $0x8] sm:$0xff] %vm766, %v4574
      %4603 = vst.msk [vmem:[%s534 + $0x10] sm:$0xff] %vm766, %v4579
      %4604 = vst.msk [vmem:[%s534 + $0x18] sm:$0xff] %vm766, %v4582
      %4605 = vst.msk [vmem:[%s534 + $0x20] sm:$0xff] %vm766, %v4587
      %4606 = vst.msk [vmem:[%s534 + $0x28] sm:$0xff] %vm766, %v4590
      %4607 = vst.msk [vmem:[%s534 + $0x30] sm:$0xff] %vm766, %v4595
      %4608 = vst.msk [vmem:[%s534 + $0x38] sm:$0xff] %vm766, %v4598
      %v4609 = vld [vmem:[%s10] sm:$0xff]
      %v4610 = vld [vmem:[%s10 + $0x8] sm:$0xff]
      %v4611 = vld [vmem:[%s10 + $0x10] sm:$0xff]
      %v4612 = vld [vmem:[%s10 + $0x18] sm:$0xff]
      %v4613 = vld [vmem:[%s10 + $0x20] sm:$0xff]
      %v4614 = vld [vmem:[%s10 + $0x28] sm:$0xff]
      %v4615 = vld [vmem:[%s10 + $0x30] sm:$0xff]
      %v4616 = vld [vmem:[%s10 + $0x38] sm:$0xff]
      %v4617 = vld [vmem:[%s10 + $0x40] sm:$0xff]
      %v4618 = vld [vmem:[%s10 + $0x48] sm:$0xff]
      %v4619 = vld [vmem:[%s10 + $0x50] sm:$0xff]
      %v4620 = vld [vmem:[%s10 + $0x58] sm:$0xff]
      %v4621 = vld [vmem:[%s10 + $0x60] sm:$0xff]
      %v4622 = vld [vmem:[%s10 + $0x68] sm:$0xff]
      %v4623 = vld [vmem:[%s10 + $0x70] sm:$0xff]
      %v4624 = vld [vmem:[%s10 + $0x78] sm:$0xff]
      %v4625 = vunpack.c.l.bf16 %v4609
      %v4626 = vunpack.c.h.bf16 %v4609
      %v4627 = vunpack.c.l.bf16 %v4610
      %v4628 = vunpack.c.h.bf16 %v4610
      %v4629 = vunpack.c.l.bf16 %v4611
      %v4630 = vunpack.c.h.bf16 %v4611
      %v4631 = vunpack.c.l.bf16 %v4612
      %v4632 = vunpack.c.h.bf16 %v4612
      %v4633 = vunpack.c.l.bf16 %v4613
      %v4634 = vunpack.c.h.bf16 %v4613
      %v4635 = vunpack.c.l.bf16 %v4614
      %v4636 = vunpack.c.h.bf16 %v4614
      %v4637 = vunpack.c.l.bf16 %v4615
      %v4638 = vunpack.c.h.bf16 %v4615
      %v4639 = vunpack.c.l.bf16 %v4616
      %v4640 = vunpack.c.h.bf16 %v4616
      %v4641 = vunpack.c.l.bf16 %v4617
      %v4642 = vunpack.c.h.bf16 %v4617
      %v4643 = vunpack.c.l.bf16 %v4618
      %v4644 = vunpack.c.h.bf16 %v4618
      %v4645 = vunpack.c.l.bf16 %v4619
      %v4646 = vunpack.c.h.bf16 %v4619
      %v4647 = vunpack.c.l.bf16 %v4620
      %v4648 = vunpack.c.h.bf16 %v4620
      %v4649 = vunpack.c.l.bf16 %v4621
      %v4650 = vunpack.c.h.bf16 %v4621
      %v4651 = vunpack.c.l.bf16 %v4622
      %v4652 = vunpack.c.h.bf16 %v4622
      %v4653 = vunpack.c.l.bf16 %v4623
      %v4654 = vunpack.c.h.bf16 %v4623
      %v4655 = vunpack.c.l.bf16 %v4624
      %v4656 = vunpack.c.h.bf16 %v4624
      %4658 = vset.pattern.permute.xlu0 0
      %4659 = vperm.xlu0 %4658, %v4571
      %v4660 = vpop.permute.xlu0 %4659
      %4663 = vset.pattern.permute.xlu0 0
      %4664 = vperm.xlu0 %4663, %v4574
      %v4665 = vpop.permute.xlu0 %4664
      %4668 = vset.pattern.permute.xlu0 0
      %4669 = vperm.xlu0 %4668, %v4579
      %v4670 = vpop.permute.xlu0 %4669
      %4673 = vset.pattern.permute.xlu0 0
      %4674 = vperm.xlu0 %4673, %v4582
      %v4675 = vpop.permute.xlu0 %4674
      %4678 = vset.pattern.permute.xlu0 0
      %4679 = vperm.xlu0 %4678, %v4587
      %v4680 = vpop.permute.xlu0 %4679
      %4683 = vset.pattern.permute.xlu0 0
      %4684 = vperm.xlu0 %4683, %v4590
      %v4685 = vpop.permute.xlu0 %4684
      %4688 = vset.pattern.permute.xlu0 0
      %4689 = vperm.xlu0 %4688, %v4595
      %v4690 = vpop.permute.xlu0 %4689
      %4693 = vset.pattern.permute.xlu0 0
      %4694 = vperm.xlu0 %4693, %v4598
      %v4695 = vpop.permute.xlu0 %4694
      %v4697 = vmul.f32 %v4660, %v4625
      %v4698 = vmul.f32 %v4660, %v4626
      %v4699 = vmul.f32 %v4660, %v4627
      %v4700 = vmul.f32 %v4660, %v4628
      %v4701 = vmul.f32 %v4665, %v4629
      %v4702 = vmul.f32 %v4665, %v4630
      %v4703 = vmul.f32 %v4665, %v4631
      %v4704 = vmul.f32 %v4665, %v4632
      %v4705 = vmul.f32 %v4670, %v4633
      %v4706 = vmul.f32 %v4670, %v4634
      %v4707 = vmul.f32 %v4670, %v4635
      %v4708 = vmul.f32 %v4670, %v4636
      %v4709 = vmul.f32 %v4675, %v4637
      %v4710 = vmul.f32 %v4675, %v4638
      %v4711 = vmul.f32 %v4675, %v4639
      %v4712 = vmul.f32 %v4675, %v4640
      %v4713 = vmul.f32 %v4680, %v4641
      %v4714 = vmul.f32 %v4680, %v4642
      %v4715 = vmul.f32 %v4680, %v4643
      %v4716 = vmul.f32 %v4680, %v4644
      %v4717 = vmul.f32 %v4685, %v4645
      %v4718 = vmul.f32 %v4685, %v4646
      %v4719 = vmul.f32 %v4685, %v4647
      %v4720 = vmul.f32 %v4685, %v4648
      %v4721 = vmul.f32 %v4690, %v4649
      %v4722 = vmul.f32 %v4690, %v4650
      %v4723 = vmul.f32 %v4690, %v4651
      %v4724 = vmul.f32 %v4690, %v4652
      %v4725 = vmul.f32 %v4695, %v4653
      %v4726 = vmul.f32 %v4695, %v4654
      %v4727 = vmul.f32 %v4695, %v4655
      %v4728 = vmul.f32 %v4695, %v4656
      %s4729 = scalar_lea.vmem %s10, 128
      %v4730 = vld [vmem:[%s4729] sm:$0xff]
      %v4731 = vld [vmem:[%s4729 + $0x8] sm:$0xff]
      %v4732 = vld [vmem:[%s4729 + $0x10] sm:$0xff]
      %v4733 = vld [vmem:[%s4729 + $0x18] sm:$0xff]
      %v4734 = vld [vmem:[%s4729 + $0x20] sm:$0xff]
      %v4735 = vld [vmem:[%s4729 + $0x28] sm:$0xff]
      %v4736 = vld [vmem:[%s4729 + $0x30] sm:$0xff]
      %v4737 = vld [vmem:[%s4729 + $0x38] sm:$0xff]
      %v4738 = vld [vmem:[%s4729 + $0x40] sm:$0xff]
      %v4739 = vld [vmem:[%s4729 + $0x48] sm:$0xff]
      %v4740 = vld [vmem:[%s4729 + $0x50] sm:$0xff]
      %v4741 = vld [vmem:[%s4729 + $0x58] sm:$0xff]
      %v4742 = vld [vmem:[%s4729 + $0x60] sm:$0xff]
      %v4743 = vld [vmem:[%s4729 + $0x68] sm:$0xff]
      %v4744 = vld [vmem:[%s4729 + $0x70] sm:$0xff]
      %v4745 = vld [vmem:[%s4729 + $0x78] sm:$0xff]
      %v4746 = vunpack.c.l.bf16 %v4730
      %v4747 = vunpack.c.h.bf16 %v4730
      %v4748 = vunpack.c.l.bf16 %v4731
      %v4749 = vunpack.c.h.bf16 %v4731
      %v4750 = vunpack.c.l.bf16 %v4732
      %v4751 = vunpack.c.h.bf16 %v4732
      %v4752 = vunpack.c.l.bf16 %v4733
      %v4753 = vunpack.c.h.bf16 %v4733
      %v4754 = vunpack.c.l.bf16 %v4734
      %v4755 = vunpack.c.h.bf16 %v4734
      %v4756 = vunpack.c.l.bf16 %v4735
      %v4757 = vunpack.c.h.bf16 %v4735
      %v4758 = vunpack.c.l.bf16 %v4736
      %v4759 = vunpack.c.h.bf16 %v4736
      %v4760 = vunpack.c.l.bf16 %v4737
      %v4761 = vunpack.c.h.bf16 %v4737
      %v4762 = vunpack.c.l.bf16 %v4738
      %v4763 = vunpack.c.h.bf16 %v4738
      %v4764 = vunpack.c.l.bf16 %v4739
      %v4765 = vunpack.c.h.bf16 %v4739
      %v4766 = vunpack.c.l.bf16 %v4740
      %v4767 = vunpack.c.h.bf16 %v4740
      %v4768 = vunpack.c.l.bf16 %v4741
      %v4769 = vunpack.c.h.bf16 %v4741
      %v4770 = vunpack.c.l.bf16 %v4742
      %v4771 = vunpack.c.h.bf16 %v4742
      %v4772 = vunpack.c.l.bf16 %v4743
      %v4773 = vunpack.c.h.bf16 %v4743
      %v4774 = vunpack.c.l.bf16 %v4744
      %v4775 = vunpack.c.h.bf16 %v4744
      %v4776 = vunpack.c.l.bf16 %v4745
      %v4777 = vunpack.c.h.bf16 %v4745
      %4778 = vset.pattern.permute.xlu0 1
      %4779 = vperm.xlu0 %4778, %v4571
      %v4780 = vpop.permute.xlu0 %4779
      %4782 = vset.pattern.permute.xlu0 1
      %4783 = vperm.xlu0 %4782, %v4574
      %v4784 = vpop.permute.xlu0 %4783
      %4786 = vset.pattern.permute.xlu0 1
      %4787 = vperm.xlu0 %4786, %v4579
      %v4788 = vpop.permute.xlu0 %4787
      %4790 = vset.pattern.permute.xlu0 1
      %4791 = vperm.xlu0 %4790, %v4582
      %v4792 = vpop.permute.xlu0 %4791
      %4794 = vset.pattern.permute.xlu0 1
      %4795 = vperm.xlu0 %4794, %v4587
      %v4796 = vpop.permute.xlu0 %4795
      %4798 = vset.pattern.permute.xlu0 1
      %4799 = vperm.xlu0 %4798, %v4590
      %v4800 = vpop.permute.xlu0 %4799
      %4802 = vset.pattern.permute.xlu0 1
      %4803 = vperm.xlu0 %4802, %v4595
      %v4804 = vpop.permute.xlu0 %4803
      %4806 = vset.pattern.permute.xlu0 1
      %4807 = vperm.xlu0 %4806, %v4598
      %v4808 = vpop.permute.xlu0 %4807
      %v4810 = vmul.f32 %v4780, %v4746
      %v4811 = vmul.f32 %v4780, %v4747
      %v4812 = vmul.f32 %v4780, %v4748
      %v4813 = vmul.f32 %v4780, %v4749
      %v4814 = vmul.f32 %v4784, %v4750
      %v4815 = vmul.f32 %v4784, %v4751
      %v4816 = vmul.f32 %v4784, %v4752
      %v4817 = vmul.f32 %v4784, %v4753
      %v4818 = vmul.f32 %v4788, %v4754
      %v4819 = vmul.f32 %v4788, %v4755
      %v4820 = vmul.f32 %v4788, %v4756
      %v4821 = vmul.f32 %v4788, %v4757
      %v4822 = vmul.f32 %v4792, %v4758
      %v4823 = vmul.f32 %v4792, %v4759
      %v4824 = vmul.f32 %v4792, %v4760
      %v4825 = vmul.f32 %v4792, %v4761
      %v4826 = vmul.f32 %v4796, %v4762
      %v4827 = vmul.f32 %v4796, %v4763
      %v4828 = vmul.f32 %v4796, %v4764
      %v4829 = vmul.f32 %v4796, %v4765
      %v4830 = vmul.f32 %v4800, %v4766
      %v4831 = vmul.f32 %v4800, %v4767
      %v4832 = vmul.f32 %v4800, %v4768
      %v4833 = vmul.f32 %v4800, %v4769
      %v4834 = vmul.f32 %v4804, %v4770
      %v4835 = vmul.f32 %v4804, %v4771
      %v4836 = vmul.f32 %v4804, %v4772
      %v4837 = vmul.f32 %v4804, %v4773
      %v4838 = vmul.f32 %v4808, %v4774
      %v4839 = vmul.f32 %v4808, %v4775
      %v4840 = vmul.f32 %v4808, %v4776
      %v4841 = vmul.f32 %v4808, %v4777
      %v4842 = vadd.f32 %v4697, %v4810
      %v4843 = vadd.f32 %v4698, %v4811
      %v4844 = vadd.f32 %v4699, %v4812
      %v4845 = vadd.f32 %v4700, %v4813
      %v4846 = vadd.f32 %v4701, %v4814
      %v4847 = vadd.f32 %v4702, %v4815
      %v4848 = vadd.f32 %v4703, %v4816
      %v4849 = vadd.f32 %v4704, %v4817
      %v4850 = vadd.f32 %v4705, %v4818
      %v4851 = vadd.f32 %v4706, %v4819
      %v4852 = vadd.f32 %v4707, %v4820
      %v4853 = vadd.f32 %v4708, %v4821
      %v4854 = vadd.f32 %v4709, %v4822
      %v4855 = vadd.f32 %v4710, %v4823
      %v4856 = vadd.f32 %v4711, %v4824
      %v4857 = vadd.f32 %v4712, %v4825
      %v4858 = vadd.f32 %v4713, %v4826
      %v4859 = vadd.f32 %v4714, %v4827
      %v4860 = vadd.f32 %v4715, %v4828
      %v4861 = vadd.f32 %v4716, %v4829
      %v4862 = vadd.f32 %v4717, %v4830
      %v4863 = vadd.f32 %v4718, %v4831
      %v4864 = vadd.f32 %v4719, %v4832
      %v4865 = vadd.f32 %v4720, %v4833
      %v4866 = vadd.f32 %v4721, %v4834
      %v4867 = vadd.f32 %v4722, %v4835
      %v4868 = vadd.f32 %v4723, %v4836
      %v4869 = vadd.f32 %v4724, %v4837
      %v4870 = vadd.f32 %v4725, %v4838
      %v4871 = vadd.f32 %v4726, %v4839
      %v4872 = vadd.f32 %v4727, %v4840
      %v4873 = vadd.f32 %v4728, %v4841
      %s4874 = scalar_lea.vmem %s10, 256
      %v4875 = vld [vmem:[%s4874] sm:$0xff]
      %v4876 = vld [vmem:[%s4874 + $0x8] sm:$0xff]
      %v4877 = vld [vmem:[%s4874 + $0x10] sm:$0xff]
      %v4878 = vld [vmem:[%s4874 + $0x18] sm:$0xff]
      %v4879 = vld [vmem:[%s4874 + $0x20] sm:$0xff]
      %v4880 = vld [vmem:[%s4874 + $0x28] sm:$0xff]
      %v4881 = vld [vmem:[%s4874 + $0x30] sm:$0xff]
      %v4882 = vld [vmem:[%s4874 + $0x38] sm:$0xff]
      %v4883 = vld [vmem:[%s4874 + $0x40] sm:$0xff]
      %v4884 = vld [vmem:[%s4874 + $0x48] sm:$0xff]
      %v4885 = vld [vmem:[%s4874 + $0x50] sm:$0xff]
      %v4886 = vld [vmem:[%s4874 + $0x58] sm:$0xff]
      %v4887 = vld [vmem:[%s4874 + $0x60] sm:$0xff]
      %v4888 = vld [vmem:[%s4874 + $0x68] sm:$0xff]
      %v4889 = vld [vmem:[%s4874 + $0x70] sm:$0xff]
      %v4890 = vld [vmem:[%s4874 + $0x78] sm:$0xff]
      %v4891 = vunpack.c.l.bf16 %v4875
      %v4892 = vunpack.c.h.bf16 %v4875
      %v4893 = vunpack.c.l.bf16 %v4876
      %v4894 = vunpack.c.h.bf16 %v4876
      %v4895 = vunpack.c.l.bf16 %v4877
      %v4896 = vunpack.c.h.bf16 %v4877
      %v4897 = vunpack.c.l.bf16 %v4878
      %v4898 = vunpack.c.h.bf16 %v4878
      %v4899 = vunpack.c.l.bf16 %v4879
      %v4900 = vunpack.c.h.bf16 %v4879
      %v4901 = vunpack.c.l.bf16 %v4880
      %v4902 = vunpack.c.h.bf16 %v4880
      %v4903 = vunpack.c.l.bf16 %v4881
      %v4904 = vunpack.c.h.bf16 %v4881
      %v4905 = vunpack.c.l.bf16 %v4882
      %v4906 = vunpack.c.h.bf16 %v4882
      %v4907 = vunpack.c.l.bf16 %v4883
      %v4908 = vunpack.c.h.bf16 %v4883
      %v4909 = vunpack.c.l.bf16 %v4884
      %v4910 = vunpack.c.h.bf16 %v4884
      %v4911 = vunpack.c.l.bf16 %v4885
      %v4912 = vunpack.c.h.bf16 %v4885
      %v4913 = vunpack.c.l.bf16 %v4886
      %v4914 = vunpack.c.h.bf16 %v4886
      %v4915 = vunpack.c.l.bf16 %v4887
      %v4916 = vunpack.c.h.bf16 %v4887
      %v4917 = vunpack.c.l.bf16 %v4888
      %v4918 = vunpack.c.h.bf16 %v4888
      %v4919 = vunpack.c.l.bf16 %v4889
      %v4920 = vunpack.c.h.bf16 %v4889
      %v4921 = vunpack.c.l.bf16 %v4890
      %v4922 = vunpack.c.h.bf16 %v4890
      %4923 = vset.pattern.permute.xlu0 2
      %4924 = vperm.xlu0 %4923, %v4571
      %v4925 = vpop.permute.xlu0 %4924
      %4927 = vset.pattern.permute.xlu0 2
      %4928 = vperm.xlu0 %4927, %v4574
      %v4929 = vpop.permute.xlu0 %4928
      %4931 = vset.pattern.permute.xlu0 2
      %4932 = vperm.xlu0 %4931, %v4579
      %v4933 = vpop.permute.xlu0 %4932
      %4935 = vset.pattern.permute.xlu0 2
      %4936 = vperm.xlu0 %4935, %v4582
      %v4937 = vpop.permute.xlu0 %4936
      %4939 = vset.pattern.permute.xlu0 2
      %4940 = vperm.xlu0 %4939, %v4587
      %v4941 = vpop.permute.xlu0 %4940
      %4943 = vset.pattern.permute.xlu0 2
      %4944 = vperm.xlu0 %4943, %v4590
      %v4945 = vpop.permute.xlu0 %4944
      %4947 = vset.pattern.permute.xlu0 2
      %4948 = vperm.xlu0 %4947, %v4595
      %v4949 = vpop.permute.xlu0 %4948
      %4951 = vset.pattern.permute.xlu0 2
      %4952 = vperm.xlu0 %4951, %v4598
      %v4953 = vpop.permute.xlu0 %4952
      %v4955 = vmul.f32 %v4925, %v4891
      %v4956 = vmul.f32 %v4925, %v4892
      %v4957 = vmul.f32 %v4925, %v4893
      %v4958 = vmul.f32 %v4925, %v4894
      %v4959 = vmul.f32 %v4929, %v4895
      %v4960 = vmul.f32 %v4929, %v4896
      %v4961 = vmul.f32 %v4929, %v4897
      %v4962 = vmul.f32 %v4929, %v4898
      %v4963 = vmul.f32 %v4933, %v4899
      %v4964 = vmul.f32 %v4933, %v4900
      %v4965 = vmul.f32 %v4933, %v4901
      %v4966 = vmul.f32 %v4933, %v4902
      %v4967 = vmul.f32 %v4937, %v4903
      %v4968 = vmul.f32 %v4937, %v4904
      %v4969 = vmul.f32 %v4937, %v4905
      %v4970 = vmul.f32 %v4937, %v4906
      %v4971 = vmul.f32 %v4941, %v4907
      %v4972 = vmul.f32 %v4941, %v4908
      %v4973 = vmul.f32 %v4941, %v4909
      %v4974 = vmul.f32 %v4941, %v4910
      %v4975 = vmul.f32 %v4945, %v4911
      %v4976 = vmul.f32 %v4945, %v4912
      %v4977 = vmul.f32 %v4945, %v4913
      %v4978 = vmul.f32 %v4945, %v4914
      %v4979 = vmul.f32 %v4949, %v4915
      %v4980 = vmul.f32 %v4949, %v4916
      %v4981 = vmul.f32 %v4949, %v4917
      %v4982 = vmul.f32 %v4949, %v4918
      %v4983 = vmul.f32 %v4953, %v4919
      %v4984 = vmul.f32 %v4953, %v4920
      %v4985 = vmul.f32 %v4953, %v4921
      %v4986 = vmul.f32 %v4953, %v4922
      %v4987 = vadd.f32 %v4842, %v4955
      %v4988 = vadd.f32 %v4843, %v4956
      %v4989 = vadd.f32 %v4844, %v4957
      %v4990 = vadd.f32 %v4845, %v4958
      %v4991 = vadd.f32 %v4846, %v4959
      %v4992 = vadd.f32 %v4847, %v4960
      %v4993 = vadd.f32 %v4848, %v4961
      %v4994 = vadd.f32 %v4849, %v4962
      %v4995 = vadd.f32 %v4850, %v4963
      %v4996 = vadd.f32 %v4851, %v4964
      %v4997 = vadd.f32 %v4852, %v4965
      %v4998 = vadd.f32 %v4853, %v4966
      %v4999 = vadd.f32 %v4854, %v4967
      %v5000 = vadd.f32 %v4855, %v4968
      %v5001 = vadd.f32 %v4856, %v4969
      %v5002 = vadd.f32 %v4857, %v4970
      %v5003 = vadd.f32 %v4858, %v4971
      %v5004 = vadd.f32 %v4859, %v4972
      %v5005 = vadd.f32 %v4860, %v4973
      %v5006 = vadd.f32 %v4861, %v4974
      %v5007 = vadd.f32 %v4862, %v4975
      %v5008 = vadd.f32 %v4863, %v4976
      %v5009 = vadd.f32 %v4864, %v4977
      %v5010 = vadd.f32 %v4865, %v4978
      %v5011 = vadd.f32 %v4866, %v4979
      %v5012 = vadd.f32 %v4867, %v4980
      %v5013 = vadd.f32 %v4868, %v4981
      %v5014 = vadd.f32 %v4869, %v4982
      %v5015 = vadd.f32 %v4870, %v4983
      %v5016 = vadd.f32 %v4871, %v4984
      %v5017 = vadd.f32 %v4872, %v4985
      %v5018 = vadd.f32 %v4873, %v4986
      %s5019 = scalar_lea.vmem %s10, 384
      %v5020 = vld [vmem:[%s5019] sm:$0xff]
      %v5021 = vld [vmem:[%s5019 + $0x8] sm:$0xff]
      %v5022 = vld [vmem:[%s5019 + $0x10] sm:$0xff]
      %v5023 = vld [vmem:[%s5019 + $0x18] sm:$0xff]
      %v5024 = vld [vmem:[%s5019 + $0x20] sm:$0xff]
      %v5025 = vld [vmem:[%s5019 + $0x28] sm:$0xff]
      %v5026 = vld [vmem:[%s5019 + $0x30] sm:$0xff]
      %v5027 = vld [vmem:[%s5019 + $0x38] sm:$0xff]
      %v5028 = vld [vmem:[%s5019 + $0x40] sm:$0xff]
      %v5029 = vld [vmem:[%s5019 + $0x48] sm:$0xff]
      %v5030 = vld [vmem:[%s5019 + $0x50] sm:$0xff]
      %v5031 = vld [vmem:[%s5019 + $0x58] sm:$0xff]
      %v5032 = vld [vmem:[%s5019 + $0x60] sm:$0xff]
      %v5033 = vld [vmem:[%s5019 + $0x68] sm:$0xff]
      %v5034 = vld [vmem:[%s5019 + $0x70] sm:$0xff]
      %v5035 = vld [vmem:[%s5019 + $0x78] sm:$0xff]
      %v5036 = vunpack.c.l.bf16 %v5020
      %v5037 = vunpack.c.h.bf16 %v5020
      %v5038 = vunpack.c.l.bf16 %v5021
      %v5039 = vunpack.c.h.bf16 %v5021
      %v5040 = vunpack.c.l.bf16 %v5022
      %v5041 = vunpack.c.h.bf16 %v5022
      %v5042 = vunpack.c.l.bf16 %v5023
      %v5043 = vunpack.c.h.bf16 %v5023
      %v5044 = vunpack.c.l.bf16 %v5024
      %v5045 = vunpack.c.h.bf16 %v5024
      %v5046 = vunpack.c.l.bf16 %v5025
      %v5047 = vunpack.c.h.bf16 %v5025
      %v5048 = vunpack.c.l.bf16 %v5026
      %v5049 = vunpack.c.h.bf16 %v5026
      %v5050 = vunpack.c.l.bf16 %v5027
      %v5051 = vunpack.c.h.bf16 %v5027
      %v5052 = vunpack.c.l.bf16 %v5028
      %v5053 = vunpack.c.h.bf16 %v5028
      %v5054 = vunpack.c.l.bf16 %v5029
      %v5055 = vunpack.c.h.bf16 %v5029
      %v5056 = vunpack.c.l.bf16 %v5030
      %v5057 = vunpack.c.h.bf16 %v5030
      %v5058 = vunpack.c.l.bf16 %v5031
      %v5059 = vunpack.c.h.bf16 %v5031
      %v5060 = vunpack.c.l.bf16 %v5032
      %v5061 = vunpack.c.h.bf16 %v5032
      %v5062 = vunpack.c.l.bf16 %v5033
      %v5063 = vunpack.c.h.bf16 %v5033
      %v5064 = vunpack.c.l.bf16 %v5034
      %v5065 = vunpack.c.h.bf16 %v5034
      %v5066 = vunpack.c.l.bf16 %v5035
      %v5067 = vunpack.c.h.bf16 %v5035
      %5068 = vset.pattern.permute.xlu0 3
      %5069 = vperm.xlu0 %5068, %v4571
      %v5070 = vpop.permute.xlu0 %5069
      %5072 = vset.pattern.permute.xlu0 3
      %5073 = vperm.xlu0 %5072, %v4574
      %v5074 = vpop.permute.xlu0 %5073
      %5076 = vset.pattern.permute.xlu0 3
      %5077 = vperm.xlu0 %5076, %v4579
      %v5078 = vpop.permute.xlu0 %5077
      %5080 = vset.pattern.permute.xlu0 3
      %5081 = vperm.xlu0 %5080, %v4582
      %v5082 = vpop.permute.xlu0 %5081
      %5084 = vset.pattern.permute.xlu0 3
      %5085 = vperm.xlu0 %5084, %v4587
      %v5086 = vpop.permute.xlu0 %5085
      %5088 = vset.pattern.permute.xlu0 3
      %5089 = vperm.xlu0 %5088, %v4590
      %v5090 = vpop.permute.xlu0 %5089
      %5092 = vset.pattern.permute.xlu0 3
      %5093 = vperm.xlu0 %5092, %v4595
      %v5094 = vpop.permute.xlu0 %5093
      %5096 = vset.pattern.permute.xlu0 3
      %5097 = vperm.xlu0 %5096, %v4598
      %v5098 = vpop.permute.xlu0 %5097
      %v5100 = vmul.f32 %v5070, %v5036
      %v5101 = vmul.f32 %v5070, %v5037
      %v5102 = vmul.f32 %v5070, %v5038
      %v5103 = vmul.f32 %v5070, %v5039
      %v5104 = vmul.f32 %v5074, %v5040
      %v5105 = vmul.f32 %v5074, %v5041
      %v5106 = vmul.f32 %v5074, %v5042
      %v5107 = vmul.f32 %v5074, %v5043
      %v5108 = vmul.f32 %v5078, %v5044
      %v5109 = vmul.f32 %v5078, %v5045
      %v5110 = vmul.f32 %v5078, %v5046
      %v5111 = vmul.f32 %v5078, %v5047
      %v5112 = vmul.f32 %v5082, %v5048
      %v5113 = vmul.f32 %v5082, %v5049
      %v5114 = vmul.f32 %v5082, %v5050
      %v5115 = vmul.f32 %v5082, %v5051
      %v5116 = vmul.f32 %v5086, %v5052
      %v5117 = vmul.f32 %v5086, %v5053
      %v5118 = vmul.f32 %v5086, %v5054
      %v5119 = vmul.f32 %v5086, %v5055
      %v5120 = vmul.f32 %v5090, %v5056
      %v5121 = vmul.f32 %v5090, %v5057
      %v5122 = vmul.f32 %v5090, %v5058
      %v5123 = vmul.f32 %v5090, %v5059
      %v5124 = vmul.f32 %v5094, %v5060
      %v5125 = vmul.f32 %v5094, %v5061
      %v5126 = vmul.f32 %v5094, %v5062
      %v5127 = vmul.f32 %v5094, %v5063
      %v5128 = vmul.f32 %v5098, %v5064
      %v5129 = vmul.f32 %v5098, %v5065
      %v5130 = vmul.f32 %v5098, %v5066
      %v5131 = vmul.f32 %v5098, %v5067
      %v5132 = vadd.f32 %v4987, %v5100
      %v5133 = vadd.f32 %v4988, %v5101
      %v5134 = vadd.f32 %v4989, %v5102
      %v5135 = vadd.f32 %v4990, %v5103
      %v5136 = vadd.f32 %v4991, %v5104
      %v5137 = vadd.f32 %v4992, %v5105
      %v5138 = vadd.f32 %v4993, %v5106
      %v5139 = vadd.f32 %v4994, %v5107
      %v5140 = vadd.f32 %v4995, %v5108
      %v5141 = vadd.f32 %v4996, %v5109
      %v5142 = vadd.f32 %v4997, %v5110
      %v5143 = vadd.f32 %v4998, %v5111
      %v5144 = vadd.f32 %v4999, %v5112
      %v5145 = vadd.f32 %v5000, %v5113
      %v5146 = vadd.f32 %v5001, %v5114
      %v5147 = vadd.f32 %v5002, %v5115
      %v5148 = vadd.f32 %v5003, %v5116
      %v5149 = vadd.f32 %v5004, %v5117
      %v5150 = vadd.f32 %v5005, %v5118
      %v5151 = vadd.f32 %v5006, %v5119
      %v5152 = vadd.f32 %v5007, %v5120
      %v5153 = vadd.f32 %v5008, %v5121
      %v5154 = vadd.f32 %v5009, %v5122
      %v5155 = vadd.f32 %v5010, %v5123
      %v5156 = vadd.f32 %v5011, %v5124
      %v5157 = vadd.f32 %v5012, %v5125
      %v5158 = vadd.f32 %v5013, %v5126
      %v5159 = vadd.f32 %v5014, %v5127
      %v5160 = vadd.f32 %v5015, %v5128
      %v5161 = vadd.f32 %v5016, %v5129
      %v5162 = vadd.f32 %v5017, %v5130
      %v5163 = vadd.f32 %v5018, %v5131
      %s5164 = scalar_lea.vmem %s10, 512
      %v5165 = vld [vmem:[%s5164] sm:$0xff]
      %v5166 = vld [vmem:[%s5164 + $0x8] sm:$0xff]
      %v5167 = vld [vmem:[%s5164 + $0x10] sm:$0xff]
      %v5168 = vld [vmem:[%s5164 + $0x18] sm:$0xff]
      %v5169 = vld [vmem:[%s5164 + $0x20] sm:$0xff]
      %v5170 = vld [vmem:[%s5164 + $0x28] sm:$0xff]
      %v5171 = vld [vmem:[%s5164 + $0x30] sm:$0xff]
      %v5172 = vld [vmem:[%s5164 + $0x38] sm:$0xff]
      %v5173 = vld [vmem:[%s5164 + $0x40] sm:$0xff]
      %v5174 = vld [vmem:[%s5164 + $0x48] sm:$0xff]
      %v5175 = vld [vmem:[%s5164 + $0x50] sm:$0xff]
      %v5176 = vld [vmem:[%s5164 + $0x58] sm:$0xff]
      %v5177 = vld [vmem:[%s5164 + $0x60] sm:$0xff]
      %v5178 = vld [vmem:[%s5164 + $0x68] sm:$0xff]
      %v5179 = vld [vmem:[%s5164 + $0x70] sm:$0xff]
      %v5180 = vld [vmem:[%s5164 + $0x78] sm:$0xff]
      %v5181 = vunpack.c.l.bf16 %v5165
      %v5182 = vunpack.c.h.bf16 %v5165
      %v5183 = vunpack.c.l.bf16 %v5166
      %v5184 = vunpack.c.h.bf16 %v5166
      %v5185 = vunpack.c.l.bf16 %v5167
      %v5186 = vunpack.c.h.bf16 %v5167
      %v5187 = vunpack.c.l.bf16 %v5168
      %v5188 = vunpack.c.h.bf16 %v5168
      %v5189 = vunpack.c.l.bf16 %v5169
      %v5190 = vunpack.c.h.bf16 %v5169
      %v5191 = vunpack.c.l.bf16 %v5170
      %v5192 = vunpack.c.h.bf16 %v5170
      %v5193 = vunpack.c.l.bf16 %v5171
      %v5194 = vunpack.c.h.bf16 %v5171
      %v5195 = vunpack.c.l.bf16 %v5172
      %v5196 = vunpack.c.h.bf16 %v5172
      %v5197 = vunpack.c.l.bf16 %v5173
      %v5198 = vunpack.c.h.bf16 %v5173
      %v5199 = vunpack.c.l.bf16 %v5174
      %v5200 = vunpack.c.h.bf16 %v5174
      %v5201 = vunpack.c.l.bf16 %v5175
      %v5202 = vunpack.c.h.bf16 %v5175
      %v5203 = vunpack.c.l.bf16 %v5176
      %v5204 = vunpack.c.h.bf16 %v5176
      %v5205 = vunpack.c.l.bf16 %v5177
      %v5206 = vunpack.c.h.bf16 %v5177
      %v5207 = vunpack.c.l.bf16 %v5178
      %v5208 = vunpack.c.h.bf16 %v5178
      %v5209 = vunpack.c.l.bf16 %v5179
      %v5210 = vunpack.c.h.bf16 %v5179
      %v5211 = vunpack.c.l.bf16 %v5180
      %v5212 = vunpack.c.h.bf16 %v5180
      %5213 = vset.pattern.permute.xlu0 4
      %5214 = vperm.xlu0 %5213, %v4571
      %v5215 = vpop.permute.xlu0 %5214
      %5217 = vset.pattern.permute.xlu0 4
      %5218 = vperm.xlu0 %5217, %v4574
      %v5219 = vpop.permute.xlu0 %5218
      %5221 = vset.pattern.permute.xlu0 4
      %5222 = vperm.xlu0 %5221, %v4579
      %v5223 = vpop.permute.xlu0 %5222
      %5225 = vset.pattern.permute.xlu0 4
      %5226 = vperm.xlu0 %5225, %v4582
      %v5227 = vpop.permute.xlu0 %5226
      %5229 = vset.pattern.permute.xlu0 4
      %5230 = vperm.xlu0 %5229, %v4587
      %v5231 = vpop.permute.xlu0 %5230
      %5233 = vset.pattern.permute.xlu0 4
      %5234 = vperm.xlu0 %5233, %v4590
      %v5235 = vpop.permute.xlu0 %5234
      %5237 = vset.pattern.permute.xlu0 4
      %5238 = vperm.xlu0 %5237, %v4595
      %v5239 = vpop.permute.xlu0 %5238
      %5241 = vset.pattern.permute.xlu0 4
      %5242 = vperm.xlu0 %5241, %v4598
      %v5243 = vpop.permute.xlu0 %5242
      %v5245 = vmul.f32 %v5215, %v5181
      %v5246 = vmul.f32 %v5215, %v5182
      %v5247 = vmul.f32 %v5215, %v5183
      %v5248 = vmul.f32 %v5215, %v5184
      %v5249 = vmul.f32 %v5219, %v5185
      %v5250 = vmul.f32 %v5219, %v5186
      %v5251 = vmul.f32 %v5219, %v5187
      %v5252 = vmul.f32 %v5219, %v5188
      %v5253 = vmul.f32 %v5223, %v5189
      %v5254 = vmul.f32 %v5223, %v5190
      %v5255 = vmul.f32 %v5223, %v5191
      %v5256 = vmul.f32 %v5223, %v5192
      %v5257 = vmul.f32 %v5227, %v5193
      %v5258 = vmul.f32 %v5227, %v5194
      %v5259 = vmul.f32 %v5227, %v5195
      %v5260 = vmul.f32 %v5227, %v5196
      %v5261 = vmul.f32 %v5231, %v5197
      %v5262 = vmul.f32 %v5231, %v5198
      %v5263 = vmul.f32 %v5231, %v5199
      %v5264 = vmul.f32 %v5231, %v5200
      %v5265 = vmul.f32 %v5235, %v5201
      %v5266 = vmul.f32 %v5235, %v5202
      %v5267 = vmul.f32 %v5235, %v5203
      %v5268 = vmul.f32 %v5235, %v5204
      %v5269 = vmul.f32 %v5239, %v5205
      %v5270 = vmul.f32 %v5239, %v5206
      %v5271 = vmul.f32 %v5239, %v5207
      %v5272 = vmul.f32 %v5239, %v5208
      %v5273 = vmul.f32 %v5243, %v5209
      %v5274 = vmul.f32 %v5243, %v5210
      %v5275 = vmul.f32 %v5243, %v5211
      %v5276 = vmul.f32 %v5243, %v5212
      %v5277 = vadd.f32 %v5132, %v5245
      %v5278 = vadd.f32 %v5133, %v5246
      %v5279 = vadd.f32 %v5134, %v5247
      %v5280 = vadd.f32 %v5135, %v5248
      %v5281 = vadd.f32 %v5136, %v5249
      %v5282 = vadd.f32 %v5137, %v5250
      %v5283 = vadd.f32 %v5138, %v5251
      %v5284 = vadd.f32 %v5139, %v5252
      %v5285 = vadd.f32 %v5140, %v5253
      %v5286 = vadd.f32 %v5141, %v5254
      %v5287 = vadd.f32 %v5142, %v5255
      %v5288 = vadd.f32 %v5143, %v5256
      %v5289 = vadd.f32 %v5144, %v5257
      %v5290 = vadd.f32 %v5145, %v5258
      %v5291 = vadd.f32 %v5146, %v5259
      %v5292 = vadd.f32 %v5147, %v5260
      %v5293 = vadd.f32 %v5148, %v5261
      %v5294 = vadd.f32 %v5149, %v5262
      %v5295 = vadd.f32 %v5150, %v5263
      %v5296 = vadd.f32 %v5151, %v5264
      %v5297 = vadd.f32 %v5152, %v5265
      %v5298 = vadd.f32 %v5153, %v5266
      %v5299 = vadd.f32 %v5154, %v5267
      %v5300 = vadd.f32 %v5155, %v5268
      %v5301 = vadd.f32 %v5156, %v5269
      %v5302 = vadd.f32 %v5157, %v5270
      %v5303 = vadd.f32 %v5158, %v5271
      %v5304 = vadd.f32 %v5159, %v5272
      %v5305 = vadd.f32 %v5160, %v5273
      %v5306 = vadd.f32 %v5161, %v5274
      %v5307 = vadd.f32 %v5162, %v5275
      %v5308 = vadd.f32 %v5163, %v5276
      %s5309 = scalar_lea.vmem %s10, 640
      %v5310 = vld [vmem:[%s5309] sm:$0xff]
      %v5311 = vld [vmem:[%s5309 + $0x8] sm:$0xff]
      %v5312 = vld [vmem:[%s5309 + $0x10] sm:$0xff]
      %v5313 = vld [vmem:[%s5309 + $0x18] sm:$0xff]
      %v5314 = vld [vmem:[%s5309 + $0x20] sm:$0xff]
      %v5315 = vld [vmem:[%s5309 + $0x28] sm:$0xff]
      %v5316 = vld [vmem:[%s5309 + $0x30] sm:$0xff]
      %v5317 = vld [vmem:[%s5309 + $0x38] sm:$0xff]
      %v5318 = vld [vmem:[%s5309 + $0x40] sm:$0xff]
      %v5319 = vld [vmem:[%s5309 + $0x48] sm:$0xff]
      %v5320 = vld [vmem:[%s5309 + $0x50] sm:$0xff]
      %v5321 = vld [vmem:[%s5309 + $0x58] sm:$0xff]
      %v5322 = vld [vmem:[%s5309 + $0x60] sm:$0xff]
      %v5323 = vld [vmem:[%s5309 + $0x68] sm:$0xff]
      %v5324 = vld [vmem:[%s5309 + $0x70] sm:$0xff]
      %v5325 = vld [vmem:[%s5309 + $0x78] sm:$0xff]
      %v5326 = vunpack.c.l.bf16 %v5310
      %v5327 = vunpack.c.h.bf16 %v5310
      %v5328 = vunpack.c.l.bf16 %v5311
      %v5329 = vunpack.c.h.bf16 %v5311
      %v5330 = vunpack.c.l.bf16 %v5312
      %v5331 = vunpack.c.h.bf16 %v5312
      %v5332 = vunpack.c.l.bf16 %v5313
      %v5333 = vunpack.c.h.bf16 %v5313
      %v5334 = vunpack.c.l.bf16 %v5314
      %v5335 = vunpack.c.h.bf16 %v5314
      %v5336 = vunpack.c.l.bf16 %v5315
      %v5337 = vunpack.c.h.bf16 %v5315
      %v5338 = vunpack.c.l.bf16 %v5316
      %v5339 = vunpack.c.h.bf16 %v5316
      %v5340 = vunpack.c.l.bf16 %v5317
      %v5341 = vunpack.c.h.bf16 %v5317
      %v5342 = vunpack.c.l.bf16 %v5318
      %v5343 = vunpack.c.h.bf16 %v5318
      %v5344 = vunpack.c.l.bf16 %v5319
      %v5345 = vunpack.c.h.bf16 %v5319
      %v5346 = vunpack.c.l.bf16 %v5320
      %v5347 = vunpack.c.h.bf16 %v5320
      %v5348 = vunpack.c.l.bf16 %v5321
      %v5349 = vunpack.c.h.bf16 %v5321
      %v5350 = vunpack.c.l.bf16 %v5322
      %v5351 = vunpack.c.h.bf16 %v5322
      %v5352 = vunpack.c.l.bf16 %v5323
      %v5353 = vunpack.c.h.bf16 %v5323
      %v5354 = vunpack.c.l.bf16 %v5324
      %v5355 = vunpack.c.h.bf16 %v5324
      %v5356 = vunpack.c.l.bf16 %v5325
      %v5357 = vunpack.c.h.bf16 %v5325
      %5358 = vset.pattern.permute.xlu0 5
      %5359 = vperm.xlu0 %5358, %v4571
      %v5360 = vpop.permute.xlu0 %5359
      %5362 = vset.pattern.permute.xlu0 5
      %5363 = vperm.xlu0 %5362, %v4574
      %v5364 = vpop.permute.xlu0 %5363
      %5366 = vset.pattern.permute.xlu0 5
      %5367 = vperm.xlu0 %5366, %v4579
      %v5368 = vpop.permute.xlu0 %5367
      %5370 = vset.pattern.permute.xlu0 5
      %5371 = vperm.xlu0 %5370, %v4582
      %v5372 = vpop.permute.xlu0 %5371
      %5374 = vset.pattern.permute.xlu0 5
      %5375 = vperm.xlu0 %5374, %v4587
      %v5376 = vpop.permute.xlu0 %5375
      %5378 = vset.pattern.permute.xlu0 5
      %5379 = vperm.xlu0 %5378, %v4590
      %v5380 = vpop.permute.xlu0 %5379
      %5382 = vset.pattern.permute.xlu0 5
      %5383 = vperm.xlu0 %5382, %v4595
      %v5384 = vpop.permute.xlu0 %5383
      %5386 = vset.pattern.permute.xlu0 5
      %5387 = vperm.xlu0 %5386, %v4598
      %v5388 = vpop.permute.xlu0 %5387
      %v5390 = vmul.f32 %v5360, %v5326
      %v5391 = vmul.f32 %v5360, %v5327
      %v5392 = vmul.f32 %v5360, %v5328
      %v5393 = vmul.f32 %v5360, %v5329
      %v5394 = vmul.f32 %v5364, %v5330
      %v5395 = vmul.f32 %v5364, %v5331
      %v5396 = vmul.f32 %v5364, %v5332
      %v5397 = vmul.f32 %v5364, %v5333
      %v5398 = vmul.f32 %v5368, %v5334
      %v5399 = vmul.f32 %v5368, %v5335
      %v5400 = vmul.f32 %v5368, %v5336
      %v5401 = vmul.f32 %v5368, %v5337
      %v5402 = vmul.f32 %v5372, %v5338
      %v5403 = vmul.f32 %v5372, %v5339
      %v5404 = vmul.f32 %v5372, %v5340
      %v5405 = vmul.f32 %v5372, %v5341
      %v5406 = vmul.f32 %v5376, %v5342
      %v5407 = vmul.f32 %v5376, %v5343
      %v5408 = vmul.f32 %v5376, %v5344
      %v5409 = vmul.f32 %v5376, %v5345
      %v5410 = vmul.f32 %v5380, %v5346
      %v5411 = vmul.f32 %v5380, %v5347
      %v5412 = vmul.f32 %v5380, %v5348
      %v5413 = vmul.f32 %v5380, %v5349
      %v5414 = vmul.f32 %v5384, %v5350
      %v5415 = vmul.f32 %v5384, %v5351
      %v5416 = vmul.f32 %v5384, %v5352
      %v5417 = vmul.f32 %v5384, %v5353
      %v5418 = vmul.f32 %v5388, %v5354
      %v5419 = vmul.f32 %v5388, %v5355
      %v5420 = vmul.f32 %v5388, %v5356
      %v5421 = vmul.f32 %v5388, %v5357
      %v5422 = vadd.f32 %v5277, %v5390
      %v5423 = vadd.f32 %v5278, %v5391
      %v5424 = vadd.f32 %v5279, %v5392
      %v5425 = vadd.f32 %v5280, %v5393
      %v5426 = vadd.f32 %v5281, %v5394
      %v5427 = vadd.f32 %v5282, %v5395
      %v5428 = vadd.f32 %v5283, %v5396
      %v5429 = vadd.f32 %v5284, %v5397
      %v5430 = vadd.f32 %v5285, %v5398
      %v5431 = vadd.f32 %v5286, %v5399
      %v5432 = vadd.f32 %v5287, %v5400
      %v5433 = vadd.f32 %v5288, %v5401
      %v5434 = vadd.f32 %v5289, %v5402
      %v5435 = vadd.f32 %v5290, %v5403
      %v5436 = vadd.f32 %v5291, %v5404
      %v5437 = vadd.f32 %v5292, %v5405
      %v5438 = vadd.f32 %v5293, %v5406
      %v5439 = vadd.f32 %v5294, %v5407
      %v5440 = vadd.f32 %v5295, %v5408
      %v5441 = vadd.f32 %v5296, %v5409
      %v5442 = vadd.f32 %v5297, %v5410
      %v5443 = vadd.f32 %v5298, %v5411
      %v5444 = vadd.f32 %v5299, %v5412
      %v5445 = vadd.f32 %v5300, %v5413
      %v5446 = vadd.f32 %v5301, %v5414
      %v5447 = vadd.f32 %v5302, %v5415
      %v5448 = vadd.f32 %v5303, %v5416
      %v5449 = vadd.f32 %v5304, %v5417
      %v5450 = vadd.f32 %v5305, %v5418
      %v5451 = vadd.f32 %v5306, %v5419
      %v5452 = vadd.f32 %v5307, %v5420
      %v5453 = vadd.f32 %v5308, %v5421
      %s5454 = scalar_lea.vmem %s10, 768
      %v5455 = vld [vmem:[%s5454] sm:$0xff]
      %v5456 = vld [vmem:[%s5454 + $0x8] sm:$0xff]
      %v5457 = vld [vmem:[%s5454 + $0x10] sm:$0xff]
      %v5458 = vld [vmem:[%s5454 + $0x18] sm:$0xff]
      %v5459 = vld [vmem:[%s5454 + $0x20] sm:$0xff]
      %v5460 = vld [vmem:[%s5454 + $0x28] sm:$0xff]
      %v5461 = vld [vmem:[%s5454 + $0x30] sm:$0xff]
      %v5462 = vld [vmem:[%s5454 + $0x38] sm:$0xff]
      %v5463 = vld [vmem:[%s5454 + $0x40] sm:$0xff]
      %v5464 = vld [vmem:[%s5454 + $0x48] sm:$0xff]
      %v5465 = vld [vmem:[%s5454 + $0x50] sm:$0xff]
      %v5466 = vld [vmem:[%s5454 + $0x58] sm:$0xff]
      %v5467 = vld [vmem:[%s5454 + $0x60] sm:$0xff]
      %v5468 = vld [vmem:[%s5454 + $0x68] sm:$0xff]
      %v5469 = vld [vmem:[%s5454 + $0x70] sm:$0xff]
      %v5470 = vld [vmem:[%s5454 + $0x78] sm:$0xff]
      %v5471 = vunpack.c.l.bf16 %v5455
      %v5472 = vunpack.c.h.bf16 %v5455
      %v5473 = vunpack.c.l.bf16 %v5456
      %v5474 = vunpack.c.h.bf16 %v5456
      %v5475 = vunpack.c.l.bf16 %v5457
      %v5476 = vunpack.c.h.bf16 %v5457
      %v5477 = vunpack.c.l.bf16 %v5458
      %v5478 = vunpack.c.h.bf16 %v5458
      %v5479 = vunpack.c.l.bf16 %v5459
      %v5480 = vunpack.c.h.bf16 %v5459
      %v5481 = vunpack.c.l.bf16 %v5460
      %v5482 = vunpack.c.h.bf16 %v5460
      %v5483 = vunpack.c.l.bf16 %v5461
      %v5484 = vunpack.c.h.bf16 %v5461
      %v5485 = vunpack.c.l.bf16 %v5462
      %v5486 = vunpack.c.h.bf16 %v5462
      %v5487 = vunpack.c.l.bf16 %v5463
      %v5488 = vunpack.c.h.bf16 %v5463
      %v5489 = vunpack.c.l.bf16 %v5464
      %v5490 = vunpack.c.h.bf16 %v5464
      %v5491 = vunpack.c.l.bf16 %v5465
      %v5492 = vunpack.c.h.bf16 %v5465
      %v5493 = vunpack.c.l.bf16 %v5466
      %v5494 = vunpack.c.h.bf16 %v5466
      %v5495 = vunpack.c.l.bf16 %v5467
      %v5496 = vunpack.c.h.bf16 %v5467
      %v5497 = vunpack.c.l.bf16 %v5468
      %v5498 = vunpack.c.h.bf16 %v5468
      %v5499 = vunpack.c.l.bf16 %v5469
      %v5500 = vunpack.c.h.bf16 %v5469
      %v5501 = vunpack.c.l.bf16 %v5470
      %v5502 = vunpack.c.h.bf16 %v5470
      %5503 = vset.pattern.permute.xlu0 6
      %5504 = vperm.xlu0 %5503, %v4571
      %v5505 = vpop.permute.xlu0 %5504
      %5507 = vset.pattern.permute.xlu0 6
      %5508 = vperm.xlu0 %5507, %v4574
      %v5509 = vpop.permute.xlu0 %5508
      %5511 = vset.pattern.permute.xlu0 6
      %5512 = vperm.xlu0 %5511, %v4579
      %v5513 = vpop.permute.xlu0 %5512
      %5515 = vset.pattern.permute.xlu0 6
      %5516 = vperm.xlu0 %5515, %v4582
      %v5517 = vpop.permute.xlu0 %5516
      %5519 = vset.pattern.permute.xlu0 6
      %5520 = vperm.xlu0 %5519, %v4587
      %v5521 = vpop.permute.xlu0 %5520
      %5523 = vset.pattern.permute.xlu0 6
      %5524 = vperm.xlu0 %5523, %v4590
      %v5525 = vpop.permute.xlu0 %5524
      %5527 = vset.pattern.permute.xlu0 6
      %5528 = vperm.xlu0 %5527, %v4595
      %v5529 = vpop.permute.xlu0 %5528
      %5531 = vset.pattern.permute.xlu0 6
      %5532 = vperm.xlu0 %5531, %v4598
      %v5533 = vpop.permute.xlu0 %5532
      %v5535 = vmul.f32 %v5505, %v5471
      %v5536 = vmul.f32 %v5505, %v5472
      %v5537 = vmul.f32 %v5505, %v5473
      %v5538 = vmul.f32 %v5505, %v5474
      %v5539 = vmul.f32 %v5509, %v5475
      %v5540 = vmul.f32 %v5509, %v5476
      %v5541 = vmul.f32 %v5509, %v5477
      %v5542 = vmul.f32 %v5509, %v5478
      %v5543 = vmul.f32 %v5513, %v5479
      %v5544 = vmul.f32 %v5513, %v5480
      %v5545 = vmul.f32 %v5513, %v5481
      %v5546 = vmul.f32 %v5513, %v5482
      %v5547 = vmul.f32 %v5517, %v5483
      %v5548 = vmul.f32 %v5517, %v5484
      %v5549 = vmul.f32 %v5517, %v5485
      %v5550 = vmul.f32 %v5517, %v5486
      %v5551 = vmul.f32 %v5521, %v5487
      %v5552 = vmul.f32 %v5521, %v5488
      %v5553 = vmul.f32 %v5521, %v5489
      %v5554 = vmul.f32 %v5521, %v5490
      %v5555 = vmul.f32 %v5525, %v5491
      %v5556 = vmul.f32 %v5525, %v5492
      %v5557 = vmul.f32 %v5525, %v5493
      %v5558 = vmul.f32 %v5525, %v5494
      %v5559 = vmul.f32 %v5529, %v5495
      %v5560 = vmul.f32 %v5529, %v5496
      %v5561 = vmul.f32 %v5529, %v5497
      %v5562 = vmul.f32 %v5529, %v5498
      %v5563 = vmul.f32 %v5533, %v5499
      %v5564 = vmul.f32 %v5533, %v5500
      %v5565 = vmul.f32 %v5533, %v5501
      %v5566 = vmul.f32 %v5533, %v5502
      %v5567 = vadd.f32 %v5422, %v5535
      %v5568 = vadd.f32 %v5423, %v5536
      %v5569 = vadd.f32 %v5424, %v5537
      %v5570 = vadd.f32 %v5425, %v5538
      %v5571 = vadd.f32 %v5426, %v5539
      %v5572 = vadd.f32 %v5427, %v5540
      %v5573 = vadd.f32 %v5428, %v5541
      %v5574 = vadd.f32 %v5429, %v5542
      %v5575 = vadd.f32 %v5430, %v5543
      %v5576 = vadd.f32 %v5431, %v5544
      %v5577 = vadd.f32 %v5432, %v5545
      %v5578 = vadd.f32 %v5433, %v5546
      %v5579 = vadd.f32 %v5434, %v5547
      %v5580 = vadd.f32 %v5435, %v5548
      %v5581 = vadd.f32 %v5436, %v5549
      %v5582 = vadd.f32 %v5437, %v5550
      %v5583 = vadd.f32 %v5438, %v5551
      %v5584 = vadd.f32 %v5439, %v5552
      %v5585 = vadd.f32 %v5440, %v5553
      %v5586 = vadd.f32 %v5441, %v5554
      %v5587 = vadd.f32 %v5442, %v5555
      %v5588 = vadd.f32 %v5443, %v5556
      %v5589 = vadd.f32 %v5444, %v5557
      %v5590 = vadd.f32 %v5445, %v5558
      %v5591 = vadd.f32 %v5446, %v5559
      %v5592 = vadd.f32 %v5447, %v5560
      %v5593 = vadd.f32 %v5448, %v5561
      %v5594 = vadd.f32 %v5449, %v5562
      %v5595 = vadd.f32 %v5450, %v5563
      %v5596 = vadd.f32 %v5451, %v5564
      %v5597 = vadd.f32 %v5452, %v5565
      %v5598 = vadd.f32 %v5453, %v5566
      %s5599 = scalar_lea.vmem %s10, 896
      %v5600 = vld [vmem:[%s5599] sm:$0xff]
      %v5601 = vld [vmem:[%s5599 + $0x8] sm:$0xff]
      %v5602 = vld [vmem:[%s5599 + $0x10] sm:$0xff]
      %v5603 = vld [vmem:[%s5599 + $0x18] sm:$0xff]
      %v5604 = vld [vmem:[%s5599 + $0x20] sm:$0xff]
      %v5605 = vld [vmem:[%s5599 + $0x28] sm:$0xff]
      %v5606 = vld [vmem:[%s5599 + $0x30] sm:$0xff]
      %v5607 = vld [vmem:[%s5599 + $0x38] sm:$0xff]
      %v5608 = vld [vmem:[%s5599 + $0x40] sm:$0xff]
      %v5609 = vld [vmem:[%s5599 + $0x48] sm:$0xff]
      %v5610 = vld [vmem:[%s5599 + $0x50] sm:$0xff]
      %v5611 = vld [vmem:[%s5599 + $0x58] sm:$0xff]
      %v5612 = vld [vmem:[%s5599 + $0x60] sm:$0xff]
      %v5613 = vld [vmem:[%s5599 + $0x68] sm:$0xff]
      %v5614 = vld [vmem:[%s5599 + $0x70] sm:$0xff]
      %v5615 = vld [vmem:[%s5599 + $0x78] sm:$0xff]
      %v5616 = vunpack.c.l.bf16 %v5600
      %v5617 = vunpack.c.h.bf16 %v5600
      %v5618 = vunpack.c.l.bf16 %v5601
      %v5619 = vunpack.c.h.bf16 %v5601
      %v5620 = vunpack.c.l.bf16 %v5602
      %v5621 = vunpack.c.h.bf16 %v5602
      %v5622 = vunpack.c.l.bf16 %v5603
      %v5623 = vunpack.c.h.bf16 %v5603
      %v5624 = vunpack.c.l.bf16 %v5604
      %v5625 = vunpack.c.h.bf16 %v5604
      %v5626 = vunpack.c.l.bf16 %v5605
      %v5627 = vunpack.c.h.bf16 %v5605
      %v5628 = vunpack.c.l.bf16 %v5606
      %v5629 = vunpack.c.h.bf16 %v5606
      %v5630 = vunpack.c.l.bf16 %v5607
      %v5631 = vunpack.c.h.bf16 %v5607
      %v5632 = vunpack.c.l.bf16 %v5608
      %v5633 = vunpack.c.h.bf16 %v5608
      %v5634 = vunpack.c.l.bf16 %v5609
      %v5635 = vunpack.c.h.bf16 %v5609
      %v5636 = vunpack.c.l.bf16 %v5610
      %v5637 = vunpack.c.h.bf16 %v5610
      %v5638 = vunpack.c.l.bf16 %v5611
      %v5639 = vunpack.c.h.bf16 %v5611
      %v5640 = vunpack.c.l.bf16 %v5612
      %v5641 = vunpack.c.h.bf16 %v5612
      %v5642 = vunpack.c.l.bf16 %v5613
      %v5643 = vunpack.c.h.bf16 %v5613
      %v5644 = vunpack.c.l.bf16 %v5614
      %v5645 = vunpack.c.h.bf16 %v5614
      %v5646 = vunpack.c.l.bf16 %v5615
      %v5647 = vunpack.c.h.bf16 %v5615
      %5648 = vset.pattern.permute.xlu0 7
      %5649 = vperm.xlu0 %5648, %v4571
      %v5650 = vpop.permute.xlu0 %5649
      %5652 = vset.pattern.permute.xlu0 7
      %5653 = vperm.xlu0 %5652, %v4574
      %v5654 = vpop.permute.xlu0 %5653
      %5656 = vset.pattern.permute.xlu0 7
      %5657 = vperm.xlu0 %5656, %v4579
      %v5658 = vpop.permute.xlu0 %5657
      %5660 = vset.pattern.permute.xlu0 7
      %5661 = vperm.xlu0 %5660, %v4582
      %v5662 = vpop.permute.xlu0 %5661
      %5664 = vset.pattern.permute.xlu0 7
      %5665 = vperm.xlu0 %5664, %v4587
      %v5666 = vpop.permute.xlu0 %5665
      %5668 = vset.pattern.permute.xlu0 7
      %5669 = vperm.xlu0 %5668, %v4590
      %v5670 = vpop.permute.xlu0 %5669
      %5672 = vset.pattern.permute.xlu0 7
      %5673 = vperm.xlu0 %5672, %v4595
      %v5674 = vpop.permute.xlu0 %5673
      %5676 = vset.pattern.permute.xlu0 7
      %5677 = vperm.xlu0 %5676, %v4598
      %v5678 = vpop.permute.xlu0 %5677
      %v5680 = vmul.f32 %v5650, %v5616
      %v5681 = vmul.f32 %v5650, %v5617
      %v5682 = vmul.f32 %v5650, %v5618
      %v5683 = vmul.f32 %v5650, %v5619
      %v5684 = vmul.f32 %v5654, %v5620
      %v5685 = vmul.f32 %v5654, %v5621
      %v5686 = vmul.f32 %v5654, %v5622
      %v5687 = vmul.f32 %v5654, %v5623
      %v5688 = vmul.f32 %v5658, %v5624
      %v5689 = vmul.f32 %v5658, %v5625
      %v5690 = vmul.f32 %v5658, %v5626
      %v5691 = vmul.f32 %v5658, %v5627
      %v5692 = vmul.f32 %v5662, %v5628
      %v5693 = vmul.f32 %v5662, %v5629
      %v5694 = vmul.f32 %v5662, %v5630
      %v5695 = vmul.f32 %v5662, %v5631
      %v5696 = vmul.f32 %v5666, %v5632
      %v5697 = vmul.f32 %v5666, %v5633
      %v5698 = vmul.f32 %v5666, %v5634
      %v5699 = vmul.f32 %v5666, %v5635
      %v5700 = vmul.f32 %v5670, %v5636
      %v5701 = vmul.f32 %v5670, %v5637
      %v5702 = vmul.f32 %v5670, %v5638
      %v5703 = vmul.f32 %v5670, %v5639
      %v5704 = vmul.f32 %v5674, %v5640
      %v5705 = vmul.f32 %v5674, %v5641
      %v5706 = vmul.f32 %v5674, %v5642
      %v5707 = vmul.f32 %v5674, %v5643
      %v5708 = vmul.f32 %v5678, %v5644
      %v5709 = vmul.f32 %v5678, %v5645
      %v5710 = vmul.f32 %v5678, %v5646
      %v5711 = vmul.f32 %v5678, %v5647
      %v5712 = vadd.f32 %v5567, %v5680
      %v5713 = vadd.f32 %v5568, %v5681
      %v5714 = vadd.f32 %v5569, %v5682
      %v5715 = vadd.f32 %v5570, %v5683
      %v5716 = vadd.f32 %v5571, %v5684
      %v5717 = vadd.f32 %v5572, %v5685
      %v5718 = vadd.f32 %v5573, %v5686
      %v5719 = vadd.f32 %v5574, %v5687
      %v5720 = vadd.f32 %v5575, %v5688
      %v5721 = vadd.f32 %v5576, %v5689
      %v5722 = vadd.f32 %v5577, %v5690
      %v5723 = vadd.f32 %v5578, %v5691
      %v5724 = vadd.f32 %v5579, %v5692
      %v5725 = vadd.f32 %v5580, %v5693
      %v5726 = vadd.f32 %v5581, %v5694
      %v5727 = vadd.f32 %v5582, %v5695
      %v5728 = vadd.f32 %v5583, %v5696
      %v5729 = vadd.f32 %v5584, %v5697
      %v5730 = vadd.f32 %v5585, %v5698
      %v5731 = vadd.f32 %v5586, %v5699
      %v5732 = vadd.f32 %v5587, %v5700
      %v5733 = vadd.f32 %v5588, %v5701
      %v5734 = vadd.f32 %v5589, %v5702
      %v5735 = vadd.f32 %v5590, %v5703
      %v5736 = vadd.f32 %v5591, %v5704
      %v5737 = vadd.f32 %v5592, %v5705
      %v5738 = vadd.f32 %v5593, %v5706
      %v5739 = vadd.f32 %v5594, %v5707
      %v5740 = vadd.f32 %v5595, %v5708
      %v5741 = vadd.f32 %v5596, %v5709
      %v5742 = vadd.f32 %v5597, %v5710
      %v5743 = vadd.f32 %v5598, %v5711
      %s5744 = scalar_lea.vmem %s10, 1024
      %v5745 = vld [vmem:[%s5744] sm:$0xff]
      %v5746 = vld [vmem:[%s5744 + $0x8] sm:$0xff]
      %v5747 = vld [vmem:[%s5744 + $0x10] sm:$0xff]
      %v5748 = vld [vmem:[%s5744 + $0x18] sm:$0xff]
      %v5749 = vld [vmem:[%s5744 + $0x20] sm:$0xff]
      %v5750 = vld [vmem:[%s5744 + $0x28] sm:$0xff]
      %v5751 = vld [vmem:[%s5744 + $0x30] sm:$0xff]
      %v5752 = vld [vmem:[%s5744 + $0x38] sm:$0xff]
      %v5753 = vld [vmem:[%s5744 + $0x40] sm:$0xff]
      %v5754 = vld [vmem:[%s5744 + $0x48] sm:$0xff]
      %v5755 = vld [vmem:[%s5744 + $0x50] sm:$0xff]
      %v5756 = vld [vmem:[%s5744 + $0x58] sm:$0xff]
      %v5757 = vld [vmem:[%s5744 + $0x60] sm:$0xff]
      %v5758 = vld [vmem:[%s5744 + $0x68] sm:$0xff]
      %v5759 = vld [vmem:[%s5744 + $0x70] sm:$0xff]
      %v5760 = vld [vmem:[%s5744 + $0x78] sm:$0xff]
      %v5761 = vunpack.c.l.bf16 %v5745
      %v5762 = vunpack.c.h.bf16 %v5745
      %v5763 = vunpack.c.l.bf16 %v5746
      %v5764 = vunpack.c.h.bf16 %v5746
      %v5765 = vunpack.c.l.bf16 %v5747
      %v5766 = vunpack.c.h.bf16 %v5747
      %v5767 = vunpack.c.l.bf16 %v5748
      %v5768 = vunpack.c.h.bf16 %v5748
      %v5769 = vunpack.c.l.bf16 %v5749
      %v5770 = vunpack.c.h.bf16 %v5749
      %v5771 = vunpack.c.l.bf16 %v5750
      %v5772 = vunpack.c.h.bf16 %v5750
      %v5773 = vunpack.c.l.bf16 %v5751
      %v5774 = vunpack.c.h.bf16 %v5751
      %v5775 = vunpack.c.l.bf16 %v5752
      %v5776 = vunpack.c.h.bf16 %v5752
      %v5777 = vunpack.c.l.bf16 %v5753
      %v5778 = vunpack.c.h.bf16 %v5753
      %v5779 = vunpack.c.l.bf16 %v5754
      %v5780 = vunpack.c.h.bf16 %v5754
      %v5781 = vunpack.c.l.bf16 %v5755
      %v5782 = vunpack.c.h.bf16 %v5755
      %v5783 = vunpack.c.l.bf16 %v5756
      %v5784 = vunpack.c.h.bf16 %v5756
      %v5785 = vunpack.c.l.bf16 %v5757
      %v5786 = vunpack.c.h.bf16 %v5757
      %v5787 = vunpack.c.l.bf16 %v5758
      %v5788 = vunpack.c.h.bf16 %v5758
      %v5789 = vunpack.c.l.bf16 %v5759
      %v5790 = vunpack.c.h.bf16 %v5759
      %v5791 = vunpack.c.l.bf16 %v5760
      %v5792 = vunpack.c.h.bf16 %v5760
      %5793 = vset.pattern.permute.xlu0 8
      %5794 = vperm.xlu0 %5793, %v4571
      %v5795 = vpop.permute.xlu0 %5794
      %5797 = vset.pattern.permute.xlu0 8
      %5798 = vperm.xlu0 %5797, %v4574
      %v5799 = vpop.permute.xlu0 %5798
      %5801 = vset.pattern.permute.xlu0 8
      %5802 = vperm.xlu0 %5801, %v4579
      %v5803 = vpop.permute.xlu0 %5802
      %5805 = vset.pattern.permute.xlu0 8
      %5806 = vperm.xlu0 %5805, %v4582
      %v5807 = vpop.permute.xlu0 %5806
      %5809 = vset.pattern.permute.xlu0 8
      %5810 = vperm.xlu0 %5809, %v4587
      %v5811 = vpop.permute.xlu0 %5810
      %5813 = vset.pattern.permute.xlu0 8
      %5814 = vperm.xlu0 %5813, %v4590
      %v5815 = vpop.permute.xlu0 %5814
      %5817 = vset.pattern.permute.xlu0 8
      %5818 = vperm.xlu0 %5817, %v4595
      %v5819 = vpop.permute.xlu0 %5818
      %5821 = vset.pattern.permute.xlu0 8
      %5822 = vperm.xlu0 %5821, %v4598
      %v5823 = vpop.permute.xlu0 %5822
      %v5825 = vmul.f32 %v5795, %v5761
      %v5826 = vmul.f32 %v5795, %v5762
      %v5827 = vmul.f32 %v5795, %v5763
      %v5828 = vmul.f32 %v5795, %v5764
      %v5829 = vmul.f32 %v5799, %v5765
      %v5830 = vmul.f32 %v5799, %v5766
      %v5831 = vmul.f32 %v5799, %v5767
      %v5832 = vmul.f32 %v5799, %v5768
      %v5833 = vmul.f32 %v5803, %v5769
      %v5834 = vmul.f32 %v5803, %v5770
      %v5835 = vmul.f32 %v5803, %v5771
      %v5836 = vmul.f32 %v5803, %v5772
      %v5837 = vmul.f32 %v5807, %v5773
      %v5838 = vmul.f32 %v5807, %v5774
      %v5839 = vmul.f32 %v5807, %v5775
      %v5840 = vmul.f32 %v5807, %v5776
      %v5841 = vmul.f32 %v5811, %v5777
      %v5842 = vmul.f32 %v5811, %v5778
      %v5843 = vmul.f32 %v5811, %v5779
      %v5844 = vmul.f32 %v5811, %v5780
      %v5845 = vmul.f32 %v5815, %v5781
      %v5846 = vmul.f32 %v5815, %v5782
      %v5847 = vmul.f32 %v5815, %v5783
      %v5848 = vmul.f32 %v5815, %v5784
      %v5849 = vmul.f32 %v5819, %v5785
      %v5850 = vmul.f32 %v5819, %v5786
      %v5851 = vmul.f32 %v5819, %v5787
      %v5852 = vmul.f32 %v5819, %v5788
      %v5853 = vmul.f32 %v5823, %v5789
      %v5854 = vmul.f32 %v5823, %v5790
      %v5855 = vmul.f32 %v5823, %v5791
      %v5856 = vmul.f32 %v5823, %v5792
      %v5857 = vadd.f32 %v5712, %v5825
      %v5858 = vadd.f32 %v5713, %v5826
      %v5859 = vadd.f32 %v5714, %v5827
      %v5860 = vadd.f32 %v5715, %v5828
      %v5861 = vadd.f32 %v5716, %v5829
      %v5862 = vadd.f32 %v5717, %v5830
      %v5863 = vadd.f32 %v5718, %v5831
      %v5864 = vadd.f32 %v5719, %v5832
      %v5865 = vadd.f32 %v5720, %v5833
      %v5866 = vadd.f32 %v5721, %v5834
      %v5867 = vadd.f32 %v5722, %v5835
      %v5868 = vadd.f32 %v5723, %v5836
      %v5869 = vadd.f32 %v5724, %v5837
      %v5870 = vadd.f32 %v5725, %v5838
      %v5871 = vadd.f32 %v5726, %v5839
      %v5872 = vadd.f32 %v5727, %v5840
      %v5873 = vadd.f32 %v5728, %v5841
      %v5874 = vadd.f32 %v5729, %v5842
      %v5875 = vadd.f32 %v5730, %v5843
      %v5876 = vadd.f32 %v5731, %v5844
      %v5877 = vadd.f32 %v5732, %v5845
      %v5878 = vadd.f32 %v5733, %v5846
      %v5879 = vadd.f32 %v5734, %v5847
      %v5880 = vadd.f32 %v5735, %v5848
      %v5881 = vadd.f32 %v5736, %v5849
      %v5882 = vadd.f32 %v5737, %v5850
      %v5883 = vadd.f32 %v5738, %v5851
      %v5884 = vadd.f32 %v5739, %v5852
      %v5885 = vadd.f32 %v5740, %v5853
      %v5886 = vadd.f32 %v5741, %v5854
      %v5887 = vadd.f32 %v5742, %v5855
      %v5888 = vadd.f32 %v5743, %v5856
      %s5889 = scalar_lea.vmem %s10, 1152
      %v5890 = vld [vmem:[%s5889] sm:$0xff]
      %v5891 = vld [vmem:[%s5889 + $0x8] sm:$0xff]
      %v5892 = vld [vmem:[%s5889 + $0x10] sm:$0xff]
      %v5893 = vld [vmem:[%s5889 + $0x18] sm:$0xff]
      %v5894 = vld [vmem:[%s5889 + $0x20] sm:$0xff]
      %v5895 = vld [vmem:[%s5889 + $0x28] sm:$0xff]
      %v5896 = vld [vmem:[%s5889 + $0x30] sm:$0xff]
      %v5897 = vld [vmem:[%s5889 + $0x38] sm:$0xff]
      %v5898 = vld [vmem:[%s5889 + $0x40] sm:$0xff]
      %v5899 = vld [vmem:[%s5889 + $0x48] sm:$0xff]
      %v5900 = vld [vmem:[%s5889 + $0x50] sm:$0xff]
      %v5901 = vld [vmem:[%s5889 + $0x58] sm:$0xff]
      %v5902 = vld [vmem:[%s5889 + $0x60] sm:$0xff]
      %v5903 = vld [vmem:[%s5889 + $0x68] sm:$0xff]
      %v5904 = vld [vmem:[%s5889 + $0x70] sm:$0xff]
      %v5905 = vld [vmem:[%s5889 + $0x78] sm:$0xff]
      %v5906 = vunpack.c.l.bf16 %v5890
      %v5907 = vunpack.c.h.bf16 %v5890
      %v5908 = vunpack.c.l.bf16 %v5891
      %v5909 = vunpack.c.h.bf16 %v5891
      %v5910 = vunpack.c.l.bf16 %v5892
      %v5911 = vunpack.c.h.bf16 %v5892
      %v5912 = vunpack.c.l.bf16 %v5893
      %v5913 = vunpack.c.h.bf16 %v5893
      %v5914 = vunpack.c.l.bf16 %v5894
      %v5915 = vunpack.c.h.bf16 %v5894
      %v5916 = vunpack.c.l.bf16 %v5895
      %v5917 = vunpack.c.h.bf16 %v5895
      %v5918 = vunpack.c.l.bf16 %v5896
      %v5919 = vunpack.c.h.bf16 %v5896
      %v5920 = vunpack.c.l.bf16 %v5897
      %v5921 = vunpack.c.h.bf16 %v5897
      %v5922 = vunpack.c.l.bf16 %v5898
      %v5923 = vunpack.c.h.bf16 %v5898
      %v5924 = vunpack.c.l.bf16 %v5899
      %v5925 = vunpack.c.h.bf16 %v5899
      %v5926 = vunpack.c.l.bf16 %v5900
      %v5927 = vunpack.c.h.bf16 %v5900
      %v5928 = vunpack.c.l.bf16 %v5901
      %v5929 = vunpack.c.h.bf16 %v5901
      %v5930 = vunpack.c.l.bf16 %v5902
      %v5931 = vunpack.c.h.bf16 %v5902
      %v5932 = vunpack.c.l.bf16 %v5903
      %v5933 = vunpack.c.h.bf16 %v5903
      %v5934 = vunpack.c.l.bf16 %v5904
      %v5935 = vunpack.c.h.bf16 %v5904
      %v5936 = vunpack.c.l.bf16 %v5905
      %v5937 = vunpack.c.h.bf16 %v5905
      %5938 = vset.pattern.permute.xlu0 9
      %5939 = vperm.xlu0 %5938, %v4571
      %v5940 = vpop.permute.xlu0 %5939
      %5942 = vset.pattern.permute.xlu0 9
      %5943 = vperm.xlu0 %5942, %v4574
      %v5944 = vpop.permute.xlu0 %5943
      %5946 = vset.pattern.permute.xlu0 9
      %5947 = vperm.xlu0 %5946, %v4579
      %v5948 = vpop.permute.xlu0 %5947
      %5950 = vset.pattern.permute.xlu0 9
      %5951 = vperm.xlu0 %5950, %v4582
      %v5952 = vpop.permute.xlu0 %5951
      %5954 = vset.pattern.permute.xlu0 9
      %5955 = vperm.xlu0 %5954, %v4587
      %v5956 = vpop.permute.xlu0 %5955
      %5958 = vset.pattern.permute.xlu0 9
      %5959 = vperm.xlu0 %5958, %v4590
      %v5960 = vpop.permute.xlu0 %5959
      %5962 = vset.pattern.permute.xlu0 9
      %5963 = vperm.xlu0 %5962, %v4595
      %v5964 = vpop.permute.xlu0 %5963
      %5966 = vset.pattern.permute.xlu0 9
      %5967 = vperm.xlu0 %5966, %v4598
      %v5968 = vpop.permute.xlu0 %5967
      %v5970 = vmul.f32 %v5940, %v5906
      %v5971 = vmul.f32 %v5940, %v5907
      %v5972 = vmul.f32 %v5940, %v5908
      %v5973 = vmul.f32 %v5940, %v5909
      %v5974 = vmul.f32 %v5944, %v5910
      %v5975 = vmul.f32 %v5944, %v5911
      %v5976 = vmul.f32 %v5944, %v5912
      %v5977 = vmul.f32 %v5944, %v5913
      %v5978 = vmul.f32 %v5948, %v5914
      %v5979 = vmul.f32 %v5948, %v5915
      %v5980 = vmul.f32 %v5948, %v5916
      %v5981 = vmul.f32 %v5948, %v5917
      %v5982 = vmul.f32 %v5952, %v5918
      %v5983 = vmul.f32 %v5952, %v5919
      %v5984 = vmul.f32 %v5952, %v5920
      %v5985 = vmul.f32 %v5952, %v5921
      %v5986 = vmul.f32 %v5956, %v5922
      %v5987 = vmul.f32 %v5956, %v5923
      %v5988 = vmul.f32 %v5956, %v5924
      %v5989 = vmul.f32 %v5956, %v5925
      %v5990 = vmul.f32 %v5960, %v5926
      %v5991 = vmul.f32 %v5960, %v5927
      %v5992 = vmul.f32 %v5960, %v5928
      %v5993 = vmul.f32 %v5960, %v5929
      %v5994 = vmul.f32 %v5964, %v5930
      %v5995 = vmul.f32 %v5964, %v5931
      %v5996 = vmul.f32 %v5964, %v5932
      %v5997 = vmul.f32 %v5964, %v5933
      %v5998 = vmul.f32 %v5968, %v5934
      %v5999 = vmul.f32 %v5968, %v5935
      %v6000 = vmul.f32 %v5968, %v5936
      %v6001 = vmul.f32 %v5968, %v5937
      %v6002 = vadd.f32 %v5857, %v5970
      %v6003 = vadd.f32 %v5858, %v5971
      %v6004 = vadd.f32 %v5859, %v5972
      %v6005 = vadd.f32 %v5860, %v5973
      %v6006 = vadd.f32 %v5861, %v5974
      %v6007 = vadd.f32 %v5862, %v5975
      %v6008 = vadd.f32 %v5863, %v5976
      %v6009 = vadd.f32 %v5864, %v5977
      %v6010 = vadd.f32 %v5865, %v5978
      %v6011 = vadd.f32 %v5866, %v5979
      %v6012 = vadd.f32 %v5867, %v5980
      %v6013 = vadd.f32 %v5868, %v5981
      %v6014 = vadd.f32 %v5869, %v5982
      %v6015 = vadd.f32 %v5870, %v5983
      %v6016 = vadd.f32 %v5871, %v5984
      %v6017 = vadd.f32 %v5872, %v5985
      %v6018 = vadd.f32 %v5873, %v5986
      %v6019 = vadd.f32 %v5874, %v5987
      %v6020 = vadd.f32 %v5875, %v5988
      %v6021 = vadd.f32 %v5876, %v5989
      %v6022 = vadd.f32 %v5877, %v5990
      %v6023 = vadd.f32 %v5878, %v5991
      %v6024 = vadd.f32 %v5879, %v5992
      %v6025 = vadd.f32 %v5880, %v5993
      %v6026 = vadd.f32 %v5881, %v5994
      %v6027 = vadd.f32 %v5882, %v5995
      %v6028 = vadd.f32 %v5883, %v5996
      %v6029 = vadd.f32 %v5884, %v5997
      %v6030 = vadd.f32 %v5885, %v5998
      %v6031 = vadd.f32 %v5886, %v5999
      %v6032 = vadd.f32 %v5887, %v6000
      %v6033 = vadd.f32 %v5888, %v6001
      %s6034 = scalar_lea.vmem %s10, 1280
      %v6035 = vld [vmem:[%s6034] sm:$0xff]
      %v6036 = vld [vmem:[%s6034 + $0x8] sm:$0xff]
      %v6037 = vld [vmem:[%s6034 + $0x10] sm:$0xff]
      %v6038 = vld [vmem:[%s6034 + $0x18] sm:$0xff]
      %v6039 = vld [vmem:[%s6034 + $0x20] sm:$0xff]
      %v6040 = vld [vmem:[%s6034 + $0x28] sm:$0xff]
      %v6041 = vld [vmem:[%s6034 + $0x30] sm:$0xff]
      %v6042 = vld [vmem:[%s6034 + $0x38] sm:$0xff]
      %v6043 = vld [vmem:[%s6034 + $0x40] sm:$0xff]
      %v6044 = vld [vmem:[%s6034 + $0x48] sm:$0xff]
      %v6045 = vld [vmem:[%s6034 + $0x50] sm:$0xff]
      %v6046 = vld [vmem:[%s6034 + $0x58] sm:$0xff]
      %v6047 = vld [vmem:[%s6034 + $0x60] sm:$0xff]
      %v6048 = vld [vmem:[%s6034 + $0x68] sm:$0xff]
      %v6049 = vld [vmem:[%s6034 + $0x70] sm:$0xff]
      %v6050 = vld [vmem:[%s6034 + $0x78] sm:$0xff]
      %v6051 = vunpack.c.l.bf16 %v6035
      %v6052 = vunpack.c.h.bf16 %v6035
      %v6053 = vunpack.c.l.bf16 %v6036
      %v6054 = vunpack.c.h.bf16 %v6036
      %v6055 = vunpack.c.l.bf16 %v6037
      %v6056 = vunpack.c.h.bf16 %v6037
      %v6057 = vunpack.c.l.bf16 %v6038
      %v6058 = vunpack.c.h.bf16 %v6038
      %v6059 = vunpack.c.l.bf16 %v6039
      %v6060 = vunpack.c.h.bf16 %v6039
      %v6061 = vunpack.c.l.bf16 %v6040
      %v6062 = vunpack.c.h.bf16 %v6040
      %v6063 = vunpack.c.l.bf16 %v6041
      %v6064 = vunpack.c.h.bf16 %v6041
      %v6065 = vunpack.c.l.bf16 %v6042
      %v6066 = vunpack.c.h.bf16 %v6042
      %v6067 = vunpack.c.l.bf16 %v6043
      %v6068 = vunpack.c.h.bf16 %v6043
      %v6069 = vunpack.c.l.bf16 %v6044
      %v6070 = vunpack.c.h.bf16 %v6044
      %v6071 = vunpack.c.l.bf16 %v6045
      %v6072 = vunpack.c.h.bf16 %v6045
      %v6073 = vunpack.c.l.bf16 %v6046
      %v6074 = vunpack.c.h.bf16 %v6046
      %v6075 = vunpack.c.l.bf16 %v6047
      %v6076 = vunpack.c.h.bf16 %v6047
      %v6077 = vunpack.c.l.bf16 %v6048
      %v6078 = vunpack.c.h.bf16 %v6048
      %v6079 = vunpack.c.l.bf16 %v6049
      %v6080 = vunpack.c.h.bf16 %v6049
      %v6081 = vunpack.c.l.bf16 %v6050
      %v6082 = vunpack.c.h.bf16 %v6050
      %6083 = vset.pattern.permute.xlu0 10
      %6084 = vperm.xlu0 %6083, %v4571
      %v6085 = vpop.permute.xlu0 %6084
      %6087 = vset.pattern.permute.xlu0 10
      %6088 = vperm.xlu0 %6087, %v4574
      %v6089 = vpop.permute.xlu0 %6088
      %6091 = vset.pattern.permute.xlu0 10
      %6092 = vperm.xlu0 %6091, %v4579
      %v6093 = vpop.permute.xlu0 %6092
      %6095 = vset.pattern.permute.xlu0 10
      %6096 = vperm.xlu0 %6095, %v4582
      %v6097 = vpop.permute.xlu0 %6096
      %6099 = vset.pattern.permute.xlu0 10
      %6100 = vperm.xlu0 %6099, %v4587
      %v6101 = vpop.permute.xlu0 %6100
      %6103 = vset.pattern.permute.xlu0 10
      %6104 = vperm.xlu0 %6103, %v4590
      %v6105 = vpop.permute.xlu0 %6104
      %6107 = vset.pattern.permute.xlu0 10
      %6108 = vperm.xlu0 %6107, %v4595
      %v6109 = vpop.permute.xlu0 %6108
      %6111 = vset.pattern.permute.xlu0 10
      %6112 = vperm.xlu0 %6111, %v4598
      %v6113 = vpop.permute.xlu0 %6112
      %v6115 = vmul.f32 %v6085, %v6051
      %v6116 = vmul.f32 %v6085, %v6052
      %v6117 = vmul.f32 %v6085, %v6053
      %v6118 = vmul.f32 %v6085, %v6054
      %v6119 = vmul.f32 %v6089, %v6055
      %v6120 = vmul.f32 %v6089, %v6056
      %v6121 = vmul.f32 %v6089, %v6057
      %v6122 = vmul.f32 %v6089, %v6058
      %v6123 = vmul.f32 %v6093, %v6059
      %v6124 = vmul.f32 %v6093, %v6060
      %v6125 = vmul.f32 %v6093, %v6061
      %v6126 = vmul.f32 %v6093, %v6062
      %v6127 = vmul.f32 %v6097, %v6063
      %v6128 = vmul.f32 %v6097, %v6064
      %v6129 = vmul.f32 %v6097, %v6065
      %v6130 = vmul.f32 %v6097, %v6066
      %v6131 = vmul.f32 %v6101, %v6067
      %v6132 = vmul.f32 %v6101, %v6068
      %v6133 = vmul.f32 %v6101, %v6069
      %v6134 = vmul.f32 %v6101, %v6070
      %v6135 = vmul.f32 %v6105, %v6071
      %v6136 = vmul.f32 %v6105, %v6072
      %v6137 = vmul.f32 %v6105, %v6073
      %v6138 = vmul.f32 %v6105, %v6074
      %v6139 = vmul.f32 %v6109, %v6075
      %v6140 = vmul.f32 %v6109, %v6076
      %v6141 = vmul.f32 %v6109, %v6077
      %v6142 = vmul.f32 %v6109, %v6078
      %v6143 = vmul.f32 %v6113, %v6079
      %v6144 = vmul.f32 %v6113, %v6080
      %v6145 = vmul.f32 %v6113, %v6081
      %v6146 = vmul.f32 %v6113, %v6082
      %v6147 = vadd.f32 %v6002, %v6115
      %v6148 = vadd.f32 %v6003, %v6116
      %v6149 = vadd.f32 %v6004, %v6117
      %v6150 = vadd.f32 %v6005, %v6118
      %v6151 = vadd.f32 %v6006, %v6119
      %v6152 = vadd.f32 %v6007, %v6120
      %v6153 = vadd.f32 %v6008, %v6121
      %v6154 = vadd.f32 %v6009, %v6122
      %v6155 = vadd.f32 %v6010, %v6123
      %v6156 = vadd.f32 %v6011, %v6124
      %v6157 = vadd.f32 %v6012, %v6125
      %v6158 = vadd.f32 %v6013, %v6126
      %v6159 = vadd.f32 %v6014, %v6127
      %v6160 = vadd.f32 %v6015, %v6128
      %v6161 = vadd.f32 %v6016, %v6129
      %v6162 = vadd.f32 %v6017, %v6130
      %v6163 = vadd.f32 %v6018, %v6131
      %v6164 = vadd.f32 %v6019, %v6132
      %v6165 = vadd.f32 %v6020, %v6133
      %v6166 = vadd.f32 %v6021, %v6134
      %v6167 = vadd.f32 %v6022, %v6135
      %v6168 = vadd.f32 %v6023, %v6136
      %v6169 = vadd.f32 %v6024, %v6137
      %v6170 = vadd.f32 %v6025, %v6138
      %v6171 = vadd.f32 %v6026, %v6139
      %v6172 = vadd.f32 %v6027, %v6140
      %v6173 = vadd.f32 %v6028, %v6141
      %v6174 = vadd.f32 %v6029, %v6142
      %v6175 = vadd.f32 %v6030, %v6143
      %v6176 = vadd.f32 %v6031, %v6144
      %v6177 = vadd.f32 %v6032, %v6145
      %v6178 = vadd.f32 %v6033, %v6146
      %s6179 = scalar_lea.vmem %s10, 1408
      %v6180 = vld [vmem:[%s6179] sm:$0xff]
      %v6181 = vld [vmem:[%s6179 + $0x8] sm:$0xff]
      %v6182 = vld [vmem:[%s6179 + $0x10] sm:$0xff]
      %v6183 = vld [vmem:[%s6179 + $0x18] sm:$0xff]
      %v6184 = vld [vmem:[%s6179 + $0x20] sm:$0xff]
      %v6185 = vld [vmem:[%s6179 + $0x28] sm:$0xff]
      %v6186 = vld [vmem:[%s6179 + $0x30] sm:$0xff]
      %v6187 = vld [vmem:[%s6179 + $0x38] sm:$0xff]
      %v6188 = vld [vmem:[%s6179 + $0x40] sm:$0xff]
      %v6189 = vld [vmem:[%s6179 + $0x48] sm:$0xff]
      %v6190 = vld [vmem:[%s6179 + $0x50] sm:$0xff]
      %v6191 = vld [vmem:[%s6179 + $0x58] sm:$0xff]
      %v6192 = vld [vmem:[%s6179 + $0x60] sm:$0xff]
      %v6193 = vld [vmem:[%s6179 + $0x68] sm:$0xff]
      %v6194 = vld [vmem:[%s6179 + $0x70] sm:$0xff]
      %v6195 = vld [vmem:[%s6179 + $0x78] sm:$0xff]
      %v6196 = vunpack.c.l.bf16 %v6180
      %v6197 = vunpack.c.h.bf16 %v6180
      %v6198 = vunpack.c.l.bf16 %v6181
      %v6199 = vunpack.c.h.bf16 %v6181
      %v6200 = vunpack.c.l.bf16 %v6182
      %v6201 = vunpack.c.h.bf16 %v6182
      %v6202 = vunpack.c.l.bf16 %v6183
      %v6203 = vunpack.c.h.bf16 %v6183
      %v6204 = vunpack.c.l.bf16 %v6184
      %v6205 = vunpack.c.h.bf16 %v6184
      %v6206 = vunpack.c.l.bf16 %v6185
      %v6207 = vunpack.c.h.bf16 %v6185
      %v6208 = vunpack.c.l.bf16 %v6186
      %v6209 = vunpack.c.h.bf16 %v6186
      %v6210 = vunpack.c.l.bf16 %v6187
      %v6211 = vunpack.c.h.bf16 %v6187
      %v6212 = vunpack.c.l.bf16 %v6188
      %v6213 = vunpack.c.h.bf16 %v6188
      %v6214 = vunpack.c.l.bf16 %v6189
      %v6215 = vunpack.c.h.bf16 %v6189
      %v6216 = vunpack.c.l.bf16 %v6190
      %v6217 = vunpack.c.h.bf16 %v6190
      %v6218 = vunpack.c.l.bf16 %v6191
      %v6219 = vunpack.c.h.bf16 %v6191
      %v6220 = vunpack.c.l.bf16 %v6192
      %v6221 = vunpack.c.h.bf16 %v6192
      %v6222 = vunpack.c.l.bf16 %v6193
      %v6223 = vunpack.c.h.bf16 %v6193
      %v6224 = vunpack.c.l.bf16 %v6194
      %v6225 = vunpack.c.h.bf16 %v6194
      %v6226 = vunpack.c.l.bf16 %v6195
      %v6227 = vunpack.c.h.bf16 %v6195
      %6228 = vset.pattern.permute.xlu0 11
      %6229 = vperm.xlu0 %6228, %v4571
      %v6230 = vpop.permute.xlu0 %6229
      %6232 = vset.pattern.permute.xlu0 11
      %6233 = vperm.xlu0 %6232, %v4574
      %v6234 = vpop.permute.xlu0 %6233
      %6236 = vset.pattern.permute.xlu0 11
      %6237 = vperm.xlu0 %6236, %v4579
      %v6238 = vpop.permute.xlu0 %6237
      %6240 = vset.pattern.permute.xlu0 11
      %6241 = vperm.xlu0 %6240, %v4582
      %v6242 = vpop.permute.xlu0 %6241
      %6244 = vset.pattern.permute.xlu0 11
      %6245 = vperm.xlu0 %6244, %v4587
      %v6246 = vpop.permute.xlu0 %6245
      %6248 = vset.pattern.permute.xlu0 11
      %6249 = vperm.xlu0 %6248, %v4590
      %v6250 = vpop.permute.xlu0 %6249
      %6252 = vset.pattern.permute.xlu0 11
      %6253 = vperm.xlu0 %6252, %v4595
      %v6254 = vpop.permute.xlu0 %6253
      %6256 = vset.pattern.permute.xlu0 11
      %6257 = vperm.xlu0 %6256, %v4598
      %v6258 = vpop.permute.xlu0 %6257
      %v6260 = vmul.f32 %v6230, %v6196
      %v6261 = vmul.f32 %v6230, %v6197
      %v6262 = vmul.f32 %v6230, %v6198
      %v6263 = vmul.f32 %v6230, %v6199
      %v6264 = vmul.f32 %v6234, %v6200
      %v6265 = vmul.f32 %v6234, %v6201
      %v6266 = vmul.f32 %v6234, %v6202
      %v6267 = vmul.f32 %v6234, %v6203
      %v6268 = vmul.f32 %v6238, %v6204
      %v6269 = vmul.f32 %v6238, %v6205
      %v6270 = vmul.f32 %v6238, %v6206
      %v6271 = vmul.f32 %v6238, %v6207
      %v6272 = vmul.f32 %v6242, %v6208
      %v6273 = vmul.f32 %v6242, %v6209
      %v6274 = vmul.f32 %v6242, %v6210
      %v6275 = vmul.f32 %v6242, %v6211
      %v6276 = vmul.f32 %v6246, %v6212
      %v6277 = vmul.f32 %v6246, %v6213
      %v6278 = vmul.f32 %v6246, %v6214
      %v6279 = vmul.f32 %v6246, %v6215
      %v6280 = vmul.f32 %v6250, %v6216
      %v6281 = vmul.f32 %v6250, %v6217
      %v6282 = vmul.f32 %v6250, %v6218
      %v6283 = vmul.f32 %v6250, %v6219
      %v6284 = vmul.f32 %v6254, %v6220
      %v6285 = vmul.f32 %v6254, %v6221
      %v6286 = vmul.f32 %v6254, %v6222
      %v6287 = vmul.f32 %v6254, %v6223
      %v6288 = vmul.f32 %v6258, %v6224
      %v6289 = vmul.f32 %v6258, %v6225
      %v6290 = vmul.f32 %v6258, %v6226
      %v6291 = vmul.f32 %v6258, %v6227
      %v6292 = vadd.f32 %v6147, %v6260
      %v6293 = vadd.f32 %v6148, %v6261
      %v6294 = vadd.f32 %v6149, %v6262
      %v6295 = vadd.f32 %v6150, %v6263
      %v6296 = vadd.f32 %v6151, %v6264
      %v6297 = vadd.f32 %v6152, %v6265
      %v6298 = vadd.f32 %v6153, %v6266
      %v6299 = vadd.f32 %v6154, %v6267
      %v6300 = vadd.f32 %v6155, %v6268
      %v6301 = vadd.f32 %v6156, %v6269
      %v6302 = vadd.f32 %v6157, %v6270
      %v6303 = vadd.f32 %v6158, %v6271
      %v6304 = vadd.f32 %v6159, %v6272
      %v6305 = vadd.f32 %v6160, %v6273
      %v6306 = vadd.f32 %v6161, %v6274
      %v6307 = vadd.f32 %v6162, %v6275
      %v6308 = vadd.f32 %v6163, %v6276
      %v6309 = vadd.f32 %v6164, %v6277
      %v6310 = vadd.f32 %v6165, %v6278
      %v6311 = vadd.f32 %v6166, %v6279
      %v6312 = vadd.f32 %v6167, %v6280
      %v6313 = vadd.f32 %v6168, %v6281
      %v6314 = vadd.f32 %v6169, %v6282
      %v6315 = vadd.f32 %v6170, %v6283
      %v6316 = vadd.f32 %v6171, %v6284
      %v6317 = vadd.f32 %v6172, %v6285
      %v6318 = vadd.f32 %v6173, %v6286
      %v6319 = vadd.f32 %v6174, %v6287
      %v6320 = vadd.f32 %v6175, %v6288
      %v6321 = vadd.f32 %v6176, %v6289
      %v6322 = vadd.f32 %v6177, %v6290
      %v6323 = vadd.f32 %v6178, %v6291
      %s6324 = scalar_lea.vmem %s10, 1536
      %v6325 = vld [vmem:[%s6324] sm:$0xff]
      %v6326 = vld [vmem:[%s6324 + $0x8] sm:$0xff]
      %v6327 = vld [vmem:[%s6324 + $0x10] sm:$0xff]
      %v6328 = vld [vmem:[%s6324 + $0x18] sm:$0xff]
      %v6329 = vld [vmem:[%s6324 + $0x20] sm:$0xff]
      %v6330 = vld [vmem:[%s6324 + $0x28] sm:$0xff]
      %v6331 = vld [vmem:[%s6324 + $0x30] sm:$0xff]
      %v6332 = vld [vmem:[%s6324 + $0x38] sm:$0xff]
      %v6333 = vld [vmem:[%s6324 + $0x40] sm:$0xff]
      %v6334 = vld [vmem:[%s6324 + $0x48] sm:$0xff]
      %v6335 = vld [vmem:[%s6324 + $0x50] sm:$0xff]
      %v6336 = vld [vmem:[%s6324 + $0x58] sm:$0xff]
      %v6337 = vld [vmem:[%s6324 + $0x60] sm:$0xff]
      %v6338 = vld [vmem:[%s6324 + $0x68] sm:$0xff]
      %v6339 = vld [vmem:[%s6324 + $0x70] sm:$0xff]
      %v6340 = vld [vmem:[%s6324 + $0x78] sm:$0xff]
      %v6341 = vunpack.c.l.bf16 %v6325
      %v6342 = vunpack.c.h.bf16 %v6325
      %v6343 = vunpack.c.l.bf16 %v6326
      %v6344 = vunpack.c.h.bf16 %v6326
      %v6345 = vunpack.c.l.bf16 %v6327
      %v6346 = vunpack.c.h.bf16 %v6327
      %v6347 = vunpack.c.l.bf16 %v6328
      %v6348 = vunpack.c.h.bf16 %v6328
      %v6349 = vunpack.c.l.bf16 %v6329
      %v6350 = vunpack.c.h.bf16 %v6329
      %v6351 = vunpack.c.l.bf16 %v6330
      %v6352 = vunpack.c.h.bf16 %v6330
      %v6353 = vunpack.c.l.bf16 %v6331
      %v6354 = vunpack.c.h.bf16 %v6331
      %v6355 = vunpack.c.l.bf16 %v6332
      %v6356 = vunpack.c.h.bf16 %v6332
      %v6357 = vunpack.c.l.bf16 %v6333
      %v6358 = vunpack.c.h.bf16 %v6333
      %v6359 = vunpack.c.l.bf16 %v6334
      %v6360 = vunpack.c.h.bf16 %v6334
      %v6361 = vunpack.c.l.bf16 %v6335
      %v6362 = vunpack.c.h.bf16 %v6335
      %v6363 = vunpack.c.l.bf16 %v6336
      %v6364 = vunpack.c.h.bf16 %v6336
      %v6365 = vunpack.c.l.bf16 %v6337
      %v6366 = vunpack.c.h.bf16 %v6337
      %v6367 = vunpack.c.l.bf16 %v6338
      %v6368 = vunpack.c.h.bf16 %v6338
      %v6369 = vunpack.c.l.bf16 %v6339
      %v6370 = vunpack.c.h.bf16 %v6339
      %v6371 = vunpack.c.l.bf16 %v6340
      %v6372 = vunpack.c.h.bf16 %v6340
      %6373 = vset.pattern.permute.xlu0 12
      %6374 = vperm.xlu0 %6373, %v4571
      %v6375 = vpop.permute.xlu0 %6374
      %6377 = vset.pattern.permute.xlu0 12
      %6378 = vperm.xlu0 %6377, %v4574
      %v6379 = vpop.permute.xlu0 %6378
      %6381 = vset.pattern.permute.xlu0 12
      %6382 = vperm.xlu0 %6381, %v4579
      %v6383 = vpop.permute.xlu0 %6382
      %6385 = vset.pattern.permute.xlu0 12
      %6386 = vperm.xlu0 %6385, %v4582
      %v6387 = vpop.permute.xlu0 %6386
      %6389 = vset.pattern.permute.xlu0 12
      %6390 = vperm.xlu0 %6389, %v4587
      %v6391 = vpop.permute.xlu0 %6390
      %6393 = vset.pattern.permute.xlu0 12
      %6394 = vperm.xlu0 %6393, %v4590
      %v6395 = vpop.permute.xlu0 %6394
      %6397 = vset.pattern.permute.xlu0 12
      %6398 = vperm.xlu0 %6397, %v4595
      %v6399 = vpop.permute.xlu0 %6398
      %6401 = vset.pattern.permute.xlu0 12
      %6402 = vperm.xlu0 %6401, %v4598
      %v6403 = vpop.permute.xlu0 %6402
      %v6405 = vmul.f32 %v6375, %v6341
      %v6406 = vmul.f32 %v6375, %v6342
      %v6407 = vmul.f32 %v6375, %v6343
      %v6408 = vmul.f32 %v6375, %v6344
      %v6409 = vmul.f32 %v6379, %v6345
      %v6410 = vmul.f32 %v6379, %v6346
      %v6411 = vmul.f32 %v6379, %v6347
      %v6412 = vmul.f32 %v6379, %v6348
      %v6413 = vmul.f32 %v6383, %v6349
      %v6414 = vmul.f32 %v6383, %v6350
      %v6415 = vmul.f32 %v6383, %v6351
      %v6416 = vmul.f32 %v6383, %v6352
      %v6417 = vmul.f32 %v6387, %v6353
      %v6418 = vmul.f32 %v6387, %v6354
      %v6419 = vmul.f32 %v6387, %v6355
      %v6420 = vmul.f32 %v6387, %v6356
      %v6421 = vmul.f32 %v6391, %v6357
      %v6422 = vmul.f32 %v6391, %v6358
      %v6423 = vmul.f32 %v6391, %v6359
      %v6424 = vmul.f32 %v6391, %v6360
      %v6425 = vmul.f32 %v6395, %v6361
      %v6426 = vmul.f32 %v6395, %v6362
      %v6427 = vmul.f32 %v6395, %v6363
      %v6428 = vmul.f32 %v6395, %v6364
      %v6429 = vmul.f32 %v6399, %v6365
      %v6430 = vmul.f32 %v6399, %v6366
      %v6431 = vmul.f32 %v6399, %v6367
      %v6432 = vmul.f32 %v6399, %v6368
      %v6433 = vmul.f32 %v6403, %v6369
      %v6434 = vmul.f32 %v6403, %v6370
      %v6435 = vmul.f32 %v6403, %v6371
      %v6436 = vmul.f32 %v6403, %v6372
      %v6437 = vadd.f32 %v6292, %v6405
      %v6438 = vadd.f32 %v6293, %v6406
      %v6439 = vadd.f32 %v6294, %v6407
      %v6440 = vadd.f32 %v6295, %v6408
      %v6441 = vadd.f32 %v6296, %v6409
      %v6442 = vadd.f32 %v6297, %v6410
      %v6443 = vadd.f32 %v6298, %v6411
      %v6444 = vadd.f32 %v6299, %v6412
      %v6445 = vadd.f32 %v6300, %v6413
      %v6446 = vadd.f32 %v6301, %v6414
      %v6447 = vadd.f32 %v6302, %v6415
      %v6448 = vadd.f32 %v6303, %v6416
      %v6449 = vadd.f32 %v6304, %v6417
      %v6450 = vadd.f32 %v6305, %v6418
      %v6451 = vadd.f32 %v6306, %v6419
      %v6452 = vadd.f32 %v6307, %v6420
      %v6453 = vadd.f32 %v6308, %v6421
      %v6454 = vadd.f32 %v6309, %v6422
      %v6455 = vadd.f32 %v6310, %v6423
      %v6456 = vadd.f32 %v6311, %v6424
      %v6457 = vadd.f32 %v6312, %v6425
      %v6458 = vadd.f32 %v6313, %v6426
      %v6459 = vadd.f32 %v6314, %v6427
      %v6460 = vadd.f32 %v6315, %v6428
      %v6461 = vadd.f32 %v6316, %v6429
      %v6462 = vadd.f32 %v6317, %v6430
      %v6463 = vadd.f32 %v6318, %v6431
      %v6464 = vadd.f32 %v6319, %v6432
      %v6465 = vadd.f32 %v6320, %v6433
      %v6466 = vadd.f32 %v6321, %v6434
      %v6467 = vadd.f32 %v6322, %v6435
      %v6468 = vadd.f32 %v6323, %v6436
      %s6469 = scalar_lea.vmem %s10, 1664
      %v6470 = vld [vmem:[%s6469] sm:$0xff]
      %v6471 = vld [vmem:[%s6469 + $0x8] sm:$0xff]
      %v6472 = vld [vmem:[%s6469 + $0x10] sm:$0xff]
      %v6473 = vld [vmem:[%s6469 + $0x18] sm:$0xff]
      %v6474 = vld [vmem:[%s6469 + $0x20] sm:$0xff]
      %v6475 = vld [vmem:[%s6469 + $0x28] sm:$0xff]
      %v6476 = vld [vmem:[%s6469 + $0x30] sm:$0xff]
      %v6477 = vld [vmem:[%s6469 + $0x38] sm:$0xff]
      %v6478 = vld [vmem:[%s6469 + $0x40] sm:$0xff]
      %v6479 = vld [vmem:[%s6469 + $0x48] sm:$0xff]
      %v6480 = vld [vmem:[%s6469 + $0x50] sm:$0xff]
      %v6481 = vld [vmem:[%s6469 + $0x58] sm:$0xff]
      %v6482 = vld [vmem:[%s6469 + $0x60] sm:$0xff]
      %v6483 = vld [vmem:[%s6469 + $0x68] sm:$0xff]
      %v6484 = vld [vmem:[%s6469 + $0x70] sm:$0xff]
      %v6485 = vld [vmem:[%s6469 + $0x78] sm:$0xff]
      %v6486 = vunpack.c.l.bf16 %v6470
      %v6487 = vunpack.c.h.bf16 %v6470
      %v6488 = vunpack.c.l.bf16 %v6471
      %v6489 = vunpack.c.h.bf16 %v6471
      %v6490 = vunpack.c.l.bf16 %v6472
      %v6491 = vunpack.c.h.bf16 %v6472
      %v6492 = vunpack.c.l.bf16 %v6473
      %v6493 = vunpack.c.h.bf16 %v6473
      %v6494 = vunpack.c.l.bf16 %v6474
      %v6495 = vunpack.c.h.bf16 %v6474
      %v6496 = vunpack.c.l.bf16 %v6475
      %v6497 = vunpack.c.h.bf16 %v6475
      %v6498 = vunpack.c.l.bf16 %v6476
      %v6499 = vunpack.c.h.bf16 %v6476
      %v6500 = vunpack.c.l.bf16 %v6477
      %v6501 = vunpack.c.h.bf16 %v6477
      %v6502 = vunpack.c.l.bf16 %v6478
      %v6503 = vunpack.c.h.bf16 %v6478
      %v6504 = vunpack.c.l.bf16 %v6479
      %v6505 = vunpack.c.h.bf16 %v6479
      %v6506 = vunpack.c.l.bf16 %v6480
      %v6507 = vunpack.c.h.bf16 %v6480
      %v6508 = vunpack.c.l.bf16 %v6481
      %v6509 = vunpack.c.h.bf16 %v6481
      %v6510 = vunpack.c.l.bf16 %v6482
      %v6511 = vunpack.c.h.bf16 %v6482
      %v6512 = vunpack.c.l.bf16 %v6483
      %v6513 = vunpack.c.h.bf16 %v6483
      %v6514 = vunpack.c.l.bf16 %v6484
      %v6515 = vunpack.c.h.bf16 %v6484
      %v6516 = vunpack.c.l.bf16 %v6485
      %v6517 = vunpack.c.h.bf16 %v6485
      %6518 = vset.pattern.permute.xlu0 13
      %6519 = vperm.xlu0 %6518, %v4571
      %v6520 = vpop.permute.xlu0 %6519
      %6522 = vset.pattern.permute.xlu0 13
      %6523 = vperm.xlu0 %6522, %v4574
      %v6524 = vpop.permute.xlu0 %6523
      %6526 = vset.pattern.permute.xlu0 13
      %6527 = vperm.xlu0 %6526, %v4579
      %v6528 = vpop.permute.xlu0 %6527
      %6530 = vset.pattern.permute.xlu0 13
      %6531 = vperm.xlu0 %6530, %v4582
      %v6532 = vpop.permute.xlu0 %6531
      %6534 = vset.pattern.permute.xlu0 13
      %6535 = vperm.xlu0 %6534, %v4587
      %v6536 = vpop.permute.xlu0 %6535
      %6538 = vset.pattern.permute.xlu0 13
      %6539 = vperm.xlu0 %6538, %v4590
      %v6540 = vpop.permute.xlu0 %6539
      %6542 = vset.pattern.permute.xlu0 13
      %6543 = vperm.xlu0 %6542, %v4595
      %v6544 = vpop.permute.xlu0 %6543
      %6546 = vset.pattern.permute.xlu0 13
      %6547 = vperm.xlu0 %6546, %v4598
      %v6548 = vpop.permute.xlu0 %6547
      %v6550 = vmul.f32 %v6520, %v6486
      %v6551 = vmul.f32 %v6520, %v6487
      %v6552 = vmul.f32 %v6520, %v6488
      %v6553 = vmul.f32 %v6520, %v6489
      %v6554 = vmul.f32 %v6524, %v6490
      %v6555 = vmul.f32 %v6524, %v6491
      %v6556 = vmul.f32 %v6524, %v6492
      %v6557 = vmul.f32 %v6524, %v6493
      %v6558 = vmul.f32 %v6528, %v6494
      %v6559 = vmul.f32 %v6528, %v6495
      %v6560 = vmul.f32 %v6528, %v6496
      %v6561 = vmul.f32 %v6528, %v6497
      %v6562 = vmul.f32 %v6532, %v6498
      %v6563 = vmul.f32 %v6532, %v6499
      %v6564 = vmul.f32 %v6532, %v6500
      %v6565 = vmul.f32 %v6532, %v6501
      %v6566 = vmul.f32 %v6536, %v6502
      %v6567 = vmul.f32 %v6536, %v6503
      %v6568 = vmul.f32 %v6536, %v6504
      %v6569 = vmul.f32 %v6536, %v6505
      %v6570 = vmul.f32 %v6540, %v6506
      %v6571 = vmul.f32 %v6540, %v6507
      %v6572 = vmul.f32 %v6540, %v6508
      %v6573 = vmul.f32 %v6540, %v6509
      %v6574 = vmul.f32 %v6544, %v6510
      %v6575 = vmul.f32 %v6544, %v6511
      %v6576 = vmul.f32 %v6544, %v6512
      %v6577 = vmul.f32 %v6544, %v6513
      %v6578 = vmul.f32 %v6548, %v6514
      %v6579 = vmul.f32 %v6548, %v6515
      %v6580 = vmul.f32 %v6548, %v6516
      %v6581 = vmul.f32 %v6548, %v6517
      %v6582 = vadd.f32 %v6437, %v6550
      %v6583 = vadd.f32 %v6438, %v6551
      %v6584 = vadd.f32 %v6439, %v6552
      %v6585 = vadd.f32 %v6440, %v6553
      %v6586 = vadd.f32 %v6441, %v6554
      %v6587 = vadd.f32 %v6442, %v6555
      %v6588 = vadd.f32 %v6443, %v6556
      %v6589 = vadd.f32 %v6444, %v6557
      %v6590 = vadd.f32 %v6445, %v6558
      %v6591 = vadd.f32 %v6446, %v6559
      %v6592 = vadd.f32 %v6447, %v6560
      %v6593 = vadd.f32 %v6448, %v6561
      %v6594 = vadd.f32 %v6449, %v6562
      %v6595 = vadd.f32 %v6450, %v6563
      %v6596 = vadd.f32 %v6451, %v6564
      %v6597 = vadd.f32 %v6452, %v6565
      %v6598 = vadd.f32 %v6453, %v6566
      %v6599 = vadd.f32 %v6454, %v6567
      %v6600 = vadd.f32 %v6455, %v6568
      %v6601 = vadd.f32 %v6456, %v6569
      %v6602 = vadd.f32 %v6457, %v6570
      %v6603 = vadd.f32 %v6458, %v6571
      %v6604 = vadd.f32 %v6459, %v6572
      %v6605 = vadd.f32 %v6460, %v6573
      %v6606 = vadd.f32 %v6461, %v6574
      %v6607 = vadd.f32 %v6462, %v6575
      %v6608 = vadd.f32 %v6463, %v6576
      %v6609 = vadd.f32 %v6464, %v6577
      %v6610 = vadd.f32 %v6465, %v6578
      %v6611 = vadd.f32 %v6466, %v6579
      %v6612 = vadd.f32 %v6467, %v6580
      %v6613 = vadd.f32 %v6468, %v6581
      %s6614 = scalar_lea.vmem %s10, 1792
      %v6615 = vld [vmem:[%s6614] sm:$0xff]
      %v6616 = vld [vmem:[%s6614 + $0x8] sm:$0xff]
      %v6617 = vld [vmem:[%s6614 + $0x10] sm:$0xff]
      %v6618 = vld [vmem:[%s6614 + $0x18] sm:$0xff]
      %v6619 = vld [vmem:[%s6614 + $0x20] sm:$0xff]
      %v6620 = vld [vmem:[%s6614 + $0x28] sm:$0xff]
      %v6621 = vld [vmem:[%s6614 + $0x30] sm:$0xff]
      %v6622 = vld [vmem:[%s6614 + $0x38] sm:$0xff]
      %v6623 = vld [vmem:[%s6614 + $0x40] sm:$0xff]
      %v6624 = vld [vmem:[%s6614 + $0x48] sm:$0xff]
      %v6625 = vld [vmem:[%s6614 + $0x50] sm:$0xff]
      %v6626 = vld [vmem:[%s6614 + $0x58] sm:$0xff]
      %v6627 = vld [vmem:[%s6614 + $0x60] sm:$0xff]
      %v6628 = vld [vmem:[%s6614 + $0x68] sm:$0xff]
      %v6629 = vld [vmem:[%s6614 + $0x70] sm:$0xff]
      %v6630 = vld [vmem:[%s6614 + $0x78] sm:$0xff]
      %v6631 = vunpack.c.l.bf16 %v6615
      %v6632 = vunpack.c.h.bf16 %v6615
      %v6633 = vunpack.c.l.bf16 %v6616
      %v6634 = vunpack.c.h.bf16 %v6616
      %v6635 = vunpack.c.l.bf16 %v6617
      %v6636 = vunpack.c.h.bf16 %v6617
      %v6637 = vunpack.c.l.bf16 %v6618
      %v6638 = vunpack.c.h.bf16 %v6618
      %v6639 = vunpack.c.l.bf16 %v6619
      %v6640 = vunpack.c.h.bf16 %v6619
      %v6641 = vunpack.c.l.bf16 %v6620
      %v6642 = vunpack.c.h.bf16 %v6620
      %v6643 = vunpack.c.l.bf16 %v6621
      %v6644 = vunpack.c.h.bf16 %v6621
      %v6645 = vunpack.c.l.bf16 %v6622
      %v6646 = vunpack.c.h.bf16 %v6622
      %v6647 = vunpack.c.l.bf16 %v6623
      %v6648 = vunpack.c.h.bf16 %v6623
      %v6649 = vunpack.c.l.bf16 %v6624
      %v6650 = vunpack.c.h.bf16 %v6624
      %v6651 = vunpack.c.l.bf16 %v6625
      %v6652 = vunpack.c.h.bf16 %v6625
      %v6653 = vunpack.c.l.bf16 %v6626
      %v6654 = vunpack.c.h.bf16 %v6626
      %v6655 = vunpack.c.l.bf16 %v6627
      %v6656 = vunpack.c.h.bf16 %v6627
      %v6657 = vunpack.c.l.bf16 %v6628
      %v6658 = vunpack.c.h.bf16 %v6628
      %v6659 = vunpack.c.l.bf16 %v6629
      %v6660 = vunpack.c.h.bf16 %v6629
      %v6661 = vunpack.c.l.bf16 %v6630
      %v6662 = vunpack.c.h.bf16 %v6630
      %6663 = vset.pattern.permute.xlu0 14
      %6664 = vperm.xlu0 %6663, %v4571
      %v6665 = vpop.permute.xlu0 %6664
      %6667 = vset.pattern.permute.xlu0 14
      %6668 = vperm.xlu0 %6667, %v4574
      %v6669 = vpop.permute.xlu0 %6668
      %6671 = vset.pattern.permute.xlu0 14
      %6672 = vperm.xlu0 %6671, %v4579
      %v6673 = vpop.permute.xlu0 %6672
      %6675 = vset.pattern.permute.xlu0 14
      %6676 = vperm.xlu0 %6675, %v4582
      %v6677 = vpop.permute.xlu0 %6676
      %6679 = vset.pattern.permute.xlu0 14
      %6680 = vperm.xlu0 %6679, %v4587
      %v6681 = vpop.permute.xlu0 %6680
      %6683 = vset.pattern.permute.xlu0 14
      %6684 = vperm.xlu0 %6683, %v4590
      %v6685 = vpop.permute.xlu0 %6684
      %6687 = vset.pattern.permute.xlu0 14
      %6688 = vperm.xlu0 %6687, %v4595
      %v6689 = vpop.permute.xlu0 %6688
      %6691 = vset.pattern.permute.xlu0 14
      %6692 = vperm.xlu0 %6691, %v4598
      %v6693 = vpop.permute.xlu0 %6692
      %v6695 = vmul.f32 %v6665, %v6631
      %v6696 = vmul.f32 %v6665, %v6632
      %v6697 = vmul.f32 %v6665, %v6633
      %v6698 = vmul.f32 %v6665, %v6634
      %v6699 = vmul.f32 %v6669, %v6635
      %v6700 = vmul.f32 %v6669, %v6636
      %v6701 = vmul.f32 %v6669, %v6637
      %v6702 = vmul.f32 %v6669, %v6638
      %v6703 = vmul.f32 %v6673, %v6639
      %v6704 = vmul.f32 %v6673, %v6640
      %v6705 = vmul.f32 %v6673, %v6641
      %v6706 = vmul.f32 %v6673, %v6642
      %v6707 = vmul.f32 %v6677, %v6643
      %v6708 = vmul.f32 %v6677, %v6644
      %v6709 = vmul.f32 %v6677, %v6645
      %v6710 = vmul.f32 %v6677, %v6646
      %v6711 = vmul.f32 %v6681, %v6647
      %v6712 = vmul.f32 %v6681, %v6648
      %v6713 = vmul.f32 %v6681, %v6649
      %v6714 = vmul.f32 %v6681, %v6650
      %v6715 = vmul.f32 %v6685, %v6651
      %v6716 = vmul.f32 %v6685, %v6652
      %v6717 = vmul.f32 %v6685, %v6653
      %v6718 = vmul.f32 %v6685, %v6654
      %v6719 = vmul.f32 %v6689, %v6655
      %v6720 = vmul.f32 %v6689, %v6656
      %v6721 = vmul.f32 %v6689, %v6657
      %v6722 = vmul.f32 %v6689, %v6658
      %v6723 = vmul.f32 %v6693, %v6659
      %v6724 = vmul.f32 %v6693, %v6660
      %v6725 = vmul.f32 %v6693, %v6661
      %v6726 = vmul.f32 %v6693, %v6662
      %v6727 = vadd.f32 %v6582, %v6695
      %v6728 = vadd.f32 %v6583, %v6696
      %v6729 = vadd.f32 %v6584, %v6697
      %v6730 = vadd.f32 %v6585, %v6698
      %v6731 = vadd.f32 %v6586, %v6699
      %v6732 = vadd.f32 %v6587, %v6700
      %v6733 = vadd.f32 %v6588, %v6701
      %v6734 = vadd.f32 %v6589, %v6702
      %v6735 = vadd.f32 %v6590, %v6703
      %v6736 = vadd.f32 %v6591, %v6704
      %v6737 = vadd.f32 %v6592, %v6705
      %v6738 = vadd.f32 %v6593, %v6706
      %v6739 = vadd.f32 %v6594, %v6707
      %v6740 = vadd.f32 %v6595, %v6708
      %v6741 = vadd.f32 %v6596, %v6709
      %v6742 = vadd.f32 %v6597, %v6710
      %v6743 = vadd.f32 %v6598, %v6711
      %v6744 = vadd.f32 %v6599, %v6712
      %v6745 = vadd.f32 %v6600, %v6713
      %v6746 = vadd.f32 %v6601, %v6714
      %v6747 = vadd.f32 %v6602, %v6715
      %v6748 = vadd.f32 %v6603, %v6716
      %v6749 = vadd.f32 %v6604, %v6717
      %v6750 = vadd.f32 %v6605, %v6718
      %v6751 = vadd.f32 %v6606, %v6719
      %v6752 = vadd.f32 %v6607, %v6720
      %v6753 = vadd.f32 %v6608, %v6721
      %v6754 = vadd.f32 %v6609, %v6722
      %v6755 = vadd.f32 %v6610, %v6723
      %v6756 = vadd.f32 %v6611, %v6724
      %v6757 = vadd.f32 %v6612, %v6725
      %v6758 = vadd.f32 %v6613, %v6726
      %s6759 = scalar_lea.vmem %s10, 1920
      %v6760 = vld [vmem:[%s6759] sm:$0xff]
      %v6761 = vld [vmem:[%s6759 + $0x8] sm:$0xff]
      %v6762 = vld [vmem:[%s6759 + $0x10] sm:$0xff]
      %v6763 = vld [vmem:[%s6759 + $0x18] sm:$0xff]
      %v6764 = vld [vmem:[%s6759 + $0x20] sm:$0xff]
      %v6765 = vld [vmem:[%s6759 + $0x28] sm:$0xff]
      %v6766 = vld [vmem:[%s6759 + $0x30] sm:$0xff]
      %v6767 = vld [vmem:[%s6759 + $0x38] sm:$0xff]
      %v6768 = vld [vmem:[%s6759 + $0x40] sm:$0xff]
      %v6769 = vld [vmem:[%s6759 + $0x48] sm:$0xff]
      %v6770 = vld [vmem:[%s6759 + $0x50] sm:$0xff]
      %v6771 = vld [vmem:[%s6759 + $0x58] sm:$0xff]
      %v6772 = vld [vmem:[%s6759 + $0x60] sm:$0xff]
      %v6773 = vld [vmem:[%s6759 + $0x68] sm:$0xff]
      %v6774 = vld [vmem:[%s6759 + $0x70] sm:$0xff]
      %v6775 = vld [vmem:[%s6759 + $0x78] sm:$0xff]
      %v6776 = vunpack.c.l.bf16 %v6760
      %v6777 = vunpack.c.h.bf16 %v6760
      %v6778 = vunpack.c.l.bf16 %v6761
      %v6779 = vunpack.c.h.bf16 %v6761
      %v6780 = vunpack.c.l.bf16 %v6762
      %v6781 = vunpack.c.h.bf16 %v6762
      %v6782 = vunpack.c.l.bf16 %v6763
      %v6783 = vunpack.c.h.bf16 %v6763
      %v6784 = vunpack.c.l.bf16 %v6764
      %v6785 = vunpack.c.h.bf16 %v6764
      %v6786 = vunpack.c.l.bf16 %v6765
      %v6787 = vunpack.c.h.bf16 %v6765
      %v6788 = vunpack.c.l.bf16 %v6766
      %v6789 = vunpack.c.h.bf16 %v6766
      %v6790 = vunpack.c.l.bf16 %v6767
      %v6791 = vunpack.c.h.bf16 %v6767
      %v6792 = vunpack.c.l.bf16 %v6768
      %v6793 = vunpack.c.h.bf16 %v6768
      %v6794 = vunpack.c.l.bf16 %v6769
      %v6795 = vunpack.c.h.bf16 %v6769
      %v6796 = vunpack.c.l.bf16 %v6770
      %v6797 = vunpack.c.h.bf16 %v6770
      %v6798 = vunpack.c.l.bf16 %v6771
      %v6799 = vunpack.c.h.bf16 %v6771
      %v6800 = vunpack.c.l.bf16 %v6772
      %v6801 = vunpack.c.h.bf16 %v6772
      %v6802 = vunpack.c.l.bf16 %v6773
      %v6803 = vunpack.c.h.bf16 %v6773
      %v6804 = vunpack.c.l.bf16 %v6774
      %v6805 = vunpack.c.h.bf16 %v6774
      %v6806 = vunpack.c.l.bf16 %v6775
      %v6807 = vunpack.c.h.bf16 %v6775
      %6808 = vset.pattern.permute.xlu0 15
      %6809 = vperm.xlu0 %6808, %v4571
      %v6810 = vpop.permute.xlu0 %6809
      %6812 = vset.pattern.permute.xlu0 15
      %6813 = vperm.xlu0 %6812, %v4574
      %v6814 = vpop.permute.xlu0 %6813
      %6816 = vset.pattern.permute.xlu0 15
      %6817 = vperm.xlu0 %6816, %v4579
      %v6818 = vpop.permute.xlu0 %6817
      %6820 = vset.pattern.permute.xlu0 15
      %6821 = vperm.xlu0 %6820, %v4582
      %v6822 = vpop.permute.xlu0 %6821
      %6824 = vset.pattern.permute.xlu0 15
      %6825 = vperm.xlu0 %6824, %v4587
      %v6826 = vpop.permute.xlu0 %6825
      %6828 = vset.pattern.permute.xlu0 15
      %6829 = vperm.xlu0 %6828, %v4590
      %v6830 = vpop.permute.xlu0 %6829
      %6832 = vset.pattern.permute.xlu0 15
      %6833 = vperm.xlu0 %6832, %v4595
      %v6834 = vpop.permute.xlu0 %6833
      %6836 = vset.pattern.permute.xlu0 15
      %6837 = vperm.xlu0 %6836, %v4598
      %v6838 = vpop.permute.xlu0 %6837
      %v6840 = vmul.f32 %v6810, %v6776
      %v6841 = vmul.f32 %v6810, %v6777
      %v6842 = vmul.f32 %v6810, %v6778
      %v6843 = vmul.f32 %v6810, %v6779
      %v6844 = vmul.f32 %v6814, %v6780
      %v6845 = vmul.f32 %v6814, %v6781
      %v6846 = vmul.f32 %v6814, %v6782
      %v6847 = vmul.f32 %v6814, %v6783
      %v6848 = vmul.f32 %v6818, %v6784
      %v6849 = vmul.f32 %v6818, %v6785
      %v6850 = vmul.f32 %v6818, %v6786
      %v6851 = vmul.f32 %v6818, %v6787
      %v6852 = vmul.f32 %v6822, %v6788
      %v6853 = vmul.f32 %v6822, %v6789
      %v6854 = vmul.f32 %v6822, %v6790
      %v6855 = vmul.f32 %v6822, %v6791
      %v6856 = vmul.f32 %v6826, %v6792
      %v6857 = vmul.f32 %v6826, %v6793
      %v6858 = vmul.f32 %v6826, %v6794
      %v6859 = vmul.f32 %v6826, %v6795
      %v6860 = vmul.f32 %v6830, %v6796
      %v6861 = vmul.f32 %v6830, %v6797
      %v6862 = vmul.f32 %v6830, %v6798
      %v6863 = vmul.f32 %v6830, %v6799
      %v6864 = vmul.f32 %v6834, %v6800
      %v6865 = vmul.f32 %v6834, %v6801
      %v6866 = vmul.f32 %v6834, %v6802
      %v6867 = vmul.f32 %v6834, %v6803
      %v6868 = vmul.f32 %v6838, %v6804
      %v6869 = vmul.f32 %v6838, %v6805
      %v6870 = vmul.f32 %v6838, %v6806
      %v6871 = vmul.f32 %v6838, %v6807
      %v6872 = vadd.f32 %v6727, %v6840
      %v6873 = vadd.f32 %v6728, %v6841
      %v6874 = vadd.f32 %v6729, %v6842
      %v6875 = vadd.f32 %v6730, %v6843
      %v6876 = vadd.f32 %v6731, %v6844
      %v6877 = vadd.f32 %v6732, %v6845
      %v6878 = vadd.f32 %v6733, %v6846
      %v6879 = vadd.f32 %v6734, %v6847
      %v6880 = vadd.f32 %v6735, %v6848
      %v6881 = vadd.f32 %v6736, %v6849
      %v6882 = vadd.f32 %v6737, %v6850
      %v6883 = vadd.f32 %v6738, %v6851
      %v6884 = vadd.f32 %v6739, %v6852
      %v6885 = vadd.f32 %v6740, %v6853
      %v6886 = vadd.f32 %v6741, %v6854
      %v6887 = vadd.f32 %v6742, %v6855
      %v6888 = vadd.f32 %v6743, %v6856
      %v6889 = vadd.f32 %v6744, %v6857
      %v6890 = vadd.f32 %v6745, %v6858
      %v6891 = vadd.f32 %v6746, %v6859
      %v6892 = vadd.f32 %v6747, %v6860
      %v6893 = vadd.f32 %v6748, %v6861
      %v6894 = vadd.f32 %v6749, %v6862
      %v6895 = vadd.f32 %v6750, %v6863
      %v6896 = vadd.f32 %v6751, %v6864
      %v6897 = vadd.f32 %v6752, %v6865
      %v6898 = vadd.f32 %v6753, %v6866
      %v6899 = vadd.f32 %v6754, %v6867
      %v6900 = vadd.f32 %v6755, %v6868
      %v6901 = vadd.f32 %v6756, %v6869
      %v6902 = vadd.f32 %v6757, %v6870
      %v6903 = vadd.f32 %v6758, %v6871
      %v6904 = vadd.f32 %v6872, %v6876
      %v6905 = vadd.f32 %v6904, %v6880
      %v6906 = vadd.f32 %v6905, %v6884
      %v6907 = vadd.f32 %v6906, %v6888
      %v6908 = vadd.f32 %v6907, %v6892
      %v6909 = vadd.f32 %v6908, %v6896
      %v6910 = vadd.f32 %v6909, %v6900
      %v6911 = vrot.slane %v6910, 4
      %v6912 = vadd.f32 %v6910, %v6911
      %v6913 = vrot.slane %v6912, 2
      %v6914 = vadd.f32 %v6912, %v6913
      %v6915 = vrot.slane %v6914, 1
      %v6916 = vadd.f32 %v6914, %v6915
      %v6917 = vadd.f32 %v6873, %v6877
      %v6918 = vadd.f32 %v6917, %v6881
      %v6919 = vadd.f32 %v6918, %v6885
      %v6920 = vadd.f32 %v6919, %v6889
      %v6921 = vadd.f32 %v6920, %v6893
      %v6922 = vadd.f32 %v6921, %v6897
      %v6923 = vadd.f32 %v6922, %v6901
      %v6924 = vrot.slane %v6923, 4
      %v6925 = vadd.f32 %v6923, %v6924
      %v6926 = vrot.slane %v6925, 2
      %v6927 = vadd.f32 %v6925, %v6926
      %v6928 = vrot.slane %v6927, 1
      %v6929 = vadd.f32 %v6927, %v6928
      %v6930 = vadd.f32 %v6874, %v6878
      %v6931 = vadd.f32 %v6930, %v6882
      %v6932 = vadd.f32 %v6931, %v6886
      %v6933 = vadd.f32 %v6932, %v6890
      %v6934 = vadd.f32 %v6933, %v6894
      %v6935 = vadd.f32 %v6934, %v6898
      %v6936 = vadd.f32 %v6935, %v6902
      %v6937 = vrot.slane %v6936, 4
      %v6938 = vadd.f32 %v6936, %v6937
      %v6939 = vrot.slane %v6938, 2
      %v6940 = vadd.f32 %v6938, %v6939
      %v6941 = vrot.slane %v6940, 1
      %v6942 = vadd.f32 %v6940, %v6941
      %v6943 = vadd.f32 %v6875, %v6879
      %v6944 = vadd.f32 %v6943, %v6883
      %v6945 = vadd.f32 %v6944, %v6887
      %v6946 = vadd.f32 %v6945, %v6891
      %v6947 = vadd.f32 %v6946, %v6895
      %v6948 = vadd.f32 %v6947, %v6899
      %v6949 = vadd.f32 %v6948, %v6903
      %v6950 = vrot.slane %v6949, 4
      %v6951 = vadd.f32 %v6949, %v6950
      %v6952 = vrot.slane %v6951, 2
      %v6953 = vadd.f32 %v6951, %v6952
      %v6954 = vrot.slane %v6953, 1
      %v6955 = vadd.f32 %v6953, %v6954
      %v6956 = vld [vmem:[%s11] sm:$0xf]
      %v6958 = vlaneseq
      %v6959 = vshrl.u32 %v6958, 7
      %v6960 = vsub.s32 0, %v6959
      %v6961 = vrot.slane %v6956, %v6960
      %v6962 = vlaneseq
      %v6963 = vshrl.u32 %v6962, 7
      %v6964 = vsub.s32 1, %v6963
      %v6965 = vrot.slane %v6956, %v6964
      %v6966 = vlaneseq
      %v6967 = vshrl.u32 %v6966, 7
      %v6968 = vsub.s32 2, %v6967
      %v6969 = vrot.slane %v6956, %v6968
      %v6970 = vlaneseq
      %v6971 = vshrl.u32 %v6970, 7
      %v6972 = vsub.s32 3, %v6971
      %v6973 = vrot.slane %v6956, %v6972
      %v6978 = vadd.f32 %v6916, %v6961
      %v6979 = vadd.f32 %v6929, %v6965
      %v6980 = vadd.f32 %v6942, %v6969
      %v6981 = vadd.f32 %v6955, %v6973
      %v6982 = vmax.f32 %v6978, 0.0
      %v6983 = vmax.f32 %v6979, 0.0
      %v6984 = vmax.f32 %v6980, 0.0
      %v6985 = vmax.f32 %v6981, 0.0
      %v6986 = vld [vmem:[%s12] sm:$0xff]
      %v6987 = vld [vmem:[%s12 + $0x8] sm:$0xff]
      %v6988 = vld [vmem:[%s12 + $0x10] sm:$0xff]
      %v6989 = vld [vmem:[%s12 + $0x18] sm:$0xff]
      %v6990 = vld [vmem:[%s12 + $0x20] sm:$0xff]
      %v6991 = vld [vmem:[%s12 + $0x28] sm:$0xff]
      %v6992 = vld [vmem:[%s12 + $0x30] sm:$0xff]
      %v6993 = vld [vmem:[%s12 + $0x38] sm:$0xff]
      %v6994 = vlaneseq
      %v6995 = vshrl.u32 %v6994, 7
      %v6996 = vsub.s32 0, %v6995
      %v6997 = vrot.slane %v6982, %v6996
      %v6998 = vlaneseq
      %v6999 = vshrl.u32 %v6998, 7
      %v7000 = vsub.s32 0, %v6999
      %v7001 = vrot.slane %v6983, %v7000
      %v7002 = vlaneseq
      %v7003 = vshrl.u32 %v7002, 7
      %v7004 = vsub.s32 0, %v7003
      %v7005 = vrot.slane %v6984, %v7004
      %v7006 = vlaneseq
      %v7007 = vshrl.u32 %v7006, 7
      %v7008 = vsub.s32 0, %v7007
      %v7009 = vrot.slane %v6985, %v7008
      %v7010 = vmul.f32 %v6986, %v6997
      %v7011 = vmul.f32 %v6987, %v7001
      %v7012 = vmul.f32 %v6988, %v7005
      %v7013 = vmul.f32 %v6989, %v7009
      %v7014 = vmul.f32 %v6990, %v6997
      %v7015 = vmul.f32 %v6991, %v7001
      %v7016 = vmul.f32 %v6992, %v7005
      %v7017 = vmul.f32 %v6993, %v7009
      %v7018 = vadd.f32 %v7010, %v7011
      %v7019 = vadd.f32 %v7018, %v7012
      %v7020 = vadd.f32 %v7019, %v7013
      %7021 = vadd.xlane.f32.xlu0 %v7020
      %v7022 = vpop.xlane.xlu0 %7021
      %v7023 = vadd.f32 %v7014, %v7015
      %v7024 = vadd.f32 %v7023, %v7016
      %v7025 = vadd.f32 %v7024, %v7017
      %7026 = vadd.xlane.f32.xlu0 %v7025
      %v7027 = vpop.xlane.xlu0 %7026
      %v7028 = vld [vmem:[%s13] sm:$0xff]
      %v7029 = vld [vmem:[%s13 + $0x8] sm:$0xff]
      %v7030 = vadd.f32 %v7022, %v7028
      %v7031 = vadd.f32 %v7027, %v7029
      %vm7032 = vcmask 7168
      %7033 = vst.msk [vmem:[%s538] sm:$0xff] %vm7032, %v7030
      %v7034 = vmul.f32 %v7031, 1.442695
      %v7035 = vpow.pop %v7034
      %7036 = vst.msk [vmem:[%s542] sm:$0xff] %vm7032, %v7035
      %p7037 = scmp.lt.s32.totalorder %s28, 1
      %s7038 = scalar_select %p7037, %s28, 1
      %s7039 = smul.addr %s7038, 8
      %s7040 = smul.addr %s7039, 8
      %s7041 = scalar_lea.vmem %s14, %s7040
      %p7042 = scmp.lt.s32.totalorder %s28, 1
      %s7043 = scalar_select %p7042, %s28, 1
      %s7044 = smul.addr %s7043, 8
      %s7045 = scalar_lea.vmem %s15, %s7044
      %p7046 = scmp.lt.s32.totalorder %s28, 1
      %s7047 = scalar_select %p7046, %s28, 1
      %s7048 = smul.addr %s7047, 8
      %s7049 = scalar_lea.vmem %s16, %s7048
      // Predicated region
      $region77: #{enc_vae_forward.1} parent=75 // pred_check
        %p7050 = pneg %p345
      $region78: #{enc_vae_forward.1} parent=75 // pred_check_branch
        %7052 = sbr.rel (%p7050) target = $region80
      $region79: #{enc_vae_forward.1} parent=75 // pred_region
        _
      $region80: #{enc_vae_forward.1} parent=75 // pred_fallthru
        _
      // Predicated region
      $region81: #{enc_vae_forward.1} parent=75 // pred_check
        %p7053 = pneg %p371
      $region82: #{enc_vae_forward.1} parent=75 // pred_check_branch
        %7055 = sbr.rel (%p7053) target = $region84
      $region83: #{enc_vae_forward.1} parent=75 // pred_region
        _
      $region84: #{enc_vae_forward.1} parent=75 // pred_fallthru
        _
      // Predicated region
      $region85: #{enc_vae_forward.1} parent=75 // pred_check
        %p7056 = pneg %p397
      $region86: #{enc_vae_forward.1} parent=75 // pred_check_branch
        %7058 = sbr.rel (%p7056) target = $region88
      $region87: #{enc_vae_forward.1} parent=75 // pred_region
        _
      $region88: #{enc_vae_forward.1} parent=75 // pred_fallthru
        _
    $region76: #{enc_vae_forward.1} parent=5 // pred_fallthru
      _
    %p7059 = scmp.le.s32.totalorder 2, %s23
    // Predicated region
    $region89: #{enc_vae_forward.1} parent=5 // pred_check
      %p7060 = pneg %p7059
    $region90: #{enc_vae_forward.1} parent=5 // pred_check_branch
      %7062 = sbr.rel (%p7060) target = $region92
    $region91: #{enc_vae_forward.1} parent=5 // pred_region
      %s7063 = ssub.s32 %s23, 2
      // Predicated region
      $region93: #{enc_vae_forward.1} parent=91 // pred_check
        %p7064 = pneg %p351
      $region94: #{enc_vae_forward.1} parent=91 // pred_check_branch
        %7066 = sbr.rel (%p7064) target = $region96
      $region95: #{enc_vae_forward.1} parent=91 // pred_region
        %p7067 = scmp.lt.s32.totalorder %s29, 1
        %s7068 = scalar_select %p7067, %s29, 1
        %s7069 = smul.addr %s7068, 8
        %s7070 = smul.addr %s7069, 8
        %s7071 = scalar_lea.vmem %s14, %s7070
      $region96: #{enc_vae_forward.1} parent=91 // pred_fallthru
        _
      // Predicated region
      $region97: #{enc_vae_forward.1} parent=91 // pred_check
        %p7072 = pneg %p377
      $region98: #{enc_vae_forward.1} parent=91 // pred_check_branch
        %7074 = sbr.rel (%p7072) target = $region100
      $region99: #{enc_vae_forward.1} parent=91 // pred_region
        %p7075 = scmp.lt.s32.totalorder %s29, 1
        %s7076 = scalar_select %p7075, %s29, 1
        %s7077 = smul.addr %s7076, 8
        %s7078 = scalar_lea.vmem %s15, %s7077
      $region100: #{enc_vae_forward.1} parent=91 // pred_fallthru
        _
      // Predicated region
      $region101: #{enc_vae_forward.1} parent=91 // pred_check
        %p7079 = pneg %p403
      $region102: #{enc_vae_forward.1} parent=91 // pred_check_branch
        %7081 = sbr.rel (%p7079) target = $region104
      $region103: #{enc_vae_forward.1} parent=91 // pred_region
        %p7082 = scmp.lt.s32.totalorder %s29, 1
        %s7083 = scalar_select %p7082, %s29, 1
        %s7084 = smul.addr %s7083, 8
        %s7085 = scalar_lea.vmem %s16, %s7084
      $region104: #{enc_vae_forward.1} parent=91 // pred_fallthru
        _
    $region92: #{enc_vae_forward.1} parent=5 // pred_fallthru
      _
  $region6: #{enc_vae_forward.1} parent=0 // loop_footer
    %s27 = sadd.s32 1, %s23
  $region7: #{enc_vae_forward.1} parent=0 // loop_footer_branch
    %22 = sbr.rel target = $region3
  $region8: #{enc_vae_forward.1} parent=0 // loop_exit
    _

</llo_original>
